<compile_context>
chip_gen: v7x
topology: tpu7x:2x2x1
jax: 0.10.0
libtpu: 0.0.40
codegen_flags: <defaults>
</compile_context>

<pallas_src>
import jax
import jax.numpy as jnp
from jax.experimental import pallas as pl
from jax.experimental.pallas import tpu as pltpu

# ----------------------------- model sizes -----------------------------
HIDDEN = 32                      # hidden_size
VOCAB = 64                       # output_size
MAX_LEN = 397                    # max_length (module default)
L_PAD = 512                      # attention axis padded to a lane-dense multiple of 128
OUT_PACK = L_PAD + 128           # packed output row: [attn_w(512) | logp(64) | h(32) | pad(32)]
BIAS_LANES = 896                 # packed bias row; every segment starts on a 128-lane boundary
GRU_B_OFF = L_PAD                # 512
OUT_B_OFF = L_PAD + 4 * HIDDEN   # 640
COMB_B_OFF = 768                 # 6 * 128
NEG_INF = -1e30                  # softmax mask for padded attention positions


# ----------------------------------- kernel -----------------------------------
def attn_decoder_kernel(
    tok_ref,          # SMEM (T,) int32 token ids (scalar prefetch)
    emb_ref,          # (V, H)        embedding table            (VMEM-resident)
    hid0_ref,         # (1, H)        initial hidden state
    enc_ref,          # (L_PAD, H)    encoder outputs, zero-padded rows >= MAX_LEN
    attn_we_ref,      # (H, L_PAD)    attn projection, embedded half
    attn_wh_ref,      # (H, L_PAD)    attn projection, hidden half
    comb_we_ref,      # (H, H)        atten_combine, embedded half
    comb_wa_ref,      # (H, H)        atten_combine, attn_applied half
    gru_wx_ref,       # (H, 4H)       GRU input weights,  cols [r | z | gi_n | 0]
    gru_wh_ref,       # (H, 4H)       GRU hidden weights, cols [r | z | 0 | gh_n]
    out_w_ref,        # (H, V)        output projection
    bias_ref,         # (1, BIAS_LANES) packed biases (128-aligned segments)
    out_ref,          # (T, OUT_PACK) packed outputs
    emb_scr,          # VMEM (T, H)       gathered embedding rows
    pre_attn_scr,     # VMEM (T, L_PAD)   emb @ W_attn_e + attn_b   (token-only part)
    pre_comb_scr,     # VMEM (T, H)       emb @ W_comb_e + comb_b   (token-only part)
    h_scr,            # VMEM (T, H)       per-step hidden states
):
    f32 = jnp.float32
    H, V, Lp = HIDDEN, VOCAB, L_PAD
    T = out_ref.shape[0]

    # Biases loaded once; live in vregs for the whole decode.
    attn_b = bias_ref[:, 0:Lp]                          # (1, 512), lanes >= MAX_LEN = -1e30
    gru_b = bias_ref[:, GRU_B_OFF:GRU_B_OFF + 4 * H]    # (1, 128)
    out_b = bias_ref[:, OUT_B_OFF:OUT_B_OFF + V]        # (1, 64)
    comb_b = bias_ref[:, COMB_B_OFF:COMB_B_OFF + H]     # (1, 32)

    # ---- token-dependent work hoisted out of the recurrence (batched over T) ----
    # embedding_dropout == identity (eval mode).
    for t in range(T):
        emb_scr[pl.ds(t, 1), :] = emb_ref[pl.ds(tok_ref[t], 1), :]
    emb_seq = emb_scr[...]                                                   # (T, H)
    pre_attn_scr[...] = (
        jnp.dot(emb_seq, attn_we_ref[...], preferred_element_type=f32) + attn_b)
    pre_comb_scr[...] = (
        jnp.dot(emb_seq, comb_we_ref[...], preferred_element_type=f32) + comb_b)

    # ---- recurrence: hidden state carried in vregs across a static-unrolled loop ----
    hid = hid0_ref[...]                                                      # (1, H)
    for t in range(T):
        # attn_weights = softmax(attn(cat(embedded, hidden)))
        logits = pre_attn_scr[pl.ds(t, 1), :] + jnp.dot(
            hid, attn_wh_ref[...], preferred_element_type=f32)              # (1, 512)
        m = jnp.max(logits, axis=1, keepdims=True)
        e = jnp.exp(logits - m)                                              # padded lanes -> 0
        attn_w = e / jnp.sum(e, axis=1, keepdims=True)                       # exact reciprocal
        out_ref[pl.ds(t, 1), pl.ds(0, Lp)] = attn_w                          # lane-dense store

        # attn_applied = attn_weights @ encoder_output   (padded rows are zero)
        attn_applied = jnp.dot(attn_w, enc_ref[...], preferred_element_type=f32)   # (1, H)

        # x = relu(atten_combine(cat(embedded, attn_applied)))
        x = jnp.maximum(
            pre_comb_scr[pl.ds(t, 1), :]
            + jnp.dot(attn_applied, comb_wa_ref[...], preferred_element_type=f32),
            0.0)

        # single-step GRU: two independent dots summed on the VPU (no lane concat)
        g = (jnp.dot(x, gru_wx_ref[...], preferred_element_type=f32)
             + jnp.dot(hid, gru_wh_ref[...], preferred_element_type=f32) + gru_b)   # (1, 4H)
        r = jax.nn.sigmoid(g[:, 0:H])
        z = jax.nn.sigmoid(g[:, H:2 * H])
        n = jnp.tanh(g[:, 2 * H:3 * H] + r * g[:, 3 * H:4 * H])
        hid = (1.0 - z) * n + z * hid                                        # (1, H)
        h_scr[pl.ds(t, 1), :] = hid

    # ---- deferred output head: one batched dot + batched log_softmax ----
    h_seq = h_scr[...]                                                       # (T, H)
    logits = jnp.dot(h_seq, out_w_ref[...], preferred_element_type=f32) + out_b
    m2 = jnp.max(logits, axis=1, keepdims=True)
    lse = m2 + jnp.log(jnp.sum(jnp.exp(logits - m2), axis=1, keepdims=True))
    logp = logits - lse                                                      # (T, V)
    pad = jnp.zeros((T, OUT_PACK - Lp - V - H), dtype=f32)
    out_ref[:, pl.ds(Lp, OUT_PACK - Lp)] = jnp.concatenate([logp, h_seq, pad], axis=1)


# ------------------------------ weight packing ----------------------------------
def _pack_params(params):
    """Pre-transpose / split / pad all weights into lane-aligned VMEM slabs."""
    H, V, L, Lp = HIDDEN, VOCAB, MAX_LEN, L_PAD
    p = {k: jnp.asarray(v, jnp.float32) for k, v in params.items()}

    # attn: nn.Linear(2H, L).  cat(emb, hid) @ W.T == emb @ Wt[:H] + hid @ Wt[H:]
    attn_wt = jnp.pad(p["attn_w"].T, ((0, 0), (0, Lp - L)))   # (2H, Lp), zero padded cols
    attn_we, attn_wh = attn_wt[:H], attn_wt[H:]

    # atten_combine: nn.Linear(2H, H)
    comb_wt = p["comb_w"].T                                    # (2H, H)
    comb_we, comb_wa = comb_wt[:H], comb_wt[H:]

    # GRU split into input / hidden slabs, cols [r | z | gi_n | gh_n]
    wih_t, whh_t = p["gru_w_ih"].T, p["gru_w_hh"].T            # (H, 3H)
    zH = jnp.zeros((H, H), jnp.float32)
    gru_wx = jnp.concatenate([wih_t[:, :2 * H], wih_t[:, 2 * H:], zH], axis=1)   # (H, 4H)
    gru_wh = jnp.concatenate([whh_t[:, :2 * H], zH, whh_t[:, 2 * H:]], axis=1)   # (H, 4H)

    b_ih, b_hh = p["gru_b_ih"], p["gru_b_hh"]
    gru_b = jnp.concatenate(
        [b_ih[:2 * H] + b_hh[:2 * H], b_ih[2 * H:], b_hh[2 * H:]])               # (4H,)

    out_wt = p["out_w"].T                                      # (H, V)

    attn_b_pad = jnp.full((Lp,), NEG_INF, jnp.float32).at[:L].set(p["attn_b"])
    bias = jnp.zeros((BIAS_LANES,), jnp.float32)
    bias = bias.at[0:Lp].set(attn_b_pad)
    bias = bias.at[GRU_B_OFF:GRU_B_OFF + 4 * H].set(gru_b)
    bias = bias.at[OUT_B_OFF:OUT_B_OFF + V].set(p["out_b"])
    bias = bias.at[COMB_B_OFF:COMB_B_OFF + H].set(p["comb_b"])

    return (p["embedding"], attn_we, attn_wh, comb_we, comb_wa,
            gru_wx, gru_wh, out_wt, bias.reshape(1, -1))


# ----------------------------------- wrappers -----------------------------------
def attn_decoder_forward_seq(tokens, hidden0, encoder_output, params):
    """Run T teacher-forced decoder steps in ONE pallas_call (single grid point).

    tokens: (T,) int32; hidden0: (1,1,H); encoder_output: (MAX_LEN, H).
    Returns (log_probs (T,V), hidden_per_step (T,H), attn_weights (T,MAX_LEN)).
    """
    H, V, L, Lp = HIDDEN, VOCAB, MAX_LEN, L_PAD
    T = int(tokens.shape[0])

    (emb_tbl, attn_we, attn_wh, comb_we, comb_wa,
     gru_wx, gru_wh, out_wt, bias) = _pack_params(params)

    tokens = jnp.clip(tokens.astype(jnp.int32), 0, V - 1)       # guard OOB vocab index
    hid0 = hidden0.reshape(1, H).astype(jnp.float32)
    enc = jnp.pad(encoder_output.astype(jnp.float32), ((0, Lp - L), (0, 0)))   # zero rows

    # every slab is the full array mapped to block (0,0): one DMA, VMEM-resident.
    resident = lambda shape: pl.BlockSpec(shape, lambda i, tok: (0, 0))

    packed = pl.pallas_call(
        attn_decoder_kernel,
        out_shape=jax.ShapeDtypeStruct((T, OUT_PACK), jnp.float32),
        grid_spec=pltpu.PrefetchScalarGridSpec(
            num_scalar_prefetch=1,            # token ids -> SMEM
            grid=(1,),                        # recurrence lives inside the kernel
            in_specs=[
                resident((VOCAB, H)),         # embedding table
                resident((1, H)),             # initial hidden
                resident((Lp, H)),            # encoder outputs (padded)
                resident((H, Lp)),            # attn W, embedded half
                resident((H, Lp)),            # attn W, hidden half
                resident((H, H)),             # combine W, embedded half
                resident((H, H)),             # combine W, attn_applied half
                resident((H, 4 * H)),         # GRU W_x
                resident((H, 4 * H)),         # GRU W_h
                resident((H, V)),             # output W
                resident((1, BIAS_LANES)),    # packed biases
            ],
            out_specs=pl.BlockSpec((T, OUT_PACK), lambda i, tok: (0, 0)),
            scratch_shapes=[
                pltpu.VMEM((T, H), jnp.float32),    # gathered embeddings
                pltpu.VMEM((T, Lp), jnp.float32),   # pre-computed attn rows
                pltpu.VMEM((T, H), jnp.float32),    # pre-computed combine rows
                pltpu.VMEM((T, H), jnp.float32),    # per-step hidden states
            ],
        ),
        compiler_params=pltpu.CompilerParams(dimension_semantics=("arbitrary",)),
    )(tokens, emb_tbl, hid0, enc, attn_we, attn_wh, comb_we, comb_wa,
      gru_wx, gru_wh, out_wt, bias)

    attn_w_seq = packed[:, 0:L]                  # drop padded attention lanes [L:Lp]
    logp_seq = packed[:, Lp:Lp + V]
    hidden_seq = packed[:, Lp + V:Lp + V + H]
    return logp_seq, hidden_seq, attn_w_seq


def attn_decoder_forward(token_idx, hidden, encoder_output, params):
    """Single decode step, matching the PyTorch module's forward signature."""
    logp, h_seq, attn_w = attn_decoder_forward_seq(
        jnp.reshape(token_idx, (-1,)), hidden, encoder_output, params)
    return logp[:1], h_seq[-1].reshape(1, 1, HIDDEN), attn_w[:1]


# -------------------------- pure-JAX reference (check) --------------------------
def reference_step(tok, hid, encoder_output, p):
    H = HIDDEN
    mm = lambda a, b: jnp.dot(a, b, precision=jax.lax.Precision.HIGHEST)
    emb = p["embedding"][tok][None, :]                                   # (1, H)
    attn_logits = mm(jnp.concatenate([emb, hid], 1), p["attn_w"].T) + p["attn_b"]
    attn_w = jax.nn.softmax(attn_logits, axis=1)
    attn_applied = mm(attn_w, encoder_output)                            # (1, H)
    x = jax.nn.relu(mm(jnp.concatenate([emb, attn_applied], 1), p["comb_w"].T) + p["comb_b"])
    gi = mm(x, p["gru_w_ih"].T) + p["gru_b_ih"]
    gh = mm(hid, p["gru_w_hh"].T) + p["gru_b_hh"]
    r = jax.nn.sigmoid(gi[:, :H] + gh[:, :H])
    z = jax.nn.sigmoid(gi[:, H:2 * H] + gh[:, H:2 * H])
    n = jnp.tanh(gi[:, 2 * H:] + r * gh[:, 2 * H:])
    h_new = (1.0 - z) * n + z * hid
    logits = mm(h_new, p["out_w"].T) + p["out_b"]
    return jax.nn.log_softmax(logits, axis=1), h_new, attn_w


def reference_seq(tokens, hidden0, encoder_output, p):
    hid = hidden0.reshape(1, HIDDEN)
    lps, hs, aws = [], [], []
    for t in range(tokens.shape[0]):
        lp, hid, aw = reference_step(int(tokens[t]), hid, encoder_output, p)
        lps.append(lp), hs.append(hid), aws.append(aw)
    return jnp.concatenate(lps, 0), jnp.concatenate(hs, 0), jnp.concatenate(aws, 0)


# ------------------------------------ main -------------------------------------
def make_params(key):
    H, V, L = HIDDEN, VOCAB, MAX_LEN
    ks = jax.random.split(key, 11)
    u = lambda k, shape, scale: jax.random.uniform(k, shape, jnp.float32, -scale, scale)
    s_h, s_2h = 1.0 / (H ** 0.5), 1.0 / ((2 * H) ** 0.5)
    return {
        "embedding": jax.random.normal(ks[0], (V, H), jnp.float32),
        "attn_w": u(ks[1], (L, 2 * H), s_2h), "attn_b": u(ks[2], (L,), s_2h),
        "comb_w": u(ks[3], (H, 2 * H), s_2h), "comb_b": u(ks[4], (H,), s_2h),
        "gru_w_ih": u(ks[5], (3 * H, H), s_h), "gru_w_hh": u(ks[6], (3 * H, H), s_h),
        "gru_b_ih": u(ks[7], (3 * H,), s_h), "gru_b_hh": u(ks[8], (3 * H,), s_h),
        "out_w": u(ks[9], (V, H), s_h), "out_b": u(ks[10], (V,), s_h),
    }


if __name__ == "__main__":
    key = jax.random.PRNGKey(0)
    k_param, k_hid, k_enc = jax.random.split(key, 3)

    params = make_params(k_param)
    tokens = jnp.array([3, 17, 42, 0, 63, 9, 51, 28], dtype=jnp.int32)   # T = 8 decode steps
    hidden0 = jax.random.normal(k_hid, (1, 1, HIDDEN), jnp.float32)
    encoder_output = jax.random.normal(k_enc, (MAX_LEN, HIDDEN), jnp.float32)

    # fused multi-step decode: weights + encoder outputs resident, recurrence in-kernel
    logp_seq, h_seq, attn_seq = jax.block_until_ready(
        attn_decoder_forward_seq(tokens, hidden0, encoder_output, params))

    ref_lp, ref_h, ref_aw = reference_seq(tokens, hidden0, encoder_output, params)
    assert logp_seq.shape == (tokens.shape[0], VOCAB)
    assert h_seq.shape == (tokens.shape[0], HIDDEN)
    assert attn_seq.shape == (tokens.shape[0], MAX_LEN)
    tol = dict(atol=5e-3, rtol=5e-3)
    assert jnp.allclose(logp_seq, ref_lp, **tol)
    assert jnp.allclose(h_seq, ref_h, **tol)
    assert jnp.allclose(attn_seq, ref_aw, **tol)

    # single-step API matching the PyTorch module forward
    lp1, h1, aw1 = jax.block_until_ready(
        attn_decoder_forward(tokens[:1], hidden0, encoder_output, params))
    r_lp1, r_h1, r_aw1 = reference_step(
        int(tokens[0]), hidden0.reshape(1, HIDDEN), encoder_output, params)
    assert lp1.shape == (1, VOCAB)
    assert h1.shape == (1, 1, HIDDEN)
    assert aw1.shape == (1, MAX_LEN)
    assert jnp.allclose(lp1, r_lp1, **tol)
    assert jnp.allclose(h1.reshape(1, HIDDEN), r_h1, **tol)
    assert jnp.allclose(aw1, r_aw1, **tol)

    print("KERNEL_OK")
</pallas_src>

<mosaic_0001>
module attributes {stable_mosaic.version = 11 : i64} {
  func.func @attn_decoder_kernel(%arg0: i32, %arg1: memref<8xi32, #tpu.memory_space<smem>>, %arg2: memref<64x32xf32, #tpu.memory_space<vmem>>, %arg3: memref<1x32xf32, #tpu.memory_space<vmem>>, %arg4: memref<512x32xf32, #tpu.memory_space<vmem>>, %arg5: memref<32x512xf32, #tpu.memory_space<vmem>>, %arg6: memref<32x512xf32, #tpu.memory_space<vmem>>, %arg7: memref<32x32xf32, #tpu.memory_space<vmem>>, %arg8: memref<32x32xf32, #tpu.memory_space<vmem>>, %arg9: memref<32x128xf32, #tpu.memory_space<vmem>>, %arg10: memref<32x128xf32, #tpu.memory_space<vmem>>, %arg11: memref<32x64xf32, #tpu.memory_space<vmem>>, %arg12: memref<1x896xf32, #tpu.memory_space<vmem>>, %arg13: memref<8x640xf32, #tpu.memory_space<vmem>>, %arg14: memref<8x32xf32, #tpu.memory_space<vmem>>, %arg15: memref<8x512xf32, #tpu.memory_space<vmem>>, %arg16: memref<8x32xf32, #tpu.memory_space<vmem>>, %arg17: memref<8x32xf32, #tpu.memory_space<vmem>>) attributes {dimension_semantics = [#tpu.dimension_semantics<arbitrary>], iteration_bounds = array<i64: 1>, scalar_prefetch = 1 : i64, scratch_operands = 4 : i64, tpu.core_type = #tpu.core_type<tc>, window_params = [{pipeline_mode = #tpu.pipeline_mode<synchronous>, transform_indices = @transform_0, window_bounds = array<i64: 64, 32>}, {pipeline_mode = #tpu.pipeline_mode<synchronous>, transform_indices = @transform_1, window_bounds = array<i64: 1, 32>}, {pipeline_mode = #tpu.pipeline_mode<synchronous>, transform_indices = @transform_2, window_bounds = array<i64: 512, 32>}, {pipeline_mode = #tpu.pipeline_mode<synchronous>, transform_indices = @transform_3, window_bounds = array<i64: 32, 512>}, {pipeline_mode = #tpu.pipeline_mode<synchronous>, transform_indices = @transform_4, window_bounds = array<i64: 32, 512>}, {pipeline_mode = #tpu.pipeline_mode<synchronous>, transform_indices = @transform_5, window_bounds = array<i64: 32, 32>}, {pipeline_mode = #tpu.pipeline_mode<synchronous>, transform_indices = @transform_6, window_bounds = array<i64: 32, 32>}, {pipeline_mode = #tpu.pipeline_mode<synchronous>, transform_indices = @transform_7, window_bounds = array<i64: 32, 128>}, {pipeline_mode = #tpu.pipeline_mode<synchronous>, transform_indices = @transform_8, window_bounds = array<i64: 32, 128>}, {pipeline_mode = #tpu.pipeline_mode<synchronous>, transform_indices = @transform_9, window_bounds = array<i64: 32, 64>}, {pipeline_mode = #tpu.pipeline_mode<synchronous>, transform_indices = @transform_10, window_bounds = array<i64: 1, 896>}, {pipeline_mode = #tpu.pipeline_mode<synchronous>, transform_indices = @transform_11, window_bounds = array<i64: 8, 640>}]} {
    %c0 = arith.constant 0 : index
    %c0_0 = arith.constant 0 : index
    %0 = vector.load %arg12[%c0, %c0_0] : memref<1x896xf32, #tpu.memory_space<vmem>>, vector<1x512xf32>
    %c0_1 = arith.constant 0 : index
    %c512 = arith.constant 512 : index
    %1 = vector.load %arg12[%c0_1, %c512] : memref<1x896xf32, #tpu.memory_space<vmem>>, vector<1x128xf32>
    %c0_2 = arith.constant 0 : index
    %c640 = arith.constant 640 : index
    %2 = vector.load %arg12[%c0_2, %c640] : memref<1x896xf32, #tpu.memory_space<vmem>>, vector<1x64xf32>
    %c0_3 = arith.constant 0 : index
    %c768 = arith.constant 768 : index
    %3 = vector.load %arg12[%c0_3, %c768] : memref<1x896xf32, #tpu.memory_space<vmem>>, vector<1x32xf32>
    %c0_4 = arith.constant 0 : index
    %4 = memref.load %arg1[%c0_4] : memref<8xi32, #tpu.memory_space<smem>>
    %5 = arith.index_cast %4 : i32 to index
    %c0_5 = arith.constant 0 : index
    %6 = vector.load %arg2[%5, %c0_5] : memref<64x32xf32, #tpu.memory_space<vmem>>, vector<1x32xf32>
    %c0_6 = arith.constant 0 : index
    %c0_7 = arith.constant 0 : index
    %7 = vector.load %arg14[%c0_6, %c0_7] : memref<8x32xf32, #tpu.memory_space<vmem>>, vector<1x32xf32>
    tpu.vector_store %arg14[%c0_6, %c0_7], %6 {strides = array<i32>} : memref<8x32xf32, #tpu.memory_space<vmem>>, vector<1x32xf32>,
    %c1 = arith.constant 1 : index
    %8 = memref.load %arg1[%c1] : memref<8xi32, #tpu.memory_space<smem>>
    %9 = arith.index_cast %8 : i32 to index
    %c0_8 = arith.constant 0 : index
    %10 = vector.load %arg2[%9, %c0_8] : memref<64x32xf32, #tpu.memory_space<vmem>>, vector<1x32xf32>
    %c1_9 = arith.constant 1 : index
    %c0_10 = arith.constant 0 : index
    %11 = vector.load %arg14[%c1_9, %c0_10] : memref<8x32xf32, #tpu.memory_space<vmem>>, vector<1x32xf32>
    tpu.vector_store %arg14[%c1_9, %c0_10], %10 {strides = array<i32>} : memref<8x32xf32, #tpu.memory_space<vmem>>, vector<1x32xf32>,
    %c2 = arith.constant 2 : index
    %12 = memref.load %arg1[%c2] : memref<8xi32, #tpu.memory_space<smem>>
    %13 = arith.index_cast %12 : i32 to index
    %c0_11 = arith.constant 0 : index
    %14 = vector.load %arg2[%13, %c0_11] : memref<64x32xf32, #tpu.memory_space<vmem>>, vector<1x32xf32>
    %c2_12 = arith.constant 2 : index
    %c0_13 = arith.constant 0 : index
    %15 = vector.load %arg14[%c2_12, %c0_13] : memref<8x32xf32, #tpu.memory_space<vmem>>, vector<1x32xf32>
    tpu.vector_store %arg14[%c2_12, %c0_13], %14 {strides = array<i32>} : memref<8x32xf32, #tpu.memory_space<vmem>>, vector<1x32xf32>,
    %c3 = arith.constant 3 : index
    %16 = memref.load %arg1[%c3] : memref<8xi32, #tpu.memory_space<smem>>
    %17 = arith.index_cast %16 : i32 to index
    %c0_14 = arith.constant 0 : index
    %18 = vector.load %arg2[%17, %c0_14] : memref<64x32xf32, #tpu.memory_space<vmem>>, vector<1x32xf32>
    %c3_15 = arith.constant 3 : index
    %c0_16 = arith.constant 0 : index
    %19 = vector.load %arg14[%c3_15, %c0_16] : memref<8x32xf32, #tpu.memory_space<vmem>>, vector<1x32xf32>
    tpu.vector_store %arg14[%c3_15, %c0_16], %18 {strides = array<i32>} : memref<8x32xf32, #tpu.memory_space<vmem>>, vector<1x32xf32>,
    %c4 = arith.constant 4 : index
    %20 = memref.load %arg1[%c4] : memref<8xi32, #tpu.memory_space<smem>>
    %21 = arith.index_cast %20 : i32 to index
    %c0_17 = arith.constant 0 : index
    %22 = vector.load %arg2[%21, %c0_17] : memref<64x32xf32, #tpu.memory_space<vmem>>, vector<1x32xf32>
    %c4_18 = arith.constant 4 : index
    %c0_19 = arith.constant 0 : index
    %23 = vector.load %arg14[%c4_18, %c0_19] : memref<8x32xf32, #tpu.memory_space<vmem>>, vector<1x32xf32>
    tpu.vector_store %arg14[%c4_18, %c0_19], %22 {strides = array<i32>} : memref<8x32xf32, #tpu.memory_space<vmem>>, vector<1x32xf32>,
    %c5 = arith.constant 5 : index
    %24 = memref.load %arg1[%c5] : memref<8xi32, #tpu.memory_space<smem>>
    %25 = arith.index_cast %24 : i32 to index
    %c0_20 = arith.constant 0 : index
    %26 = vector.load %arg2[%25, %c0_20] : memref<64x32xf32, #tpu.memory_space<vmem>>, vector<1x32xf32>
    %c5_21 = arith.constant 5 : index
    %c0_22 = arith.constant 0 : index
    %27 = vector.load %arg14[%c5_21, %c0_22] : memref<8x32xf32, #tpu.memory_space<vmem>>, vector<1x32xf32>
    tpu.vector_store %arg14[%c5_21, %c0_22], %26 {strides = array<i32>} : memref<8x32xf32, #tpu.memory_space<vmem>>, vector<1x32xf32>,
    %c6 = arith.constant 6 : index
    %28 = memref.load %arg1[%c6] : memref<8xi32, #tpu.memory_space<smem>>
    %29 = arith.index_cast %28 : i32 to index
    %c0_23 = arith.constant 0 : index
    %30 = vector.load %arg2[%29, %c0_23] : memref<64x32xf32, #tpu.memory_space<vmem>>, vector<1x32xf32>
    %c6_24 = arith.constant 6 : index
    %c0_25 = arith.constant 0 : index
    %31 = vector.load %arg14[%c6_24, %c0_25] : memref<8x32xf32, #tpu.memory_space<vmem>>, vector<1x32xf32>
    tpu.vector_store %arg14[%c6_24, %c0_25], %30 {strides = array<i32>} : memref<8x32xf32, #tpu.memory_space<vmem>>, vector<1x32xf32>,
    %c7 = arith.constant 7 : index
    %32 = memref.load %arg1[%c7] : memref<8xi32, #tpu.memory_space<smem>>
    %33 = arith.index_cast %32 : i32 to index
    %c0_26 = arith.constant 0 : index
    %34 = vector.load %arg2[%33, %c0_26] : memref<64x32xf32, #tpu.memory_space<vmem>>, vector<1x32xf32>
    %c7_27 = arith.constant 7 : index
    %c0_28 = arith.constant 0 : index
    %35 = vector.load %arg14[%c7_27, %c0_28] : memref<8x32xf32, #tpu.memory_space<vmem>>, vector<1x32xf32>
    tpu.vector_store %arg14[%c7_27, %c0_28], %34 {strides = array<i32>} : memref<8x32xf32, #tpu.memory_space<vmem>>, vector<1x32xf32>,
    %c0_29 = arith.constant 0 : index
    %c0_30 = arith.constant 0 : index
    %36 = vector.load %arg14[%c0_29, %c0_30] : memref<8x32xf32, #tpu.memory_space<vmem>>, vector<8x32xf32>
    %c0_31 = arith.constant 0 : index
    %c0_32 = arith.constant 0 : index
    %37 = vector.load %arg5[%c0_31, %c0_32] : memref<32x512xf32, #tpu.memory_space<vmem>>, vector<32x512xf32>
    %cst = arith.constant dense<0.000000e+00> : vector<8x512xf32>
    %38 = tpu.matmul %36, %37, %cst {dimension_numbers = #tpu.dot_dimension_numbers<[1], [0], [0], [1], [0, 0, 1, 1], [], []>} : vector<8x32xf32>, vector<32x512xf32>, vector<8x512xf32> -> vector<8x512xf32>
    %39 = vector.broadcast %0 : vector<1x512xf32> to vector<8x512xf32>
    %40 = arith.addf %38, %39 : vector<8x512xf32>
    %c0_33 = arith.constant 0 : index
    %c0_34 = arith.constant 0 : index
    %41 = vector.load %arg15[%c0_33, %c0_34] : memref<8x512xf32, #tpu.memory_space<vmem>>, vector<8x512xf32>
    tpu.vector_store %arg15[%c0_33, %c0_34], %40 {strides = array<i32>} : memref<8x512xf32, #tpu.memory_space<vmem>>, vector<8x512xf32>,
    %c0_35 = arith.constant 0 : index
    %c0_36 = arith.constant 0 : index
    %42 = vector.load %arg7[%c0_35, %c0_36] : memref<32x32xf32, #tpu.memory_space<vmem>>, vector<32x32xf32>
    %cst_37 = arith.constant dense<0.000000e+00> : vector<8x32xf32>
    %43 = tpu.matmul %36, %42, %cst_37 {dimension_numbers = #tpu.dot_dimension_numbers<[1], [0], [0], [1], [0, 0, 1, 1], [], []>} : vector<8x32xf32>, vector<32x32xf32>, vector<8x32xf32> -> vector<8x32xf32>
    %44 = vector.broadcast %3 : vector<1x32xf32> to vector<8x32xf32>
    %45 = arith.addf %43, %44 : vector<8x32xf32>
    %c0_38 = arith.constant 0 : index
    %c0_39 = arith.constant 0 : index
    %46 = vector.load %arg16[%c0_38, %c0_39] : memref<8x32xf32, #tpu.memory_space<vmem>>, vector<8x32xf32>
    tpu.vector_store %arg16[%c0_38, %c0_39], %45 {strides = array<i32>} : memref<8x32xf32, #tpu.memory_space<vmem>>, vector<8x32xf32>,
    %c0_40 = arith.constant 0 : index
    %c0_41 = arith.constant 0 : index
    %47 = vector.load %arg3[%c0_40, %c0_41] : memref<1x32xf32, #tpu.memory_space<vmem>>, vector<1x32xf32>
    %c0_42 = arith.constant 0 : index
    %c0_43 = arith.constant 0 : index
    %48 = vector.load %arg15[%c0_42, %c0_43] : memref<8x512xf32, #tpu.memory_space<vmem>>, vector<1x512xf32>
    %c0_44 = arith.constant 0 : index
    %c0_45 = arith.constant 0 : index
    %49 = vector.load %arg6[%c0_44, %c0_45] : memref<32x512xf32, #tpu.memory_space<vmem>>, vector<32x512xf32>
    %cst_46 = arith.constant dense<0.000000e+00> : vector<1x512xf32>
    %50 = tpu.matmul %47, %49, %cst_46 {dimension_numbers = #tpu.dot_dimension_numbers<[1], [0], [0], [1], [0, 0, 1, 1], [], []>} : vector<1x32xf32>, vector<32x512xf32>, vector<1x512xf32> -> vector<1x512xf32>
    %51 = arith.addf %48, %50 : vector<1x512xf32>
    %cst_47 = arith.constant dense<0xFF800000> : vector<1xf32>
    %52 = vector.multi_reduction <maximumf>, %51, %cst_47 [1] : vector<1x512xf32> to vector<1xf32>
    %53 = vector.shape_cast %52 : vector<1xf32> to vector<1x1xf32>
    %54 = vector.broadcast %53 : vector<1x1xf32> to vector<1x512xf32>
    %55 = arith.subf %51, %54 : vector<1x512xf32>
    %56 = math.exp %55 : vector<1x512xf32>
    %cst_48 = arith.constant dense<0.000000e+00> : vector<1xf32>
    %57 = vector.multi_reduction <add>, %56, %cst_48 [1] : vector<1x512xf32> to vector<1xf32>
    %58 = vector.shape_cast %57 : vector<1xf32> to vector<1x1xf32>
    %59 = vector.broadcast %58 : vector<1x1xf32> to vector<1x512xf32>
    %60 = arith.divf %56, %59 : vector<1x512xf32>
    %c0_49 = arith.constant 0 : index
    %c0_50 = arith.constant 0 : index
    %61 = vector.load %arg13[%c0_49, %c0_50] : memref<8x640xf32, #tpu.memory_space<vmem>>, vector<1x512xf32>
    tpu.vector_store %arg13[%c0_49, %c0_50], %60 {strides = array<i32>} : memref<8x640xf32, #tpu.memory_space<vmem>>, vector<1x512xf32>,
    %c0_51 = arith.constant 0 : index
    %c0_52 = arith.constant 0 : index
    %62 = vector.load %arg4[%c0_51, %c0_52] : memref<512x32xf32, #tpu.memory_space<vmem>>, vector<512x32xf32>
    %cst_53 = arith.constant dense<0.000000e+00> : vector<1x32xf32>
    %63 = tpu.matmul %60, %62, %cst_53 {dimension_numbers = #tpu.dot_dimension_numbers<[1], [0], [0], [1], [0, 0, 1, 1], [], []>} : vector<1x512xf32>, vector<512x32xf32>, vector<1x32xf32> -> vector<1x32xf32>
    %c0_54 = arith.constant 0 : index
    %c0_55 = arith.constant 0 : index
    %64 = vector.load %arg16[%c0_54, %c0_55] : memref<8x32xf32, #tpu.memory_space<vmem>>, vector<1x32xf32>
    %c0_56 = arith.constant 0 : index
    %c0_57 = arith.constant 0 : index
    %65 = vector.load %arg8[%c0_56, %c0_57] : memref<32x32xf32, #tpu.memory_space<vmem>>, vector<32x32xf32>
    %cst_58 = arith.constant dense<0.000000e+00> : vector<1x32xf32>
    %66 = tpu.matmul %63, %65, %cst_58 {dimension_numbers = #tpu.dot_dimension_numbers<[1], [0], [0], [1], [0, 0, 1, 1], [], []>} : vector<1x32xf32>, vector<32x32xf32>, vector<1x32xf32> -> vector<1x32xf32>
    %67 = arith.addf %64, %66 : vector<1x32xf32>
    %cst_59 = arith.constant 0.000000e+00 : f32
    %68 = vector.broadcast %cst_59 : f32 to vector<1x32xf32>
    %69 = arith.maximumf %67, %68 : vector<1x32xf32>
    %c0_60 = arith.constant 0 : index
    %c0_61 = arith.constant 0 : index
    %70 = vector.load %arg9[%c0_60, %c0_61] : memref<32x128xf32, #tpu.memory_space<vmem>>, vector<32x128xf32>
    %cst_62 = arith.constant dense<0.000000e+00> : vector<1x128xf32>
    %71 = tpu.matmul %69, %70, %cst_62 {dimension_numbers = #tpu.dot_dimension_numbers<[1], [0], [0], [1], [0, 0, 1, 1], [], []>} : vector<1x32xf32>, vector<32x128xf32>, vector<1x128xf32> -> vector<1x128xf32>
    %c0_63 = arith.constant 0 : index
    %c0_64 = arith.constant 0 : index
    %72 = vector.load %arg10[%c0_63, %c0_64] : memref<32x128xf32, #tpu.memory_space<vmem>>, vector<32x128xf32>
    %cst_65 = arith.constant dense<0.000000e+00> : vector<1x128xf32>
    %73 = tpu.matmul %47, %72, %cst_65 {dimension_numbers = #tpu.dot_dimension_numbers<[1], [0], [0], [1], [0, 0, 1, 1], [], []>} : vector<1x32xf32>, vector<32x128xf32>, vector<1x128xf32> -> vector<1x128xf32>
    %74 = arith.addf %71, %73 : vector<1x128xf32>
    %75 = arith.addf %74, %1 : vector<1x128xf32>
    %76 = vector.extract_strided_slice %75 {offsets = [0, 0], sizes = [1, 32], strides = [1, 1]} : vector<1x128xf32> to vector<1x32xf32>
    %77 = arith.negf %76 : vector<1x32xf32>
    %78 = math.exp %77 : vector<1x32xf32>
    %cst_66 = arith.constant 1.000000e+00 : f32
    %79 = vector.broadcast %cst_66 : f32 to vector<1x32xf32>
    %80 = arith.addf %79, %78 : vector<1x32xf32>
    %81 = arith.divf %79, %80 : vector<1x32xf32>
    %82 = vector.extract_strided_slice %75 {offsets = [0, 32], sizes = [1, 32], strides = [1, 1]} : vector<1x128xf32> to vector<1x32xf32>
    %83 = arith.negf %82 : vector<1x32xf32>
    %84 = math.exp %83 : vector<1x32xf32>
    %cst_67 = arith.constant 1.000000e+00 : f32
    %85 = vector.broadcast %cst_67 : f32 to vector<1x32xf32>
    %86 = arith.addf %85, %84 : vector<1x32xf32>
    %87 = arith.divf %85, %86 : vector<1x32xf32>
    %88 = vector.extract_strided_slice %75 {offsets = [0, 64], sizes = [1, 32], strides = [1, 1]} : vector<1x128xf32> to vector<1x32xf32>
    %89 = vector.extract_strided_slice %75 {offsets = [0, 96], sizes = [1, 32], strides = [1, 1]} : vector<1x128xf32> to vector<1x32xf32>
    %90 = arith.mulf %81, %89 : vector<1x32xf32>
    %91 = arith.addf %88, %90 : vector<1x32xf32>
    %92 = math.tanh %91 : vector<1x32xf32>
    %cst_68 = arith.constant 1.000000e+00 : f32
    %93 = vector.broadcast %cst_68 : f32 to vector<1x32xf32>
    %94 = arith.subf %93, %87 : vector<1x32xf32>
    %95 = arith.mulf %94, %92 : vector<1x32xf32>
    %96 = arith.mulf %87, %47 : vector<1x32xf32>
    %97 = arith.addf %95, %96 : vector<1x32xf32>
    %c0_69 = arith.constant 0 : index
    %c0_70 = arith.constant 0 : index
    %98 = vector.load %arg17[%c0_69, %c0_70] : memref<8x32xf32, #tpu.memory_space<vmem>>, vector<1x32xf32>
    tpu.vector_store %arg17[%c0_69, %c0_70], %97 {strides = array<i32>} : memref<8x32xf32, #tpu.memory_space<vmem>>, vector<1x32xf32>,
    %c1_71 = arith.constant 1 : index
    %c0_72 = arith.constant 0 : index
    %99 = vector.load %arg15[%c1_71, %c0_72] : memref<8x512xf32, #tpu.memory_space<vmem>>, vector<1x512xf32>
    %c0_73 = arith.constant 0 : index
    %c0_74 = arith.constant 0 : index
    %100 = vector.load %arg6[%c0_73, %c0_74] : memref<32x512xf32, #tpu.memory_space<vmem>>, vector<32x512xf32>
    %cst_75 = arith.constant dense<0.000000e+00> : vector<1x512xf32>
    %101 = tpu.matmul %97, %100, %cst_75 {dimension_numbers = #tpu.dot_dimension_numbers<[1], [0], [0], [1], [0, 0, 1, 1], [], []>} : vector<1x32xf32>, vector<32x512xf32>, vector<1x512xf32> -> vector<1x512xf32>
    %102 = arith.addf %99, %101 : vector<1x512xf32>
    %cst_76 = arith.constant dense<0xFF800000> : vector<1xf32>
    %103 = vector.multi_reduction <maximumf>, %102, %cst_76 [1] : vector<1x512xf32> to vector<1xf32>
    %104 = vector.shape_cast %103 : vector<1xf32> to vector<1x1xf32>
    %105 = vector.broadcast %104 : vector<1x1xf32> to vector<1x512xf32>
    %106 = arith.subf %102, %105 : vector<1x512xf32>
    %107 = math.exp %106 : vector<1x512xf32>
    %cst_77 = arith.constant dense<0.000000e+00> : vector<1xf32>
    %108 = vector.multi_reduction <add>, %107, %cst_77 [1] : vector<1x512xf32> to vector<1xf32>
    %109 = vector.shape_cast %108 : vector<1xf32> to vector<1x1xf32>
    %110 = vector.broadcast %109 : vector<1x1xf32> to vector<1x512xf32>
    %111 = arith.divf %107, %110 : vector<1x512xf32>
    %c1_78 = arith.constant 1 : index
    %c0_79 = arith.constant 0 : index
    %112 = vector.load %arg13[%c1_78, %c0_79] : memref<8x640xf32, #tpu.memory_space<vmem>>, vector<1x512xf32>
    tpu.vector_store %arg13[%c1_78, %c0_79], %111 {strides = array<i32>} : memref<8x640xf32, #tpu.memory_space<vmem>>, vector<1x512xf32>,
    %c0_80 = arith.constant 0 : index
    %c0_81 = arith.constant 0 : index
    %113 = vector.load %arg4[%c0_80, %c0_81] : memref<512x32xf32, #tpu.memory_space<vmem>>, vector<512x32xf32>
    %cst_82 = arith.constant dense<0.000000e+00> : vector<1x32xf32>
    %114 = tpu.matmul %111, %113, %cst_82 {dimension_numbers = #tpu.dot_dimension_numbers<[1], [0], [0], [1], [0, 0, 1, 1], [], []>} : vector<1x512xf32>, vector<512x32xf32>, vector<1x32xf32> -> vector<1x32xf32>
    %c1_83 = arith.constant 1 : index
    %c0_84 = arith.constant 0 : index
    %115 = vector.load %arg16[%c1_83, %c0_84] : memref<8x32xf32, #tpu.memory_space<vmem>>, vector<1x32xf32>
    %c0_85 = arith.constant 0 : index
    %c0_86 = arith.constant 0 : index
    %116 = vector.load %arg8[%c0_85, %c0_86] : memref<32x32xf32, #tpu.memory_space<vmem>>, vector<32x32xf32>
    %cst_87 = arith.constant dense<0.000000e+00> : vector<1x32xf32>
    %117 = tpu.matmul %114, %116, %cst_87 {dimension_numbers = #tpu.dot_dimension_numbers<[1], [0], [0], [1], [0, 0, 1, 1], [], []>} : vector<1x32xf32>, vector<32x32xf32>, vector<1x32xf32> -> vector<1x32xf32>
    %118 = arith.addf %115, %117 : vector<1x32xf32>
    %cst_88 = arith.constant 0.000000e+00 : f32
    %119 = vector.broadcast %cst_88 : f32 to vector<1x32xf32>
    %120 = arith.maximumf %118, %119 : vector<1x32xf32>
    %c0_89 = arith.constant 0 : index
    %c0_90 = arith.constant 0 : index
    %121 = vector.load %arg9[%c0_89, %c0_90] : memref<32x128xf32, #tpu.memory_space<vmem>>, vector<32x128xf32>
    %cst_91 = arith.constant dense<0.000000e+00> : vector<1x128xf32>
    %122 = tpu.matmul %120, %121, %cst_91 {dimension_numbers = #tpu.dot_dimension_numbers<[1], [0], [0], [1], [0, 0, 1, 1], [], []>} : vector<1x32xf32>, vector<32x128xf32>, vector<1x128xf32> -> vector<1x128xf32>
    %c0_92 = arith.constant 0 : index
    %c0_93 = arith.constant 0 : index
    %123 = vector.load %arg10[%c0_92, %c0_93] : memref<32x128xf32, #tpu.memory_space<vmem>>, vector<32x128xf32>
    %cst_94 = arith.constant dense<0.000000e+00> : vector<1x128xf32>
    %124 = tpu.matmul %97, %123, %cst_94 {dimension_numbers = #tpu.dot_dimension_numbers<[1], [0], [0], [1], [0, 0, 1, 1], [], []>} : vector<1x32xf32>, vector<32x128xf32>, vector<1x128xf32> -> vector<1x128xf32>
    %125 = arith.addf %122, %124 : vector<1x128xf32>
    %126 = arith.addf %125, %1 : vector<1x128xf32>
    %127 = vector.extract_strided_slice %126 {offsets = [0, 0], sizes = [1, 32], strides = [1, 1]} : vector<1x128xf32> to vector<1x32xf32>
    %128 = arith.negf %127 : vector<1x32xf32>
    %129 = math.exp %128 : vector<1x32xf32>
    %cst_95 = arith.constant 1.000000e+00 : f32
    %130 = vector.broadcast %cst_95 : f32 to vector<1x32xf32>
    %131 = arith.addf %130, %129 : vector<1x32xf32>
    %132 = arith.divf %130, %131 : vector<1x32xf32>
    %133 = vector.extract_strided_slice %126 {offsets = [0, 32], sizes = [1, 32], strides = [1, 1]} : vector<1x128xf32> to vector<1x32xf32>
    %134 = arith.negf %133 : vector<1x32xf32>
    %135 = math.exp %134 : vector<1x32xf32>
    %cst_96 = arith.constant 1.000000e+00 : f32
    %136 = vector.broadcast %cst_96 : f32 to vector<1x32xf32>
    %137 = arith.addf %136, %135 : vector<1x32xf32>
    %138 = arith.divf %136, %137 : vector<1x32xf32>
    %139 = vector.extract_strided_slice %126 {offsets = [0, 64], sizes = [1, 32], strides = [1, 1]} : vector<1x128xf32> to vector<1x32xf32>
    %140 = vector.extract_strided_slice %126 {offsets = [0, 96], sizes = [1, 32], strides = [1, 1]} : vector<1x128xf32> to vector<1x32xf32>
    %141 = arith.mulf %132, %140 : vector<1x32xf32>
    %142 = arith.addf %139, %141 : vector<1x32xf32>
    %143 = math.tanh %142 : vector<1x32xf32>
    %cst_97 = arith.constant 1.000000e+00 : f32
    %144 = vector.broadcast %cst_97 : f32 to vector<1x32xf32>
    %145 = arith.subf %144, %138 : vector<1x32xf32>
    %146 = arith.mulf %145, %143 : vector<1x32xf32>
    %147 = arith.mulf %138, %97 : vector<1x32xf32>
    %148 = arith.addf %146, %147 : vector<1x32xf32>
    %c1_98 = arith.constant 1 : index
    %c0_99 = arith.constant 0 : index
    %149 = vector.load %arg17[%c1_98, %c0_99] : memref<8x32xf32, #tpu.memory_space<vmem>>, vector<1x32xf32>
    tpu.vector_store %arg17[%c1_98, %c0_99], %148 {strides = array<i32>} : memref<8x32xf32, #tpu.memory_space<vmem>>, vector<1x32xf32>,
    %c2_100 = arith.constant 2 : index
    %c0_101 = arith.constant 0 : index
    %150 = vector.load %arg15[%c2_100, %c0_101] : memref<8x512xf32, #tpu.memory_space<vmem>>, vector<1x512xf32>
    %c0_102 = arith.constant 0 : index
    %c0_103 = arith.constant 0 : index
    %151 = vector.load %arg6[%c0_102, %c0_103] : memref<32x512xf32, #tpu.memory_space<vmem>>, vector<32x512xf32>
    %cst_104 = arith.constant dense<0.000000e+00> : vector<1x512xf32>
    %152 = tpu.matmul %148, %151, %cst_104 {dimension_numbers = #tpu.dot_dimension_numbers<[1], [0], [0], [1], [0, 0, 1, 1], [], []>} : vector<1x32xf32>, vector<32x512xf32>, vector<1x512xf32> -> vector<1x512xf32>
    %153 = arith.addf %150, %152 : vector<1x512xf32>
    %cst_105 = arith.constant dense<0xFF800000> : vector<1xf32>
    %154 = vector.multi_reduction <maximumf>, %153, %cst_105 [1] : vector<1x512xf32> to vector<1xf32>
    %155 = vector.shape_cast %154 : vector<1xf32> to vector<1x1xf32>
    %156 = vector.broadcast %155 : vector<1x1xf32> to vector<1x512xf32>
    %157 = arith.subf %153, %156 : vector<1x512xf32>
    %158 = math.exp %157 : vector<1x512xf32>
    %cst_106 = arith.constant dense<0.000000e+00> : vector<1xf32>
    %159 = vector.multi_reduction <add>, %158, %cst_106 [1] : vector<1x512xf32> to vector<1xf32>
    %160 = vector.shape_cast %159 : vector<1xf32> to vector<1x1xf32>
    %161 = vector.broadcast %160 : vector<1x1xf32> to vector<1x512xf32>
    %162 = arith.divf %158, %161 : vector<1x512xf32>
    %c2_107 = arith.constant 2 : index
    %c0_108 = arith.constant 0 : index
    %163 = vector.load %arg13[%c2_107, %c0_108] : memref<8x640xf32, #tpu.memory_space<vmem>>, vector<1x512xf32>
    tpu.vector_store %arg13[%c2_107, %c0_108], %162 {strides = array<i32>} : memref<8x640xf32, #tpu.memory_space<vmem>>, vector<1x512xf32>,
    %c0_109 = arith.constant 0 : index
    %c0_110 = arith.constant 0 : index
    %164 = vector.load %arg4[%c0_109, %c0_110] : memref<512x32xf32, #tpu.memory_space<vmem>>, vector<512x32xf32>
    %cst_111 = arith.constant dense<0.000000e+00> : vector<1x32xf32>
    %165 = tpu.matmul %162, %164, %cst_111 {dimension_numbers = #tpu.dot_dimension_numbers<[1], [0], [0], [1], [0, 0, 1, 1], [], []>} : vector<1x512xf32>, vector<512x32xf32>, vector<1x32xf32> -> vector<1x32xf32>
    %c2_112 = arith.constant 2 : index
    %c0_113 = arith.constant 0 : index
    %166 = vector.load %arg16[%c2_112, %c0_113] : memref<8x32xf32, #tpu.memory_space<vmem>>, vector<1x32xf32>
    %c0_114 = arith.constant 0 : index
    %c0_115 = arith.constant 0 : index
    %167 = vector.load %arg8[%c0_114, %c0_115] : memref<32x32xf32, #tpu.memory_space<vmem>>, vector<32x32xf32>
    %cst_116 = arith.constant dense<0.000000e+00> : vector<1x32xf32>
    %168 = tpu.matmul %165, %167, %cst_116 {dimension_numbers = #tpu.dot_dimension_numbers<[1], [0], [0], [1], [0, 0, 1, 1], [], []>} : vector<1x32xf32>, vector<32x32xf32>, vector<1x32xf32> -> vector<1x32xf32>
    %169 = arith.addf %166, %168 : vector<1x32xf32>
    %cst_117 = arith.constant 0.000000e+00 : f32
    %170 = vector.broadcast %cst_117 : f32 to vector<1x32xf32>
    %171 = arith.maximumf %169, %170 : vector<1x32xf32>
    %c0_118 = arith.constant 0 : index
    %c0_119 = arith.constant 0 : index
    %172 = vector.load %arg9[%c0_118, %c0_119] : memref<32x128xf32, #tpu.memory_space<vmem>>, vector<32x128xf32>
    %cst_120 = arith.constant dense<0.000000e+00> : vector<1x128xf32>
    %173 = tpu.matmul %171, %172, %cst_120 {dimension_numbers = #tpu.dot_dimension_numbers<[1], [0], [0], [1], [0, 0, 1, 1], [], []>} : vector<1x32xf32>, vector<32x128xf32>, vector<1x128xf32> -> vector<1x128xf32>
    %c0_121 = arith.constant 0 : index
    %c0_122 = arith.constant 0 : index
    %174 = vector.load %arg10[%c0_121, %c0_122] : memref<32x128xf32, #tpu.memory_space<vmem>>, vector<32x128xf32>
    %cst_123 = arith.constant dense<0.000000e+00> : vector<1x128xf32>
    %175 = tpu.matmul %148, %174, %cst_123 {dimension_numbers = #tpu.dot_dimension_numbers<[1], [0], [0], [1], [0, 0, 1, 1], [], []>} : vector<1x32xf32>, vector<32x128xf32>, vector<1x128xf32> -> vector<1x128xf32>
    %176 = arith.addf %173, %175 : vector<1x128xf32>
    %177 = arith.addf %176, %1 : vector<1x128xf32>
    %178 = vector.extract_strided_slice %177 {offsets = [0, 0], sizes = [1, 32], strides = [1, 1]} : vector<1x128xf32> to vector<1x32xf32>
    %179 = arith.negf %178 : vector<1x32xf32>
    %180 = math.exp %179 : vector<1x32xf32>
    %cst_124 = arith.constant 1.000000e+00 : f32
    %181 = vector.broadcast %cst_124 : f32 to vector<1x32xf32>
    %182 = arith.addf %181, %180 : vector<1x32xf32>
    %183 = arith.divf %181, %182 : vector<1x32xf32>
    %184 = vector.extract_strided_slice %177 {offsets = [0, 32], sizes = [1, 32], strides = [1, 1]} : vector<1x128xf32> to vector<1x32xf32>
    %185 = arith.negf %184 : vector<1x32xf32>
    %186 = math.exp %185 : vector<1x32xf32>
    %cst_125 = arith.constant 1.000000e+00 : f32
    %187 = vector.broadcast %cst_125 : f32 to vector<1x32xf32>
    %188 = arith.addf %187, %186 : vector<1x32xf32>
    %189 = arith.divf %187, %188 : vector<1x32xf32>
    %190 = vector.extract_strided_slice %177 {offsets = [0, 64], sizes = [1, 32], strides = [1, 1]} : vector<1x128xf32> to vector<1x32xf32>
    %191 = vector.extract_strided_slice %177 {offsets = [0, 96], sizes = [1, 32], strides = [1, 1]} : vector<1x128xf32> to vector<1x32xf32>
    %192 = arith.mulf %183, %191 : vector<1x32xf32>
    %193 = arith.addf %190, %192 : vector<1x32xf32>
    %194 = math.tanh %193 : vector<1x32xf32>
    %cst_126 = arith.constant 1.000000e+00 : f32
    %195 = vector.broadcast %cst_126 : f32 to vector<1x32xf32>
    %196 = arith.subf %195, %189 : vector<1x32xf32>
    %197 = arith.mulf %196, %194 : vector<1x32xf32>
    %198 = arith.mulf %189, %148 : vector<1x32xf32>
    %199 = arith.addf %197, %198 : vector<1x32xf32>
    %c2_127 = arith.constant 2 : index
    %c0_128 = arith.constant 0 : index
    %200 = vector.load %arg17[%c2_127, %c0_128] : memref<8x32xf32, #tpu.memory_space<vmem>>, vector<1x32xf32>
    tpu.vector_store %arg17[%c2_127, %c0_128], %199 {strides = array<i32>} : memref<8x32xf32, #tpu.memory_space<vmem>>, vector<1x32xf32>,
    %c3_129 = arith.constant 3 : index
    %c0_130 = arith.constant 0 : index
    %201 = vector.load %arg15[%c3_129, %c0_130] : memref<8x512xf32, #tpu.memory_space<vmem>>, vector<1x512xf32>
    %c0_131 = arith.constant 0 : index
    %c0_132 = arith.constant 0 : index
    %202 = vector.load %arg6[%c0_131, %c0_132] : memref<32x512xf32, #tpu.memory_space<vmem>>, vector<32x512xf32>
    %cst_133 = arith.constant dense<0.000000e+00> : vector<1x512xf32>
    %203 = tpu.matmul %199, %202, %cst_133 {dimension_numbers = #tpu.dot_dimension_numbers<[1], [0], [0], [1], [0, 0, 1, 1], [], []>} : vector<1x32xf32>, vector<32x512xf32>, vector<1x512xf32> -> vector<1x512xf32>
    %204 = arith.addf %201, %203 : vector<1x512xf32>
    %cst_134 = arith.constant dense<0xFF800000> : vector<1xf32>
    %205 = vector.multi_reduction <maximumf>, %204, %cst_134 [1] : vector<1x512xf32> to vector<1xf32>
    %206 = vector.shape_cast %205 : vector<1xf32> to vector<1x1xf32>
    %207 = vector.broadcast %206 : vector<1x1xf32> to vector<1x512xf32>
    %208 = arith.subf %204, %207 : vector<1x512xf32>
    %209 = math.exp %208 : vector<1x512xf32>
    %cst_135 = arith.constant dense<0.000000e+00> : vector<1xf32>
    %210 = vector.multi_reduction <add>, %209, %cst_135 [1] : vector<1x512xf32> to vector<1xf32>
    %211 = vector.shape_cast %210 : vector<1xf32> to vector<1x1xf32>
    %212 = vector.broadcast %211 : vector<1x1xf32> to vector<1x512xf32>
    %213 = arith.divf %209, %212 : vector<1x512xf32>
    %c3_136 = arith.constant 3 : index
    %c0_137 = arith.constant 0 : index
    %214 = vector.load %arg13[%c3_136, %c0_137] : memref<8x640xf32, #tpu.memory_space<vmem>>, vector<1x512xf32>
    tpu.vector_store %arg13[%c3_136, %c0_137], %213 {strides = array<i32>} : memref<8x640xf32, #tpu.memory_space<vmem>>, vector<1x512xf32>,
    %c0_138 = arith.constant 0 : index
    %c0_139 = arith.constant 0 : index
    %215 = vector.load %arg4[%c0_138, %c0_139] : memref<512x32xf32, #tpu.memory_space<vmem>>, vector<512x32xf32>
    %cst_140 = arith.constant dense<0.000000e+00> : vector<1x32xf32>
    %216 = tpu.matmul %213, %215, %cst_140 {dimension_numbers = #tpu.dot_dimension_numbers<[1], [0], [0], [1], [0, 0, 1, 1], [], []>} : vector<1x512xf32>, vector<512x32xf32>, vector<1x32xf32> -> vector<1x32xf32>
    %c3_141 = arith.constant 3 : index
    %c0_142 = arith.constant 0 : index
    %217 = vector.load %arg16[%c3_141, %c0_142] : memref<8x32xf32, #tpu.memory_space<vmem>>, vector<1x32xf32>
    %c0_143 = arith.constant 0 : index
    %c0_144 = arith.constant 0 : index
    %218 = vector.load %arg8[%c0_143, %c0_144] : memref<32x32xf32, #tpu.memory_space<vmem>>, vector<32x32xf32>
    %cst_145 = arith.constant dense<0.000000e+00> : vector<1x32xf32>
    %219 = tpu.matmul %216, %218, %cst_145 {dimension_numbers = #tpu.dot_dimension_numbers<[1], [0], [0], [1], [0, 0, 1, 1], [], []>} : vector<1x32xf32>, vector<32x32xf32>, vector<1x32xf32> -> vector<1x32xf32>
    %220 = arith.addf %217, %219 : vector<1x32xf32>
    %cst_146 = arith.constant 0.000000e+00 : f32
    %221 = vector.broadcast %cst_146 : f32 to vector<1x32xf32>
    %222 = arith.maximumf %220, %221 : vector<1x32xf32>
    %c0_147 = arith.constant 0 : index
    %c0_148 = arith.constant 0 : index
    %223 = vector.load %arg9[%c0_147, %c0_148] : memref<32x128xf32, #tpu.memory_space<vmem>>, vector<32x128xf32>
    %cst_149 = arith.constant dense<0.000000e+00> : vector<1x128xf32>
    %224 = tpu.matmul %222, %223, %cst_149 {dimension_numbers = #tpu.dot_dimension_numbers<[1], [0], [0], [1], [0, 0, 1, 1], [], []>} : vector<1x32xf32>, vector<32x128xf32>, vector<1x128xf32> -> vector<1x128xf32>
    %c0_150 = arith.constant 0 : index
    %c0_151 = arith.constant 0 : index
    %225 = vector.load %arg10[%c0_150, %c0_151] : memref<32x128xf32, #tpu.memory_space<vmem>>, vector<32x128xf32>
    %cst_152 = arith.constant dense<0.000000e+00> : vector<1x128xf32>
    %226 = tpu.matmul %199, %225, %cst_152 {dimension_numbers = #tpu.dot_dimension_numbers<[1], [0], [0], [1], [0, 0, 1, 1], [], []>} : vector<1x32xf32>, vector<32x128xf32>, vector<1x128xf32> -> vector<1x128xf32>
    %227 = arith.addf %224, %226 : vector<1x128xf32>
    %228 = arith.addf %227, %1 : vector<1x128xf32>
    %229 = vector.extract_strided_slice %228 {offsets = [0, 0], sizes = [1, 32], strides = [1, 1]} : vector<1x128xf32> to vector<1x32xf32>
    %230 = arith.negf %229 : vector<1x32xf32>
    %231 = math.exp %230 : vector<1x32xf32>
    %cst_153 = arith.constant 1.000000e+00 : f32
    %232 = vector.broadcast %cst_153 : f32 to vector<1x32xf32>
    %233 = arith.addf %232, %231 : vector<1x32xf32>
    %234 = arith.divf %232, %233 : vector<1x32xf32>
    %235 = vector.extract_strided_slice %228 {offsets = [0, 32], sizes = [1, 32], strides = [1, 1]} : vector<1x128xf32> to vector<1x32xf32>
    %236 = arith.negf %235 : vector<1x32xf32>
    %237 = math.exp %236 : vector<1x32xf32>
    %cst_154 = arith.constant 1.000000e+00 : f32
    %238 = vector.broadcast %cst_154 : f32 to vector<1x32xf32>
    %239 = arith.addf %238, %237 : vector<1x32xf32>
    %240 = arith.divf %238, %239 : vector<1x32xf32>
    %241 = vector.extract_strided_slice %228 {offsets = [0, 64], sizes = [1, 32], strides = [1, 1]} : vector<1x128xf32> to vector<1x32xf32>
    %242 = vector.extract_strided_slice %228 {offsets = [0, 96], sizes = [1, 32], strides = [1, 1]} : vector<1x128xf32> to vector<1x32xf32>
    %243 = arith.mulf %234, %242 : vector<1x32xf32>
    %244 = arith.addf %241, %243 : vector<1x32xf32>
    %245 = math.tanh %244 : vector<1x32xf32>
    %cst_155 = arith.constant 1.000000e+00 : f32
    %246 = vector.broadcast %cst_155 : f32 to vector<1x32xf32>
    %247 = arith.subf %246, %240 : vector<1x32xf32>
    %248 = arith.mulf %247, %245 : vector<1x32xf32>
    %249 = arith.mulf %240, %199 : vector<1x32xf32>
    %250 = arith.addf %248, %249 : vector<1x32xf32>
    %c3_156 = arith.constant 3 : index
    %c0_157 = arith.constant 0 : index
    %251 = vector.load %arg17[%c3_156, %c0_157] : memref<8x32xf32, #tpu.memory_space<vmem>>, vector<1x32xf32>
    tpu.vector_store %arg17[%c3_156, %c0_157], %250 {strides = array<i32>} : memref<8x32xf32, #tpu.memory_space<vmem>>, vector<1x32xf32>,
    %c4_158 = arith.constant 4 : index
    %c0_159 = arith.constant 0 : index
    %252 = vector.load %arg15[%c4_158, %c0_159] : memref<8x512xf32, #tpu.memory_space<vmem>>, vector<1x512xf32>
    %c0_160 = arith.constant 0 : index
    %c0_161 = arith.constant 0 : index
    %253 = vector.load %arg6[%c0_160, %c0_161] : memref<32x512xf32, #tpu.memory_space<vmem>>, vector<32x512xf32>
    %cst_162 = arith.constant dense<0.000000e+00> : vector<1x512xf32>
    %254 = tpu.matmul %250, %253, %cst_162 {dimension_numbers = #tpu.dot_dimension_numbers<[1], [0], [0], [1], [0, 0, 1, 1], [], []>} : vector<1x32xf32>, vector<32x512xf32>, vector<1x512xf32> -> vector<1x512xf32>
    %255 = arith.addf %252, %254 : vector<1x512xf32>
    %cst_163 = arith.constant dense<0xFF800000> : vector<1xf32>
    %256 = vector.multi_reduction <maximumf>, %255, %cst_163 [1] : vector<1x512xf32> to vector<1xf32>
    %257 = vector.shape_cast %256 : vector<1xf32> to vector<1x1xf32>
    %258 = vector.broadcast %257 : vector<1x1xf32> to vector<1x512xf32>
    %259 = arith.subf %255, %258 : vector<1x512xf32>
    %260 = math.exp %259 : vector<1x512xf32>
    %cst_164 = arith.constant dense<0.000000e+00> : vector<1xf32>
    %261 = vector.multi_reduction <add>, %260, %cst_164 [1] : vector<1x512xf32> to vector<1xf32>
    %262 = vector.shape_cast %261 : vector<1xf32> to vector<1x1xf32>
    %263 = vector.broadcast %262 : vector<1x1xf32> to vector<1x512xf32>
    %264 = arith.divf %260, %263 : vector<1x512xf32>
    %c4_165 = arith.constant 4 : index
    %c0_166 = arith.constant 0 : index
    %265 = vector.load %arg13[%c4_165, %c0_166] : memref<8x640xf32, #tpu.memory_space<vmem>>, vector<1x512xf32>
    tpu.vector_store %arg13[%c4_165, %c0_166], %264 {strides = array<i32>} : memref<8x640xf32, #tpu.memory_space<vmem>>, vector<1x512xf32>,
    %c0_167 = arith.constant 0 : index
    %c0_168 = arith.constant 0 : index
    %266 = vector.load %arg4[%c0_167, %c0_168] : memref<512x32xf32, #tpu.memory_space<vmem>>, vector<512x32xf32>
    %cst_169 = arith.constant dense<0.000000e+00> : vector<1x32xf32>
    %267 = tpu.matmul %264, %266, %cst_169 {dimension_numbers = #tpu.dot_dimension_numbers<[1], [0], [0], [1], [0, 0, 1, 1], [], []>} : vector<1x512xf32>, vector<512x32xf32>, vector<1x32xf32> -> vector<1x32xf32>
    %c4_170 = arith.constant 4 : index
    %c0_171 = arith.constant 0 : index
    %268 = vector.load %arg16[%c4_170, %c0_171] : memref<8x32xf32, #tpu.memory_space<vmem>>, vector<1x32xf32>
    %c0_172 = arith.constant 0 : index
    %c0_173 = arith.constant 0 : index
    %269 = vector.load %arg8[%c0_172, %c0_173] : memref<32x32xf32, #tpu.memory_space<vmem>>, vector<32x32xf32>
    %cst_174 = arith.constant dense<0.000000e+00> : vector<1x32xf32>
    %270 = tpu.matmul %267, %269, %cst_174 {dimension_numbers = #tpu.dot_dimension_numbers<[1], [0], [0], [1], [0, 0, 1, 1], [], []>} : vector<1x32xf32>, vector<32x32xf32>, vector<1x32xf32> -> vector<1x32xf32>
    %271 = arith.addf %268, %270 : vector<1x32xf32>
    %cst_175 = arith.constant 0.000000e+00 : f32
    %272 = vector.broadcast %cst_175 : f32 to vector<1x32xf32>
    %273 = arith.maximumf %271, %272 : vector<1x32xf32>
    %c0_176 = arith.constant 0 : index
    %c0_177 = arith.constant 0 : index
    %274 = vector.load %arg9[%c0_176, %c0_177] : memref<32x128xf32, #tpu.memory_space<vmem>>, vector<32x128xf32>
    %cst_178 = arith.constant dense<0.000000e+00> : vector<1x128xf32>
    %275 = tpu.matmul %273, %274, %cst_178 {dimension_numbers = #tpu.dot_dimension_numbers<[1], [0], [0], [1], [0, 0, 1, 1], [], []>} : vector<1x32xf32>, vector<32x128xf32>, vector<1x128xf32> -> vector<1x128xf32>
    %c0_179 = arith.constant 0 : index
    %c0_180 = arith.constant 0 : index
    %276 = vector.load %arg10[%c0_179, %c0_180] : memref<32x128xf32, #tpu.memory_space<vmem>>, vector<32x128xf32>
    %cst_181 = arith.constant dense<0.000000e+00> : vector<1x128xf32>
    %277 = tpu.matmul %250, %276, %cst_181 {dimension_numbers = #tpu.dot_dimension_numbers<[1], [0], [0], [1], [0, 0, 1, 1], [], []>} : vector<1x32xf32>, vector<32x128xf32>, vector<1x128xf32> -> vector<1x128xf32>
    %278 = arith.addf %275, %277 : vector<1x128xf32>
    %279 = arith.addf %278, %1 : vector<1x128xf32>
    %280 = vector.extract_strided_slice %279 {offsets = [0, 0], sizes = [1, 32], strides = [1, 1]} : vector<1x128xf32> to vector<1x32xf32>
    %281 = arith.negf %280 : vector<1x32xf32>
    %282 = math.exp %281 : vector<1x32xf32>
    %cst_182 = arith.constant 1.000000e+00 : f32
    %283 = vector.broadcast %cst_182 : f32 to vector<1x32xf32>
    %284 = arith.addf %283, %282 : vector<1x32xf32>
    %285 = arith.divf %283, %284 : vector<1x32xf32>
    %286 = vector.extract_strided_slice %279 {offsets = [0, 32], sizes = [1, 32], strides = [1, 1]} : vector<1x128xf32> to vector<1x32xf32>
    %287 = arith.negf %286 : vector<1x32xf32>
    %288 = math.exp %287 : vector<1x32xf32>
    %cst_183 = arith.constant 1.000000e+00 : f32
    %289 = vector.broadcast %cst_183 : f32 to vector<1x32xf32>
    %290 = arith.addf %289, %288 : vector<1x32xf32>
    %291 = arith.divf %289, %290 : vector<1x32xf32>
    %292 = vector.extract_strided_slice %279 {offsets = [0, 64], sizes = [1, 32], strides = [1, 1]} : vector<1x128xf32> to vector<1x32xf32>
    %293 = vector.extract_strided_slice %279 {offsets = [0, 96], sizes = [1, 32], strides = [1, 1]} : vector<1x128xf32> to vector<1x32xf32>
    %294 = arith.mulf %285, %293 : vector<1x32xf32>
    %295 = arith.addf %292, %294 : vector<1x32xf32>
    %296 = math.tanh %295 : vector<1x32xf32>
    %cst_184 = arith.constant 1.000000e+00 : f32
    %297 = vector.broadcast %cst_184 : f32 to vector<1x32xf32>
    %298 = arith.subf %297, %291 : vector<1x32xf32>
    %299 = arith.mulf %298, %296 : vector<1x32xf32>
    %300 = arith.mulf %291, %250 : vector<1x32xf32>
    %301 = arith.addf %299, %300 : vector<1x32xf32>
    %c4_185 = arith.constant 4 : index
    %c0_186 = arith.constant 0 : index
    %302 = vector.load %arg17[%c4_185, %c0_186] : memref<8x32xf32, #tpu.memory_space<vmem>>, vector<1x32xf32>
    tpu.vector_store %arg17[%c4_185, %c0_186], %301 {strides = array<i32>} : memref<8x32xf32, #tpu.memory_space<vmem>>, vector<1x32xf32>,
    %c5_187 = arith.constant 5 : index
    %c0_188 = arith.constant 0 : index
    %303 = vector.load %arg15[%c5_187, %c0_188] : memref<8x512xf32, #tpu.memory_space<vmem>>, vector<1x512xf32>
    %c0_189 = arith.constant 0 : index
    %c0_190 = arith.constant 0 : index
    %304 = vector.load %arg6[%c0_189, %c0_190] : memref<32x512xf32, #tpu.memory_space<vmem>>, vector<32x512xf32>
    %cst_191 = arith.constant dense<0.000000e+00> : vector<1x512xf32>
    %305 = tpu.matmul %301, %304, %cst_191 {dimension_numbers = #tpu.dot_dimension_numbers<[1], [0], [0], [1], [0, 0, 1, 1], [], []>} : vector<1x32xf32>, vector<32x512xf32>, vector<1x512xf32> -> vector<1x512xf32>
    %306 = arith.addf %303, %305 : vector<1x512xf32>
    %cst_192 = arith.constant dense<0xFF800000> : vector<1xf32>
    %307 = vector.multi_reduction <maximumf>, %306, %cst_192 [1] : vector<1x512xf32> to vector<1xf32>
    %308 = vector.shape_cast %307 : vector<1xf32> to vector<1x1xf32>
    %309 = vector.broadcast %308 : vector<1x1xf32> to vector<1x512xf32>
    %310 = arith.subf %306, %309 : vector<1x512xf32>
    %311 = math.exp %310 : vector<1x512xf32>
    %cst_193 = arith.constant dense<0.000000e+00> : vector<1xf32>
    %312 = vector.multi_reduction <add>, %311, %cst_193 [1] : vector<1x512xf32> to vector<1xf32>
    %313 = vector.shape_cast %312 : vector<1xf32> to vector<1x1xf32>
    %314 = vector.broadcast %313 : vector<1x1xf32> to vector<1x512xf32>
    %315 = arith.divf %311, %314 : vector<1x512xf32>
    %c5_194 = arith.constant 5 : index
    %c0_195 = arith.constant 0 : index
    %316 = vector.load %arg13[%c5_194, %c0_195] : memref<8x640xf32, #tpu.memory_space<vmem>>, vector<1x512xf32>
    tpu.vector_store %arg13[%c5_194, %c0_195], %315 {strides = array<i32>} : memref<8x640xf32, #tpu.memory_space<vmem>>, vector<1x512xf32>,
    %c0_196 = arith.constant 0 : index
    %c0_197 = arith.constant 0 : index
    %317 = vector.load %arg4[%c0_196, %c0_197] : memref<512x32xf32, #tpu.memory_space<vmem>>, vector<512x32xf32>
    %cst_198 = arith.constant dense<0.000000e+00> : vector<1x32xf32>
    %318 = tpu.matmul %315, %317, %cst_198 {dimension_numbers = #tpu.dot_dimension_numbers<[1], [0], [0], [1], [0, 0, 1, 1], [], []>} : vector<1x512xf32>, vector<512x32xf32>, vector<1x32xf32> -> vector<1x32xf32>
    %c5_199 = arith.constant 5 : index
    %c0_200 = arith.constant 0 : index
    %319 = vector.load %arg16[%c5_199, %c0_200] : memref<8x32xf32, #tpu.memory_space<vmem>>, vector<1x32xf32>
    %c0_201 = arith.constant 0 : index
    %c0_202 = arith.constant 0 : index
    %320 = vector.load %arg8[%c0_201, %c0_202] : memref<32x32xf32, #tpu.memory_space<vmem>>, vector<32x32xf32>
    %cst_203 = arith.constant dense<0.000000e+00> : vector<1x32xf32>
    %321 = tpu.matmul %318, %320, %cst_203 {dimension_numbers = #tpu.dot_dimension_numbers<[1], [0], [0], [1], [0, 0, 1, 1], [], []>} : vector<1x32xf32>, vector<32x32xf32>, vector<1x32xf32> -> vector<1x32xf32>
    %322 = arith.addf %319, %321 : vector<1x32xf32>
    %cst_204 = arith.constant 0.000000e+00 : f32
    %323 = vector.broadcast %cst_204 : f32 to vector<1x32xf32>
    %324 = arith.maximumf %322, %323 : vector<1x32xf32>
    %c0_205 = arith.constant 0 : index
    %c0_206 = arith.constant 0 : index
    %325 = vector.load %arg9[%c0_205, %c0_206] : memref<32x128xf32, #tpu.memory_space<vmem>>, vector<32x128xf32>
    %cst_207 = arith.constant dense<0.000000e+00> : vector<1x128xf32>
    %326 = tpu.matmul %324, %325, %cst_207 {dimension_numbers = #tpu.dot_dimension_numbers<[1], [0], [0], [1], [0, 0, 1, 1], [], []>} : vector<1x32xf32>, vector<32x128xf32>, vector<1x128xf32> -> vector<1x128xf32>
    %c0_208 = arith.constant 0 : index
    %c0_209 = arith.constant 0 : index
    %327 = vector.load %arg10[%c0_208, %c0_209] : memref<32x128xf32, #tpu.memory_space<vmem>>, vector<32x128xf32>
    %cst_210 = arith.constant dense<0.000000e+00> : vector<1x128xf32>
    %328 = tpu.matmul %301, %327, %cst_210 {dimension_numbers = #tpu.dot_dimension_numbers<[1], [0], [0], [1], [0, 0, 1, 1], [], []>} : vector<1x32xf32>, vector<32x128xf32>, vector<1x128xf32> -> vector<1x128xf32>
    %329 = arith.addf %326, %328 : vector<1x128xf32>
    %330 = arith.addf %329, %1 : vector<1x128xf32>
    %331 = vector.extract_strided_slice %330 {offsets = [0, 0], sizes = [1, 32], strides = [1, 1]} : vector<1x128xf32> to vector<1x32xf32>
    %332 = arith.negf %331 : vector<1x32xf32>
    %333 = math.exp %332 : vector<1x32xf32>
    %cst_211 = arith.constant 1.000000e+00 : f32
    %334 = vector.broadcast %cst_211 : f32 to vector<1x32xf32>
    %335 = arith.addf %334, %333 : vector<1x32xf32>
    %336 = arith.divf %334, %335 : vector<1x32xf32>
    %337 = vector.extract_strided_slice %330 {offsets = [0, 32], sizes = [1, 32], strides = [1, 1]} : vector<1x128xf32> to vector<1x32xf32>
    %338 = arith.negf %337 : vector<1x32xf32>
    %339 = math.exp %338 : vector<1x32xf32>
    %cst_212 = arith.constant 1.000000e+00 : f32
    %340 = vector.broadcast %cst_212 : f32 to vector<1x32xf32>
    %341 = arith.addf %340, %339 : vector<1x32xf32>
    %342 = arith.divf %340, %341 : vector<1x32xf32>
    %343 = vector.extract_strided_slice %330 {offsets = [0, 64], sizes = [1, 32], strides = [1, 1]} : vector<1x128xf32> to vector<1x32xf32>
    %344 = vector.extract_strided_slice %330 {offsets = [0, 96], sizes = [1, 32], strides = [1, 1]} : vector<1x128xf32> to vector<1x32xf32>
    %345 = arith.mulf %336, %344 : vector<1x32xf32>
    %346 = arith.addf %343, %345 : vector<1x32xf32>
    %347 = math.tanh %346 : vector<1x32xf32>
    %cst_213 = arith.constant 1.000000e+00 : f32
    %348 = vector.broadcast %cst_213 : f32 to vector<1x32xf32>
    %349 = arith.subf %348, %342 : vector<1x32xf32>
    %350 = arith.mulf %349, %347 : vector<1x32xf32>
    %351 = arith.mulf %342, %301 : vector<1x32xf32>
    %352 = arith.addf %350, %351 : vector<1x32xf32>
    %c5_214 = arith.constant 5 : index
    %c0_215 = arith.constant 0 : index
    %353 = vector.load %arg17[%c5_214, %c0_215] : memref<8x32xf32, #tpu.memory_space<vmem>>, vector<1x32xf32>
    tpu.vector_store %arg17[%c5_214, %c0_215], %352 {strides = array<i32>} : memref<8x32xf32, #tpu.memory_space<vmem>>, vector<1x32xf32>,
    %c6_216 = arith.constant 6 : index
    %c0_217 = arith.constant 0 : index
    %354 = vector.load %arg15[%c6_216, %c0_217] : memref<8x512xf32, #tpu.memory_space<vmem>>, vector<1x512xf32>
    %c0_218 = arith.constant 0 : index
    %c0_219 = arith.constant 0 : index
    %355 = vector.load %arg6[%c0_218, %c0_219] : memref<32x512xf32, #tpu.memory_space<vmem>>, vector<32x512xf32>
    %cst_220 = arith.constant dense<0.000000e+00> : vector<1x512xf32>
    %356 = tpu.matmul %352, %355, %cst_220 {dimension_numbers = #tpu.dot_dimension_numbers<[1], [0], [0], [1], [0, 0, 1, 1], [], []>} : vector<1x32xf32>, vector<32x512xf32>, vector<1x512xf32> -> vector<1x512xf32>
    %357 = arith.addf %354, %356 : vector<1x512xf32>
    %cst_221 = arith.constant dense<0xFF800000> : vector<1xf32>
    %358 = vector.multi_reduction <maximumf>, %357, %cst_221 [1] : vector<1x512xf32> to vector<1xf32>
    %359 = vector.shape_cast %358 : vector<1xf32> to vector<1x1xf32>
    %360 = vector.broadcast %359 : vector<1x1xf32> to vector<1x512xf32>
    %361 = arith.subf %357, %360 : vector<1x512xf32>
    %362 = math.exp %361 : vector<1x512xf32>
    %cst_222 = arith.constant dense<0.000000e+00> : vector<1xf32>
    %363 = vector.multi_reduction <add>, %362, %cst_222 [1] : vector<1x512xf32> to vector<1xf32>
    %364 = vector.shape_cast %363 : vector<1xf32> to vector<1x1xf32>
    %365 = vector.broadcast %364 : vector<1x1xf32> to vector<1x512xf32>
    %366 = arith.divf %362, %365 : vector<1x512xf32>
    %c6_223 = arith.constant 6 : index
    %c0_224 = arith.constant 0 : index
    %367 = vector.load %arg13[%c6_223, %c0_224] : memref<8x640xf32, #tpu.memory_space<vmem>>, vector<1x512xf32>
    tpu.vector_store %arg13[%c6_223, %c0_224], %366 {strides = array<i32>} : memref<8x640xf32, #tpu.memory_space<vmem>>, vector<1x512xf32>,
    %c0_225 = arith.constant 0 : index
    %c0_226 = arith.constant 0 : index
    %368 = vector.load %arg4[%c0_225, %c0_226] : memref<512x32xf32, #tpu.memory_space<vmem>>, vector<512x32xf32>
    %cst_227 = arith.constant dense<0.000000e+00> : vector<1x32xf32>
    %369 = tpu.matmul %366, %368, %cst_227 {dimension_numbers = #tpu.dot_dimension_numbers<[1], [0], [0], [1], [0, 0, 1, 1], [], []>} : vector<1x512xf32>, vector<512x32xf32>, vector<1x32xf32> -> vector<1x32xf32>
    %c6_228 = arith.constant 6 : index
    %c0_229 = arith.constant 0 : index
    %370 = vector.load %arg16[%c6_228, %c0_229] : memref<8x32xf32, #tpu.memory_space<vmem>>, vector<1x32xf32>
    %c0_230 = arith.constant 0 : index
    %c0_231 = arith.constant 0 : index
    %371 = vector.load %arg8[%c0_230, %c0_231] : memref<32x32xf32, #tpu.memory_space<vmem>>, vector<32x32xf32>
    %cst_232 = arith.constant dense<0.000000e+00> : vector<1x32xf32>
    %372 = tpu.matmul %369, %371, %cst_232 {dimension_numbers = #tpu.dot_dimension_numbers<[1], [0], [0], [1], [0, 0, 1, 1], [], []>} : vector<1x32xf32>, vector<32x32xf32>, vector<1x32xf32> -> vector<1x32xf32>
    %373 = arith.addf %370, %372 : vector<1x32xf32>
    %cst_233 = arith.constant 0.000000e+00 : f32
    %374 = vector.broadcast %cst_233 : f32 to vector<1x32xf32>
    %375 = arith.maximumf %373, %374 : vector<1x32xf32>
    %c0_234 = arith.constant 0 : index
    %c0_235 = arith.constant 0 : index
    %376 = vector.load %arg9[%c0_234, %c0_235] : memref<32x128xf32, #tpu.memory_space<vmem>>, vector<32x128xf32>
    %cst_236 = arith.constant dense<0.000000e+00> : vector<1x128xf32>
    %377 = tpu.matmul %375, %376, %cst_236 {dimension_numbers = #tpu.dot_dimension_numbers<[1], [0], [0], [1], [0, 0, 1, 1], [], []>} : vector<1x32xf32>, vector<32x128xf32>, vector<1x128xf32> -> vector<1x128xf32>
    %c0_237 = arith.constant 0 : index
    %c0_238 = arith.constant 0 : index
    %378 = vector.load %arg10[%c0_237, %c0_238] : memref<32x128xf32, #tpu.memory_space<vmem>>, vector<32x128xf32>
    %cst_239 = arith.constant dense<0.000000e+00> : vector<1x128xf32>
    %379 = tpu.matmul %352, %378, %cst_239 {dimension_numbers = #tpu.dot_dimension_numbers<[1], [0], [0], [1], [0, 0, 1, 1], [], []>} : vector<1x32xf32>, vector<32x128xf32>, vector<1x128xf32> -> vector<1x128xf32>
    %380 = arith.addf %377, %379 : vector<1x128xf32>
    %381 = arith.addf %380, %1 : vector<1x128xf32>
    %382 = vector.extract_strided_slice %381 {offsets = [0, 0], sizes = [1, 32], strides = [1, 1]} : vector<1x128xf32> to vector<1x32xf32>
    %383 = arith.negf %382 : vector<1x32xf32>
    %384 = math.exp %383 : vector<1x32xf32>
    %cst_240 = arith.constant 1.000000e+00 : f32
    %385 = vector.broadcast %cst_240 : f32 to vector<1x32xf32>
    %386 = arith.addf %385, %384 : vector<1x32xf32>
    %387 = arith.divf %385, %386 : vector<1x32xf32>
    %388 = vector.extract_strided_slice %381 {offsets = [0, 32], sizes = [1, 32], strides = [1, 1]} : vector<1x128xf32> to vector<1x32xf32>
    %389 = arith.negf %388 : vector<1x32xf32>
    %390 = math.exp %389 : vector<1x32xf32>
    %cst_241 = arith.constant 1.000000e+00 : f32
    %391 = vector.broadcast %cst_241 : f32 to vector<1x32xf32>
    %392 = arith.addf %391, %390 : vector<1x32xf32>
    %393 = arith.divf %391, %392 : vector<1x32xf32>
    %394 = vector.extract_strided_slice %381 {offsets = [0, 64], sizes = [1, 32], strides = [1, 1]} : vector<1x128xf32> to vector<1x32xf32>
    %395 = vector.extract_strided_slice %381 {offsets = [0, 96], sizes = [1, 32], strides = [1, 1]} : vector<1x128xf32> to vector<1x32xf32>
    %396 = arith.mulf %387, %395 : vector<1x32xf32>
    %397 = arith.addf %394, %396 : vector<1x32xf32>
    %398 = math.tanh %397 : vector<1x32xf32>
    %cst_242 = arith.constant 1.000000e+00 : f32
    %399 = vector.broadcast %cst_242 : f32 to vector<1x32xf32>
    %400 = arith.subf %399, %393 : vector<1x32xf32>
    %401 = arith.mulf %400, %398 : vector<1x32xf32>
    %402 = arith.mulf %393, %352 : vector<1x32xf32>
    %403 = arith.addf %401, %402 : vector<1x32xf32>
    %c6_243 = arith.constant 6 : index
    %c0_244 = arith.constant 0 : index
    %404 = vector.load %arg17[%c6_243, %c0_244] : memref<8x32xf32, #tpu.memory_space<vmem>>, vector<1x32xf32>
    tpu.vector_store %arg17[%c6_243, %c0_244], %403 {strides = array<i32>} : memref<8x32xf32, #tpu.memory_space<vmem>>, vector<1x32xf32>,
    %c7_245 = arith.constant 7 : index
    %c0_246 = arith.constant 0 : index
    %405 = vector.load %arg15[%c7_245, %c0_246] : memref<8x512xf32, #tpu.memory_space<vmem>>, vector<1x512xf32>
    %c0_247 = arith.constant 0 : index
    %c0_248 = arith.constant 0 : index
    %406 = vector.load %arg6[%c0_247, %c0_248] : memref<32x512xf32, #tpu.memory_space<vmem>>, vector<32x512xf32>
    %cst_249 = arith.constant dense<0.000000e+00> : vector<1x512xf32>
    %407 = tpu.matmul %403, %406, %cst_249 {dimension_numbers = #tpu.dot_dimension_numbers<[1], [0], [0], [1], [0, 0, 1, 1], [], []>} : vector<1x32xf32>, vector<32x512xf32>, vector<1x512xf32> -> vector<1x512xf32>
    %408 = arith.addf %405, %407 : vector<1x512xf32>
    %cst_250 = arith.constant dense<0xFF800000> : vector<1xf32>
    %409 = vector.multi_reduction <maximumf>, %408, %cst_250 [1] : vector<1x512xf32> to vector<1xf32>
    %410 = vector.shape_cast %409 : vector<1xf32> to vector<1x1xf32>
    %411 = vector.broadcast %410 : vector<1x1xf32> to vector<1x512xf32>
    %412 = arith.subf %408, %411 : vector<1x512xf32>
    %413 = math.exp %412 : vector<1x512xf32>
    %cst_251 = arith.constant dense<0.000000e+00> : vector<1xf32>
    %414 = vector.multi_reduction <add>, %413, %cst_251 [1] : vector<1x512xf32> to vector<1xf32>
    %415 = vector.shape_cast %414 : vector<1xf32> to vector<1x1xf32>
    %416 = vector.broadcast %415 : vector<1x1xf32> to vector<1x512xf32>
    %417 = arith.divf %413, %416 : vector<1x512xf32>
    %c7_252 = arith.constant 7 : index
    %c0_253 = arith.constant 0 : index
    %418 = vector.load %arg13[%c7_252, %c0_253] : memref<8x640xf32, #tpu.memory_space<vmem>>, vector<1x512xf32>
    tpu.vector_store %arg13[%c7_252, %c0_253], %417 {strides = array<i32>} : memref<8x640xf32, #tpu.memory_space<vmem>>, vector<1x512xf32>,
    %c0_254 = arith.constant 0 : index
    %c0_255 = arith.constant 0 : index
    %419 = vector.load %arg4[%c0_254, %c0_255] : memref<512x32xf32, #tpu.memory_space<vmem>>, vector<512x32xf32>
    %cst_256 = arith.constant dense<0.000000e+00> : vector<1x32xf32>
    %420 = tpu.matmul %417, %419, %cst_256 {dimension_numbers = #tpu.dot_dimension_numbers<[1], [0], [0], [1], [0, 0, 1, 1], [], []>} : vector<1x512xf32>, vector<512x32xf32>, vector<1x32xf32> -> vector<1x32xf32>
    %c7_257 = arith.constant 7 : index
    %c0_258 = arith.constant 0 : index
    %421 = vector.load %arg16[%c7_257, %c0_258] : memref<8x32xf32, #tpu.memory_space<vmem>>, vector<1x32xf32>
    %c0_259 = arith.constant 0 : index
    %c0_260 = arith.constant 0 : index
    %422 = vector.load %arg8[%c0_259, %c0_260] : memref<32x32xf32, #tpu.memory_space<vmem>>, vector<32x32xf32>
    %cst_261 = arith.constant dense<0.000000e+00> : vector<1x32xf32>
    %423 = tpu.matmul %420, %422, %cst_261 {dimension_numbers = #tpu.dot_dimension_numbers<[1], [0], [0], [1], [0, 0, 1, 1], [], []>} : vector<1x32xf32>, vector<32x32xf32>, vector<1x32xf32> -> vector<1x32xf32>
    %424 = arith.addf %421, %423 : vector<1x32xf32>
    %cst_262 = arith.constant 0.000000e+00 : f32
    %425 = vector.broadcast %cst_262 : f32 to vector<1x32xf32>
    %426 = arith.maximumf %424, %425 : vector<1x32xf32>
    %c0_263 = arith.constant 0 : index
    %c0_264 = arith.constant 0 : index
    %427 = vector.load %arg9[%c0_263, %c0_264] : memref<32x128xf32, #tpu.memory_space<vmem>>, vector<32x128xf32>
    %cst_265 = arith.constant dense<0.000000e+00> : vector<1x128xf32>
    %428 = tpu.matmul %426, %427, %cst_265 {dimension_numbers = #tpu.dot_dimension_numbers<[1], [0], [0], [1], [0, 0, 1, 1], [], []>} : vector<1x32xf32>, vector<32x128xf32>, vector<1x128xf32> -> vector<1x128xf32>
    %c0_266 = arith.constant 0 : index
    %c0_267 = arith.constant 0 : index
    %429 = vector.load %arg10[%c0_266, %c0_267] : memref<32x128xf32, #tpu.memory_space<vmem>>, vector<32x128xf32>
    %cst_268 = arith.constant dense<0.000000e+00> : vector<1x128xf32>
    %430 = tpu.matmul %403, %429, %cst_268 {dimension_numbers = #tpu.dot_dimension_numbers<[1], [0], [0], [1], [0, 0, 1, 1], [], []>} : vector<1x32xf32>, vector<32x128xf32>, vector<1x128xf32> -> vector<1x128xf32>
    %431 = arith.addf %428, %430 : vector<1x128xf32>
    %432 = arith.addf %431, %1 : vector<1x128xf32>
    %433 = vector.extract_strided_slice %432 {offsets = [0, 0], sizes = [1, 32], strides = [1, 1]} : vector<1x128xf32> to vector<1x32xf32>
    %434 = arith.negf %433 : vector<1x32xf32>
    %435 = math.exp %434 : vector<1x32xf32>
    %cst_269 = arith.constant 1.000000e+00 : f32
    %436 = vector.broadcast %cst_269 : f32 to vector<1x32xf32>
    %437 = arith.addf %436, %435 : vector<1x32xf32>
    %438 = arith.divf %436, %437 : vector<1x32xf32>
    %439 = vector.extract_strided_slice %432 {offsets = [0, 32], sizes = [1, 32], strides = [1, 1]} : vector<1x128xf32> to vector<1x32xf32>
    %440 = arith.negf %439 : vector<1x32xf32>
    %441 = math.exp %440 : vector<1x32xf32>
    %cst_270 = arith.constant 1.000000e+00 : f32
    %442 = vector.broadcast %cst_270 : f32 to vector<1x32xf32>
    %443 = arith.addf %442, %441 : vector<1x32xf32>
    %444 = arith.divf %442, %443 : vector<1x32xf32>
    %445 = vector.extract_strided_slice %432 {offsets = [0, 64], sizes = [1, 32], strides = [1, 1]} : vector<1x128xf32> to vector<1x32xf32>
    %446 = vector.extract_strided_slice %432 {offsets = [0, 96], sizes = [1, 32], strides = [1, 1]} : vector<1x128xf32> to vector<1x32xf32>
    %447 = arith.mulf %438, %446 : vector<1x32xf32>
    %448 = arith.addf %445, %447 : vector<1x32xf32>
    %449 = math.tanh %448 : vector<1x32xf32>
    %cst_271 = arith.constant 1.000000e+00 : f32
    %450 = vector.broadcast %cst_271 : f32 to vector<1x32xf32>
    %451 = arith.subf %450, %444 : vector<1x32xf32>
    %452 = arith.mulf %451, %449 : vector<1x32xf32>
    %453 = arith.mulf %444, %403 : vector<1x32xf32>
    %454 = arith.addf %452, %453 : vector<1x32xf32>
    %c7_272 = arith.constant 7 : index
    %c0_273 = arith.constant 0 : index
    %455 = vector.load %arg17[%c7_272, %c0_273] : memref<8x32xf32, #tpu.memory_space<vmem>>, vector<1x32xf32>
    tpu.vector_store %arg17[%c7_272, %c0_273], %454 {strides = array<i32>} : memref<8x32xf32, #tpu.memory_space<vmem>>, vector<1x32xf32>,
    %c0_274 = arith.constant 0 : index
    %c0_275 = arith.constant 0 : index
    %456 = vector.load %arg17[%c0_274, %c0_275] : memref<8x32xf32, #tpu.memory_space<vmem>>, vector<8x32xf32>
    %c0_276 = arith.constant 0 : index
    %c0_277 = arith.constant 0 : index
    %457 = vector.load %arg11[%c0_276, %c0_277] : memref<32x64xf32, #tpu.memory_space<vmem>>, vector<32x64xf32>
    %cst_278 = arith.constant dense<0.000000e+00> : vector<8x64xf32>
    %458 = tpu.matmul %456, %457, %cst_278 {dimension_numbers = #tpu.dot_dimension_numbers<[1], [0], [0], [1], [0, 0, 1, 1], [], []>} : vector<8x32xf32>, vector<32x64xf32>, vector<8x64xf32> -> vector<8x64xf32>
    %459 = vector.broadcast %2 : vector<1x64xf32> to vector<8x64xf32>
    %460 = arith.addf %458, %459 : vector<8x64xf32>
    %cst_279 = arith.constant dense<0xFF800000> : vector<8xf32>
    %461 = vector.multi_reduction <maximumf>, %460, %cst_279 [1] : vector<8x64xf32> to vector<8xf32>
    %462 = vector.shape_cast %461 : vector<8xf32> to vector<8x1xf32>
    %463 = vector.broadcast %462 : vector<8x1xf32> to vector<8x64xf32>
    %464 = arith.subf %460, %463 : vector<8x64xf32>
    %465 = math.exp %464 : vector<8x64xf32>
    %cst_280 = arith.constant dense<0.000000e+00> : vector<8xf32>
    %466 = vector.multi_reduction <add>, %465, %cst_280 [1] : vector<8x64xf32> to vector<8xf32>
    %467 = vector.shape_cast %466 : vector<8xf32> to vector<8x1xf32>
    %468 = math.log %467 : vector<8x1xf32>
    %469 = arith.addf %462, %468 : vector<8x1xf32>
    %470 = vector.broadcast %469 : vector<8x1xf32> to vector<8x64xf32>
    %471 = arith.subf %460, %470 : vector<8x64xf32>
    %cst_281 = arith.constant 0.000000e+00 : f32
    %472 = vector.broadcast %cst_281 : f32 to vector<8x32xf32>
    %473 = tpu.concatenate %471, %456, %472 in 1 : vector<8x64xf32>, vector<8x32xf32>, vector<8x32xf32> -> vector<8x128xf32>
    %c0_282 = arith.constant 0 : index
    %c512_283 = arith.constant 512 : index
    %474 = vector.load %arg13[%c0_282, %c512_283] : memref<8x640xf32, #tpu.memory_space<vmem>>, vector<8x128xf32>
    tpu.vector_store %arg13[%c0_282, %c512_283], %473 {strides = array<i32>} : memref<8x640xf32, #tpu.memory_space<vmem>>, vector<8x128xf32>,
    return
  }
  func.func @transform_0(%arg0: i32, %arg1: memref<8xi32, #tpu.memory_space<smem>>) -> (i32, i32) {
    %c0_i32 = arith.constant 0 : i32
    %c0_i32_0 = arith.constant 0 : i32
    %c0_i32_1 = arith.constant 0 : i32
    return %c0_i32, %c0_i32_0 : i32, i32
  }
  func.func @transform_1(%arg0: i32, %arg1: memref<8xi32, #tpu.memory_space<smem>>) -> (i32, i32) {
    %c0_i32 = arith.constant 0 : i32
    %c0_i32_0 = arith.constant 0 : i32
    %c0_i32_1 = arith.constant 0 : i32
    return %c0_i32, %c0_i32_0 : i32, i32
  }
  func.func @transform_2(%arg0: i32, %arg1: memref<8xi32, #tpu.memory_space<smem>>) -> (i32, i32) {
    %c0_i32 = arith.constant 0 : i32
    %c0_i32_0 = arith.constant 0 : i32
    %c0_i32_1 = arith.constant 0 : i32
    return %c0_i32, %c0_i32_0 : i32, i32
  }
  func.func @transform_3(%arg0: i32, %arg1: memref<8xi32, #tpu.memory_space<smem>>) -> (i32, i32) {
    %c0_i32 = arith.constant 0 : i32
    %c0_i32_0 = arith.constant 0 : i32
    %c0_i32_1 = arith.constant 0 : i32
    return %c0_i32, %c0_i32_0 : i32, i32
  }
  func.func @transform_4(%arg0: i32, %arg1: memref<8xi32, #tpu.memory_space<smem>>) -> (i32, i32) {
    %c0_i32 = arith.constant 0 : i32
    %c0_i32_0 = arith.constant 0 : i32
    %c0_i32_1 = arith.constant 0 : i32
    return %c0_i32, %c0_i32_0 : i32, i32
  }
  func.func @transform_5(%arg0: i32, %arg1: memref<8xi32, #tpu.memory_space<smem>>) -> (i32, i32) {
    %c0_i32 = arith.constant 0 : i32
    %c0_i32_0 = arith.constant 0 : i32
    %c0_i32_1 = arith.constant 0 : i32
    return %c0_i32, %c0_i32_0 : i32, i32
  }
  func.func @transform_6(%arg0: i32, %arg1: memref<8xi32, #tpu.memory_space<smem>>) -> (i32, i32) {
    %c0_i32 = arith.constant 0 : i32
    %c0_i32_0 = arith.constant 0 : i32
    %c0_i32_1 = arith.constant 0 : i32
    return %c0_i32, %c0_i32_0 : i32, i32
  }
  func.func @transform_7(%arg0: i32, %arg1: memref<8xi32, #tpu.memory_space<smem>>) -> (i32, i32) {
    %c0_i32 = arith.constant 0 : i32
    %c0_i32_0 = arith.constant 0 : i32
    %c0_i32_1 = arith.constant 0 : i32
    return %c0_i32, %c0_i32_0 : i32, i32
  }
  func.func @transform_8(%arg0: i32, %arg1: memref<8xi32, #tpu.memory_space<smem>>) -> (i32, i32) {
    %c0_i32 = arith.constant 0 : i32
    %c0_i32_0 = arith.constant 0 : i32
    %c0_i32_1 = arith.constant 0 : i32
    return %c0_i32, %c0_i32_0 : i32, i32
  }
  func.func @transform_9(%arg0: i32, %arg1: memref<8xi32, #tpu.memory_space<smem>>) -> (i32, i32) {
    %c0_i32 = arith.constant 0 : i32
    %c0_i32_0 = arith.constant 0 : i32
    %c0_i32_1 = arith.constant 0 : i32
    return %c0_i32, %c0_i32_0 : i32, i32
  }
  func.func @transform_10(%arg0: i32, %arg1: memref<8xi32, #tpu.memory_space<smem>>) -> (i32, i32) {
    %c0_i32 = arith.constant 0 : i32
    %c0_i32_0 = arith.constant 0 : i32
    %c0_i32_1 = arith.constant 0 : i32
    return %c0_i32, %c0_i32_0 : i32, i32
  }
  func.func @transform_11(%arg0: i32, %arg1: memref<8xi32, #tpu.memory_space<smem>>) -> (i32, i32) {
    %c0_i32 = arith.constant 0 : i32
    %c0_i32_0 = arith.constant 0 : i32
    %c0_i32_1 = arith.constant 0 : i32
    return %c0_i32, %c0_i32_0 : i32, i32
  }
}

</mosaic_0001>

<llo_original>
// kernel: tpu_custom_call.1
$region0: #{tpu_custom_call.1}
  #allocation0 [shape = 'u32[]', space=smem, size = 0x4, offset = 0x4, fixed_abs, tag = 'smem constant byte address 0x4 - core index']
  #allocation1 [shape = 'u32[144,128]{1,0:T(1,128)}', space=vmem, size = 0x12000, scoped, tag = 'internal scratch']
  #allocation2 [shape = 'f32[8,32]{1,0:T(8,128)}', space=vmem, size = 0x1000, scoped, tag = 'scratch operand']
  #allocation3 [shape = 'f32[8,512]{1,0:T(8,128)}', space=vmem, size = 0x4000, scoped, tag = 'scratch operand']
  #allocation4 [shape = 'f32[8,32]{1,0:T(8,128)}', space=vmem, size = 0x1000, scoped, tag = 'scratch operand']
  #allocation5 [shape = 'f32[8,32]{1,0:T(8,128)}', space=vmem, size = 0x1000, scoped, tag = 'scratch operand']
  #allocation6 [shape = 's32[1]{0}', space=sflag, size = 0x4, scoped, tag = 'scoped memory for tpu_custom_call.1']
  #allocation7 [shape = 'u8[512]{0}', space=smem, size = 0x200, scoped, tag = 'prefetched SMEM operand 0']
  %s0 = inlined_call_operand.vmem [shape: s32[8], index: 0, kind: input, shape index: {}]
  %s1 = inlined_call_operand.vmem [shape: f32[64,32], index: 1, kind: input, shape index: {}]
  %s2 = inlined_call_operand.vmem [shape: f32[1,32], index: 2, kind: input, shape index: {}]
  %s3 = inlined_call_operand.vmem [shape: f32[512,32], index: 3, kind: input, shape index: {}]
  %s4 = inlined_call_operand.vmem [shape: f32[32,512], index: 4, kind: input, shape index: {}]
  %s5 = inlined_call_operand.vmem [shape: f32[32,512], index: 5, kind: input, shape index: {}]
  %s6 = inlined_call_operand.vmem [shape: f32[32,32], index: 6, kind: input, shape index: {}]
  %s7 = inlined_call_operand.vmem [shape: f32[32,32], index: 7, kind: input, shape index: {}]
  %s8 = inlined_call_operand.vmem [shape: f32[32,128], index: 8, kind: input, shape index: {}]
  %s9 = inlined_call_operand.vmem [shape: f32[32,128], index: 9, kind: input, shape index: {}]
  %s10 = inlined_call_operand.vmem [shape: f32[32,64], index: 10, kind: input, shape index: {}]
  %s11 = inlined_call_operand.vmem [shape: f32[1,896], index: 11, kind: input, shape index: {}]
  %s12 = inlined_call_operand.hbm [shape: f32[8,640], index: 12, kind: output, shape index: {}]
  %s13 = sld [smem:[#allocation0]]
  $region54: #{tpu_custom_call.1} parent=0
    _
  %s15 = ssub.s32 1, %s13
  %s16 = scalar_select 0, %s15, %s13
  %s17 = sshll.u32 %s0, 4
  %s18 = int_to_ptr.vmem [resolvable:$true] %s17
  %20 = dma.vmem_to_smem %s18, 16, [#allocation7], [#allocation6]
  %21 = dma.done [#allocation6], 16
  %22 = sfence
  $region1: #{tpu_custom_call.1} parent=0
    #allocation8 [shape = 'u8[20480]{0}', space=vmem, size = 0x5000, scoped, tag = 'output window, operand 0, single buffered']
    #allocation9 [shape = 's32[1]{0}', space=sflag, size = 0x4, scoped, tag = 'scoped memory for tpu_custom_call.1']
    %23 = vsyncpa [#allocation9], 0
    // Predicated region
    $region2: #{tpu_custom_call.1} parent=1 // pred_check
      _
    $region3: #{tpu_custom_call.1} parent=1 // pred_check_branch
      %25 = sbr.rel (0) target = $region5
    $region4: #{tpu_custom_call.1} parent=1 // pred_region
      _
    $region5: #{tpu_custom_call.1} parent=1 // pred_fallthru
      _
    // Predicated region
    $region6: #{tpu_custom_call.1} parent=1 // pred_check
      _
    $region7: #{tpu_custom_call.1} parent=1 // pred_check_branch
      %27 = sbr.rel (0) target = $region9
    $region8: #{tpu_custom_call.1} parent=1 // pred_region
      _
    $region9: #{tpu_custom_call.1} parent=1 // pred_fallthru
      _
    // Predicated region
    $region10: #{tpu_custom_call.1} parent=1 // pred_check
      _
    $region11: #{tpu_custom_call.1} parent=1 // pred_check_branch
      %29 = sbr.rel (0) target = $region13
    $region12: #{tpu_custom_call.1} parent=1 // pred_region
      _
    $region13: #{tpu_custom_call.1} parent=1 // pred_fallthru
      _
    // Predicated region
    $region14: #{tpu_custom_call.1} parent=1 // pred_check
      _
    $region15: #{tpu_custom_call.1} parent=1 // pred_check_branch
      %31 = sbr.rel (0) target = $region17
    $region16: #{tpu_custom_call.1} parent=1 // pred_region
      _
    $region17: #{tpu_custom_call.1} parent=1 // pred_fallthru
      _
    // Predicated region
    $region18: #{tpu_custom_call.1} parent=1 // pred_check
      _
    $region19: #{tpu_custom_call.1} parent=1 // pred_check_branch
      %33 = sbr.rel (0) target = $region21
    $region20: #{tpu_custom_call.1} parent=1 // pred_region
      _
    $region21: #{tpu_custom_call.1} parent=1 // pred_fallthru
      _
    // Predicated region
    $region22: #{tpu_custom_call.1} parent=1 // pred_check
      _
    $region23: #{tpu_custom_call.1} parent=1 // pred_check_branch
      %35 = sbr.rel (0) target = $region25
    $region24: #{tpu_custom_call.1} parent=1 // pred_region
      _
    $region25: #{tpu_custom_call.1} parent=1 // pred_fallthru
      _
    // Predicated region
    $region26: #{tpu_custom_call.1} parent=1 // pred_check
      _
    $region27: #{tpu_custom_call.1} parent=1 // pred_check_branch
      %37 = sbr.rel (0) target = $region29
    $region28: #{tpu_custom_call.1} parent=1 // pred_region
      _
    $region29: #{tpu_custom_call.1} parent=1 // pred_fallthru
      _
    // Predicated region
    $region30: #{tpu_custom_call.1} parent=1 // pred_check
      _
    $region31: #{tpu_custom_call.1} parent=1 // pred_check_branch
      %39 = sbr.rel (0) target = $region33
    $region32: #{tpu_custom_call.1} parent=1 // pred_region
      _
    $region33: #{tpu_custom_call.1} parent=1 // pred_fallthru
      _
    // Predicated region
    $region34: #{tpu_custom_call.1} parent=1 // pred_check
      _
    $region35: #{tpu_custom_call.1} parent=1 // pred_check_branch
      %41 = sbr.rel (0) target = $region37
    $region36: #{tpu_custom_call.1} parent=1 // pred_region
      _
    $region37: #{tpu_custom_call.1} parent=1 // pred_fallthru
      _
    // Predicated region
    $region38: #{tpu_custom_call.1} parent=1 // pred_check
      _
    $region39: #{tpu_custom_call.1} parent=1 // pred_check_branch
      %43 = sbr.rel (0) target = $region41
    $region40: #{tpu_custom_call.1} parent=1 // pred_region
      _
    $region41: #{tpu_custom_call.1} parent=1 // pred_fallthru
      _
    // Predicated region
    $region42: #{tpu_custom_call.1} parent=1 // pred_check
      _
    $region43: #{tpu_custom_call.1} parent=1 // pred_check_branch
      %45 = sbr.rel (0) target = $region45
    $region44: #{tpu_custom_call.1} parent=1 // pred_region
      _
    $region45: #{tpu_custom_call.1} parent=1 // pred_fallthru
      _
    %v46 = vld [vmem:[%s11] sm:$0xf]
    %v47 = vld [vmem:[%s11 + $0x4] sm:$0x1]
    %v48 = vld [vmem:[%s11 + $0x5] sm:$0x1]
    %v49 = vld [vmem:[%s11 + $0x6] sm:$0x1]
    %s50 = sld [smem:[#allocation7]]
    %s51 = scalar_lea.vmem %s1, %s50
    %v52 = vld [vmem:[%s51] sm:$0x1]
    %vm53 = vcmask 253952
    %54 = vst.msk [vmem:[#allocation2] sm:$0x1] %vm53, %v52
    %s55 = sld [smem:[#allocation7 + $0x1]]
    %s56 = scalar_lea.vmem %s1, %s55
    %v57 = vld [vmem:[%s56] sm:$0x1]
    %58 = vst.msk [vmem:[#allocation2 + $0x1] sm:$0x1] %vm53, %v57
    %s59 = sld [smem:[#allocation7 + $0x2]]
    %s60 = scalar_lea.vmem %s1, %s59
    %v61 = vld [vmem:[%s60] sm:$0x1]
    %62 = vst.msk [vmem:[#allocation2 + $0x2] sm:$0x1] %vm53, %v61
    %s63 = sld [smem:[#allocation7 + $0x3]]
    %s64 = scalar_lea.vmem %s1, %s63
    %v65 = vld [vmem:[%s64] sm:$0x1]
    %66 = vst.msk [vmem:[#allocation2 + $0x3] sm:$0x1] %vm53, %v65
    %s67 = sld [smem:[#allocation7 + $0x4]]
    %s68 = scalar_lea.vmem %s1, %s67
    %v69 = vld [vmem:[%s68] sm:$0x1]
    %70 = vst.msk [vmem:[#allocation2 + $0x4] sm:$0x1] %vm53, %v69
    %s71 = sld [smem:[#allocation7 + $0x5]]
    %s72 = scalar_lea.vmem %s1, %s71
    %v73 = vld [vmem:[%s72] sm:$0x1]
    %74 = vst.msk [vmem:[#allocation2 + $0x5] sm:$0x1] %vm53, %v73
    %s75 = sld [smem:[#allocation7 + $0x6]]
    %s76 = scalar_lea.vmem %s1, %s75
    %v77 = vld [vmem:[%s76] sm:$0x1]
    %78 = vst.msk [vmem:[#allocation2 + $0x6] sm:$0x1] %vm53, %v77
    %s79 = sld [smem:[#allocation7 + $0x7]]
    %s80 = scalar_lea.vmem %s1, %s79
    %v81 = vld [vmem:[%s80] sm:$0x1]
    %82 = vst.msk [vmem:[#allocation2 + $0x7] sm:$0x1] %vm53, %v81
    %v83 = vld [vmem:[#allocation2] sm:$0xff]
    %v84 = vld [vmem:[%s4] sm:$0xff]
    %v85 = vld [vmem:[%s4 + $0x8] sm:$0xff]
    %v86 = vld [vmem:[%s4 + $0x10] sm:$0xff]
    %v87 = vld [vmem:[%s4 + $0x18] sm:$0xff]
    %v88 = vld [vmem:[%s4 + $0x20] sm:$0xff]
    %v89 = vld [vmem:[%s4 + $0x28] sm:$0xff]
    %v90 = vld [vmem:[%s4 + $0x30] sm:$0xff]
    %v91 = vld [vmem:[%s4 + $0x38] sm:$0xff]
    %v92 = vld [vmem:[%s4 + $0x40] sm:$0xff]
    %v93 = vld [vmem:[%s4 + $0x48] sm:$0xff]
    %v94 = vld [vmem:[%s4 + $0x50] sm:$0xff]
    %v95 = vld [vmem:[%s4 + $0x58] sm:$0xff]
    %v96 = vld [vmem:[%s4 + $0x60] sm:$0xff]
    %v97 = vld [vmem:[%s4 + $0x68] sm:$0xff]
    %v98 = vld [vmem:[%s4 + $0x70] sm:$0xff]
    %v99 = vld [vmem:[%s4 + $0x78] sm:$0xff]
    %v101 = vlaneseq
    %v102 = vshrl.u32 %v101, 7
    %v103 = vsub.s32 0, %v102
    %v104 = vrot.slane %v46, %v103
    %v105 = vlaneseq
    %v106 = vshrl.u32 %v105, 7
    %v107 = vsub.s32 1, %v106
    %v108 = vrot.slane %v46, %v107
    %v109 = vlaneseq
    %v110 = vshrl.u32 %v109, 7
    %v111 = vsub.s32 2, %v110
    %v112 = vrot.slane %v46, %v111
    %v113 = vlaneseq
    %v114 = vshrl.u32 %v113, 7
    %v115 = vsub.s32 3, %v114
    %v116 = vrot.slane %v46, %v115
    %vm121 = vcmask 261120
    %v123 = vsel %vm121, %v83, 0
    %125 = vmatprep.subr.mxu0 %v85
    %126 = vmatpush1.msra.mxu0 %v84
    %127 = vmatprep.subr.mxu0 %v89
    %128 = vmatpush1.msra.mxu0 %v88
    %129 = vmatprep.subr.mxu0 %v93
    %130 = vmatpush1.msra.mxu0 %v92
    %131 = vmatprep.subr.mxu0 %v97
    %132 = vmatpush1.msra.mxu0 %v96
    %133 = vmatprep.subr.mxu0 0.0
    %134 = vmatpush1.msra.mxu0 0.0
    %135 = vmatprep.subr.mxu0 0.0
    %136 = vmatpush1.msra.mxu0 0.0
    %137 = vmatprep.subr.mxu0 0.0
    %138 = vmatpush1.msra.mxu0 0.0
    %139 = vmatprep.subr.mxu0 0.0
    %140 = vmatpush1.msra.mxu0 0.0
    %141 = vmatprep.subr.mxu0 0.0
    %142 = vmatpush1.msra.mxu0 0.0
    %143 = vmatprep.subr.mxu0 0.0
    %144 = vmatpush1.msra.mxu0 0.0
    %145 = vmatprep.subr.mxu0 0.0
    %146 = vmatpush1.msra.mxu0 0.0
    %147 = vmatprep.subr.mxu0 0.0
    %148 = vmatpush1.msra.mxu0 0.0
    %149 = vmatprep.subr.mxu0 0.0
    %150 = vmatpush1.msra.mxu0 0.0
    %151 = vmatprep.subr.mxu0 0.0
    %152 = vmatpush1.msra.mxu0 0.0
    %153 = vmatprep.subr.mxu0 0.0
    %154 = vmatpush1.msra.mxu0 0.0
    %155 = vmatprep.subr.mxu0 0.0
    %156 = vmatpush1.msra.mxu0 0.0
    %157 = vmatprep.subr.mxu0 0.0
    %158 = vmatpush1.msra.mxu0 0.0
    %159 = vmatprep.subr.mxu0 0.0
    %160 = vmatpush1.msra.mxu0 0.0
    %161 = vmatprep.subr.mxu0 0.0
    %162 = vmatpush1.msra.mxu0 0.0
    %163 = vmatprep.subr.mxu0 0.0
    %164 = vmatpush1.msra.mxu0 0.0
    %165 = vmatprep.subr.mxu0 0.0
    %166 = vmatpush1.msra.mxu0 0.0
    %167 = vmatprep.subr.mxu0 0.0
    %168 = vmatpush1.msra.mxu0 0.0
    %169 = vmatprep.subr.mxu0 0.0
    %170 = vmatpush1.msra.mxu0 0.0
    %171 = vmatprep.subr.mxu0 0.0
    %172 = vmatpush1.msra.mxu0 0.0
    %173 = vmatprep.subr.mxu0 0.0
    %174 = vmatpush1.msra.mxu0 0.0
    %175 = vmatprep.subr.mxu0 0.0
    %176 = vmatpush1.msra.mxu0 0.0
    %177 = vmatprep.subr.mxu0 0.0
    %178 = vmatpush1.msra.mxu0 0.0
    %179 = vmatprep.subr.mxu0 0.0
    %180 = vmatpush1.msra.mxu0 0.0
    %181 = vmatprep.subr.mxu0 0.0
    %182 = vmatpush1.msra.mxu0 0.0
    %183 = vmatprep.subr.mxu0 0.0
    %184 = vmatpush1.msra.mxu0 0.0
    %185 = vmatprep.subr.mxu0 0.0
    %186 = vmatpush1.msra.mxu0 0.0
    %187 = vmatprep.subr.mxu0 0.0
    %188 = vmatpush1.msra.mxu0 0.0
    %189 = vmatprep.mubr.f32.mxu0 0.0
    %190 = vmatmul.mubr.f32.gmra.mrb[0].mxu0 %v123
    %v191 = vpop.f32.mrb[0].mxu0
    %v192 = vadd.f32 %v104, %v191
    %v193 = vpop.f32.mrb[0].mxu0
    %v194 = vadd.f32 %v108, %v193
    %195 = vdwg.mxu0
    %196 = vmatprep.subr.mxu0 %v87
    %197 = vmatpush1.msra.mxu0 %v86
    %198 = vmatprep.subr.mxu0 %v91
    %199 = vmatpush1.msra.mxu0 %v90
    %200 = vmatprep.subr.mxu0 %v95
    %201 = vmatpush1.msra.mxu0 %v94
    %202 = vmatprep.subr.mxu0 %v99
    %203 = vmatpush1.msra.mxu0 %v98
    %204 = vmatprep.subr.mxu0 0.0
    %205 = vmatpush1.msra.mxu0 0.0
    %206 = vmatprep.subr.mxu0 0.0
    %207 = vmatpush1.msra.mxu0 0.0
    %208 = vmatprep.subr.mxu0 0.0
    %209 = vmatpush1.msra.mxu0 0.0
    %210 = vmatprep.subr.mxu0 0.0
    %211 = vmatpush1.msra.mxu0 0.0
    %212 = vmatprep.subr.mxu0 0.0
    %213 = vmatpush1.msra.mxu0 0.0
    %214 = vmatprep.subr.mxu0 0.0
    %215 = vmatpush1.msra.mxu0 0.0
    %216 = vmatprep.subr.mxu0 0.0
    %217 = vmatpush1.msra.mxu0 0.0
    %218 = vmatprep.subr.mxu0 0.0
    %219 = vmatpush1.msra.mxu0 0.0
    %220 = vmatprep.subr.mxu0 0.0
    %221 = vmatpush1.msra.mxu0 0.0
    %222 = vmatprep.subr.mxu0 0.0
    %223 = vmatpush1.msra.mxu0 0.0
    %224 = vmatprep.subr.mxu0 0.0
    %225 = vmatpush1.msra.mxu0 0.0
    %226 = vmatprep.subr.mxu0 0.0
    %227 = vmatpush1.msra.mxu0 0.0
    %228 = vmatprep.subr.mxu0 0.0
    %229 = vmatpush1.msra.mxu0 0.0
    %230 = vmatprep.subr.mxu0 0.0
    %231 = vmatpush1.msra.mxu0 0.0
    %232 = vmatprep.subr.mxu0 0.0
    %233 = vmatpush1.msra.mxu0 0.0
    %234 = vmatprep.subr.mxu0 0.0
    %235 = vmatpush1.msra.mxu0 0.0
    %236 = vmatprep.subr.mxu0 0.0
    %237 = vmatpush1.msra.mxu0 0.0
    %238 = vmatprep.subr.mxu0 0.0
    %239 = vmatpush1.msra.mxu0 0.0
    %240 = vmatprep.subr.mxu0 0.0
    %241 = vmatpush1.msra.mxu0 0.0
    %242 = vmatprep.subr.mxu0 0.0
    %243 = vmatpush1.msra.mxu0 0.0
    %244 = vmatprep.subr.mxu0 0.0
    %245 = vmatpush1.msra.mxu0 0.0
    %246 = vmatprep.subr.mxu0 0.0
    %247 = vmatpush1.msra.mxu0 0.0
    %248 = vmatprep.subr.mxu0 0.0
    %249 = vmatpush1.msra.mxu0 0.0
    %250 = vmatprep.subr.mxu0 0.0
    %251 = vmatpush1.msra.mxu0 0.0
    %252 = vmatprep.subr.mxu0 0.0
    %253 = vmatpush1.msra.mxu0 0.0
    %254 = vmatprep.subr.mxu0 0.0
    %255 = vmatpush1.msra.mxu0 0.0
    %256 = vmatprep.subr.mxu0 0.0
    %257 = vmatpush1.msra.mxu0 0.0
    %258 = vmatprep.subr.mxu0 0.0
    %259 = vmatpush1.msra.mxu0 0.0
    %260 = vmatprep.mubr.f32.mxu0 0.0
    %261 = vmatmul.mubr.f32.gmra.mrb[0].mxu0 %v123
    %v262 = vpop.f32.mrb[0].mxu0
    %v263 = vadd.f32 %v112, %v262
    %v264 = vpop.f32.mrb[0].mxu0
    %v265 = vadd.f32 %v116, %v264
    %266 = vdwg.mxu0
    %267 = vst [vmem:[#allocation3] sm:$0xff] %v192
    %268 = vst [vmem:[#allocation3 + $0x8] sm:$0xff] %v194
    %269 = vst [vmem:[#allocation3 + $0x10] sm:$0xff] %v263
    %270 = vst [vmem:[#allocation3 + $0x18] sm:$0xff] %v265
    %v271 = vld [vmem:[%s6] sm:$0xff]
    %v272 = vld [vmem:[%s6 + $0x8] sm:$0xff]
    %v273 = vld [vmem:[%s6 + $0x10] sm:$0xff]
    %v274 = vld [vmem:[%s6 + $0x18] sm:$0xff]
    %v276 = vlaneseq
    %v277 = vshrl.u32 %v276, 7
    %v278 = vsub.s32 0, %v277
    %v279 = vrot.slane %v49, %v278
    %281 = vmatprep.subr.mxu0 0.0
    %282 = vmatpush1.msra.mxu0 %v271
    %283 = vmatprep.subr.mxu0 0.0
    %284 = vmatpush1.msra.mxu0 %v272
    %285 = vmatprep.subr.mxu0 0.0
    %286 = vmatpush1.msra.mxu0 %v273
    %287 = vmatprep.subr.mxu0 0.0
    %288 = vmatpush1.msra.mxu0 %v274
    %289 = vmatprep.subr.mxu0 0.0
    %290 = vmatpush1.msra.mxu0 0.0
    %291 = vmatprep.subr.mxu0 0.0
    %292 = vmatpush1.msra.mxu0 0.0
    %293 = vmatprep.subr.mxu0 0.0
    %294 = vmatpush1.msra.mxu0 0.0
    %295 = vmatprep.subr.mxu0 0.0
    %296 = vmatpush1.msra.mxu0 0.0
    %297 = vmatprep.subr.mxu0 0.0
    %298 = vmatpush1.msra.mxu0 0.0
    %299 = vmatprep.subr.mxu0 0.0
    %300 = vmatpush1.msra.mxu0 0.0
    %301 = vmatprep.subr.mxu0 0.0
    %302 = vmatpush1.msra.mxu0 0.0
    %303 = vmatprep.subr.mxu0 0.0
    %304 = vmatpush1.msra.mxu0 0.0
    %305 = vmatprep.subr.mxu0 0.0
    %306 = vmatpush1.msra.mxu0 0.0
    %307 = vmatprep.subr.mxu0 0.0
    %308 = vmatpush1.msra.mxu0 0.0
    %309 = vmatprep.subr.mxu0 0.0
    %310 = vmatpush1.msra.mxu0 0.0
    %311 = vmatprep.subr.mxu0 0.0
    %312 = vmatpush1.msra.mxu0 0.0
    %313 = vmatprep.subr.mxu0 0.0
    %314 = vmatpush1.msra.mxu0 0.0
    %315 = vmatprep.subr.mxu0 0.0
    %316 = vmatpush1.msra.mxu0 0.0
    %317 = vmatprep.subr.mxu0 0.0
    %318 = vmatpush1.msra.mxu0 0.0
    %319 = vmatprep.subr.mxu0 0.0
    %320 = vmatpush1.msra.mxu0 0.0
    %321 = vmatprep.subr.mxu0 0.0
    %322 = vmatpush1.msra.mxu0 0.0
    %323 = vmatprep.subr.mxu0 0.0
    %324 = vmatpush1.msra.mxu0 0.0
    %325 = vmatprep.subr.mxu0 0.0
    %326 = vmatpush1.msra.mxu0 0.0
    %327 = vmatprep.subr.mxu0 0.0
    %328 = vmatpush1.msra.mxu0 0.0
    %329 = vmatprep.subr.mxu0 0.0
    %330 = vmatpush1.msra.mxu0 0.0
    %331 = vmatprep.subr.mxu0 0.0
    %332 = vmatpush1.msra.mxu0 0.0
    %333 = vmatprep.subr.mxu0 0.0
    %334 = vmatpush1.msra.mxu0 0.0
    %335 = vmatprep.subr.mxu0 0.0
    %336 = vmatpush1.msra.mxu0 0.0
    %337 = vmatprep.subr.mxu0 0.0
    %338 = vmatpush1.msra.mxu0 0.0
    %339 = vmatprep.subr.mxu0 0.0
    %340 = vmatpush1.msra.mxu0 0.0
    %341 = vmatprep.subr.mxu0 0.0
    %342 = vmatpush1.msra.mxu0 0.0
    %343 = vmatprep.subr.mxu0 0.0
    %344 = vmatpush1.msra.mxu0 0.0
    %345 = vmatprep.mubr.f32.mxu0 0.0
    %346 = vmatmul.mubr.f32.gmra.mrb[0].mxu0 %v123
    %v347 = vpop.f32.mrb[0].mxu0
    %v348 = vadd.f32 %v279, %v347
    %v349 = vpop.f32.mrb[0].mxu0
    %350 = vdwg.mxu0
    %351 = vst.msk [vmem:[#allocation4] sm:$0xff] %vm121, %v348
    %v352 = vld [vmem:[%s2] sm:$0x1]
    %v353 = vld [vmem:[#allocation3] ss:$8 sm:$0xf]
    %v354 = vld [vmem:[%s5] sm:$0xff]
    %v355 = vld [vmem:[%s5 + $0x8] sm:$0xff]
    %v356 = vld [vmem:[%s5 + $0x10] sm:$0xff]
    %v357 = vld [vmem:[%s5 + $0x18] sm:$0xff]
    %v358 = vld [vmem:[%s5 + $0x20] sm:$0xff]
    %v359 = vld [vmem:[%s5 + $0x28] sm:$0xff]
    %v360 = vld [vmem:[%s5 + $0x30] sm:$0xff]
    %v361 = vld [vmem:[%s5 + $0x38] sm:$0xff]
    %v362 = vld [vmem:[%s5 + $0x40] sm:$0xff]
    %v363 = vld [vmem:[%s5 + $0x48] sm:$0xff]
    %v364 = vld [vmem:[%s5 + $0x50] sm:$0xff]
    %v365 = vld [vmem:[%s5 + $0x58] sm:$0xff]
    %v366 = vld [vmem:[%s5 + $0x60] sm:$0xff]
    %v367 = vld [vmem:[%s5 + $0x68] sm:$0xff]
    %v368 = vld [vmem:[%s5 + $0x70] sm:$0xff]
    %v369 = vld [vmem:[%s5 + $0x78] sm:$0xff]
    %v371 = vsel %vm121, %v352, 0
    %373 = vmatprep.subr.mxu0 %v355
    %374 = vmatpush1.msra.mxu0 %v354
    %375 = vmatprep.subr.mxu0 %v359
    %376 = vmatpush1.msra.mxu0 %v358
    %377 = vmatprep.subr.mxu0 %v363
    %378 = vmatpush1.msra.mxu0 %v362
    %379 = vmatprep.subr.mxu0 %v367
    %380 = vmatpush1.msra.mxu0 %v366
    %381 = vmatprep.subr.mxu0 0.0
    %382 = vmatpush1.msra.mxu0 0.0
    %383 = vmatprep.subr.mxu0 0.0
    %384 = vmatpush1.msra.mxu0 0.0
    %385 = vmatprep.subr.mxu0 0.0
    %386 = vmatpush1.msra.mxu0 0.0
    %387 = vmatprep.subr.mxu0 0.0
    %388 = vmatpush1.msra.mxu0 0.0
    %389 = vmatprep.subr.mxu0 0.0
    %390 = vmatpush1.msra.mxu0 0.0
    %391 = vmatprep.subr.mxu0 0.0
    %392 = vmatpush1.msra.mxu0 0.0
    %393 = vmatprep.subr.mxu0 0.0
    %394 = vmatpush1.msra.mxu0 0.0
    %395 = vmatprep.subr.mxu0 0.0
    %396 = vmatpush1.msra.mxu0 0.0
    %397 = vmatprep.subr.mxu0 0.0
    %398 = vmatpush1.msra.mxu0 0.0
    %399 = vmatprep.subr.mxu0 0.0
    %400 = vmatpush1.msra.mxu0 0.0
    %401 = vmatprep.subr.mxu0 0.0
    %402 = vmatpush1.msra.mxu0 0.0
    %403 = vmatprep.subr.mxu0 0.0
    %404 = vmatpush1.msra.mxu0 0.0
    %405 = vmatprep.subr.mxu0 0.0
    %406 = vmatpush1.msra.mxu0 0.0
    %407 = vmatprep.subr.mxu0 0.0
    %408 = vmatpush1.msra.mxu0 0.0
    %409 = vmatprep.subr.mxu0 0.0
    %410 = vmatpush1.msra.mxu0 0.0
    %411 = vmatprep.subr.mxu0 0.0
    %412 = vmatpush1.msra.mxu0 0.0
    %413 = vmatprep.subr.mxu0 0.0
    %414 = vmatpush1.msra.mxu0 0.0
    %415 = vmatprep.subr.mxu0 0.0
    %416 = vmatpush1.msra.mxu0 0.0
    %417 = vmatprep.subr.mxu0 0.0
    %418 = vmatpush1.msra.mxu0 0.0
    %419 = vmatprep.subr.mxu0 0.0
    %420 = vmatpush1.msra.mxu0 0.0
    %421 = vmatprep.subr.mxu0 0.0
    %422 = vmatpush1.msra.mxu0 0.0
    %423 = vmatprep.subr.mxu0 0.0
    %424 = vmatpush1.msra.mxu0 0.0
    %425 = vmatprep.subr.mxu0 0.0
    %426 = vmatpush1.msra.mxu0 0.0
    %427 = vmatprep.subr.mxu0 0.0
    %428 = vmatpush1.msra.mxu0 0.0
    %429 = vmatprep.subr.mxu0 0.0
    %430 = vmatpush1.msra.mxu0 0.0
    %431 = vmatprep.subr.mxu0 0.0
    %432 = vmatpush1.msra.mxu0 0.0
    %433 = vmatprep.subr.mxu0 0.0
    %434 = vmatpush1.msra.mxu0 0.0
    %435 = vmatprep.subr.mxu0 0.0
    %436 = vmatpush1.msra.mxu0 0.0
    %437 = vmatprep.mubr.f32.mxu0 0.0
    %438 = vmatmul.mubr.f32.gmra.mrb[0].mxu0 %v371
    %v439 = vpop.f32.mrb[0].mxu0
    %v440 = vadd.f32 0.0, %v439
    %v441 = vpop.f32.mrb[0].mxu0
    %v442 = vadd.f32 0.0, %v441
    %443 = vdwg.mxu0
    %444 = vmatprep.subr.mxu0 %v357
    %445 = vmatpush1.msra.mxu0 %v356
    %446 = vmatprep.subr.mxu0 %v361
    %447 = vmatpush1.msra.mxu0 %v360
    %448 = vmatprep.subr.mxu0 %v365
    %449 = vmatpush1.msra.mxu0 %v364
    %450 = vmatprep.subr.mxu0 %v369
    %451 = vmatpush1.msra.mxu0 %v368
    %452 = vmatprep.subr.mxu0 0.0
    %453 = vmatpush1.msra.mxu0 0.0
    %454 = vmatprep.subr.mxu0 0.0
    %455 = vmatpush1.msra.mxu0 0.0
    %456 = vmatprep.subr.mxu0 0.0
    %457 = vmatpush1.msra.mxu0 0.0
    %458 = vmatprep.subr.mxu0 0.0
    %459 = vmatpush1.msra.mxu0 0.0
    %460 = vmatprep.subr.mxu0 0.0
    %461 = vmatpush1.msra.mxu0 0.0
    %462 = vmatprep.subr.mxu0 0.0
    %463 = vmatpush1.msra.mxu0 0.0
    %464 = vmatprep.subr.mxu0 0.0
    %465 = vmatpush1.msra.mxu0 0.0
    %466 = vmatprep.subr.mxu0 0.0
    %467 = vmatpush1.msra.mxu0 0.0
    %468 = vmatprep.subr.mxu0 0.0
    %469 = vmatpush1.msra.mxu0 0.0
    %470 = vmatprep.subr.mxu0 0.0
    %471 = vmatpush1.msra.mxu0 0.0
    %472 = vmatprep.subr.mxu0 0.0
    %473 = vmatpush1.msra.mxu0 0.0
    %474 = vmatprep.subr.mxu0 0.0
    %475 = vmatpush1.msra.mxu0 0.0
    %476 = vmatprep.subr.mxu0 0.0
    %477 = vmatpush1.msra.mxu0 0.0
    %478 = vmatprep.subr.mxu0 0.0
    %479 = vmatpush1.msra.mxu0 0.0
    %480 = vmatprep.subr.mxu0 0.0
    %481 = vmatpush1.msra.mxu0 0.0
    %482 = vmatprep.subr.mxu0 0.0
    %483 = vmatpush1.msra.mxu0 0.0
    %484 = vmatprep.subr.mxu0 0.0
    %485 = vmatpush1.msra.mxu0 0.0
    %486 = vmatprep.subr.mxu0 0.0
    %487 = vmatpush1.msra.mxu0 0.0
    %488 = vmatprep.subr.mxu0 0.0
    %489 = vmatpush1.msra.mxu0 0.0
    %490 = vmatprep.subr.mxu0 0.0
    %491 = vmatpush1.msra.mxu0 0.0
    %492 = vmatprep.subr.mxu0 0.0
    %493 = vmatpush1.msra.mxu0 0.0
    %494 = vmatprep.subr.mxu0 0.0
    %495 = vmatpush1.msra.mxu0 0.0
    %496 = vmatprep.subr.mxu0 0.0
    %497 = vmatpush1.msra.mxu0 0.0
    %498 = vmatprep.subr.mxu0 0.0
    %499 = vmatpush1.msra.mxu0 0.0
    %500 = vmatprep.subr.mxu0 0.0
    %501 = vmatpush1.msra.mxu0 0.0
    %502 = vmatprep.subr.mxu0 0.0
    %503 = vmatpush1.msra.mxu0 0.0
    %504 = vmatprep.subr.mxu0 0.0
    %505 = vmatpush1.msra.mxu0 0.0
    %506 = vmatprep.subr.mxu0 0.0
    %507 = vmatpush1.msra.mxu0 0.0
    %508 = vmatprep.mubr.f32.mxu0 0.0
    %509 = vmatmul.mubr.f32.gmra.mrb[0].mxu0 %v371
    %v510 = vpop.f32.mrb[0].mxu0
    %v511 = vadd.f32 0.0, %v510
    %v512 = vpop.f32.mrb[0].mxu0
    %v513 = vadd.f32 0.0, %v512
    %514 = vdwg.mxu0
    %v519 = vcombine.low %v440, %v442
    %v520 = vcombine.low %v511, %v513
    %v522 = vunpack.c.l.s4 1966171168
    %v523 = vunpack.c.0.s8 %v522
    %v524 = vlaneseq
    %v525 = vshrl.u32 %v524, 7
    %v526 = vsub.s32 %v523, %v525
    %v527 = vrot.slane %v519, %v526
    %v529 = vunpack.c.l.s4 1966171168
    %v530 = vunpack.c.0.s8 %v529
    %v531 = vlaneseq
    %v532 = vshrl.u32 %v531, 7
    %v533 = vsub.s32 %v530, %v532
    %v534 = vrot.slane %v520, %v533
    %v535 = vcombine.low %v527, %v534
    %v537 = vunpack.c.l.s4 1966171168
    %v538 = vunpack.c.0.s8 %v537
    %v539 = vlaneseq
    %v540 = vshrl.u32 %v539, 7
    %v541 = vsub.s32 %v538, %v540
    %v542 = vrot.slane %v535, %v541
    %v544 = vadd.f32 %v353, %v542
    %v546 = vlaneseq
    %v547 = vshrl.u32 %v546, 7
    %v548 = vsub.s32 0, %v547
    %v549 = vrot.slane %v544, %v548
    %v550 = vlaneseq
    %v551 = vshrl.u32 %v550, 7
    %v552 = vsub.s32 1, %v551
    %v553 = vrot.slane %v544, %v552
    %v554 = vlaneseq
    %v555 = vshrl.u32 %v554, 7
    %v556 = vsub.s32 2, %v555
    %v557 = vrot.slane %v544, %v556
    %v558 = vlaneseq
    %v559 = vshrl.u32 %v558, 7
    %v560 = vsub.s32 3, %v559
    %v561 = vrot.slane %v544, %v560
    %vm566 = vcmask 1040384
    %v567 = vsel %vm566, %v549, -inf
    %v568 = vsel %vm566, %v553, -inf
    %v569 = vsel %vm566, %v557, -inf
    %v570 = vsel %vm566, %v561, -inf
    %v571 = vmax.f32 %v567, %v568
    %v572 = vmax.f32 %v569, %v570
    %v573 = vmax.f32 %v571, %v572
    %574 = vmax.xlane.f32.xlu0 %v573
    %v575 = vpop.xlane.xlu0 %574
    %v577 = vlaneseq
    %v578 = vshrl.u32 %v577, 7
    %v579 = vsub.s32 0, %v578
    %v580 = vrot.slane %v575, %v579
    %v582 = vsub.f32 %v544, %v580
    %v583 = vmul.f32 %v582, 1.442695
    %v584 = vpow.pop %v583
    %v586 = vlaneseq
    %v587 = vshrl.u32 %v586, 7
    %v588 = vsub.s32 0, %v587
    %v589 = vrot.slane %v584, %v588
    %v590 = vlaneseq
    %v591 = vshrl.u32 %v590, 7
    %v592 = vsub.s32 1, %v591
    %v593 = vrot.slane %v584, %v592
    %v594 = vlaneseq
    %v595 = vshrl.u32 %v594, 7
    %v596 = vsub.s32 2, %v595
    %v597 = vrot.slane %v584, %v596
    %v598 = vlaneseq
    %v599 = vshrl.u32 %v598, 7
    %v600 = vsub.s32 3, %v599
    %v601 = vrot.slane %v584, %v600
    %v606 = vsel %vm566, %v589, 0.0
    %v607 = vsel %vm566, %v593, 0.0
    %v608 = vadd.f32 %v606, %v607
    %v609 = vsel %vm566, %v597, 0.0
    %v610 = vadd.f32 %v608, %v609
    %v611 = vsel %vm566, %v601, 0.0
    %v612 = vadd.f32 %v610, %v611
    %613 = vadd.xlane.f32.xlu0 %v612
    %v614 = vpop.xlane.xlu0 %613
    %v616 = vlaneseq
    %v617 = vshrl.u32 %v616, 7
    %v618 = vsub.s32 0, %v617
    %v619 = vrot.slane %v614, %v618
    %v621 = vrcp.pop %v619
    %v622 = vmul.f32 %v584, %v621
    %v623 = vlaneseq
    %vm624 = vcmp.ge.s32.totalorder %v623, 0
    %vm625 = vcmp.lt.s32.totalorder %v623, 512
    %vm626 = vmand %vm624, %vm625
    %627 = vst.msk [vmem:[#allocation8] ss:$8 sm:$0xf] %vm626, %v622
    %628 = vst.msk [vmem:[#allocation8] ss:$8 sm:$0x0] %vm626, %v622
    %v629 = vld [vmem:[%s3] sm:$0xff]
    %v630 = vld [vmem:[%s3 + $0x8] sm:$0xff]
    %v631 = vld [vmem:[%s3 + $0x10] sm:$0xff]
    %v632 = vld [vmem:[%s3 + $0x18] sm:$0xff]
    %v633 = vld [vmem:[%s3 + $0x20] sm:$0xff]
    %v634 = vld [vmem:[%s3 + $0x28] sm:$0xff]
    %v635 = vld [vmem:[%s3 + $0x30] sm:$0xff]
    %v636 = vld [vmem:[%s3 + $0x38] sm:$0xff]
    %v637 = vld [vmem:[%s3 + $0x40] sm:$0xff]
    %v638 = vld [vmem:[%s3 + $0x48] sm:$0xff]
    %v639 = vld [vmem:[%s3 + $0x50] sm:$0xff]
    %v640 = vld [vmem:[%s3 + $0x58] sm:$0xff]
    %v641 = vld [vmem:[%s3 + $0x60] sm:$0xff]
    %v642 = vld [vmem:[%s3 + $0x68] sm:$0xff]
    %v643 = vld [vmem:[%s3 + $0x70] sm:$0xff]
    %v644 = vld [vmem:[%s3 + $0x78] sm:$0xff]
    %v645 = vld [vmem:[%s3 + $0x80] sm:$0xff]
    %v646 = vld [vmem:[%s3 + $0x88] sm:$0xff]
    %v647 = vld [vmem:[%s3 + $0x90] sm:$0xff]
    %v648 = vld [vmem:[%s3 + $0x98] sm:$0xff]
    %v649 = vld [vmem:[%s3 + $0xa0] sm:$0xff]
    %v650 = vld [vmem:[%s3 + $0xa8] sm:$0xff]
    %v651 = vld [vmem:[%s3 + $0xb0] sm:$0xff]
    %v652 = vld [vmem:[%s3 + $0xb8] sm:$0xff]
    %v653 = vld [vmem:[%s3 + $0xc0] sm:$0xff]
    %v654 = vld [vmem:[%s3 + $0xc8] sm:$0xff]
    %v655 = vld [vmem:[%s3 + $0xd0] sm:$0xff]
    %v656 = vld [vmem:[%s3 + $0xd8] sm:$0xff]
    %v657 = vld [vmem:[%s3 + $0xe0] sm:$0xff]
    %v658 = vld [vmem:[%s3 + $0xe8] sm:$0xff]
    %v659 = vld [vmem:[%s3 + $0xf0] sm:$0xff]
    %v660 = vld [vmem:[%s3 + $0xf8] sm:$0xff]
    %v661 = vld [vmem:[%s3 + $0x100] sm:$0xff]
    %v662 = vld [vmem:[%s3 + $0x108] sm:$0xff]
    %v663 = vld [vmem:[%s3 + $0x110] sm:$0xff]
    %v664 = vld [vmem:[%s3 + $0x118] sm:$0xff]
    %v665 = vld [vmem:[%s3 + $0x120] sm:$0xff]
    %v666 = vld [vmem:[%s3 + $0x128] sm:$0xff]
    %v667 = vld [vmem:[%s3 + $0x130] sm:$0xff]
    %v668 = vld [vmem:[%s3 + $0x138] sm:$0xff]
    %v669 = vld [vmem:[%s3 + $0x140] sm:$0xff]
    %v670 = vld [vmem:[%s3 + $0x148] sm:$0xff]
    %v671 = vld [vmem:[%s3 + $0x150] sm:$0xff]
    %v672 = vld [vmem:[%s3 + $0x158] sm:$0xff]
    %v673 = vld [vmem:[%s3 + $0x160] sm:$0xff]
    %v674 = vld [vmem:[%s3 + $0x168] sm:$0xff]
    %v675 = vld [vmem:[%s3 + $0x170] sm:$0xff]
    %v676 = vld [vmem:[%s3 + $0x178] sm:$0xff]
    %v677 = vld [vmem:[%s3 + $0x180] sm:$0xff]
    %v678 = vld [vmem:[%s3 + $0x188] sm:$0xff]
    %v679 = vld [vmem:[%s3 + $0x190] sm:$0xff]
    %v680 = vld [vmem:[%s3 + $0x198] sm:$0xff]
    %v681 = vld [vmem:[%s3 + $0x1a0] sm:$0xff]
    %v682 = vld [vmem:[%s3 + $0x1a8] sm:$0xff]
    %v683 = vld [vmem:[%s3 + $0x1b0] sm:$0xff]
    %v684 = vld [vmem:[%s3 + $0x1b8] sm:$0xff]
    %v685 = vld [vmem:[%s3 + $0x1c0] sm:$0xff]
    %v686 = vld [vmem:[%s3 + $0x1c8] sm:$0xff]
    %v687 = vld [vmem:[%s3 + $0x1d0] sm:$0xff]
    %v688 = vld [vmem:[%s3 + $0x1d8] sm:$0xff]
    %v689 = vld [vmem:[%s3 + $0x1e0] sm:$0xff]
    %v690 = vld [vmem:[%s3 + $0x1e8] sm:$0xff]
    %v691 = vld [vmem:[%s3 + $0x1f0] sm:$0xff]
    %v692 = vld [vmem:[%s3 + $0x1f8] sm:$0xff]
    %v694 = vlaneseq
    %v695 = vshrl.u32 %v694, 7
    %v696 = vsub.s32 0, %v695
    %v697 = vrot.slane %v622, %v696
    %v698 = vlaneseq
    %v699 = vshrl.u32 %v698, 7
    %v700 = vsub.s32 1, %v699
    %v701 = vrot.slane %v622, %v700
    %v702 = vlaneseq
    %v703 = vshrl.u32 %v702, 7
    %v704 = vsub.s32 2, %v703
    %v705 = vrot.slane %v622, %v704
    %v706 = vlaneseq
    %v707 = vshrl.u32 %v706, 7
    %v708 = vsub.s32 3, %v707
    %v709 = vrot.slane %v622, %v708
    %714 = vmatprep.subr.mxu0 0.0
    %715 = vmatpush1.msra.mxu0 %v629
    %716 = vmatprep.subr.mxu0 0.0
    %717 = vmatpush1.msra.mxu0 %v630
    %718 = vmatprep.subr.mxu0 0.0
    %719 = vmatpush1.msra.mxu0 %v631
    %720 = vmatprep.subr.mxu0 0.0
    %721 = vmatpush1.msra.mxu0 %v632
    %722 = vmatprep.subr.mxu0 0.0
    %723 = vmatpush1.msra.mxu0 %v633
    %724 = vmatprep.subr.mxu0 0.0
    %725 = vmatpush1.msra.mxu0 %v634
    %726 = vmatprep.subr.mxu0 0.0
    %727 = vmatpush1.msra.mxu0 %v635
    %728 = vmatprep.subr.mxu0 0.0
    %729 = vmatpush1.msra.mxu0 %v636
    %730 = vmatprep.subr.mxu0 0.0
    %731 = vmatpush1.msra.mxu0 %v637
    %732 = vmatprep.subr.mxu0 0.0
    %733 = vmatpush1.msra.mxu0 %v638
    %734 = vmatprep.subr.mxu0 0.0
    %735 = vmatpush1.msra.mxu0 %v639
    %736 = vmatprep.subr.mxu0 0.0
    %737 = vmatpush1.msra.mxu0 %v640
    %738 = vmatprep.subr.mxu0 0.0
    %739 = vmatpush1.msra.mxu0 %v641
    %740 = vmatprep.subr.mxu0 0.0
    %741 = vmatpush1.msra.mxu0 %v642
    %742 = vmatprep.subr.mxu0 0.0
    %743 = vmatpush1.msra.mxu0 %v643
    %744 = vmatprep.subr.mxu0 0.0
    %745 = vmatpush1.msra.mxu0 %v644
    %746 = vmatprep.subr.mxu0 0.0
    %747 = vmatpush1.msra.mxu0 %v645
    %748 = vmatprep.subr.mxu0 0.0
    %749 = vmatpush1.msra.mxu0 %v646
    %750 = vmatprep.subr.mxu0 0.0
    %751 = vmatpush1.msra.mxu0 %v647
    %752 = vmatprep.subr.mxu0 0.0
    %753 = vmatpush1.msra.mxu0 %v648
    %754 = vmatprep.subr.mxu0 0.0
    %755 = vmatpush1.msra.mxu0 %v649
    %756 = vmatprep.subr.mxu0 0.0
    %757 = vmatpush1.msra.mxu0 %v650
    %758 = vmatprep.subr.mxu0 0.0
    %759 = vmatpush1.msra.mxu0 %v651
    %760 = vmatprep.subr.mxu0 0.0
    %761 = vmatpush1.msra.mxu0 %v652
    %762 = vmatprep.subr.mxu0 0.0
    %763 = vmatpush1.msra.mxu0 %v653
    %764 = vmatprep.subr.mxu0 0.0
    %765 = vmatpush1.msra.mxu0 %v654
    %766 = vmatprep.subr.mxu0 0.0
    %767 = vmatpush1.msra.mxu0 %v655
    %768 = vmatprep.subr.mxu0 0.0
    %769 = vmatpush1.msra.mxu0 %v656
    %770 = vmatprep.subr.mxu0 0.0
    %771 = vmatpush1.msra.mxu0 %v657
    %772 = vmatprep.subr.mxu0 0.0
    %773 = vmatpush1.msra.mxu0 %v658
    %774 = vmatprep.subr.mxu0 0.0
    %775 = vmatpush1.msra.mxu0 %v659
    %776 = vmatprep.subr.mxu0 0.0
    %777 = vmatpush1.msra.mxu0 %v660
    %778 = vmatprep.mubr.f32.mxu0 %v701
    %779 = vmatmul.mubr.f32.gmra.mrb[0].mxu0 %v697
    %v780 = vpop.f32.mrb[0].mxu0
    %v781 = vadd.f32 0.0, %v780
    %v782 = vpop.f32.mrb[0].mxu0
    %783 = vdwg.mxu0
    %784 = vmatprep.subr.mxu0 0.0
    %785 = vmatpush1.msra.mxu0 %v661
    %786 = vmatprep.subr.mxu0 0.0
    %787 = vmatpush1.msra.mxu0 %v662
    %788 = vmatprep.subr.mxu0 0.0
    %789 = vmatpush1.msra.mxu0 %v663
    %790 = vmatprep.subr.mxu0 0.0
    %791 = vmatpush1.msra.mxu0 %v664
    %792 = vmatprep.subr.mxu0 0.0
    %793 = vmatpush1.msra.mxu0 %v665
    %794 = vmatprep.subr.mxu0 0.0
    %795 = vmatpush1.msra.mxu0 %v666
    %796 = vmatprep.subr.mxu0 0.0
    %797 = vmatpush1.msra.mxu0 %v667
    %798 = vmatprep.subr.mxu0 0.0
    %799 = vmatpush1.msra.mxu0 %v668
    %800 = vmatprep.subr.mxu0 0.0
    %801 = vmatpush1.msra.mxu0 %v669
    %802 = vmatprep.subr.mxu0 0.0
    %803 = vmatpush1.msra.mxu0 %v670
    %804 = vmatprep.subr.mxu0 0.0
    %805 = vmatpush1.msra.mxu0 %v671
    %806 = vmatprep.subr.mxu0 0.0
    %807 = vmatpush1.msra.mxu0 %v672
    %808 = vmatprep.subr.mxu0 0.0
    %809 = vmatpush1.msra.mxu0 %v673
    %810 = vmatprep.subr.mxu0 0.0
    %811 = vmatpush1.msra.mxu0 %v674
    %812 = vmatprep.subr.mxu0 0.0
    %813 = vmatpush1.msra.mxu0 %v675
    %814 = vmatprep.subr.mxu0 0.0
    %815 = vmatpush1.msra.mxu0 %v676
    %816 = vmatprep.subr.mxu0 0.0
    %817 = vmatpush1.msra.mxu0 %v677
    %818 = vmatprep.subr.mxu0 0.0
    %819 = vmatpush1.msra.mxu0 %v678
    %820 = vmatprep.subr.mxu0 0.0
    %821 = vmatpush1.msra.mxu0 %v679
    %822 = vmatprep.subr.mxu0 0.0
    %823 = vmatpush1.msra.mxu0 %v680
    %824 = vmatprep.subr.mxu0 0.0
    %825 = vmatpush1.msra.mxu0 %v681
    %826 = vmatprep.subr.mxu0 0.0
    %827 = vmatpush1.msra.mxu0 %v682
    %828 = vmatprep.subr.mxu0 0.0
    %829 = vmatpush1.msra.mxu0 %v683
    %830 = vmatprep.subr.mxu0 0.0
    %831 = vmatpush1.msra.mxu0 %v684
    %832 = vmatprep.subr.mxu0 0.0
    %833 = vmatpush1.msra.mxu0 %v685
    %834 = vmatprep.subr.mxu0 0.0
    %835 = vmatpush1.msra.mxu0 %v686
    %836 = vmatprep.subr.mxu0 0.0
    %837 = vmatpush1.msra.mxu0 %v687
    %838 = vmatprep.subr.mxu0 0.0
    %839 = vmatpush1.msra.mxu0 %v688
    %840 = vmatprep.subr.mxu0 0.0
    %841 = vmatpush1.msra.mxu0 %v689
    %842 = vmatprep.subr.mxu0 0.0
    %843 = vmatpush1.msra.mxu0 %v690
    %844 = vmatprep.subr.mxu0 0.0
    %845 = vmatpush1.msra.mxu0 %v691
    %846 = vmatprep.subr.mxu0 0.0
    %847 = vmatpush1.msra.mxu0 %v692
    %848 = vmatprep.mubr.f32.mxu0 %v709
    %849 = vmatmul.mubr.f32.gmra.mrb[0].mxu0 %v705
    %v850 = vpop.f32.mrb[0].mxu0
    %v851 = vadd.f32 %v781, %v850
    %v852 = vpop.f32.mrb[0].mxu0
    %853 = vdwg.mxu0
    %v854 = vld [vmem:[#allocation4] sm:$0x1]
    %v855 = vld [vmem:[%s7] sm:$0xff]
    %v856 = vld [vmem:[%s7 + $0x8] sm:$0xff]
    %v857 = vld [vmem:[%s7 + $0x10] sm:$0xff]
    %v858 = vld [vmem:[%s7 + $0x18] sm:$0xff]
    %v860 = vsel %vm121, %v851, 0
    %862 = vmatprep.subr.mxu0 0.0
    %863 = vmatpush1.msra.mxu0 %v855
    %864 = vmatprep.subr.mxu0 0.0
    %865 = vmatpush1.msra.mxu0 %v856
    %866 = vmatprep.subr.mxu0 0.0
    %867 = vmatpush1.msra.mxu0 %v857
    %868 = vmatprep.subr.mxu0 0.0
    %869 = vmatpush1.msra.mxu0 %v858
    %870 = vmatprep.subr.mxu0 0.0
    %871 = vmatpush1.msra.mxu0 0.0
    %872 = vmatprep.subr.mxu0 0.0
    %873 = vmatpush1.msra.mxu0 0.0
    %874 = vmatprep.subr.mxu0 0.0
    %875 = vmatpush1.msra.mxu0 0.0
    %876 = vmatprep.subr.mxu0 0.0
    %877 = vmatpush1.msra.mxu0 0.0
    %878 = vmatprep.subr.mxu0 0.0
    %879 = vmatpush1.msra.mxu0 0.0
    %880 = vmatprep.subr.mxu0 0.0
    %881 = vmatpush1.msra.mxu0 0.0
    %882 = vmatprep.subr.mxu0 0.0
    %883 = vmatpush1.msra.mxu0 0.0
    %884 = vmatprep.subr.mxu0 0.0
    %885 = vmatpush1.msra.mxu0 0.0
    %886 = vmatprep.subr.mxu0 0.0
    %887 = vmatpush1.msra.mxu0 0.0
    %888 = vmatprep.subr.mxu0 0.0
    %889 = vmatpush1.msra.mxu0 0.0
    %890 = vmatprep.subr.mxu0 0.0
    %891 = vmatpush1.msra.mxu0 0.0
    %892 = vmatprep.subr.mxu0 0.0
    %893 = vmatpush1.msra.mxu0 0.0
    %894 = vmatprep.subr.mxu0 0.0
    %895 = vmatpush1.msra.mxu0 0.0
    %896 = vmatprep.subr.mxu0 0.0
    %897 = vmatpush1.msra.mxu0 0.0
    %898 = vmatprep.subr.mxu0 0.0
    %899 = vmatpush1.msra.mxu0 0.0
    %900 = vmatprep.subr.mxu0 0.0
    %901 = vmatpush1.msra.mxu0 0.0
    %902 = vmatprep.subr.mxu0 0.0
    %903 = vmatpush1.msra.mxu0 0.0
    %904 = vmatprep.subr.mxu0 0.0
    %905 = vmatpush1.msra.mxu0 0.0
    %906 = vmatprep.subr.mxu0 0.0
    %907 = vmatpush1.msra.mxu0 0.0
    %908 = vmatprep.subr.mxu0 0.0
    %909 = vmatpush1.msra.mxu0 0.0
    %910 = vmatprep.subr.mxu0 0.0
    %911 = vmatpush1.msra.mxu0 0.0
    %912 = vmatprep.subr.mxu0 0.0
    %913 = vmatpush1.msra.mxu0 0.0
    %914 = vmatprep.subr.mxu0 0.0
    %915 = vmatpush1.msra.mxu0 0.0
    %916 = vmatprep.subr.mxu0 0.0
    %917 = vmatpush1.msra.mxu0 0.0
    %918 = vmatprep.subr.mxu0 0.0
    %919 = vmatpush1.msra.mxu0 0.0
    %920 = vmatprep.subr.mxu0 0.0
    %921 = vmatpush1.msra.mxu0 0.0
    %922 = vmatprep.subr.mxu0 0.0
    %923 = vmatpush1.msra.mxu0 0.0
    %924 = vmatprep.subr.mxu0 0.0
    %925 = vmatpush1.msra.mxu0 0.0
    %926 = vmatprep.mubr.f32.mxu0 0.0
    %927 = vmatmul.mubr.f32.gmra.mrb[0].mxu0 %v860
    %v928 = vpop.f32.mrb[0].mxu0
    %v929 = vadd.f32 0.0, %v928
    %v930 = vpop.f32.mrb[0].mxu0
    %931 = vdwg.mxu0
    %v932 = vadd.f32 %v854, %v929
    %v933 = vmax.f32 %v932, 0.0
    %v934 = vld [vmem:[%s8] sm:$0xff]
    %v935 = vld [vmem:[%s8 + $0x8] sm:$0xff]
    %v936 = vld [vmem:[%s8 + $0x10] sm:$0xff]
    %v937 = vld [vmem:[%s8 + $0x18] sm:$0xff]
    %v938 = vld [vmem:[%s9] sm:$0xff]
    %v939 = vld [vmem:[%s9 + $0x8] sm:$0xff]
    %v940 = vld [vmem:[%s9 + $0x10] sm:$0xff]
    %v941 = vld [vmem:[%s9 + $0x18] sm:$0xff]
    %942 = vmatprep.subr.mxu0 0.0
    %943 = vmatpush1.msra.mxu0 %v938
    %944 = vmatprep.subr.mxu0 0.0
    %945 = vmatpush1.msra.mxu0 %v939
    %946 = vmatprep.subr.mxu0 0.0
    %947 = vmatpush1.msra.mxu0 %v940
    %948 = vmatprep.subr.mxu0 0.0
    %949 = vmatpush1.msra.mxu0 %v941
    %950 = vmatprep.subr.mxu0 0.0
    %951 = vmatpush1.msra.mxu0 0.0
    %952 = vmatprep.subr.mxu0 0.0
    %953 = vmatpush1.msra.mxu0 0.0
    %954 = vmatprep.subr.mxu0 0.0
    %955 = vmatpush1.msra.mxu0 0.0
    %956 = vmatprep.subr.mxu0 0.0
    %957 = vmatpush1.msra.mxu0 0.0
    %958 = vmatprep.subr.mxu0 0.0
    %959 = vmatpush1.msra.mxu0 0.0
    %960 = vmatprep.subr.mxu0 0.0
    %961 = vmatpush1.msra.mxu0 0.0
    %962 = vmatprep.subr.mxu0 0.0
    %963 = vmatpush1.msra.mxu0 0.0
    %964 = vmatprep.subr.mxu0 0.0
    %965 = vmatpush1.msra.mxu0 0.0
    %966 = vmatprep.subr.mxu0 0.0
    %967 = vmatpush1.msra.mxu0 0.0
    %968 = vmatprep.subr.mxu0 0.0
    %969 = vmatpush1.msra.mxu0 0.0
    %970 = vmatprep.subr.mxu0 0.0
    %971 = vmatpush1.msra.mxu0 0.0
    %972 = vmatprep.subr.mxu0 0.0
    %973 = vmatpush1.msra.mxu0 0.0
    %974 = vmatprep.subr.mxu0 0.0
    %975 = vmatpush1.msra.mxu0 0.0
    %976 = vmatprep.subr.mxu0 0.0
    %977 = vmatpush1.msra.mxu0 0.0
    %978 = vmatprep.subr.mxu0 0.0
    %979 = vmatpush1.msra.mxu0 0.0
    %980 = vmatprep.subr.mxu0 0.0
    %981 = vmatpush1.msra.mxu0 0.0
    %982 = vmatprep.subr.mxu0 0.0
    %983 = vmatpush1.msra.mxu0 0.0
    %984 = vmatprep.subr.mxu0 0.0
    %985 = vmatpush1.msra.mxu0 0.0
    %986 = vmatprep.subr.mxu0 0.0
    %987 = vmatpush1.msra.mxu0 0.0
    %988 = vmatprep.subr.mxu0 0.0
    %989 = vmatpush1.msra.mxu0 0.0
    %990 = vmatprep.subr.mxu0 0.0
    %991 = vmatpush1.msra.mxu0 0.0
    %992 = vmatprep.subr.mxu0 0.0
    %993 = vmatpush1.msra.mxu0 0.0
    %994 = vmatprep.subr.mxu0 0.0
    %995 = vmatpush1.msra.mxu0 0.0
    %996 = vmatprep.subr.mxu0 0.0
    %997 = vmatpush1.msra.mxu0 0.0
    %998 = vmatprep.subr.mxu0 0.0
    %999 = vmatpush1.msra.mxu0 0.0
    %1000 = vmatprep.subr.mxu0 0.0
    %1001 = vmatpush1.msra.mxu0 0.0
    %1002 = vmatprep.subr.mxu0 0.0
    %1003 = vmatpush1.msra.mxu0 0.0
    %1004 = vmatprep.subr.mxu0 0.0
    %1005 = vmatpush1.msra.mxu0 0.0
    %1006 = vmatprep.mubr.f32.mxu0 0.0
    %1007 = vmatmul.mubr.f32.gmra.mrb[0].mxu0 %v371
    %v1008 = vpop.f32.mrb[0].mxu0
    %v1009 = vadd.f32 0.0, %v1008
    %v1010 = vpop.f32.mrb[0].mxu0
    %1011 = vdwg.mxu0
    %v1013 = vsel %vm121, %v933, 0
    %1015 = vmatprep.subr.mxu0 0.0
    %1016 = vmatpush1.msra.mxu0 %v934
    %1017 = vmatprep.subr.mxu0 0.0
    %1018 = vmatpush1.msra.mxu0 %v935
    %1019 = vmatprep.subr.mxu0 0.0
    %1020 = vmatpush1.msra.mxu0 %v936
    %1021 = vmatprep.subr.mxu0 0.0
    %1022 = vmatpush1.msra.mxu0 %v937
    %1023 = vmatprep.subr.mxu0 0.0
    %1024 = vmatpush1.msra.mxu0 0.0
    %1025 = vmatprep.subr.mxu0 0.0
    %1026 = vmatpush1.msra.mxu0 0.0
    %1027 = vmatprep.subr.mxu0 0.0
    %1028 = vmatpush1.msra.mxu0 0.0
    %1029 = vmatprep.subr.mxu0 0.0
    %1030 = vmatpush1.msra.mxu0 0.0
    %1031 = vmatprep.subr.mxu0 0.0
    %1032 = vmatpush1.msra.mxu0 0.0
    %1033 = vmatprep.subr.mxu0 0.0
    %1034 = vmatpush1.msra.mxu0 0.0
    %1035 = vmatprep.subr.mxu0 0.0
    %1036 = vmatpush1.msra.mxu0 0.0
    %1037 = vmatprep.subr.mxu0 0.0
    %1038 = vmatpush1.msra.mxu0 0.0
    %1039 = vmatprep.subr.mxu0 0.0
    %1040 = vmatpush1.msra.mxu0 0.0
    %1041 = vmatprep.subr.mxu0 0.0
    %1042 = vmatpush1.msra.mxu0 0.0
    %1043 = vmatprep.subr.mxu0 0.0
    %1044 = vmatpush1.msra.mxu0 0.0
    %1045 = vmatprep.subr.mxu0 0.0
    %1046 = vmatpush1.msra.mxu0 0.0
    %1047 = vmatprep.subr.mxu0 0.0
    %1048 = vmatpush1.msra.mxu0 0.0
    %1049 = vmatprep.subr.mxu0 0.0
    %1050 = vmatpush1.msra.mxu0 0.0
    %1051 = vmatprep.subr.mxu0 0.0
    %1052 = vmatpush1.msra.mxu0 0.0
    %1053 = vmatprep.subr.mxu0 0.0
    %1054 = vmatpush1.msra.mxu0 0.0
    %1055 = vmatprep.subr.mxu0 0.0
    %1056 = vmatpush1.msra.mxu0 0.0
    %1057 = vmatprep.subr.mxu0 0.0
    %1058 = vmatpush1.msra.mxu0 0.0
    %1059 = vmatprep.subr.mxu0 0.0
    %1060 = vmatpush1.msra.mxu0 0.0
    %1061 = vmatprep.subr.mxu0 0.0
    %1062 = vmatpush1.msra.mxu0 0.0
    %1063 = vmatprep.subr.mxu0 0.0
    %1064 = vmatpush1.msra.mxu0 0.0
    %1065 = vmatprep.subr.mxu0 0.0
    %1066 = vmatpush1.msra.mxu0 0.0
    %1067 = vmatprep.subr.mxu0 0.0
    %1068 = vmatpush1.msra.mxu0 0.0
    %1069 = vmatprep.subr.mxu0 0.0
    %1070 = vmatpush1.msra.mxu0 0.0
    %1071 = vmatprep.subr.mxu0 0.0
    %1072 = vmatpush1.msra.mxu0 0.0
    %1073 = vmatprep.subr.mxu0 0.0
    %1074 = vmatpush1.msra.mxu0 0.0
    %1075 = vmatprep.subr.mxu0 0.0
    %1076 = vmatpush1.msra.mxu0 0.0
    %1077 = vmatprep.subr.mxu0 0.0
    %1078 = vmatpush1.msra.mxu0 0.0
    %1079 = vmatprep.mubr.f32.mxu0 0.0
    %1080 = vmatmul.mubr.f32.gmra.mrb[0].mxu0 %v1013
    %v1081 = vpop.f32.mrb[0].mxu0
    %v1082 = vadd.f32 %v1009, %v1081
    %v1083 = vpop.f32.mrb[0].mxu0
    %1084 = vdwg.mxu0
    %v1085 = vadd.f32 %v1082, %v47
    %v1086 = vxor.u32 %v1085, 2147483648
    %v1087 = vmul.f32 %v1086, 1.442695
    %v1088 = vpow.pop %v1087
    %v1089 = vadd.f32 %v1088, 1.0
    %v1090 = vrcp.pop %v1089
    %v1091 = vmul.f32 1.0, %v1090
    %1093 = vrot.lane.b32.xlu0 %v1085, 32
    %v1094 = vpop.permute.xlu0 %1093
    %v1096 = vmul.f32 %v1091, %v1094
    %1098 = vrot.lane.b32.xlu0 %v1096, 64
    %v1099 = vpop.permute.xlu0 %1098
    %v1101 = vadd.f32 %v1085, %v1099
    %v1102 = vtanh.pop %v1101
    %v1103 = vsub.f32 1.0, %v1091
    %1105 = vrot.lane.b32.xlu0 %v1102, 96
    %v1106 = vpop.permute.xlu0 %1105
    %v1108 = vmul.f32 %v1103, %v1106
    %v1109 = vlaneseq
    %v1110 = vshrl.u32 %v1109, 7
    %v1111 = vsub.s32 0, %v1110
    %v1112 = vrot.slane %v352, %v1111
    %1113 = vrot.lane.b32.xlu0 %v1112, 32
    %v1114 = vpop.permute.xlu0 %1113
    %v1116 = vmul.f32 %v1091, %v1114
    %v1117 = vadd.f32 %v1108, %v1116
    %1119 = vrot.lane.b32.xlu0 %v1117, 96
    %v1120 = vpop.permute.xlu0 %1119
    %1122 = vst.msk [vmem:[#allocation5] sm:$0x1] %vm53, %v1120
    %s1123 = scalar_lea.vmem [#allocation3], 1
    %v1124 = vld [vmem:[%s1123] ss:$8 sm:$0xf]
    %v1125 = vld [vmem:[%s5] sm:$0xff]
    %v1126 = vld [vmem:[%s5 + $0x8] sm:$0xff]
    %v1127 = vld [vmem:[%s5 + $0x10] sm:$0xff]
    %v1128 = vld [vmem:[%s5 + $0x18] sm:$0xff]
    %v1129 = vld [vmem:[%s5 + $0x20] sm:$0xff]
    %v1130 = vld [vmem:[%s5 + $0x28] sm:$0xff]
    %v1131 = vld [vmem:[%s5 + $0x30] sm:$0xff]
    %v1132 = vld [vmem:[%s5 + $0x38] sm:$0xff]
    %v1133 = vld [vmem:[%s5 + $0x40] sm:$0xff]
    %v1134 = vld [vmem:[%s5 + $0x48] sm:$0xff]
    %v1135 = vld [vmem:[%s5 + $0x50] sm:$0xff]
    %v1136 = vld [vmem:[%s5 + $0x58] sm:$0xff]
    %v1137 = vld [vmem:[%s5 + $0x60] sm:$0xff]
    %v1138 = vld [vmem:[%s5 + $0x68] sm:$0xff]
    %v1139 = vld [vmem:[%s5 + $0x70] sm:$0xff]
    %v1140 = vld [vmem:[%s5 + $0x78] sm:$0xff]
    %v1141 = vsel %vm121, %v1120, 0
    %1143 = vmatprep.subr.mxu0 %v1126
    %1144 = vmatpush1.msra.mxu0 %v1125
    %1145 = vmatprep.subr.mxu0 %v1130
    %1146 = vmatpush1.msra.mxu0 %v1129
    %1147 = vmatprep.subr.mxu0 %v1134
    %1148 = vmatpush1.msra.mxu0 %v1133
    %1149 = vmatprep.subr.mxu0 %v1138
    %1150 = vmatpush1.msra.mxu0 %v1137
    %1151 = vmatprep.subr.mxu0 0.0
    %1152 = vmatpush1.msra.mxu0 0.0
    %1153 = vmatprep.subr.mxu0 0.0
    %1154 = vmatpush1.msra.mxu0 0.0
    %1155 = vmatprep.subr.mxu0 0.0
    %1156 = vmatpush1.msra.mxu0 0.0
    %1157 = vmatprep.subr.mxu0 0.0
    %1158 = vmatpush1.msra.mxu0 0.0
    %1159 = vmatprep.subr.mxu0 0.0
    %1160 = vmatpush1.msra.mxu0 0.0
    %1161 = vmatprep.subr.mxu0 0.0
    %1162 = vmatpush1.msra.mxu0 0.0
    %1163 = vmatprep.subr.mxu0 0.0
    %1164 = vmatpush1.msra.mxu0 0.0
    %1165 = vmatprep.subr.mxu0 0.0
    %1166 = vmatpush1.msra.mxu0 0.0
    %1167 = vmatprep.subr.mxu0 0.0
    %1168 = vmatpush1.msra.mxu0 0.0
    %1169 = vmatprep.subr.mxu0 0.0
    %1170 = vmatpush1.msra.mxu0 0.0
    %1171 = vmatprep.subr.mxu0 0.0
    %1172 = vmatpush1.msra.mxu0 0.0
    %1173 = vmatprep.subr.mxu0 0.0
    %1174 = vmatpush1.msra.mxu0 0.0
    %1175 = vmatprep.subr.mxu0 0.0
    %1176 = vmatpush1.msra.mxu0 0.0
    %1177 = vmatprep.subr.mxu0 0.0
    %1178 = vmatpush1.msra.mxu0 0.0
    %1179 = vmatprep.subr.mxu0 0.0
    %1180 = vmatpush1.msra.mxu0 0.0
    %1181 = vmatprep.subr.mxu0 0.0
    %1182 = vmatpush1.msra.mxu0 0.0
    %1183 = vmatprep.subr.mxu0 0.0
    %1184 = vmatpush1.msra.mxu0 0.0
    %1185 = vmatprep.subr.mxu0 0.0
    %1186 = vmatpush1.msra.mxu0 0.0
    %1187 = vmatprep.subr.mxu0 0.0
    %1188 = vmatpush1.msra.mxu0 0.0
    %1189 = vmatprep.subr.mxu0 0.0
    %1190 = vmatpush1.msra.mxu0 0.0
    %1191 = vmatprep.subr.mxu0 0.0
    %1192 = vmatpush1.msra.mxu0 0.0
    %1193 = vmatprep.subr.mxu0 0.0
    %1194 = vmatpush1.msra.mxu0 0.0
    %1195 = vmatprep.subr.mxu0 0.0
    %1196 = vmatpush1.msra.mxu0 0.0
    %1197 = vmatprep.subr.mxu0 0.0
    %1198 = vmatpush1.msra.mxu0 0.0
    %1199 = vmatprep.subr.mxu0 0.0
    %1200 = vmatpush1.msra.mxu0 0.0
    %1201 = vmatprep.subr.mxu0 0.0
    %1202 = vmatpush1.msra.mxu0 0.0
    %1203 = vmatprep.subr.mxu0 0.0
    %1204 = vmatpush1.msra.mxu0 0.0
    %1205 = vmatprep.subr.mxu0 0.0
    %1206 = vmatpush1.msra.mxu0 0.0
    %1207 = vmatprep.mubr.f32.mxu0 0.0
    %1208 = vmatmul.mubr.f32.gmra.mrb[0].mxu0 %v1141
    %v1209 = vpop.f32.mrb[0].mxu0
    %v1210 = vadd.f32 0.0, %v1209
    %v1211 = vpop.f32.mrb[0].mxu0
    %v1212 = vadd.f32 0.0, %v1211
    %1213 = vdwg.mxu0
    %1214 = vmatprep.subr.mxu0 %v1128
    %1215 = vmatpush1.msra.mxu0 %v1127
    %1216 = vmatprep.subr.mxu0 %v1132
    %1217 = vmatpush1.msra.mxu0 %v1131
    %1218 = vmatprep.subr.mxu0 %v1136
    %1219 = vmatpush1.msra.mxu0 %v1135
    %1220 = vmatprep.subr.mxu0 %v1140
    %1221 = vmatpush1.msra.mxu0 %v1139
    %1222 = vmatprep.subr.mxu0 0.0
    %1223 = vmatpush1.msra.mxu0 0.0
    %1224 = vmatprep.subr.mxu0 0.0
    %1225 = vmatpush1.msra.mxu0 0.0
    %1226 = vmatprep.subr.mxu0 0.0
    %1227 = vmatpush1.msra.mxu0 0.0
    %1228 = vmatprep.subr.mxu0 0.0
    %1229 = vmatpush1.msra.mxu0 0.0
    %1230 = vmatprep.subr.mxu0 0.0
    %1231 = vmatpush1.msra.mxu0 0.0
    %1232 = vmatprep.subr.mxu0 0.0
    %1233 = vmatpush1.msra.mxu0 0.0
    %1234 = vmatprep.subr.mxu0 0.0
    %1235 = vmatpush1.msra.mxu0 0.0
    %1236 = vmatprep.subr.mxu0 0.0
    %1237 = vmatpush1.msra.mxu0 0.0
    %1238 = vmatprep.subr.mxu0 0.0
    %1239 = vmatpush1.msra.mxu0 0.0
    %1240 = vmatprep.subr.mxu0 0.0
    %1241 = vmatpush1.msra.mxu0 0.0
    %1242 = vmatprep.subr.mxu0 0.0
    %1243 = vmatpush1.msra.mxu0 0.0
    %1244 = vmatprep.subr.mxu0 0.0
    %1245 = vmatpush1.msra.mxu0 0.0
    %1246 = vmatprep.subr.mxu0 0.0
    %1247 = vmatpush1.msra.mxu0 0.0
    %1248 = vmatprep.subr.mxu0 0.0
    %1249 = vmatpush1.msra.mxu0 0.0
    %1250 = vmatprep.subr.mxu0 0.0
    %1251 = vmatpush1.msra.mxu0 0.0
    %1252 = vmatprep.subr.mxu0 0.0
    %1253 = vmatpush1.msra.mxu0 0.0
    %1254 = vmatprep.subr.mxu0 0.0
    %1255 = vmatpush1.msra.mxu0 0.0
    %1256 = vmatprep.subr.mxu0 0.0
    %1257 = vmatpush1.msra.mxu0 0.0
    %1258 = vmatprep.subr.mxu0 0.0
    %1259 = vmatpush1.msra.mxu0 0.0
    %1260 = vmatprep.subr.mxu0 0.0
    %1261 = vmatpush1.msra.mxu0 0.0
    %1262 = vmatprep.subr.mxu0 0.0
    %1263 = vmatpush1.msra.mxu0 0.0
    %1264 = vmatprep.subr.mxu0 0.0
    %1265 = vmatpush1.msra.mxu0 0.0
    %1266 = vmatprep.subr.mxu0 0.0
    %1267 = vmatpush1.msra.mxu0 0.0
    %1268 = vmatprep.subr.mxu0 0.0
    %1269 = vmatpush1.msra.mxu0 0.0
    %1270 = vmatprep.subr.mxu0 0.0
    %1271 = vmatpush1.msra.mxu0 0.0
    %1272 = vmatprep.subr.mxu0 0.0
    %1273 = vmatpush1.msra.mxu0 0.0
    %1274 = vmatprep.subr.mxu0 0.0
    %1275 = vmatpush1.msra.mxu0 0.0
    %1276 = vmatprep.subr.mxu0 0.0
    %1277 = vmatpush1.msra.mxu0 0.0
    %1278 = vmatprep.mubr.f32.mxu0 0.0
    %1279 = vmatmul.mubr.f32.gmra.mrb[0].mxu0 %v1141
    %v1280 = vpop.f32.mrb[0].mxu0
    %v1281 = vadd.f32 0.0, %v1280
    %v1282 = vpop.f32.mrb[0].mxu0
    %v1283 = vadd.f32 0.0, %v1282
    %1284 = vdwg.mxu0
    %v1289 = vcombine.low %v1210, %v1212
    %v1290 = vcombine.low %v1281, %v1283
    %v1292 = vunpack.c.l.s4 1966171168
    %v1293 = vunpack.c.0.s8 %v1292
    %v1294 = vlaneseq
    %v1295 = vshrl.u32 %v1294, 7
    %v1296 = vsub.s32 %v1293, %v1295
    %v1297 = vrot.slane %v1289, %v1296
    %v1299 = vunpack.c.l.s4 1966171168
    %v1300 = vunpack.c.0.s8 %v1299
    %v1301 = vlaneseq
    %v1302 = vshrl.u32 %v1301, 7
    %v1303 = vsub.s32 %v1300, %v1302
    %v1304 = vrot.slane %v1290, %v1303
    %v1305 = vcombine.low %v1297, %v1304
    %v1307 = vunpack.c.l.s4 1966171168
    %v1308 = vunpack.c.0.s8 %v1307
    %v1309 = vlaneseq
    %v1310 = vshrl.u32 %v1309, 7
    %v1311 = vsub.s32 %v1308, %v1310
    %v1312 = vrot.slane %v1305, %v1311
    %v1314 = vadd.f32 %v1124, %v1312
    %v1316 = vlaneseq
    %v1317 = vshrl.u32 %v1316, 7
    %v1318 = vsub.s32 0, %v1317
    %v1319 = vrot.slane %v1314, %v1318
    %v1320 = vlaneseq
    %v1321 = vshrl.u32 %v1320, 7
    %v1322 = vsub.s32 1, %v1321
    %v1323 = vrot.slane %v1314, %v1322
    %v1324 = vlaneseq
    %v1325 = vshrl.u32 %v1324, 7
    %v1326 = vsub.s32 2, %v1325
    %v1327 = vrot.slane %v1314, %v1326
    %v1328 = vlaneseq
    %v1329 = vshrl.u32 %v1328, 7
    %v1330 = vsub.s32 3, %v1329
    %v1331 = vrot.slane %v1314, %v1330
    %v1336 = vsel %vm566, %v1319, -inf
    %v1337 = vsel %vm566, %v1323, -inf
    %v1338 = vsel %vm566, %v1327, -inf
    %v1339 = vsel %vm566, %v1331, -inf
    %v1340 = vmax.f32 %v1336, %v1337
    %v1341 = vmax.f32 %v1338, %v1339
    %v1342 = vmax.f32 %v1340, %v1341
    %1343 = vmax.xlane.f32.xlu0 %v1342
    %v1344 = vpop.xlane.xlu0 %1343
    %v1346 = vlaneseq
    %v1347 = vshrl.u32 %v1346, 7
    %v1348 = vsub.s32 0, %v1347
    %v1349 = vrot.slane %v1344, %v1348
    %v1351 = vsub.f32 %v1314, %v1349
    %v1352 = vmul.f32 %v1351, 1.442695
    %v1353 = vpow.pop %v1352
    %v1355 = vlaneseq
    %v1356 = vshrl.u32 %v1355, 7
    %v1357 = vsub.s32 0, %v1356
    %v1358 = vrot.slane %v1353, %v1357
    %v1359 = vlaneseq
    %v1360 = vshrl.u32 %v1359, 7
    %v1361 = vsub.s32 1, %v1360
    %v1362 = vrot.slane %v1353, %v1361
    %v1363 = vlaneseq
    %v1364 = vshrl.u32 %v1363, 7
    %v1365 = vsub.s32 2, %v1364
    %v1366 = vrot.slane %v1353, %v1365
    %v1367 = vlaneseq
    %v1368 = vshrl.u32 %v1367, 7
    %v1369 = vsub.s32 3, %v1368
    %v1370 = vrot.slane %v1353, %v1369
    %v1375 = vsel %vm566, %v1358, 0.0
    %v1376 = vsel %vm566, %v1362, 0.0
    %v1377 = vadd.f32 %v1375, %v1376
    %v1378 = vsel %vm566, %v1366, 0.0
    %v1379 = vadd.f32 %v1377, %v1378
    %v1380 = vsel %vm566, %v1370, 0.0
    %v1381 = vadd.f32 %v1379, %v1380
    %1382 = vadd.xlane.f32.xlu0 %v1381
    %v1383 = vpop.xlane.xlu0 %1382
    %v1385 = vlaneseq
    %v1386 = vshrl.u32 %v1385, 7
    %v1387 = vsub.s32 0, %v1386
    %v1388 = vrot.slane %v1383, %v1387
    %v1390 = vrcp.pop %v1388
    %v1391 = vmul.f32 %v1353, %v1390
    %s1392 = scalar_lea.vmem [#allocation8], 1
    %1393 = vst.msk [vmem:[%s1392] ss:$8 sm:$0xf] %vm626, %v1391
    %1394 = vst.msk [vmem:[%s1392] ss:$8 sm:$0x0] %vm626, %v1391
    %v1395 = vld [vmem:[%s3] sm:$0xff]
    %v1396 = vld [vmem:[%s3 + $0x8] sm:$0xff]
    %v1397 = vld [vmem:[%s3 + $0x10] sm:$0xff]
    %v1398 = vld [vmem:[%s3 + $0x18] sm:$0xff]
    %v1399 = vld [vmem:[%s3 + $0x20] sm:$0xff]
    %v1400 = vld [vmem:[%s3 + $0x28] sm:$0xff]
    %v1401 = vld [vmem:[%s3 + $0x30] sm:$0xff]
    %v1402 = vld [vmem:[%s3 + $0x38] sm:$0xff]
    %v1403 = vld [vmem:[%s3 + $0x40] sm:$0xff]
    %v1404 = vld [vmem:[%s3 + $0x48] sm:$0xff]
    %v1405 = vld [vmem:[%s3 + $0x50] sm:$0xff]
    %v1406 = vld [vmem:[%s3 + $0x58] sm:$0xff]
    %v1407 = vld [vmem:[%s3 + $0x60] sm:$0xff]
    %v1408 = vld [vmem:[%s3 + $0x68] sm:$0xff]
    %v1409 = vld [vmem:[%s3 + $0x70] sm:$0xff]
    %v1410 = vld [vmem:[%s3 + $0x78] sm:$0xff]
    %v1411 = vld [vmem:[%s3 + $0x80] sm:$0xff]
    %v1412 = vld [vmem:[%s3 + $0x88] sm:$0xff]
    %v1413 = vld [vmem:[%s3 + $0x90] sm:$0xff]
    %v1414 = vld [vmem:[%s3 + $0x98] sm:$0xff]
    %v1415 = vld [vmem:[%s3 + $0xa0] sm:$0xff]
    %v1416 = vld [vmem:[%s3 + $0xa8] sm:$0xff]
    %v1417 = vld [vmem:[%s3 + $0xb0] sm:$0xff]
    %v1418 = vld [vmem:[%s3 + $0xb8] sm:$0xff]
    %v1419 = vld [vmem:[%s3 + $0xc0] sm:$0xff]
    %v1420 = vld [vmem:[%s3 + $0xc8] sm:$0xff]
    %v1421 = vld [vmem:[%s3 + $0xd0] sm:$0xff]
    %v1422 = vld [vmem:[%s3 + $0xd8] sm:$0xff]
    %v1423 = vld [vmem:[%s3 + $0xe0] sm:$0xff]
    %v1424 = vld [vmem:[%s3 + $0xe8] sm:$0xff]
    %v1425 = vld [vmem:[%s3 + $0xf0] sm:$0xff]
    %v1426 = vld [vmem:[%s3 + $0xf8] sm:$0xff]
    %v1427 = vld [vmem:[%s3 + $0x100] sm:$0xff]
    %v1428 = vld [vmem:[%s3 + $0x108] sm:$0xff]
    %v1429 = vld [vmem:[%s3 + $0x110] sm:$0xff]
    %v1430 = vld [vmem:[%s3 + $0x118] sm:$0xff]
    %v1431 = vld [vmem:[%s3 + $0x120] sm:$0xff]
    %v1432 = vld [vmem:[%s3 + $0x128] sm:$0xff]
    %v1433 = vld [vmem:[%s3 + $0x130] sm:$0xff]
    %v1434 = vld [vmem:[%s3 + $0x138] sm:$0xff]
    %v1435 = vld [vmem:[%s3 + $0x140] sm:$0xff]
    %v1436 = vld [vmem:[%s3 + $0x148] sm:$0xff]
    %v1437 = vld [vmem:[%s3 + $0x150] sm:$0xff]
    %v1438 = vld [vmem:[%s3 + $0x158] sm:$0xff]
    %v1439 = vld [vmem:[%s3 + $0x160] sm:$0xff]
    %v1440 = vld [vmem:[%s3 + $0x168] sm:$0xff]
    %v1441 = vld [vmem:[%s3 + $0x170] sm:$0xff]
    %v1442 = vld [vmem:[%s3 + $0x178] sm:$0xff]
    %v1443 = vld [vmem:[%s3 + $0x180] sm:$0xff]
    %v1444 = vld [vmem:[%s3 + $0x188] sm:$0xff]
    %v1445 = vld [vmem:[%s3 + $0x190] sm:$0xff]
    %v1446 = vld [vmem:[%s3 + $0x198] sm:$0xff]
    %v1447 = vld [vmem:[%s3 + $0x1a0] sm:$0xff]
    %v1448 = vld [vmem:[%s3 + $0x1a8] sm:$0xff]
    %v1449 = vld [vmem:[%s3 + $0x1b0] sm:$0xff]
    %v1450 = vld [vmem:[%s3 + $0x1b8] sm:$0xff]
    %v1451 = vld [vmem:[%s3 + $0x1c0] sm:$0xff]
    %v1452 = vld [vmem:[%s3 + $0x1c8] sm:$0xff]
    %v1453 = vld [vmem:[%s3 + $0x1d0] sm:$0xff]
    %v1454 = vld [vmem:[%s3 + $0x1d8] sm:$0xff]
    %v1455 = vld [vmem:[%s3 + $0x1e0] sm:$0xff]
    %v1456 = vld [vmem:[%s3 + $0x1e8] sm:$0xff]
    %v1457 = vld [vmem:[%s3 + $0x1f0] sm:$0xff]
    %v1458 = vld [vmem:[%s3 + $0x1f8] sm:$0xff]
    %v1460 = vlaneseq
    %v1461 = vshrl.u32 %v1460, 7
    %v1462 = vsub.s32 0, %v1461
    %v1463 = vrot.slane %v1391, %v1462
    %v1464 = vlaneseq
    %v1465 = vshrl.u32 %v1464, 7
    %v1466 = vsub.s32 1, %v1465
    %v1467 = vrot.slane %v1391, %v1466
    %v1468 = vlaneseq
    %v1469 = vshrl.u32 %v1468, 7
    %v1470 = vsub.s32 2, %v1469
    %v1471 = vrot.slane %v1391, %v1470
    %v1472 = vlaneseq
    %v1473 = vshrl.u32 %v1472, 7
    %v1474 = vsub.s32 3, %v1473
    %v1475 = vrot.slane %v1391, %v1474
    %1480 = vmatprep.subr.mxu0 0.0
    %1481 = vmatpush1.msra.mxu0 %v1395
    %1482 = vmatprep.subr.mxu0 0.0
    %1483 = vmatpush1.msra.mxu0 %v1396
    %1484 = vmatprep.subr.mxu0 0.0
    %1485 = vmatpush1.msra.mxu0 %v1397
    %1486 = vmatprep.subr.mxu0 0.0
    %1487 = vmatpush1.msra.mxu0 %v1398
    %1488 = vmatprep.subr.mxu0 0.0
    %1489 = vmatpush1.msra.mxu0 %v1399
    %1490 = vmatprep.subr.mxu0 0.0
    %1491 = vmatpush1.msra.mxu0 %v1400
    %1492 = vmatprep.subr.mxu0 0.0
    %1493 = vmatpush1.msra.mxu0 %v1401
    %1494 = vmatprep.subr.mxu0 0.0
    %1495 = vmatpush1.msra.mxu0 %v1402
    %1496 = vmatprep.subr.mxu0 0.0
    %1497 = vmatpush1.msra.mxu0 %v1403
    %1498 = vmatprep.subr.mxu0 0.0
    %1499 = vmatpush1.msra.mxu0 %v1404
    %1500 = vmatprep.subr.mxu0 0.0
    %1501 = vmatpush1.msra.mxu0 %v1405
    %1502 = vmatprep.subr.mxu0 0.0
    %1503 = vmatpush1.msra.mxu0 %v1406
    %1504 = vmatprep.subr.mxu0 0.0
    %1505 = vmatpush1.msra.mxu0 %v1407
    %1506 = vmatprep.subr.mxu0 0.0
    %1507 = vmatpush1.msra.mxu0 %v1408
    %1508 = vmatprep.subr.mxu0 0.0
    %1509 = vmatpush1.msra.mxu0 %v1409
    %1510 = vmatprep.subr.mxu0 0.0
    %1511 = vmatpush1.msra.mxu0 %v1410
    %1512 = vmatprep.subr.mxu0 0.0
    %1513 = vmatpush1.msra.mxu0 %v1411
    %1514 = vmatprep.subr.mxu0 0.0
    %1515 = vmatpush1.msra.mxu0 %v1412
    %1516 = vmatprep.subr.mxu0 0.0
    %1517 = vmatpush1.msra.mxu0 %v1413
    %1518 = vmatprep.subr.mxu0 0.0
    %1519 = vmatpush1.msra.mxu0 %v1414
    %1520 = vmatprep.subr.mxu0 0.0
    %1521 = vmatpush1.msra.mxu0 %v1415
    %1522 = vmatprep.subr.mxu0 0.0
    %1523 = vmatpush1.msra.mxu0 %v1416
    %1524 = vmatprep.subr.mxu0 0.0
    %1525 = vmatpush1.msra.mxu0 %v1417
    %1526 = vmatprep.subr.mxu0 0.0
    %1527 = vmatpush1.msra.mxu0 %v1418
    %1528 = vmatprep.subr.mxu0 0.0
    %1529 = vmatpush1.msra.mxu0 %v1419
    %1530 = vmatprep.subr.mxu0 0.0
    %1531 = vmatpush1.msra.mxu0 %v1420
    %1532 = vmatprep.subr.mxu0 0.0
    %1533 = vmatpush1.msra.mxu0 %v1421
    %1534 = vmatprep.subr.mxu0 0.0
    %1535 = vmatpush1.msra.mxu0 %v1422
    %1536 = vmatprep.subr.mxu0 0.0
    %1537 = vmatpush1.msra.mxu0 %v1423
    %1538 = vmatprep.subr.mxu0 0.0
    %1539 = vmatpush1.msra.mxu0 %v1424
    %1540 = vmatprep.subr.mxu0 0.0
    %1541 = vmatpush1.msra.mxu0 %v1425
    %1542 = vmatprep.subr.mxu0 0.0
    %1543 = vmatpush1.msra.mxu0 %v1426
    %1544 = vmatprep.mubr.f32.mxu0 %v1467
    %1545 = vmatmul.mubr.f32.gmra.mrb[0].mxu0 %v1463
    %v1546 = vpop.f32.mrb[0].mxu0
    %v1547 = vadd.f32 0.0, %v1546
    %v1548 = vpop.f32.mrb[0].mxu0
    %1549 = vdwg.mxu0
    %1550 = vmatprep.subr.mxu0 0.0
    %1551 = vmatpush1.msra.mxu0 %v1427
    %1552 = vmatprep.subr.mxu0 0.0
    %1553 = vmatpush1.msra.mxu0 %v1428
    %1554 = vmatprep.subr.mxu0 0.0
    %1555 = vmatpush1.msra.mxu0 %v1429
    %1556 = vmatprep.subr.mxu0 0.0
    %1557 = vmatpush1.msra.mxu0 %v1430
    %1558 = vmatprep.subr.mxu0 0.0
    %1559 = vmatpush1.msra.mxu0 %v1431
    %1560 = vmatprep.subr.mxu0 0.0
    %1561 = vmatpush1.msra.mxu0 %v1432
    %1562 = vmatprep.subr.mxu0 0.0
    %1563 = vmatpush1.msra.mxu0 %v1433
    %1564 = vmatprep.subr.mxu0 0.0
    %1565 = vmatpush1.msra.mxu0 %v1434
    %1566 = vmatprep.subr.mxu0 0.0
    %1567 = vmatpush1.msra.mxu0 %v1435
    %1568 = vmatprep.subr.mxu0 0.0
    %1569 = vmatpush1.msra.mxu0 %v1436
    %1570 = vmatprep.subr.mxu0 0.0
    %1571 = vmatpush1.msra.mxu0 %v1437
    %1572 = vmatprep.subr.mxu0 0.0
    %1573 = vmatpush1.msra.mxu0 %v1438
    %1574 = vmatprep.subr.mxu0 0.0
    %1575 = vmatpush1.msra.mxu0 %v1439
    %1576 = vmatprep.subr.mxu0 0.0
    %1577 = vmatpush1.msra.mxu0 %v1440
    %1578 = vmatprep.subr.mxu0 0.0
    %1579 = vmatpush1.msra.mxu0 %v1441
    %1580 = vmatprep.subr.mxu0 0.0
    %1581 = vmatpush1.msra.mxu0 %v1442
    %1582 = vmatprep.subr.mxu0 0.0
    %1583 = vmatpush1.msra.mxu0 %v1443
    %1584 = vmatprep.subr.mxu0 0.0
    %1585 = vmatpush1.msra.mxu0 %v1444
    %1586 = vmatprep.subr.mxu0 0.0
    %1587 = vmatpush1.msra.mxu0 %v1445
    %1588 = vmatprep.subr.mxu0 0.0
    %1589 = vmatpush1.msra.mxu0 %v1446
    %1590 = vmatprep.subr.mxu0 0.0
    %1591 = vmatpush1.msra.mxu0 %v1447
    %1592 = vmatprep.subr.mxu0 0.0
    %1593 = vmatpush1.msra.mxu0 %v1448
    %1594 = vmatprep.subr.mxu0 0.0
    %1595 = vmatpush1.msra.mxu0 %v1449
    %1596 = vmatprep.subr.mxu0 0.0
    %1597 = vmatpush1.msra.mxu0 %v1450
    %1598 = vmatprep.subr.mxu0 0.0
    %1599 = vmatpush1.msra.mxu0 %v1451
    %1600 = vmatprep.subr.mxu0 0.0
    %1601 = vmatpush1.msra.mxu0 %v1452
    %1602 = vmatprep.subr.mxu0 0.0
    %1603 = vmatpush1.msra.mxu0 %v1453
    %1604 = vmatprep.subr.mxu0 0.0
    %1605 = vmatpush1.msra.mxu0 %v1454
    %1606 = vmatprep.subr.mxu0 0.0
    %1607 = vmatpush1.msra.mxu0 %v1455
    %1608 = vmatprep.subr.mxu0 0.0
    %1609 = vmatpush1.msra.mxu0 %v1456
    %1610 = vmatprep.subr.mxu0 0.0
    %1611 = vmatpush1.msra.mxu0 %v1457
    %1612 = vmatprep.subr.mxu0 0.0
    %1613 = vmatpush1.msra.mxu0 %v1458
    %1614 = vmatprep.mubr.f32.mxu0 %v1475
    %1615 = vmatmul.mubr.f32.gmra.mrb[0].mxu0 %v1471
    %v1616 = vpop.f32.mrb[0].mxu0
    %v1617 = vadd.f32 %v1547, %v1616
    %v1618 = vpop.f32.mrb[0].mxu0
    %1619 = vdwg.mxu0
    %v1620 = vld [vmem:[#allocation4 + $0x1] sm:$0x1]
    %v1621 = vld [vmem:[%s7] sm:$0xff]
    %v1622 = vld [vmem:[%s7 + $0x8] sm:$0xff]
    %v1623 = vld [vmem:[%s7 + $0x10] sm:$0xff]
    %v1624 = vld [vmem:[%s7 + $0x18] sm:$0xff]
    %v1626 = vsel %vm121, %v1617, 0
    %1628 = vmatprep.subr.mxu0 0.0
    %1629 = vmatpush1.msra.mxu0 %v1621
    %1630 = vmatprep.subr.mxu0 0.0
    %1631 = vmatpush1.msra.mxu0 %v1622
    %1632 = vmatprep.subr.mxu0 0.0
    %1633 = vmatpush1.msra.mxu0 %v1623
    %1634 = vmatprep.subr.mxu0 0.0
    %1635 = vmatpush1.msra.mxu0 %v1624
    %1636 = vmatprep.subr.mxu0 0.0
    %1637 = vmatpush1.msra.mxu0 0.0
    %1638 = vmatprep.subr.mxu0 0.0
    %1639 = vmatpush1.msra.mxu0 0.0
    %1640 = vmatprep.subr.mxu0 0.0
    %1641 = vmatpush1.msra.mxu0 0.0
    %1642 = vmatprep.subr.mxu0 0.0
    %1643 = vmatpush1.msra.mxu0 0.0
    %1644 = vmatprep.subr.mxu0 0.0
    %1645 = vmatpush1.msra.mxu0 0.0
    %1646 = vmatprep.subr.mxu0 0.0
    %1647 = vmatpush1.msra.mxu0 0.0
    %1648 = vmatprep.subr.mxu0 0.0
    %1649 = vmatpush1.msra.mxu0 0.0
    %1650 = vmatprep.subr.mxu0 0.0
    %1651 = vmatpush1.msra.mxu0 0.0
    %1652 = vmatprep.subr.mxu0 0.0
    %1653 = vmatpush1.msra.mxu0 0.0
    %1654 = vmatprep.subr.mxu0 0.0
    %1655 = vmatpush1.msra.mxu0 0.0
    %1656 = vmatprep.subr.mxu0 0.0
    %1657 = vmatpush1.msra.mxu0 0.0
    %1658 = vmatprep.subr.mxu0 0.0
    %1659 = vmatpush1.msra.mxu0 0.0
    %1660 = vmatprep.subr.mxu0 0.0
    %1661 = vmatpush1.msra.mxu0 0.0
    %1662 = vmatprep.subr.mxu0 0.0
    %1663 = vmatpush1.msra.mxu0 0.0
    %1664 = vmatprep.subr.mxu0 0.0
    %1665 = vmatpush1.msra.mxu0 0.0
    %1666 = vmatprep.subr.mxu0 0.0
    %1667 = vmatpush1.msra.mxu0 0.0
    %1668 = vmatprep.subr.mxu0 0.0
    %1669 = vmatpush1.msra.mxu0 0.0
    %1670 = vmatprep.subr.mxu0 0.0
    %1671 = vmatpush1.msra.mxu0 0.0
    %1672 = vmatprep.subr.mxu0 0.0
    %1673 = vmatpush1.msra.mxu0 0.0
    %1674 = vmatprep.subr.mxu0 0.0
    %1675 = vmatpush1.msra.mxu0 0.0
    %1676 = vmatprep.subr.mxu0 0.0
    %1677 = vmatpush1.msra.mxu0 0.0
    %1678 = vmatprep.subr.mxu0 0.0
    %1679 = vmatpush1.msra.mxu0 0.0
    %1680 = vmatprep.subr.mxu0 0.0
    %1681 = vmatpush1.msra.mxu0 0.0
    %1682 = vmatprep.subr.mxu0 0.0
    %1683 = vmatpush1.msra.mxu0 0.0
    %1684 = vmatprep.subr.mxu0 0.0
    %1685 = vmatpush1.msra.mxu0 0.0
    %1686 = vmatprep.subr.mxu0 0.0
    %1687 = vmatpush1.msra.mxu0 0.0
    %1688 = vmatprep.subr.mxu0 0.0
    %1689 = vmatpush1.msra.mxu0 0.0
    %1690 = vmatprep.subr.mxu0 0.0
    %1691 = vmatpush1.msra.mxu0 0.0
    %1692 = vmatprep.mubr.f32.mxu0 0.0
    %1693 = vmatmul.mubr.f32.gmra.mrb[0].mxu0 %v1626
    %v1694 = vpop.f32.mrb[0].mxu0
    %v1695 = vadd.f32 0.0, %v1694
    %v1696 = vpop.f32.mrb[0].mxu0
    %1697 = vdwg.mxu0
    %v1698 = vadd.f32 %v1620, %v1695
    %v1699 = vmax.f32 %v1698, 0.0
    %v1700 = vld [vmem:[%s8] sm:$0xff]
    %v1701 = vld [vmem:[%s8 + $0x8] sm:$0xff]
    %v1702 = vld [vmem:[%s8 + $0x10] sm:$0xff]
    %v1703 = vld [vmem:[%s8 + $0x18] sm:$0xff]
    %v1704 = vld [vmem:[%s9] sm:$0xff]
    %v1705 = vld [vmem:[%s9 + $0x8] sm:$0xff]
    %v1706 = vld [vmem:[%s9 + $0x10] sm:$0xff]
    %v1707 = vld [vmem:[%s9 + $0x18] sm:$0xff]
    %1708 = vmatprep.subr.mxu0 0.0
    %1709 = vmatpush1.msra.mxu0 %v1704
    %1710 = vmatprep.subr.mxu0 0.0
    %1711 = vmatpush1.msra.mxu0 %v1705
    %1712 = vmatprep.subr.mxu0 0.0
    %1713 = vmatpush1.msra.mxu0 %v1706
    %1714 = vmatprep.subr.mxu0 0.0
    %1715 = vmatpush1.msra.mxu0 %v1707
    %1716 = vmatprep.subr.mxu0 0.0
    %1717 = vmatpush1.msra.mxu0 0.0
    %1718 = vmatprep.subr.mxu0 0.0
    %1719 = vmatpush1.msra.mxu0 0.0
    %1720 = vmatprep.subr.mxu0 0.0
    %1721 = vmatpush1.msra.mxu0 0.0
    %1722 = vmatprep.subr.mxu0 0.0
    %1723 = vmatpush1.msra.mxu0 0.0
    %1724 = vmatprep.subr.mxu0 0.0
    %1725 = vmatpush1.msra.mxu0 0.0
    %1726 = vmatprep.subr.mxu0 0.0
    %1727 = vmatpush1.msra.mxu0 0.0
    %1728 = vmatprep.subr.mxu0 0.0
    %1729 = vmatpush1.msra.mxu0 0.0
    %1730 = vmatprep.subr.mxu0 0.0
    %1731 = vmatpush1.msra.mxu0 0.0
    %1732 = vmatprep.subr.mxu0 0.0
    %1733 = vmatpush1.msra.mxu0 0.0
    %1734 = vmatprep.subr.mxu0 0.0
    %1735 = vmatpush1.msra.mxu0 0.0
    %1736 = vmatprep.subr.mxu0 0.0
    %1737 = vmatpush1.msra.mxu0 0.0
    %1738 = vmatprep.subr.mxu0 0.0
    %1739 = vmatpush1.msra.mxu0 0.0
    %1740 = vmatprep.subr.mxu0 0.0
    %1741 = vmatpush1.msra.mxu0 0.0
    %1742 = vmatprep.subr.mxu0 0.0
    %1743 = vmatpush1.msra.mxu0 0.0
    %1744 = vmatprep.subr.mxu0 0.0
    %1745 = vmatpush1.msra.mxu0 0.0
    %1746 = vmatprep.subr.mxu0 0.0
    %1747 = vmatpush1.msra.mxu0 0.0
    %1748 = vmatprep.subr.mxu0 0.0
    %1749 = vmatpush1.msra.mxu0 0.0
    %1750 = vmatprep.subr.mxu0 0.0
    %1751 = vmatpush1.msra.mxu0 0.0
    %1752 = vmatprep.subr.mxu0 0.0
    %1753 = vmatpush1.msra.mxu0 0.0
    %1754 = vmatprep.subr.mxu0 0.0
    %1755 = vmatpush1.msra.mxu0 0.0
    %1756 = vmatprep.subr.mxu0 0.0
    %1757 = vmatpush1.msra.mxu0 0.0
    %1758 = vmatprep.subr.mxu0 0.0
    %1759 = vmatpush1.msra.mxu0 0.0
    %1760 = vmatprep.subr.mxu0 0.0
    %1761 = vmatpush1.msra.mxu0 0.0
    %1762 = vmatprep.subr.mxu0 0.0
    %1763 = vmatpush1.msra.mxu0 0.0
    %1764 = vmatprep.subr.mxu0 0.0
    %1765 = vmatpush1.msra.mxu0 0.0
    %1766 = vmatprep.subr.mxu0 0.0
    %1767 = vmatpush1.msra.mxu0 0.0
    %1768 = vmatprep.subr.mxu0 0.0
    %1769 = vmatpush1.msra.mxu0 0.0
    %1770 = vmatprep.subr.mxu0 0.0
    %1771 = vmatpush1.msra.mxu0 0.0
    %1772 = vmatprep.mubr.f32.mxu0 0.0
    %1773 = vmatmul.mubr.f32.gmra.mrb[0].mxu0 %v1141
    %v1774 = vpop.f32.mrb[0].mxu0
    %v1775 = vadd.f32 0.0, %v1774
    %v1776 = vpop.f32.mrb[0].mxu0
    %1777 = vdwg.mxu0
    %v1779 = vsel %vm121, %v1699, 0
    %1781 = vmatprep.subr.mxu0 0.0
    %1782 = vmatpush1.msra.mxu0 %v1700
    %1783 = vmatprep.subr.mxu0 0.0
    %1784 = vmatpush1.msra.mxu0 %v1701
    %1785 = vmatprep.subr.mxu0 0.0
    %1786 = vmatpush1.msra.mxu0 %v1702
    %1787 = vmatprep.subr.mxu0 0.0
    %1788 = vmatpush1.msra.mxu0 %v1703
    %1789 = vmatprep.subr.mxu0 0.0
    %1790 = vmatpush1.msra.mxu0 0.0
    %1791 = vmatprep.subr.mxu0 0.0
    %1792 = vmatpush1.msra.mxu0 0.0
    %1793 = vmatprep.subr.mxu0 0.0
    %1794 = vmatpush1.msra.mxu0 0.0
    %1795 = vmatprep.subr.mxu0 0.0
    %1796 = vmatpush1.msra.mxu0 0.0
    %1797 = vmatprep.subr.mxu0 0.0
    %1798 = vmatpush1.msra.mxu0 0.0
    %1799 = vmatprep.subr.mxu0 0.0
    %1800 = vmatpush1.msra.mxu0 0.0
    %1801 = vmatprep.subr.mxu0 0.0
    %1802 = vmatpush1.msra.mxu0 0.0
    %1803 = vmatprep.subr.mxu0 0.0
    %1804 = vmatpush1.msra.mxu0 0.0
    %1805 = vmatprep.subr.mxu0 0.0
    %1806 = vmatpush1.msra.mxu0 0.0
    %1807 = vmatprep.subr.mxu0 0.0
    %1808 = vmatpush1.msra.mxu0 0.0
    %1809 = vmatprep.subr.mxu0 0.0
    %1810 = vmatpush1.msra.mxu0 0.0
    %1811 = vmatprep.subr.mxu0 0.0
    %1812 = vmatpush1.msra.mxu0 0.0
    %1813 = vmatprep.subr.mxu0 0.0
    %1814 = vmatpush1.msra.mxu0 0.0
    %1815 = vmatprep.subr.mxu0 0.0
    %1816 = vmatpush1.msra.mxu0 0.0
    %1817 = vmatprep.subr.mxu0 0.0
    %1818 = vmatpush1.msra.mxu0 0.0
    %1819 = vmatprep.subr.mxu0 0.0
    %1820 = vmatpush1.msra.mxu0 0.0
    %1821 = vmatprep.subr.mxu0 0.0
    %1822 = vmatpush1.msra.mxu0 0.0
    %1823 = vmatprep.subr.mxu0 0.0
    %1824 = vmatpush1.msra.mxu0 0.0
    %1825 = vmatprep.subr.mxu0 0.0
    %1826 = vmatpush1.msra.mxu0 0.0
    %1827 = vmatprep.subr.mxu0 0.0
    %1828 = vmatpush1.msra.mxu0 0.0
    %1829 = vmatprep.subr.mxu0 0.0
    %1830 = vmatpush1.msra.mxu0 0.0
    %1831 = vmatprep.subr.mxu0 0.0
    %1832 = vmatpush1.msra.mxu0 0.0
    %1833 = vmatprep.subr.mxu0 0.0
    %1834 = vmatpush1.msra.mxu0 0.0
    %1835 = vmatprep.subr.mxu0 0.0
    %1836 = vmatpush1.msra.mxu0 0.0
    %1837 = vmatprep.subr.mxu0 0.0
    %1838 = vmatpush1.msra.mxu0 0.0
    %1839 = vmatprep.subr.mxu0 0.0
    %1840 = vmatpush1.msra.mxu0 0.0
    %1841 = vmatprep.subr.mxu0 0.0
    %1842 = vmatpush1.msra.mxu0 0.0
    %1843 = vmatprep.subr.mxu0 0.0
    %1844 = vmatpush1.msra.mxu0 0.0
    %1845 = vmatprep.mubr.f32.mxu0 0.0
    %1846 = vmatmul.mubr.f32.gmra.mrb[0].mxu0 %v1779
    %v1847 = vpop.f32.mrb[0].mxu0
    %v1848 = vadd.f32 %v1775, %v1847
    %v1849 = vpop.f32.mrb[0].mxu0
    %1850 = vdwg.mxu0
    %v1851 = vadd.f32 %v1848, %v47
    %v1852 = vxor.u32 %v1851, 2147483648
    %v1853 = vmul.f32 %v1852, 1.442695
    %v1854 = vpow.pop %v1853
    %v1855 = vadd.f32 %v1854, 1.0
    %v1856 = vrcp.pop %v1855
    %v1857 = vmul.f32 1.0, %v1856
    %1859 = vrot.lane.b32.xlu0 %v1851, 32
    %v1860 = vpop.permute.xlu0 %1859
    %v1862 = vmul.f32 %v1857, %v1860
    %1864 = vrot.lane.b32.xlu0 %v1862, 64
    %v1865 = vpop.permute.xlu0 %1864
    %v1867 = vadd.f32 %v1851, %v1865
    %v1868 = vtanh.pop %v1867
    %v1869 = vsub.f32 1.0, %v1857
    %1871 = vrot.lane.b32.xlu0 %v1868, 96
    %v1872 = vpop.permute.xlu0 %1871
    %v1874 = vmul.f32 %v1869, %v1872
    %v1875 = vmul.f32 %v1857, %v1117
    %v1876 = vadd.f32 %v1874, %v1875
    %1878 = vrot.lane.b32.xlu0 %v1876, 96
    %v1879 = vpop.permute.xlu0 %1878
    %1881 = vst.msk [vmem:[#allocation5 + $0x1] sm:$0x1] %vm53, %v1879
    %s1882 = scalar_lea.vmem [#allocation3], 2
    %v1883 = vld [vmem:[%s1882] ss:$8 sm:$0xf]
    %v1884 = vld [vmem:[%s5] sm:$0xff]
    %v1885 = vld [vmem:[%s5 + $0x8] sm:$0xff]
    %v1886 = vld [vmem:[%s5 + $0x10] sm:$0xff]
    %v1887 = vld [vmem:[%s5 + $0x18] sm:$0xff]
    %v1888 = vld [vmem:[%s5 + $0x20] sm:$0xff]
    %v1889 = vld [vmem:[%s5 + $0x28] sm:$0xff]
    %v1890 = vld [vmem:[%s5 + $0x30] sm:$0xff]
    %v1891 = vld [vmem:[%s5 + $0x38] sm:$0xff]
    %v1892 = vld [vmem:[%s5 + $0x40] sm:$0xff]
    %v1893 = vld [vmem:[%s5 + $0x48] sm:$0xff]
    %v1894 = vld [vmem:[%s5 + $0x50] sm:$0xff]
    %v1895 = vld [vmem:[%s5 + $0x58] sm:$0xff]
    %v1896 = vld [vmem:[%s5 + $0x60] sm:$0xff]
    %v1897 = vld [vmem:[%s5 + $0x68] sm:$0xff]
    %v1898 = vld [vmem:[%s5 + $0x70] sm:$0xff]
    %v1899 = vld [vmem:[%s5 + $0x78] sm:$0xff]
    %v1900 = vsel %vm121, %v1879, 0
    %1902 = vmatprep.subr.mxu0 %v1885
    %1903 = vmatpush1.msra.mxu0 %v1884
    %1904 = vmatprep.subr.mxu0 %v1889
    %1905 = vmatpush1.msra.mxu0 %v1888
    %1906 = vmatprep.subr.mxu0 %v1893
    %1907 = vmatpush1.msra.mxu0 %v1892
    %1908 = vmatprep.subr.mxu0 %v1897
    %1909 = vmatpush1.msra.mxu0 %v1896
    %1910 = vmatprep.subr.mxu0 0.0
    %1911 = vmatpush1.msra.mxu0 0.0
    %1912 = vmatprep.subr.mxu0 0.0
    %1913 = vmatpush1.msra.mxu0 0.0
    %1914 = vmatprep.subr.mxu0 0.0
    %1915 = vmatpush1.msra.mxu0 0.0
    %1916 = vmatprep.subr.mxu0 0.0
    %1917 = vmatpush1.msra.mxu0 0.0
    %1918 = vmatprep.subr.mxu0 0.0
    %1919 = vmatpush1.msra.mxu0 0.0
    %1920 = vmatprep.subr.mxu0 0.0
    %1921 = vmatpush1.msra.mxu0 0.0
    %1922 = vmatprep.subr.mxu0 0.0
    %1923 = vmatpush1.msra.mxu0 0.0
    %1924 = vmatprep.subr.mxu0 0.0
    %1925 = vmatpush1.msra.mxu0 0.0
    %1926 = vmatprep.subr.mxu0 0.0
    %1927 = vmatpush1.msra.mxu0 0.0
    %1928 = vmatprep.subr.mxu0 0.0
    %1929 = vmatpush1.msra.mxu0 0.0
    %1930 = vmatprep.subr.mxu0 0.0
    %1931 = vmatpush1.msra.mxu0 0.0
    %1932 = vmatprep.subr.mxu0 0.0
    %1933 = vmatpush1.msra.mxu0 0.0
    %1934 = vmatprep.subr.mxu0 0.0
    %1935 = vmatpush1.msra.mxu0 0.0
    %1936 = vmatprep.subr.mxu0 0.0
    %1937 = vmatpush1.msra.mxu0 0.0
    %1938 = vmatprep.subr.mxu0 0.0
    %1939 = vmatpush1.msra.mxu0 0.0
    %1940 = vmatprep.subr.mxu0 0.0
    %1941 = vmatpush1.msra.mxu0 0.0
    %1942 = vmatprep.subr.mxu0 0.0
    %1943 = vmatpush1.msra.mxu0 0.0
    %1944 = vmatprep.subr.mxu0 0.0
    %1945 = vmatpush1.msra.mxu0 0.0
    %1946 = vmatprep.subr.mxu0 0.0
    %1947 = vmatpush1.msra.mxu0 0.0
    %1948 = vmatprep.subr.mxu0 0.0
    %1949 = vmatpush1.msra.mxu0 0.0
    %1950 = vmatprep.subr.mxu0 0.0
    %1951 = vmatpush1.msra.mxu0 0.0
    %1952 = vmatprep.subr.mxu0 0.0
    %1953 = vmatpush1.msra.mxu0 0.0
    %1954 = vmatprep.subr.mxu0 0.0
    %1955 = vmatpush1.msra.mxu0 0.0
    %1956 = vmatprep.subr.mxu0 0.0
    %1957 = vmatpush1.msra.mxu0 0.0
    %1958 = vmatprep.subr.mxu0 0.0
    %1959 = vmatpush1.msra.mxu0 0.0
    %1960 = vmatprep.subr.mxu0 0.0
    %1961 = vmatpush1.msra.mxu0 0.0
    %1962 = vmatprep.subr.mxu0 0.0
    %1963 = vmatpush1.msra.mxu0 0.0
    %1964 = vmatprep.subr.mxu0 0.0
    %1965 = vmatpush1.msra.mxu0 0.0
    %1966 = vmatprep.mubr.f32.mxu0 0.0
    %1967 = vmatmul.mubr.f32.gmra.mrb[0].mxu0 %v1900
    %v1968 = vpop.f32.mrb[0].mxu0
    %v1969 = vadd.f32 0.0, %v1968
    %v1970 = vpop.f32.mrb[0].mxu0
    %v1971 = vadd.f32 0.0, %v1970
    %1972 = vdwg.mxu0
    %1973 = vmatprep.subr.mxu0 %v1887
    %1974 = vmatpush1.msra.mxu0 %v1886
    %1975 = vmatprep.subr.mxu0 %v1891
    %1976 = vmatpush1.msra.mxu0 %v1890
    %1977 = vmatprep.subr.mxu0 %v1895
    %1978 = vmatpush1.msra.mxu0 %v1894
    %1979 = vmatprep.subr.mxu0 %v1899
    %1980 = vmatpush1.msra.mxu0 %v1898
    %1981 = vmatprep.subr.mxu0 0.0
    %1982 = vmatpush1.msra.mxu0 0.0
    %1983 = vmatprep.subr.mxu0 0.0
    %1984 = vmatpush1.msra.mxu0 0.0
    %1985 = vmatprep.subr.mxu0 0.0
    %1986 = vmatpush1.msra.mxu0 0.0
    %1987 = vmatprep.subr.mxu0 0.0
    %1988 = vmatpush1.msra.mxu0 0.0
    %1989 = vmatprep.subr.mxu0 0.0
    %1990 = vmatpush1.msra.mxu0 0.0
    %1991 = vmatprep.subr.mxu0 0.0
    %1992 = vmatpush1.msra.mxu0 0.0
    %1993 = vmatprep.subr.mxu0 0.0
    %1994 = vmatpush1.msra.mxu0 0.0
    %1995 = vmatprep.subr.mxu0 0.0
    %1996 = vmatpush1.msra.mxu0 0.0
    %1997 = vmatprep.subr.mxu0 0.0
    %1998 = vmatpush1.msra.mxu0 0.0
    %1999 = vmatprep.subr.mxu0 0.0
    %2000 = vmatpush1.msra.mxu0 0.0
    %2001 = vmatprep.subr.mxu0 0.0
    %2002 = vmatpush1.msra.mxu0 0.0
    %2003 = vmatprep.subr.mxu0 0.0
    %2004 = vmatpush1.msra.mxu0 0.0
    %2005 = vmatprep.subr.mxu0 0.0
    %2006 = vmatpush1.msra.mxu0 0.0
    %2007 = vmatprep.subr.mxu0 0.0
    %2008 = vmatpush1.msra.mxu0 0.0
    %2009 = vmatprep.subr.mxu0 0.0
    %2010 = vmatpush1.msra.mxu0 0.0
    %2011 = vmatprep.subr.mxu0 0.0
    %2012 = vmatpush1.msra.mxu0 0.0
    %2013 = vmatprep.subr.mxu0 0.0
    %2014 = vmatpush1.msra.mxu0 0.0
    %2015 = vmatprep.subr.mxu0 0.0
    %2016 = vmatpush1.msra.mxu0 0.0
    %2017 = vmatprep.subr.mxu0 0.0
    %2018 = vmatpush1.msra.mxu0 0.0
    %2019 = vmatprep.subr.mxu0 0.0
    %2020 = vmatpush1.msra.mxu0 0.0
    %2021 = vmatprep.subr.mxu0 0.0
    %2022 = vmatpush1.msra.mxu0 0.0
    %2023 = vmatprep.subr.mxu0 0.0
    %2024 = vmatpush1.msra.mxu0 0.0
    %2025 = vmatprep.subr.mxu0 0.0
    %2026 = vmatpush1.msra.mxu0 0.0
    %2027 = vmatprep.subr.mxu0 0.0
    %2028 = vmatpush1.msra.mxu0 0.0
    %2029 = vmatprep.subr.mxu0 0.0
    %2030 = vmatpush1.msra.mxu0 0.0
    %2031 = vmatprep.subr.mxu0 0.0
    %2032 = vmatpush1.msra.mxu0 0.0
    %2033 = vmatprep.subr.mxu0 0.0
    %2034 = vmatpush1.msra.mxu0 0.0
    %2035 = vmatprep.subr.mxu0 0.0
    %2036 = vmatpush1.msra.mxu0 0.0
    %2037 = vmatprep.mubr.f32.mxu0 0.0
    %2038 = vmatmul.mubr.f32.gmra.mrb[0].mxu0 %v1900
    %v2039 = vpop.f32.mrb[0].mxu0
    %v2040 = vadd.f32 0.0, %v2039
    %v2041 = vpop.f32.mrb[0].mxu0
    %v2042 = vadd.f32 0.0, %v2041
    %2043 = vdwg.mxu0
    %v2048 = vcombine.low %v1969, %v1971
    %v2049 = vcombine.low %v2040, %v2042
    %v2051 = vunpack.c.l.s4 1966171168
    %v2052 = vunpack.c.0.s8 %v2051
    %v2053 = vlaneseq
    %v2054 = vshrl.u32 %v2053, 7
    %v2055 = vsub.s32 %v2052, %v2054
    %v2056 = vrot.slane %v2048, %v2055
    %v2058 = vunpack.c.l.s4 1966171168
    %v2059 = vunpack.c.0.s8 %v2058
    %v2060 = vlaneseq
    %v2061 = vshrl.u32 %v2060, 7
    %v2062 = vsub.s32 %v2059, %v2061
    %v2063 = vrot.slane %v2049, %v2062
    %v2064 = vcombine.low %v2056, %v2063
    %v2066 = vunpack.c.l.s4 1966171168
    %v2067 = vunpack.c.0.s8 %v2066
    %v2068 = vlaneseq
    %v2069 = vshrl.u32 %v2068, 7
    %v2070 = vsub.s32 %v2067, %v2069
    %v2071 = vrot.slane %v2064, %v2070
    %v2073 = vadd.f32 %v1883, %v2071
    %v2075 = vlaneseq
    %v2076 = vshrl.u32 %v2075, 7
    %v2077 = vsub.s32 0, %v2076
    %v2078 = vrot.slane %v2073, %v2077
    %v2079 = vlaneseq
    %v2080 = vshrl.u32 %v2079, 7
    %v2081 = vsub.s32 1, %v2080
    %v2082 = vrot.slane %v2073, %v2081
    %v2083 = vlaneseq
    %v2084 = vshrl.u32 %v2083, 7
    %v2085 = vsub.s32 2, %v2084
    %v2086 = vrot.slane %v2073, %v2085
    %v2087 = vlaneseq
    %v2088 = vshrl.u32 %v2087, 7
    %v2089 = vsub.s32 3, %v2088
    %v2090 = vrot.slane %v2073, %v2089
    %v2095 = vsel %vm566, %v2078, -inf
    %v2096 = vsel %vm566, %v2082, -inf
    %v2097 = vsel %vm566, %v2086, -inf
    %v2098 = vsel %vm566, %v2090, -inf
    %v2099 = vmax.f32 %v2095, %v2096
    %v2100 = vmax.f32 %v2097, %v2098
    %v2101 = vmax.f32 %v2099, %v2100
    %2102 = vmax.xlane.f32.xlu0 %v2101
    %v2103 = vpop.xlane.xlu0 %2102
    %v2105 = vlaneseq
    %v2106 = vshrl.u32 %v2105, 7
    %v2107 = vsub.s32 0, %v2106
    %v2108 = vrot.slane %v2103, %v2107
    %v2110 = vsub.f32 %v2073, %v2108
    %v2111 = vmul.f32 %v2110, 1.442695
    %v2112 = vpow.pop %v2111
    %v2114 = vlaneseq
    %v2115 = vshrl.u32 %v2114, 7
    %v2116 = vsub.s32 0, %v2115
    %v2117 = vrot.slane %v2112, %v2116
    %v2118 = vlaneseq
    %v2119 = vshrl.u32 %v2118, 7
    %v2120 = vsub.s32 1, %v2119
    %v2121 = vrot.slane %v2112, %v2120
    %v2122 = vlaneseq
    %v2123 = vshrl.u32 %v2122, 7
    %v2124 = vsub.s32 2, %v2123
    %v2125 = vrot.slane %v2112, %v2124
    %v2126 = vlaneseq
    %v2127 = vshrl.u32 %v2126, 7
    %v2128 = vsub.s32 3, %v2127
    %v2129 = vrot.slane %v2112, %v2128
    %v2134 = vsel %vm566, %v2117, 0.0
    %v2135 = vsel %vm566, %v2121, 0.0
    %v2136 = vadd.f32 %v2134, %v2135
    %v2137 = vsel %vm566, %v2125, 0.0
    %v2138 = vadd.f32 %v2136, %v2137
    %v2139 = vsel %vm566, %v2129, 0.0
    %v2140 = vadd.f32 %v2138, %v2139
    %2141 = vadd.xlane.f32.xlu0 %v2140
    %v2142 = vpop.xlane.xlu0 %2141
    %v2144 = vlaneseq
    %v2145 = vshrl.u32 %v2144, 7
    %v2146 = vsub.s32 0, %v2145
    %v2147 = vrot.slane %v2142, %v2146
    %v2149 = vrcp.pop %v2147
    %v2150 = vmul.f32 %v2112, %v2149
    %s2151 = scalar_lea.vmem [#allocation8], 2
    %2152 = vst.msk [vmem:[%s2151] ss:$8 sm:$0xf] %vm626, %v2150
    %2153 = vst.msk [vmem:[%s2151] ss:$8 sm:$0x0] %vm626, %v2150
    %v2154 = vld [vmem:[%s3] sm:$0xff]
    %v2155 = vld [vmem:[%s3 + $0x8] sm:$0xff]
    %v2156 = vld [vmem:[%s3 + $0x10] sm:$0xff]
    %v2157 = vld [vmem:[%s3 + $0x18] sm:$0xff]
    %v2158 = vld [vmem:[%s3 + $0x20] sm:$0xff]
    %v2159 = vld [vmem:[%s3 + $0x28] sm:$0xff]
    %v2160 = vld [vmem:[%s3 + $0x30] sm:$0xff]
    %v2161 = vld [vmem:[%s3 + $0x38] sm:$0xff]
    %v2162 = vld [vmem:[%s3 + $0x40] sm:$0xff]
    %v2163 = vld [vmem:[%s3 + $0x48] sm:$0xff]
    %v2164 = vld [vmem:[%s3 + $0x50] sm:$0xff]
    %v2165 = vld [vmem:[%s3 + $0x58] sm:$0xff]
    %v2166 = vld [vmem:[%s3 + $0x60] sm:$0xff]
    %v2167 = vld [vmem:[%s3 + $0x68] sm:$0xff]
    %v2168 = vld [vmem:[%s3 + $0x70] sm:$0xff]
    %v2169 = vld [vmem:[%s3 + $0x78] sm:$0xff]
    %v2170 = vld [vmem:[%s3 + $0x80] sm:$0xff]
    %v2171 = vld [vmem:[%s3 + $0x88] sm:$0xff]
    %v2172 = vld [vmem:[%s3 + $0x90] sm:$0xff]
    %v2173 = vld [vmem:[%s3 + $0x98] sm:$0xff]
    %v2174 = vld [vmem:[%s3 + $0xa0] sm:$0xff]
    %v2175 = vld [vmem:[%s3 + $0xa8] sm:$0xff]
    %v2176 = vld [vmem:[%s3 + $0xb0] sm:$0xff]
    %v2177 = vld [vmem:[%s3 + $0xb8] sm:$0xff]
    %v2178 = vld [vmem:[%s3 + $0xc0] sm:$0xff]
    %v2179 = vld [vmem:[%s3 + $0xc8] sm:$0xff]
    %v2180 = vld [vmem:[%s3 + $0xd0] sm:$0xff]
    %v2181 = vld [vmem:[%s3 + $0xd8] sm:$0xff]
    %v2182 = vld [vmem:[%s3 + $0xe0] sm:$0xff]
    %v2183 = vld [vmem:[%s3 + $0xe8] sm:$0xff]
    %v2184 = vld [vmem:[%s3 + $0xf0] sm:$0xff]
    %v2185 = vld [vmem:[%s3 + $0xf8] sm:$0xff]
    %v2186 = vld [vmem:[%s3 + $0x100] sm:$0xff]
    %v2187 = vld [vmem:[%s3 + $0x108] sm:$0xff]
    %v2188 = vld [vmem:[%s3 + $0x110] sm:$0xff]
    %v2189 = vld [vmem:[%s3 + $0x118] sm:$0xff]
    %v2190 = vld [vmem:[%s3 + $0x120] sm:$0xff]
    %v2191 = vld [vmem:[%s3 + $0x128] sm:$0xff]
    %v2192 = vld [vmem:[%s3 + $0x130] sm:$0xff]
    %v2193 = vld [vmem:[%s3 + $0x138] sm:$0xff]
    %v2194 = vld [vmem:[%s3 + $0x140] sm:$0xff]
    %v2195 = vld [vmem:[%s3 + $0x148] sm:$0xff]
    %v2196 = vld [vmem:[%s3 + $0x150] sm:$0xff]
    %v2197 = vld [vmem:[%s3 + $0x158] sm:$0xff]
    %v2198 = vld [vmem:[%s3 + $0x160] sm:$0xff]
    %v2199 = vld [vmem:[%s3 + $0x168] sm:$0xff]
    %v2200 = vld [vmem:[%s3 + $0x170] sm:$0xff]
    %v2201 = vld [vmem:[%s3 + $0x178] sm:$0xff]
    %v2202 = vld [vmem:[%s3 + $0x180] sm:$0xff]
    %v2203 = vld [vmem:[%s3 + $0x188] sm:$0xff]
    %v2204 = vld [vmem:[%s3 + $0x190] sm:$0xff]
    %v2205 = vld [vmem:[%s3 + $0x198] sm:$0xff]
    %v2206 = vld [vmem:[%s3 + $0x1a0] sm:$0xff]
    %v2207 = vld [vmem:[%s3 + $0x1a8] sm:$0xff]
    %v2208 = vld [vmem:[%s3 + $0x1b0] sm:$0xff]
    %v2209 = vld [vmem:[%s3 + $0x1b8] sm:$0xff]
    %v2210 = vld [vmem:[%s3 + $0x1c0] sm:$0xff]
    %v2211 = vld [vmem:[%s3 + $0x1c8] sm:$0xff]
    %v2212 = vld [vmem:[%s3 + $0x1d0] sm:$0xff]
    %v2213 = vld [vmem:[%s3 + $0x1d8] sm:$0xff]
    %v2214 = vld [vmem:[%s3 + $0x1e0] sm:$0xff]
    %v2215 = vld [vmem:[%s3 + $0x1e8] sm:$0xff]
    %v2216 = vld [vmem:[%s3 + $0x1f0] sm:$0xff]
    %v2217 = vld [vmem:[%s3 + $0x1f8] sm:$0xff]
    %v2219 = vlaneseq
    %v2220 = vshrl.u32 %v2219, 7
    %v2221 = vsub.s32 0, %v2220
    %v2222 = vrot.slane %v2150, %v2221
    %v2223 = vlaneseq
    %v2224 = vshrl.u32 %v2223, 7
    %v2225 = vsub.s32 1, %v2224
    %v2226 = vrot.slane %v2150, %v2225
    %v2227 = vlaneseq
    %v2228 = vshrl.u32 %v2227, 7
    %v2229 = vsub.s32 2, %v2228
    %v2230 = vrot.slane %v2150, %v2229
    %v2231 = vlaneseq
    %v2232 = vshrl.u32 %v2231, 7
    %v2233 = vsub.s32 3, %v2232
    %v2234 = vrot.slane %v2150, %v2233
    %2239 = vmatprep.subr.mxu0 0.0
    %2240 = vmatpush1.msra.mxu0 %v2154
    %2241 = vmatprep.subr.mxu0 0.0
    %2242 = vmatpush1.msra.mxu0 %v2155
    %2243 = vmatprep.subr.mxu0 0.0
    %2244 = vmatpush1.msra.mxu0 %v2156
    %2245 = vmatprep.subr.mxu0 0.0
    %2246 = vmatpush1.msra.mxu0 %v2157
    %2247 = vmatprep.subr.mxu0 0.0
    %2248 = vmatpush1.msra.mxu0 %v2158
    %2249 = vmatprep.subr.mxu0 0.0
    %2250 = vmatpush1.msra.mxu0 %v2159
    %2251 = vmatprep.subr.mxu0 0.0
    %2252 = vmatpush1.msra.mxu0 %v2160
    %2253 = vmatprep.subr.mxu0 0.0
    %2254 = vmatpush1.msra.mxu0 %v2161
    %2255 = vmatprep.subr.mxu0 0.0
    %2256 = vmatpush1.msra.mxu0 %v2162
    %2257 = vmatprep.subr.mxu0 0.0
    %2258 = vmatpush1.msra.mxu0 %v2163
    %2259 = vmatprep.subr.mxu0 0.0
    %2260 = vmatpush1.msra.mxu0 %v2164
    %2261 = vmatprep.subr.mxu0 0.0
    %2262 = vmatpush1.msra.mxu0 %v2165
    %2263 = vmatprep.subr.mxu0 0.0
    %2264 = vmatpush1.msra.mxu0 %v2166
    %2265 = vmatprep.subr.mxu0 0.0
    %2266 = vmatpush1.msra.mxu0 %v2167
    %2267 = vmatprep.subr.mxu0 0.0
    %2268 = vmatpush1.msra.mxu0 %v2168
    %2269 = vmatprep.subr.mxu0 0.0
    %2270 = vmatpush1.msra.mxu0 %v2169
    %2271 = vmatprep.subr.mxu0 0.0
    %2272 = vmatpush1.msra.mxu0 %v2170
    %2273 = vmatprep.subr.mxu0 0.0
    %2274 = vmatpush1.msra.mxu0 %v2171
    %2275 = vmatprep.subr.mxu0 0.0
    %2276 = vmatpush1.msra.mxu0 %v2172
    %2277 = vmatprep.subr.mxu0 0.0
    %2278 = vmatpush1.msra.mxu0 %v2173
    %2279 = vmatprep.subr.mxu0 0.0
    %2280 = vmatpush1.msra.mxu0 %v2174
    %2281 = vmatprep.subr.mxu0 0.0
    %2282 = vmatpush1.msra.mxu0 %v2175
    %2283 = vmatprep.subr.mxu0 0.0
    %2284 = vmatpush1.msra.mxu0 %v2176
    %2285 = vmatprep.subr.mxu0 0.0
    %2286 = vmatpush1.msra.mxu0 %v2177
    %2287 = vmatprep.subr.mxu0 0.0
    %2288 = vmatpush1.msra.mxu0 %v2178
    %2289 = vmatprep.subr.mxu0 0.0
    %2290 = vmatpush1.msra.mxu0 %v2179
    %2291 = vmatprep.subr.mxu0 0.0
    %2292 = vmatpush1.msra.mxu0 %v2180
    %2293 = vmatprep.subr.mxu0 0.0
    %2294 = vmatpush1.msra.mxu0 %v2181
    %2295 = vmatprep.subr.mxu0 0.0
    %2296 = vmatpush1.msra.mxu0 %v2182
    %2297 = vmatprep.subr.mxu0 0.0
    %2298 = vmatpush1.msra.mxu0 %v2183
    %2299 = vmatprep.subr.mxu0 0.0
    %2300 = vmatpush1.msra.mxu0 %v2184
    %2301 = vmatprep.subr.mxu0 0.0
    %2302 = vmatpush1.msra.mxu0 %v2185
    %2303 = vmatprep.mubr.f32.mxu0 %v2226
    %2304 = vmatmul.mubr.f32.gmra.mrb[0].mxu0 %v2222
    %v2305 = vpop.f32.mrb[0].mxu0
    %v2306 = vadd.f32 0.0, %v2305
    %v2307 = vpop.f32.mrb[0].mxu0
    %2308 = vdwg.mxu0
    %2309 = vmatprep.subr.mxu0 0.0
    %2310 = vmatpush1.msra.mxu0 %v2186
    %2311 = vmatprep.subr.mxu0 0.0
    %2312 = vmatpush1.msra.mxu0 %v2187
    %2313 = vmatprep.subr.mxu0 0.0
    %2314 = vmatpush1.msra.mxu0 %v2188
    %2315 = vmatprep.subr.mxu0 0.0
    %2316 = vmatpush1.msra.mxu0 %v2189
    %2317 = vmatprep.subr.mxu0 0.0
    %2318 = vmatpush1.msra.mxu0 %v2190
    %2319 = vmatprep.subr.mxu0 0.0
    %2320 = vmatpush1.msra.mxu0 %v2191
    %2321 = vmatprep.subr.mxu0 0.0
    %2322 = vmatpush1.msra.mxu0 %v2192
    %2323 = vmatprep.subr.mxu0 0.0
    %2324 = vmatpush1.msra.mxu0 %v2193
    %2325 = vmatprep.subr.mxu0 0.0
    %2326 = vmatpush1.msra.mxu0 %v2194
    %2327 = vmatprep.subr.mxu0 0.0
    %2328 = vmatpush1.msra.mxu0 %v2195
    %2329 = vmatprep.subr.mxu0 0.0
    %2330 = vmatpush1.msra.mxu0 %v2196
    %2331 = vmatprep.subr.mxu0 0.0
    %2332 = vmatpush1.msra.mxu0 %v2197
    %2333 = vmatprep.subr.mxu0 0.0
    %2334 = vmatpush1.msra.mxu0 %v2198
    %2335 = vmatprep.subr.mxu0 0.0
    %2336 = vmatpush1.msra.mxu0 %v2199
    %2337 = vmatprep.subr.mxu0 0.0
    %2338 = vmatpush1.msra.mxu0 %v2200
    %2339 = vmatprep.subr.mxu0 0.0
    %2340 = vmatpush1.msra.mxu0 %v2201
    %2341 = vmatprep.subr.mxu0 0.0
    %2342 = vmatpush1.msra.mxu0 %v2202
    %2343 = vmatprep.subr.mxu0 0.0
    %2344 = vmatpush1.msra.mxu0 %v2203
    %2345 = vmatprep.subr.mxu0 0.0
    %2346 = vmatpush1.msra.mxu0 %v2204
    %2347 = vmatprep.subr.mxu0 0.0
    %2348 = vmatpush1.msra.mxu0 %v2205
    %2349 = vmatprep.subr.mxu0 0.0
    %2350 = vmatpush1.msra.mxu0 %v2206
    %2351 = vmatprep.subr.mxu0 0.0
    %2352 = vmatpush1.msra.mxu0 %v2207
    %2353 = vmatprep.subr.mxu0 0.0
    %2354 = vmatpush1.msra.mxu0 %v2208
    %2355 = vmatprep.subr.mxu0 0.0
    %2356 = vmatpush1.msra.mxu0 %v2209
    %2357 = vmatprep.subr.mxu0 0.0
    %2358 = vmatpush1.msra.mxu0 %v2210
    %2359 = vmatprep.subr.mxu0 0.0
    %2360 = vmatpush1.msra.mxu0 %v2211
    %2361 = vmatprep.subr.mxu0 0.0
    %2362 = vmatpush1.msra.mxu0 %v2212
    %2363 = vmatprep.subr.mxu0 0.0
    %2364 = vmatpush1.msra.mxu0 %v2213
    %2365 = vmatprep.subr.mxu0 0.0
    %2366 = vmatpush1.msra.mxu0 %v2214
    %2367 = vmatprep.subr.mxu0 0.0
    %2368 = vmatpush1.msra.mxu0 %v2215
    %2369 = vmatprep.subr.mxu0 0.0
    %2370 = vmatpush1.msra.mxu0 %v2216
    %2371 = vmatprep.subr.mxu0 0.0
    %2372 = vmatpush1.msra.mxu0 %v2217
    %2373 = vmatprep.mubr.f32.mxu0 %v2234
    %2374 = vmatmul.mubr.f32.gmra.mrb[0].mxu0 %v2230
    %v2375 = vpop.f32.mrb[0].mxu0
    %v2376 = vadd.f32 %v2306, %v2375
    %v2377 = vpop.f32.mrb[0].mxu0
    %2378 = vdwg.mxu0
    %v2379 = vld [vmem:[#allocation4 + $0x2] sm:$0x1]
    %v2380 = vld [vmem:[%s7] sm:$0xff]
    %v2381 = vld [vmem:[%s7 + $0x8] sm:$0xff]
    %v2382 = vld [vmem:[%s7 + $0x10] sm:$0xff]
    %v2383 = vld [vmem:[%s7 + $0x18] sm:$0xff]
    %v2385 = vsel %vm121, %v2376, 0
    %2387 = vmatprep.subr.mxu0 0.0
    %2388 = vmatpush1.msra.mxu0 %v2380
    %2389 = vmatprep.subr.mxu0 0.0
    %2390 = vmatpush1.msra.mxu0 %v2381
    %2391 = vmatprep.subr.mxu0 0.0
    %2392 = vmatpush1.msra.mxu0 %v2382
    %2393 = vmatprep.subr.mxu0 0.0
    %2394 = vmatpush1.msra.mxu0 %v2383
    %2395 = vmatprep.subr.mxu0 0.0
    %2396 = vmatpush1.msra.mxu0 0.0
    %2397 = vmatprep.subr.mxu0 0.0
    %2398 = vmatpush1.msra.mxu0 0.0
    %2399 = vmatprep.subr.mxu0 0.0
    %2400 = vmatpush1.msra.mxu0 0.0
    %2401 = vmatprep.subr.mxu0 0.0
    %2402 = vmatpush1.msra.mxu0 0.0
    %2403 = vmatprep.subr.mxu0 0.0
    %2404 = vmatpush1.msra.mxu0 0.0
    %2405 = vmatprep.subr.mxu0 0.0
    %2406 = vmatpush1.msra.mxu0 0.0
    %2407 = vmatprep.subr.mxu0 0.0
    %2408 = vmatpush1.msra.mxu0 0.0
    %2409 = vmatprep.subr.mxu0 0.0
    %2410 = vmatpush1.msra.mxu0 0.0
    %2411 = vmatprep.subr.mxu0 0.0
    %2412 = vmatpush1.msra.mxu0 0.0
    %2413 = vmatprep.subr.mxu0 0.0
    %2414 = vmatpush1.msra.mxu0 0.0
    %2415 = vmatprep.subr.mxu0 0.0
    %2416 = vmatpush1.msra.mxu0 0.0
    %2417 = vmatprep.subr.mxu0 0.0
    %2418 = vmatpush1.msra.mxu0 0.0
    %2419 = vmatprep.subr.mxu0 0.0
    %2420 = vmatpush1.msra.mxu0 0.0
    %2421 = vmatprep.subr.mxu0 0.0
    %2422 = vmatpush1.msra.mxu0 0.0
    %2423 = vmatprep.subr.mxu0 0.0
    %2424 = vmatpush1.msra.mxu0 0.0
    %2425 = vmatprep.subr.mxu0 0.0
    %2426 = vmatpush1.msra.mxu0 0.0
    %2427 = vmatprep.subr.mxu0 0.0
    %2428 = vmatpush1.msra.mxu0 0.0
    %2429 = vmatprep.subr.mxu0 0.0
    %2430 = vmatpush1.msra.mxu0 0.0
    %2431 = vmatprep.subr.mxu0 0.0
    %2432 = vmatpush1.msra.mxu0 0.0
    %2433 = vmatprep.subr.mxu0 0.0
    %2434 = vmatpush1.msra.mxu0 0.0
    %2435 = vmatprep.subr.mxu0 0.0
    %2436 = vmatpush1.msra.mxu0 0.0
    %2437 = vmatprep.subr.mxu0 0.0
    %2438 = vmatpush1.msra.mxu0 0.0
    %2439 = vmatprep.subr.mxu0 0.0
    %2440 = vmatpush1.msra.mxu0 0.0
    %2441 = vmatprep.subr.mxu0 0.0
    %2442 = vmatpush1.msra.mxu0 0.0
    %2443 = vmatprep.subr.mxu0 0.0
    %2444 = vmatpush1.msra.mxu0 0.0
    %2445 = vmatprep.subr.mxu0 0.0
    %2446 = vmatpush1.msra.mxu0 0.0
    %2447 = vmatprep.subr.mxu0 0.0
    %2448 = vmatpush1.msra.mxu0 0.0
    %2449 = vmatprep.subr.mxu0 0.0
    %2450 = vmatpush1.msra.mxu0 0.0
    %2451 = vmatprep.mubr.f32.mxu0 0.0
    %2452 = vmatmul.mubr.f32.gmra.mrb[0].mxu0 %v2385
    %v2453 = vpop.f32.mrb[0].mxu0
    %v2454 = vadd.f32 0.0, %v2453
    %v2455 = vpop.f32.mrb[0].mxu0
    %2456 = vdwg.mxu0
    %v2457 = vadd.f32 %v2379, %v2454
    %v2458 = vmax.f32 %v2457, 0.0
    %v2459 = vld [vmem:[%s8] sm:$0xff]
    %v2460 = vld [vmem:[%s8 + $0x8] sm:$0xff]
    %v2461 = vld [vmem:[%s8 + $0x10] sm:$0xff]
    %v2462 = vld [vmem:[%s8 + $0x18] sm:$0xff]
    %v2463 = vld [vmem:[%s9] sm:$0xff]
    %v2464 = vld [vmem:[%s9 + $0x8] sm:$0xff]
    %v2465 = vld [vmem:[%s9 + $0x10] sm:$0xff]
    %v2466 = vld [vmem:[%s9 + $0x18] sm:$0xff]
    %2467 = vmatprep.subr.mxu0 0.0
    %2468 = vmatpush1.msra.mxu0 %v2463
    %2469 = vmatprep.subr.mxu0 0.0
    %2470 = vmatpush1.msra.mxu0 %v2464
    %2471 = vmatprep.subr.mxu0 0.0
    %2472 = vmatpush1.msra.mxu0 %v2465
    %2473 = vmatprep.subr.mxu0 0.0
    %2474 = vmatpush1.msra.mxu0 %v2466
    %2475 = vmatprep.subr.mxu0 0.0
    %2476 = vmatpush1.msra.mxu0 0.0
    %2477 = vmatprep.subr.mxu0 0.0
    %2478 = vmatpush1.msra.mxu0 0.0
    %2479 = vmatprep.subr.mxu0 0.0
    %2480 = vmatpush1.msra.mxu0 0.0
    %2481 = vmatprep.subr.mxu0 0.0
    %2482 = vmatpush1.msra.mxu0 0.0
    %2483 = vmatprep.subr.mxu0 0.0
    %2484 = vmatpush1.msra.mxu0 0.0
    %2485 = vmatprep.subr.mxu0 0.0
    %2486 = vmatpush1.msra.mxu0 0.0
    %2487 = vmatprep.subr.mxu0 0.0
    %2488 = vmatpush1.msra.mxu0 0.0
    %2489 = vmatprep.subr.mxu0 0.0
    %2490 = vmatpush1.msra.mxu0 0.0
    %2491 = vmatprep.subr.mxu0 0.0
    %2492 = vmatpush1.msra.mxu0 0.0
    %2493 = vmatprep.subr.mxu0 0.0
    %2494 = vmatpush1.msra.mxu0 0.0
    %2495 = vmatprep.subr.mxu0 0.0
    %2496 = vmatpush1.msra.mxu0 0.0
    %2497 = vmatprep.subr.mxu0 0.0
    %2498 = vmatpush1.msra.mxu0 0.0
    %2499 = vmatprep.subr.mxu0 0.0
    %2500 = vmatpush1.msra.mxu0 0.0
    %2501 = vmatprep.subr.mxu0 0.0
    %2502 = vmatpush1.msra.mxu0 0.0
    %2503 = vmatprep.subr.mxu0 0.0
    %2504 = vmatpush1.msra.mxu0 0.0
    %2505 = vmatprep.subr.mxu0 0.0
    %2506 = vmatpush1.msra.mxu0 0.0
    %2507 = vmatprep.subr.mxu0 0.0
    %2508 = vmatpush1.msra.mxu0 0.0
    %2509 = vmatprep.subr.mxu0 0.0
    %2510 = vmatpush1.msra.mxu0 0.0
    %2511 = vmatprep.subr.mxu0 0.0
    %2512 = vmatpush1.msra.mxu0 0.0
    %2513 = vmatprep.subr.mxu0 0.0
    %2514 = vmatpush1.msra.mxu0 0.0
    %2515 = vmatprep.subr.mxu0 0.0
    %2516 = vmatpush1.msra.mxu0 0.0
    %2517 = vmatprep.subr.mxu0 0.0
    %2518 = vmatpush1.msra.mxu0 0.0
    %2519 = vmatprep.subr.mxu0 0.0
    %2520 = vmatpush1.msra.mxu0 0.0
    %2521 = vmatprep.subr.mxu0 0.0
    %2522 = vmatpush1.msra.mxu0 0.0
    %2523 = vmatprep.subr.mxu0 0.0
    %2524 = vmatpush1.msra.mxu0 0.0
    %2525 = vmatprep.subr.mxu0 0.0
    %2526 = vmatpush1.msra.mxu0 0.0
    %2527 = vmatprep.subr.mxu0 0.0
    %2528 = vmatpush1.msra.mxu0 0.0
    %2529 = vmatprep.subr.mxu0 0.0
    %2530 = vmatpush1.msra.mxu0 0.0
    %2531 = vmatprep.mubr.f32.mxu0 0.0
    %2532 = vmatmul.mubr.f32.gmra.mrb[0].mxu0 %v1900
    %v2533 = vpop.f32.mrb[0].mxu0
    %v2534 = vadd.f32 0.0, %v2533
    %v2535 = vpop.f32.mrb[0].mxu0
    %2536 = vdwg.mxu0
    %v2538 = vsel %vm121, %v2458, 0
    %2540 = vmatprep.subr.mxu0 0.0
    %2541 = vmatpush1.msra.mxu0 %v2459
    %2542 = vmatprep.subr.mxu0 0.0
    %2543 = vmatpush1.msra.mxu0 %v2460
    %2544 = vmatprep.subr.mxu0 0.0
    %2545 = vmatpush1.msra.mxu0 %v2461
    %2546 = vmatprep.subr.mxu0 0.0
    %2547 = vmatpush1.msra.mxu0 %v2462
    %2548 = vmatprep.subr.mxu0 0.0
    %2549 = vmatpush1.msra.mxu0 0.0
    %2550 = vmatprep.subr.mxu0 0.0
    %2551 = vmatpush1.msra.mxu0 0.0
    %2552 = vmatprep.subr.mxu0 0.0
    %2553 = vmatpush1.msra.mxu0 0.0
    %2554 = vmatprep.subr.mxu0 0.0
    %2555 = vmatpush1.msra.mxu0 0.0
    %2556 = vmatprep.subr.mxu0 0.0
    %2557 = vmatpush1.msra.mxu0 0.0
    %2558 = vmatprep.subr.mxu0 0.0
    %2559 = vmatpush1.msra.mxu0 0.0
    %2560 = vmatprep.subr.mxu0 0.0
    %2561 = vmatpush1.msra.mxu0 0.0
    %2562 = vmatprep.subr.mxu0 0.0
    %2563 = vmatpush1.msra.mxu0 0.0
    %2564 = vmatprep.subr.mxu0 0.0
    %2565 = vmatpush1.msra.mxu0 0.0
    %2566 = vmatprep.subr.mxu0 0.0
    %2567 = vmatpush1.msra.mxu0 0.0
    %2568 = vmatprep.subr.mxu0 0.0
    %2569 = vmatpush1.msra.mxu0 0.0
    %2570 = vmatprep.subr.mxu0 0.0
    %2571 = vmatpush1.msra.mxu0 0.0
    %2572 = vmatprep.subr.mxu0 0.0
    %2573 = vmatpush1.msra.mxu0 0.0
    %2574 = vmatprep.subr.mxu0 0.0
    %2575 = vmatpush1.msra.mxu0 0.0
    %2576 = vmatprep.subr.mxu0 0.0
    %2577 = vmatpush1.msra.mxu0 0.0
    %2578 = vmatprep.subr.mxu0 0.0
    %2579 = vmatpush1.msra.mxu0 0.0
    %2580 = vmatprep.subr.mxu0 0.0
    %2581 = vmatpush1.msra.mxu0 0.0
    %2582 = vmatprep.subr.mxu0 0.0
    %2583 = vmatpush1.msra.mxu0 0.0
    %2584 = vmatprep.subr.mxu0 0.0
    %2585 = vmatpush1.msra.mxu0 0.0
    %2586 = vmatprep.subr.mxu0 0.0
    %2587 = vmatpush1.msra.mxu0 0.0
    %2588 = vmatprep.subr.mxu0 0.0
    %2589 = vmatpush1.msra.mxu0 0.0
    %2590 = vmatprep.subr.mxu0 0.0
    %2591 = vmatpush1.msra.mxu0 0.0
    %2592 = vmatprep.subr.mxu0 0.0
    %2593 = vmatpush1.msra.mxu0 0.0
    %2594 = vmatprep.subr.mxu0 0.0
    %2595 = vmatpush1.msra.mxu0 0.0
    %2596 = vmatprep.subr.mxu0 0.0
    %2597 = vmatpush1.msra.mxu0 0.0
    %2598 = vmatprep.subr.mxu0 0.0
    %2599 = vmatpush1.msra.mxu0 0.0
    %2600 = vmatprep.subr.mxu0 0.0
    %2601 = vmatpush1.msra.mxu0 0.0
    %2602 = vmatprep.subr.mxu0 0.0
    %2603 = vmatpush1.msra.mxu0 0.0
    %2604 = vmatprep.mubr.f32.mxu0 0.0
    %2605 = vmatmul.mubr.f32.gmra.mrb[0].mxu0 %v2538
    %v2606 = vpop.f32.mrb[0].mxu0
    %v2607 = vadd.f32 %v2534, %v2606
    %v2608 = vpop.f32.mrb[0].mxu0
    %2609 = vdwg.mxu0
    %v2610 = vadd.f32 %v2607, %v47
    %v2611 = vxor.u32 %v2610, 2147483648
    %v2612 = vmul.f32 %v2611, 1.442695
    %v2613 = vpow.pop %v2612
    %v2614 = vadd.f32 %v2613, 1.0
    %v2615 = vrcp.pop %v2614
    %v2616 = vmul.f32 1.0, %v2615
    %2618 = vrot.lane.b32.xlu0 %v2610, 32
    %v2619 = vpop.permute.xlu0 %2618
    %v2621 = vmul.f32 %v2616, %v2619
    %2623 = vrot.lane.b32.xlu0 %v2621, 64
    %v2624 = vpop.permute.xlu0 %2623
    %v2626 = vadd.f32 %v2610, %v2624
    %v2627 = vtanh.pop %v2626
    %v2628 = vsub.f32 1.0, %v2616
    %2630 = vrot.lane.b32.xlu0 %v2627, 96
    %v2631 = vpop.permute.xlu0 %2630
    %v2633 = vmul.f32 %v2628, %v2631
    %v2634 = vmul.f32 %v2616, %v1876
    %v2635 = vadd.f32 %v2633, %v2634
    %2637 = vrot.lane.b32.xlu0 %v2635, 96
    %v2638 = vpop.permute.xlu0 %2637
    %2640 = vst.msk [vmem:[#allocation5 + $0x2] sm:$0x1] %vm53, %v2638
    %s2641 = scalar_lea.vmem [#allocation3], 3
    %v2642 = vld [vmem:[%s2641] ss:$8 sm:$0xf]
    %v2643 = vld [vmem:[%s5] sm:$0xff]
    %v2644 = vld [vmem:[%s5 + $0x8] sm:$0xff]
    %v2645 = vld [vmem:[%s5 + $0x10] sm:$0xff]
    %v2646 = vld [vmem:[%s5 + $0x18] sm:$0xff]
    %v2647 = vld [vmem:[%s5 + $0x20] sm:$0xff]
    %v2648 = vld [vmem:[%s5 + $0x28] sm:$0xff]
    %v2649 = vld [vmem:[%s5 + $0x30] sm:$0xff]
    %v2650 = vld [vmem:[%s5 + $0x38] sm:$0xff]
    %v2651 = vld [vmem:[%s5 + $0x40] sm:$0xff]
    %v2652 = vld [vmem:[%s5 + $0x48] sm:$0xff]
    %v2653 = vld [vmem:[%s5 + $0x50] sm:$0xff]
    %v2654 = vld [vmem:[%s5 + $0x58] sm:$0xff]
    %v2655 = vld [vmem:[%s5 + $0x60] sm:$0xff]
    %v2656 = vld [vmem:[%s5 + $0x68] sm:$0xff]
    %v2657 = vld [vmem:[%s5 + $0x70] sm:$0xff]
    %v2658 = vld [vmem:[%s5 + $0x78] sm:$0xff]
    %v2659 = vsel %vm121, %v2638, 0
    %2661 = vmatprep.subr.mxu0 %v2644
    %2662 = vmatpush1.msra.mxu0 %v2643
    %2663 = vmatprep.subr.mxu0 %v2648
    %2664 = vmatpush1.msra.mxu0 %v2647
    %2665 = vmatprep.subr.mxu0 %v2652
    %2666 = vmatpush1.msra.mxu0 %v2651
    %2667 = vmatprep.subr.mxu0 %v2656
    %2668 = vmatpush1.msra.mxu0 %v2655
    %2669 = vmatprep.subr.mxu0 0.0
    %2670 = vmatpush1.msra.mxu0 0.0
    %2671 = vmatprep.subr.mxu0 0.0
    %2672 = vmatpush1.msra.mxu0 0.0
    %2673 = vmatprep.subr.mxu0 0.0
    %2674 = vmatpush1.msra.mxu0 0.0
    %2675 = vmatprep.subr.mxu0 0.0
    %2676 = vmatpush1.msra.mxu0 0.0
    %2677 = vmatprep.subr.mxu0 0.0
    %2678 = vmatpush1.msra.mxu0 0.0
    %2679 = vmatprep.subr.mxu0 0.0
    %2680 = vmatpush1.msra.mxu0 0.0
    %2681 = vmatprep.subr.mxu0 0.0
    %2682 = vmatpush1.msra.mxu0 0.0
    %2683 = vmatprep.subr.mxu0 0.0
    %2684 = vmatpush1.msra.mxu0 0.0
    %2685 = vmatprep.subr.mxu0 0.0
    %2686 = vmatpush1.msra.mxu0 0.0
    %2687 = vmatprep.subr.mxu0 0.0
    %2688 = vmatpush1.msra.mxu0 0.0
    %2689 = vmatprep.subr.mxu0 0.0
    %2690 = vmatpush1.msra.mxu0 0.0
    %2691 = vmatprep.subr.mxu0 0.0
    %2692 = vmatpush1.msra.mxu0 0.0
    %2693 = vmatprep.subr.mxu0 0.0
    %2694 = vmatpush1.msra.mxu0 0.0
    %2695 = vmatprep.subr.mxu0 0.0
    %2696 = vmatpush1.msra.mxu0 0.0
    %2697 = vmatprep.subr.mxu0 0.0
    %2698 = vmatpush1.msra.mxu0 0.0
    %2699 = vmatprep.subr.mxu0 0.0
    %2700 = vmatpush1.msra.mxu0 0.0
    %2701 = vmatprep.subr.mxu0 0.0
    %2702 = vmatpush1.msra.mxu0 0.0
    %2703 = vmatprep.subr.mxu0 0.0
    %2704 = vmatpush1.msra.mxu0 0.0
    %2705 = vmatprep.subr.mxu0 0.0
    %2706 = vmatpush1.msra.mxu0 0.0
    %2707 = vmatprep.subr.mxu0 0.0
    %2708 = vmatpush1.msra.mxu0 0.0
    %2709 = vmatprep.subr.mxu0 0.0
    %2710 = vmatpush1.msra.mxu0 0.0
    %2711 = vmatprep.subr.mxu0 0.0
    %2712 = vmatpush1.msra.mxu0 0.0
    %2713 = vmatprep.subr.mxu0 0.0
    %2714 = vmatpush1.msra.mxu0 0.0
    %2715 = vmatprep.subr.mxu0 0.0
    %2716 = vmatpush1.msra.mxu0 0.0
    %2717 = vmatprep.subr.mxu0 0.0
    %2718 = vmatpush1.msra.mxu0 0.0
    %2719 = vmatprep.subr.mxu0 0.0
    %2720 = vmatpush1.msra.mxu0 0.0
    %2721 = vmatprep.subr.mxu0 0.0
    %2722 = vmatpush1.msra.mxu0 0.0
    %2723 = vmatprep.subr.mxu0 0.0
    %2724 = vmatpush1.msra.mxu0 0.0
    %2725 = vmatprep.mubr.f32.mxu0 0.0
    %2726 = vmatmul.mubr.f32.gmra.mrb[0].mxu0 %v2659
    %v2727 = vpop.f32.mrb[0].mxu0
    %v2728 = vadd.f32 0.0, %v2727
    %v2729 = vpop.f32.mrb[0].mxu0
    %v2730 = vadd.f32 0.0, %v2729
    %2731 = vdwg.mxu0
    %2732 = vmatprep.subr.mxu0 %v2646
    %2733 = vmatpush1.msra.mxu0 %v2645
    %2734 = vmatprep.subr.mxu0 %v2650
    %2735 = vmatpush1.msra.mxu0 %v2649
    %2736 = vmatprep.subr.mxu0 %v2654
    %2737 = vmatpush1.msra.mxu0 %v2653
    %2738 = vmatprep.subr.mxu0 %v2658
    %2739 = vmatpush1.msra.mxu0 %v2657
    %2740 = vmatprep.subr.mxu0 0.0
    %2741 = vmatpush1.msra.mxu0 0.0
    %2742 = vmatprep.subr.mxu0 0.0
    %2743 = vmatpush1.msra.mxu0 0.0
    %2744 = vmatprep.subr.mxu0 0.0
    %2745 = vmatpush1.msra.mxu0 0.0
    %2746 = vmatprep.subr.mxu0 0.0
    %2747 = vmatpush1.msra.mxu0 0.0
    %2748 = vmatprep.subr.mxu0 0.0
    %2749 = vmatpush1.msra.mxu0 0.0
    %2750 = vmatprep.subr.mxu0 0.0
    %2751 = vmatpush1.msra.mxu0 0.0
    %2752 = vmatprep.subr.mxu0 0.0
    %2753 = vmatpush1.msra.mxu0 0.0
    %2754 = vmatprep.subr.mxu0 0.0
    %2755 = vmatpush1.msra.mxu0 0.0
    %2756 = vmatprep.subr.mxu0 0.0
    %2757 = vmatpush1.msra.mxu0 0.0
    %2758 = vmatprep.subr.mxu0 0.0
    %2759 = vmatpush1.msra.mxu0 0.0
    %2760 = vmatprep.subr.mxu0 0.0
    %2761 = vmatpush1.msra.mxu0 0.0
    %2762 = vmatprep.subr.mxu0 0.0
    %2763 = vmatpush1.msra.mxu0 0.0
    %2764 = vmatprep.subr.mxu0 0.0
    %2765 = vmatpush1.msra.mxu0 0.0
    %2766 = vmatprep.subr.mxu0 0.0
    %2767 = vmatpush1.msra.mxu0 0.0
    %2768 = vmatprep.subr.mxu0 0.0
    %2769 = vmatpush1.msra.mxu0 0.0
    %2770 = vmatprep.subr.mxu0 0.0
    %2771 = vmatpush1.msra.mxu0 0.0
    %2772 = vmatprep.subr.mxu0 0.0
    %2773 = vmatpush1.msra.mxu0 0.0
    %2774 = vmatprep.subr.mxu0 0.0
    %2775 = vmatpush1.msra.mxu0 0.0
    %2776 = vmatprep.subr.mxu0 0.0
    %2777 = vmatpush1.msra.mxu0 0.0
    %2778 = vmatprep.subr.mxu0 0.0
    %2779 = vmatpush1.msra.mxu0 0.0
    %2780 = vmatprep.subr.mxu0 0.0
    %2781 = vmatpush1.msra.mxu0 0.0
    %2782 = vmatprep.subr.mxu0 0.0
    %2783 = vmatpush1.msra.mxu0 0.0
    %2784 = vmatprep.subr.mxu0 0.0
    %2785 = vmatpush1.msra.mxu0 0.0
    %2786 = vmatprep.subr.mxu0 0.0
    %2787 = vmatpush1.msra.mxu0 0.0
    %2788 = vmatprep.subr.mxu0 0.0
    %2789 = vmatpush1.msra.mxu0 0.0
    %2790 = vmatprep.subr.mxu0 0.0
    %2791 = vmatpush1.msra.mxu0 0.0
    %2792 = vmatprep.subr.mxu0 0.0
    %2793 = vmatpush1.msra.mxu0 0.0
    %2794 = vmatprep.subr.mxu0 0.0
    %2795 = vmatpush1.msra.mxu0 0.0
    %2796 = vmatprep.mubr.f32.mxu0 0.0
    %2797 = vmatmul.mubr.f32.gmra.mrb[0].mxu0 %v2659
    %v2798 = vpop.f32.mrb[0].mxu0
    %v2799 = vadd.f32 0.0, %v2798
    %v2800 = vpop.f32.mrb[0].mxu0
    %v2801 = vadd.f32 0.0, %v2800
    %2802 = vdwg.mxu0
    %v2807 = vcombine.low %v2728, %v2730
    %v2808 = vcombine.low %v2799, %v2801
    %v2810 = vunpack.c.l.s4 1966171168
    %v2811 = vunpack.c.0.s8 %v2810
    %v2812 = vlaneseq
    %v2813 = vshrl.u32 %v2812, 7
    %v2814 = vsub.s32 %v2811, %v2813
    %v2815 = vrot.slane %v2807, %v2814
    %v2817 = vunpack.c.l.s4 1966171168
    %v2818 = vunpack.c.0.s8 %v2817
    %v2819 = vlaneseq
    %v2820 = vshrl.u32 %v2819, 7
    %v2821 = vsub.s32 %v2818, %v2820
    %v2822 = vrot.slane %v2808, %v2821
    %v2823 = vcombine.low %v2815, %v2822
    %v2825 = vunpack.c.l.s4 1966171168
    %v2826 = vunpack.c.0.s8 %v2825
    %v2827 = vlaneseq
    %v2828 = vshrl.u32 %v2827, 7
    %v2829 = vsub.s32 %v2826, %v2828
    %v2830 = vrot.slane %v2823, %v2829
    %v2832 = vadd.f32 %v2642, %v2830
    %v2834 = vlaneseq
    %v2835 = vshrl.u32 %v2834, 7
    %v2836 = vsub.s32 0, %v2835
    %v2837 = vrot.slane %v2832, %v2836
    %v2838 = vlaneseq
    %v2839 = vshrl.u32 %v2838, 7
    %v2840 = vsub.s32 1, %v2839
    %v2841 = vrot.slane %v2832, %v2840
    %v2842 = vlaneseq
    %v2843 = vshrl.u32 %v2842, 7
    %v2844 = vsub.s32 2, %v2843
    %v2845 = vrot.slane %v2832, %v2844
    %v2846 = vlaneseq
    %v2847 = vshrl.u32 %v2846, 7
    %v2848 = vsub.s32 3, %v2847
    %v2849 = vrot.slane %v2832, %v2848
    %v2854 = vsel %vm566, %v2837, -inf
    %v2855 = vsel %vm566, %v2841, -inf
    %v2856 = vsel %vm566, %v2845, -inf
    %v2857 = vsel %vm566, %v2849, -inf
    %v2858 = vmax.f32 %v2854, %v2855
    %v2859 = vmax.f32 %v2856, %v2857
    %v2860 = vmax.f32 %v2858, %v2859
    %2861 = vmax.xlane.f32.xlu0 %v2860
    %v2862 = vpop.xlane.xlu0 %2861
    %v2864 = vlaneseq
    %v2865 = vshrl.u32 %v2864, 7
    %v2866 = vsub.s32 0, %v2865
    %v2867 = vrot.slane %v2862, %v2866
    %v2869 = vsub.f32 %v2832, %v2867
    %v2870 = vmul.f32 %v2869, 1.442695
    %v2871 = vpow.pop %v2870
    %v2873 = vlaneseq
    %v2874 = vshrl.u32 %v2873, 7
    %v2875 = vsub.s32 0, %v2874
    %v2876 = vrot.slane %v2871, %v2875
    %v2877 = vlaneseq
    %v2878 = vshrl.u32 %v2877, 7
    %v2879 = vsub.s32 1, %v2878
    %v2880 = vrot.slane %v2871, %v2879
    %v2881 = vlaneseq
    %v2882 = vshrl.u32 %v2881, 7
    %v2883 = vsub.s32 2, %v2882
    %v2884 = vrot.slane %v2871, %v2883
    %v2885 = vlaneseq
    %v2886 = vshrl.u32 %v2885, 7
    %v2887 = vsub.s32 3, %v2886
    %v2888 = vrot.slane %v2871, %v2887
    %v2893 = vsel %vm566, %v2876, 0.0
    %v2894 = vsel %vm566, %v2880, 0.0
    %v2895 = vadd.f32 %v2893, %v2894
    %v2896 = vsel %vm566, %v2884, 0.0
    %v2897 = vadd.f32 %v2895, %v2896
    %v2898 = vsel %vm566, %v2888, 0.0
    %v2899 = vadd.f32 %v2897, %v2898
    %2900 = vadd.xlane.f32.xlu0 %v2899
    %v2901 = vpop.xlane.xlu0 %2900
    %v2903 = vlaneseq
    %v2904 = vshrl.u32 %v2903, 7
    %v2905 = vsub.s32 0, %v2904
    %v2906 = vrot.slane %v2901, %v2905
    %v2908 = vrcp.pop %v2906
    %v2909 = vmul.f32 %v2871, %v2908
    %s2910 = scalar_lea.vmem [#allocation8], 3
    %2911 = vst.msk [vmem:[%s2910] ss:$8 sm:$0xf] %vm626, %v2909
    %2912 = vst.msk [vmem:[%s2910] ss:$8 sm:$0x0] %vm626, %v2909
    %v2913 = vld [vmem:[%s3] sm:$0xff]
    %v2914 = vld [vmem:[%s3 + $0x8] sm:$0xff]
    %v2915 = vld [vmem:[%s3 + $0x10] sm:$0xff]
    %v2916 = vld [vmem:[%s3 + $0x18] sm:$0xff]
    %v2917 = vld [vmem:[%s3 + $0x20] sm:$0xff]
    %v2918 = vld [vmem:[%s3 + $0x28] sm:$0xff]
    %v2919 = vld [vmem:[%s3 + $0x30] sm:$0xff]
    %v2920 = vld [vmem:[%s3 + $0x38] sm:$0xff]
    %v2921 = vld [vmem:[%s3 + $0x40] sm:$0xff]
    %v2922 = vld [vmem:[%s3 + $0x48] sm:$0xff]
    %v2923 = vld [vmem:[%s3 + $0x50] sm:$0xff]
    %v2924 = vld [vmem:[%s3 + $0x58] sm:$0xff]
    %v2925 = vld [vmem:[%s3 + $0x60] sm:$0xff]
    %v2926 = vld [vmem:[%s3 + $0x68] sm:$0xff]
    %v2927 = vld [vmem:[%s3 + $0x70] sm:$0xff]
    %v2928 = vld [vmem:[%s3 + $0x78] sm:$0xff]
    %v2929 = vld [vmem:[%s3 + $0x80] sm:$0xff]
    %v2930 = vld [vmem:[%s3 + $0x88] sm:$0xff]
    %v2931 = vld [vmem:[%s3 + $0x90] sm:$0xff]
    %v2932 = vld [vmem:[%s3 + $0x98] sm:$0xff]
    %v2933 = vld [vmem:[%s3 + $0xa0] sm:$0xff]
    %v2934 = vld [vmem:[%s3 + $0xa8] sm:$0xff]
    %v2935 = vld [vmem:[%s3 + $0xb0] sm:$0xff]
    %v2936 = vld [vmem:[%s3 + $0xb8] sm:$0xff]
    %v2937 = vld [vmem:[%s3 + $0xc0] sm:$0xff]
    %v2938 = vld [vmem:[%s3 + $0xc8] sm:$0xff]
    %v2939 = vld [vmem:[%s3 + $0xd0] sm:$0xff]
    %v2940 = vld [vmem:[%s3 + $0xd8] sm:$0xff]
    %v2941 = vld [vmem:[%s3 + $0xe0] sm:$0xff]
    %v2942 = vld [vmem:[%s3 + $0xe8] sm:$0xff]
    %v2943 = vld [vmem:[%s3 + $0xf0] sm:$0xff]
    %v2944 = vld [vmem:[%s3 + $0xf8] sm:$0xff]
    %v2945 = vld [vmem:[%s3 + $0x100] sm:$0xff]
    %v2946 = vld [vmem:[%s3 + $0x108] sm:$0xff]
    %v2947 = vld [vmem:[%s3 + $0x110] sm:$0xff]
    %v2948 = vld [vmem:[%s3 + $0x118] sm:$0xff]
    %v2949 = vld [vmem:[%s3 + $0x120] sm:$0xff]
    %v2950 = vld [vmem:[%s3 + $0x128] sm:$0xff]
    %v2951 = vld [vmem:[%s3 + $0x130] sm:$0xff]
    %v2952 = vld [vmem:[%s3 + $0x138] sm:$0xff]
    %v2953 = vld [vmem:[%s3 + $0x140] sm:$0xff]
    %v2954 = vld [vmem:[%s3 + $0x148] sm:$0xff]
    %v2955 = vld [vmem:[%s3 + $0x150] sm:$0xff]
    %v2956 = vld [vmem:[%s3 + $0x158] sm:$0xff]
    %v2957 = vld [vmem:[%s3 + $0x160] sm:$0xff]
    %v2958 = vld [vmem:[%s3 + $0x168] sm:$0xff]
    %v2959 = vld [vmem:[%s3 + $0x170] sm:$0xff]
    %v2960 = vld [vmem:[%s3 + $0x178] sm:$0xff]
    %v2961 = vld [vmem:[%s3 + $0x180] sm:$0xff]
    %v2962 = vld [vmem:[%s3 + $0x188] sm:$0xff]
    %v2963 = vld [vmem:[%s3 + $0x190] sm:$0xff]
    %v2964 = vld [vmem:[%s3 + $0x198] sm:$0xff]
    %v2965 = vld [vmem:[%s3 + $0x1a0] sm:$0xff]
    %v2966 = vld [vmem:[%s3 + $0x1a8] sm:$0xff]
    %v2967 = vld [vmem:[%s3 + $0x1b0] sm:$0xff]
    %v2968 = vld [vmem:[%s3 + $0x1b8] sm:$0xff]
    %v2969 = vld [vmem:[%s3 + $0x1c0] sm:$0xff]
    %v2970 = vld [vmem:[%s3 + $0x1c8] sm:$0xff]
    %v2971 = vld [vmem:[%s3 + $0x1d0] sm:$0xff]
    %v2972 = vld [vmem:[%s3 + $0x1d8] sm:$0xff]
    %v2973 = vld [vmem:[%s3 + $0x1e0] sm:$0xff]
    %v2974 = vld [vmem:[%s3 + $0x1e8] sm:$0xff]
    %v2975 = vld [vmem:[%s3 + $0x1f0] sm:$0xff]
    %v2976 = vld [vmem:[%s3 + $0x1f8] sm:$0xff]
    %v2978 = vlaneseq
    %v2979 = vshrl.u32 %v2978, 7
    %v2980 = vsub.s32 0, %v2979
    %v2981 = vrot.slane %v2909, %v2980
    %v2982 = vlaneseq
    %v2983 = vshrl.u32 %v2982, 7
    %v2984 = vsub.s32 1, %v2983
    %v2985 = vrot.slane %v2909, %v2984
    %v2986 = vlaneseq
    %v2987 = vshrl.u32 %v2986, 7
    %v2988 = vsub.s32 2, %v2987
    %v2989 = vrot.slane %v2909, %v2988
    %v2990 = vlaneseq
    %v2991 = vshrl.u32 %v2990, 7
    %v2992 = vsub.s32 3, %v2991
    %v2993 = vrot.slane %v2909, %v2992
    %2998 = vmatprep.subr.mxu0 0.0
    %2999 = vmatpush1.msra.mxu0 %v2913
    %3000 = vmatprep.subr.mxu0 0.0
    %3001 = vmatpush1.msra.mxu0 %v2914
    %3002 = vmatprep.subr.mxu0 0.0
    %3003 = vmatpush1.msra.mxu0 %v2915
    %3004 = vmatprep.subr.mxu0 0.0
    %3005 = vmatpush1.msra.mxu0 %v2916
    %3006 = vmatprep.subr.mxu0 0.0
    %3007 = vmatpush1.msra.mxu0 %v2917
    %3008 = vmatprep.subr.mxu0 0.0
    %3009 = vmatpush1.msra.mxu0 %v2918
    %3010 = vmatprep.subr.mxu0 0.0
    %3011 = vmatpush1.msra.mxu0 %v2919
    %3012 = vmatprep.subr.mxu0 0.0
    %3013 = vmatpush1.msra.mxu0 %v2920
    %3014 = vmatprep.subr.mxu0 0.0
    %3015 = vmatpush1.msra.mxu0 %v2921
    %3016 = vmatprep.subr.mxu0 0.0
    %3017 = vmatpush1.msra.mxu0 %v2922
    %3018 = vmatprep.subr.mxu0 0.0
    %3019 = vmatpush1.msra.mxu0 %v2923
    %3020 = vmatprep.subr.mxu0 0.0
    %3021 = vmatpush1.msra.mxu0 %v2924
    %3022 = vmatprep.subr.mxu0 0.0
    %3023 = vmatpush1.msra.mxu0 %v2925
    %3024 = vmatprep.subr.mxu0 0.0
    %3025 = vmatpush1.msra.mxu0 %v2926
    %3026 = vmatprep.subr.mxu0 0.0
    %3027 = vmatpush1.msra.mxu0 %v2927
    %3028 = vmatprep.subr.mxu0 0.0
    %3029 = vmatpush1.msra.mxu0 %v2928
    %3030 = vmatprep.subr.mxu0 0.0
    %3031 = vmatpush1.msra.mxu0 %v2929
    %3032 = vmatprep.subr.mxu0 0.0
    %3033 = vmatpush1.msra.mxu0 %v2930
    %3034 = vmatprep.subr.mxu0 0.0
    %3035 = vmatpush1.msra.mxu0 %v2931
    %3036 = vmatprep.subr.mxu0 0.0
    %3037 = vmatpush1.msra.mxu0 %v2932
    %3038 = vmatprep.subr.mxu0 0.0
    %3039 = vmatpush1.msra.mxu0 %v2933
    %3040 = vmatprep.subr.mxu0 0.0
    %3041 = vmatpush1.msra.mxu0 %v2934
    %3042 = vmatprep.subr.mxu0 0.0
    %3043 = vmatpush1.msra.mxu0 %v2935
    %3044 = vmatprep.subr.mxu0 0.0
    %3045 = vmatpush1.msra.mxu0 %v2936
    %3046 = vmatprep.subr.mxu0 0.0
    %3047 = vmatpush1.msra.mxu0 %v2937
    %3048 = vmatprep.subr.mxu0 0.0
    %3049 = vmatpush1.msra.mxu0 %v2938
    %3050 = vmatprep.subr.mxu0 0.0
    %3051 = vmatpush1.msra.mxu0 %v2939
    %3052 = vmatprep.subr.mxu0 0.0
    %3053 = vmatpush1.msra.mxu0 %v2940
    %3054 = vmatprep.subr.mxu0 0.0
    %3055 = vmatpush1.msra.mxu0 %v2941
    %3056 = vmatprep.subr.mxu0 0.0
    %3057 = vmatpush1.msra.mxu0 %v2942
    %3058 = vmatprep.subr.mxu0 0.0
    %3059 = vmatpush1.msra.mxu0 %v2943
    %3060 = vmatprep.subr.mxu0 0.0
    %3061 = vmatpush1.msra.mxu0 %v2944
    %3062 = vmatprep.mubr.f32.mxu0 %v2985
    %3063 = vmatmul.mubr.f32.gmra.mrb[0].mxu0 %v2981
    %v3064 = vpop.f32.mrb[0].mxu0
    %v3065 = vadd.f32 0.0, %v3064
    %v3066 = vpop.f32.mrb[0].mxu0
    %3067 = vdwg.mxu0
    %3068 = vmatprep.subr.mxu0 0.0
    %3069 = vmatpush1.msra.mxu0 %v2945
    %3070 = vmatprep.subr.mxu0 0.0
    %3071 = vmatpush1.msra.mxu0 %v2946
    %3072 = vmatprep.subr.mxu0 0.0
    %3073 = vmatpush1.msra.mxu0 %v2947
    %3074 = vmatprep.subr.mxu0 0.0
    %3075 = vmatpush1.msra.mxu0 %v2948
    %3076 = vmatprep.subr.mxu0 0.0
    %3077 = vmatpush1.msra.mxu0 %v2949
    %3078 = vmatprep.subr.mxu0 0.0
    %3079 = vmatpush1.msra.mxu0 %v2950
    %3080 = vmatprep.subr.mxu0 0.0
    %3081 = vmatpush1.msra.mxu0 %v2951
    %3082 = vmatprep.subr.mxu0 0.0
    %3083 = vmatpush1.msra.mxu0 %v2952
    %3084 = vmatprep.subr.mxu0 0.0
    %3085 = vmatpush1.msra.mxu0 %v2953
    %3086 = vmatprep.subr.mxu0 0.0
    %3087 = vmatpush1.msra.mxu0 %v2954
    %3088 = vmatprep.subr.mxu0 0.0
    %3089 = vmatpush1.msra.mxu0 %v2955
    %3090 = vmatprep.subr.mxu0 0.0
    %3091 = vmatpush1.msra.mxu0 %v2956
    %3092 = vmatprep.subr.mxu0 0.0
    %3093 = vmatpush1.msra.mxu0 %v2957
    %3094 = vmatprep.subr.mxu0 0.0
    %3095 = vmatpush1.msra.mxu0 %v2958
    %3096 = vmatprep.subr.mxu0 0.0
    %3097 = vmatpush1.msra.mxu0 %v2959
    %3098 = vmatprep.subr.mxu0 0.0
    %3099 = vmatpush1.msra.mxu0 %v2960
    %3100 = vmatprep.subr.mxu0 0.0
    %3101 = vmatpush1.msra.mxu0 %v2961
    %3102 = vmatprep.subr.mxu0 0.0
    %3103 = vmatpush1.msra.mxu0 %v2962
    %3104 = vmatprep.subr.mxu0 0.0
    %3105 = vmatpush1.msra.mxu0 %v2963
    %3106 = vmatprep.subr.mxu0 0.0
    %3107 = vmatpush1.msra.mxu0 %v2964
    %3108 = vmatprep.subr.mxu0 0.0
    %3109 = vmatpush1.msra.mxu0 %v2965
    %3110 = vmatprep.subr.mxu0 0.0
    %3111 = vmatpush1.msra.mxu0 %v2966
    %3112 = vmatprep.subr.mxu0 0.0
    %3113 = vmatpush1.msra.mxu0 %v2967
    %3114 = vmatprep.subr.mxu0 0.0
    %3115 = vmatpush1.msra.mxu0 %v2968
    %3116 = vmatprep.subr.mxu0 0.0
    %3117 = vmatpush1.msra.mxu0 %v2969
    %3118 = vmatprep.subr.mxu0 0.0
    %3119 = vmatpush1.msra.mxu0 %v2970
    %3120 = vmatprep.subr.mxu0 0.0
    %3121 = vmatpush1.msra.mxu0 %v2971
    %3122 = vmatprep.subr.mxu0 0.0
    %3123 = vmatpush1.msra.mxu0 %v2972
    %3124 = vmatprep.subr.mxu0 0.0
    %3125 = vmatpush1.msra.mxu0 %v2973
    %3126 = vmatprep.subr.mxu0 0.0
    %3127 = vmatpush1.msra.mxu0 %v2974
    %3128 = vmatprep.subr.mxu0 0.0
    %3129 = vmatpush1.msra.mxu0 %v2975
    %3130 = vmatprep.subr.mxu0 0.0
    %3131 = vmatpush1.msra.mxu0 %v2976
    %3132 = vmatprep.mubr.f32.mxu0 %v2993
    %3133 = vmatmul.mubr.f32.gmra.mrb[0].mxu0 %v2989
    %v3134 = vpop.f32.mrb[0].mxu0
    %v3135 = vadd.f32 %v3065, %v3134
    %v3136 = vpop.f32.mrb[0].mxu0
    %3137 = vdwg.mxu0
    %v3138 = vld [vmem:[#allocation4 + $0x3] sm:$0x1]
    %v3139 = vld [vmem:[%s7] sm:$0xff]
    %v3140 = vld [vmem:[%s7 + $0x8] sm:$0xff]
    %v3141 = vld [vmem:[%s7 + $0x10] sm:$0xff]
    %v3142 = vld [vmem:[%s7 + $0x18] sm:$0xff]
    %v3144 = vsel %vm121, %v3135, 0
    %3146 = vmatprep.subr.mxu0 0.0
    %3147 = vmatpush1.msra.mxu0 %v3139
    %3148 = vmatprep.subr.mxu0 0.0
    %3149 = vmatpush1.msra.mxu0 %v3140
    %3150 = vmatprep.subr.mxu0 0.0
    %3151 = vmatpush1.msra.mxu0 %v3141
    %3152 = vmatprep.subr.mxu0 0.0
    %3153 = vmatpush1.msra.mxu0 %v3142
    %3154 = vmatprep.subr.mxu0 0.0
    %3155 = vmatpush1.msra.mxu0 0.0
    %3156 = vmatprep.subr.mxu0 0.0
    %3157 = vmatpush1.msra.mxu0 0.0
    %3158 = vmatprep.subr.mxu0 0.0
    %3159 = vmatpush1.msra.mxu0 0.0
    %3160 = vmatprep.subr.mxu0 0.0
    %3161 = vmatpush1.msra.mxu0 0.0
    %3162 = vmatprep.subr.mxu0 0.0
    %3163 = vmatpush1.msra.mxu0 0.0
    %3164 = vmatprep.subr.mxu0 0.0
    %3165 = vmatpush1.msra.mxu0 0.0
    %3166 = vmatprep.subr.mxu0 0.0
    %3167 = vmatpush1.msra.mxu0 0.0
    %3168 = vmatprep.subr.mxu0 0.0
    %3169 = vmatpush1.msra.mxu0 0.0
    %3170 = vmatprep.subr.mxu0 0.0
    %3171 = vmatpush1.msra.mxu0 0.0
    %3172 = vmatprep.subr.mxu0 0.0
    %3173 = vmatpush1.msra.mxu0 0.0
    %3174 = vmatprep.subr.mxu0 0.0
    %3175 = vmatpush1.msra.mxu0 0.0
    %3176 = vmatprep.subr.mxu0 0.0
    %3177 = vmatpush1.msra.mxu0 0.0
    %3178 = vmatprep.subr.mxu0 0.0
    %3179 = vmatpush1.msra.mxu0 0.0
    %3180 = vmatprep.subr.mxu0 0.0
    %3181 = vmatpush1.msra.mxu0 0.0
    %3182 = vmatprep.subr.mxu0 0.0
    %3183 = vmatpush1.msra.mxu0 0.0
    %3184 = vmatprep.subr.mxu0 0.0
    %3185 = vmatpush1.msra.mxu0 0.0
    %3186 = vmatprep.subr.mxu0 0.0
    %3187 = vmatpush1.msra.mxu0 0.0
    %3188 = vmatprep.subr.mxu0 0.0
    %3189 = vmatpush1.msra.mxu0 0.0
    %3190 = vmatprep.subr.mxu0 0.0
    %3191 = vmatpush1.msra.mxu0 0.0
    %3192 = vmatprep.subr.mxu0 0.0
    %3193 = vmatpush1.msra.mxu0 0.0
    %3194 = vmatprep.subr.mxu0 0.0
    %3195 = vmatpush1.msra.mxu0 0.0
    %3196 = vmatprep.subr.mxu0 0.0
    %3197 = vmatpush1.msra.mxu0 0.0
    %3198 = vmatprep.subr.mxu0 0.0
    %3199 = vmatpush1.msra.mxu0 0.0
    %3200 = vmatprep.subr.mxu0 0.0
    %3201 = vmatpush1.msra.mxu0 0.0
    %3202 = vmatprep.subr.mxu0 0.0
    %3203 = vmatpush1.msra.mxu0 0.0
    %3204 = vmatprep.subr.mxu0 0.0
    %3205 = vmatpush1.msra.mxu0 0.0
    %3206 = vmatprep.subr.mxu0 0.0
    %3207 = vmatpush1.msra.mxu0 0.0
    %3208 = vmatprep.subr.mxu0 0.0
    %3209 = vmatpush1.msra.mxu0 0.0
    %3210 = vmatprep.mubr.f32.mxu0 0.0
    %3211 = vmatmul.mubr.f32.gmra.mrb[0].mxu0 %v3144
    %v3212 = vpop.f32.mrb[0].mxu0
    %v3213 = vadd.f32 0.0, %v3212
    %v3214 = vpop.f32.mrb[0].mxu0
    %3215 = vdwg.mxu0
    %v3216 = vadd.f32 %v3138, %v3213
    %v3217 = vmax.f32 %v3216, 0.0
    %v3218 = vld [vmem:[%s8] sm:$0xff]
    %v3219 = vld [vmem:[%s8 + $0x8] sm:$0xff]
    %v3220 = vld [vmem:[%s8 + $0x10] sm:$0xff]
    %v3221 = vld [vmem:[%s8 + $0x18] sm:$0xff]
    %v3222 = vld [vmem:[%s9] sm:$0xff]
    %v3223 = vld [vmem:[%s9 + $0x8] sm:$0xff]
    %v3224 = vld [vmem:[%s9 + $0x10] sm:$0xff]
    %v3225 = vld [vmem:[%s9 + $0x18] sm:$0xff]
    %3226 = vmatprep.subr.mxu0 0.0
    %3227 = vmatpush1.msra.mxu0 %v3222
    %3228 = vmatprep.subr.mxu0 0.0
    %3229 = vmatpush1.msra.mxu0 %v3223
    %3230 = vmatprep.subr.mxu0 0.0
    %3231 = vmatpush1.msra.mxu0 %v3224
    %3232 = vmatprep.subr.mxu0 0.0
    %3233 = vmatpush1.msra.mxu0 %v3225
    %3234 = vmatprep.subr.mxu0 0.0
    %3235 = vmatpush1.msra.mxu0 0.0
    %3236 = vmatprep.subr.mxu0 0.0
    %3237 = vmatpush1.msra.mxu0 0.0
    %3238 = vmatprep.subr.mxu0 0.0
    %3239 = vmatpush1.msra.mxu0 0.0
    %3240 = vmatprep.subr.mxu0 0.0
    %3241 = vmatpush1.msra.mxu0 0.0
    %3242 = vmatprep.subr.mxu0 0.0
    %3243 = vmatpush1.msra.mxu0 0.0
    %3244 = vmatprep.subr.mxu0 0.0
    %3245 = vmatpush1.msra.mxu0 0.0
    %3246 = vmatprep.subr.mxu0 0.0
    %3247 = vmatpush1.msra.mxu0 0.0
    %3248 = vmatprep.subr.mxu0 0.0
    %3249 = vmatpush1.msra.mxu0 0.0
    %3250 = vmatprep.subr.mxu0 0.0
    %3251 = vmatpush1.msra.mxu0 0.0
    %3252 = vmatprep.subr.mxu0 0.0
    %3253 = vmatpush1.msra.mxu0 0.0
    %3254 = vmatprep.subr.mxu0 0.0
    %3255 = vmatpush1.msra.mxu0 0.0
    %3256 = vmatprep.subr.mxu0 0.0
    %3257 = vmatpush1.msra.mxu0 0.0
    %3258 = vmatprep.subr.mxu0 0.0
    %3259 = vmatpush1.msra.mxu0 0.0
    %3260 = vmatprep.subr.mxu0 0.0
    %3261 = vmatpush1.msra.mxu0 0.0
    %3262 = vmatprep.subr.mxu0 0.0
    %3263 = vmatpush1.msra.mxu0 0.0
    %3264 = vmatprep.subr.mxu0 0.0
    %3265 = vmatpush1.msra.mxu0 0.0
    %3266 = vmatprep.subr.mxu0 0.0
    %3267 = vmatpush1.msra.mxu0 0.0
    %3268 = vmatprep.subr.mxu0 0.0
    %3269 = vmatpush1.msra.mxu0 0.0
    %3270 = vmatprep.subr.mxu0 0.0
    %3271 = vmatpush1.msra.mxu0 0.0
    %3272 = vmatprep.subr.mxu0 0.0
    %3273 = vmatpush1.msra.mxu0 0.0
    %3274 = vmatprep.subr.mxu0 0.0
    %3275 = vmatpush1.msra.mxu0 0.0
    %3276 = vmatprep.subr.mxu0 0.0
    %3277 = vmatpush1.msra.mxu0 0.0
    %3278 = vmatprep.subr.mxu0 0.0
    %3279 = vmatpush1.msra.mxu0 0.0
    %3280 = vmatprep.subr.mxu0 0.0
    %3281 = vmatpush1.msra.mxu0 0.0
    %3282 = vmatprep.subr.mxu0 0.0
    %3283 = vmatpush1.msra.mxu0 0.0
    %3284 = vmatprep.subr.mxu0 0.0
    %3285 = vmatpush1.msra.mxu0 0.0
    %3286 = vmatprep.subr.mxu0 0.0
    %3287 = vmatpush1.msra.mxu0 0.0
    %3288 = vmatprep.subr.mxu0 0.0
    %3289 = vmatpush1.msra.mxu0 0.0
    %3290 = vmatprep.mubr.f32.mxu0 0.0
    %3291 = vmatmul.mubr.f32.gmra.mrb[0].mxu0 %v2659
    %v3292 = vpop.f32.mrb[0].mxu0
    %v3293 = vadd.f32 0.0, %v3292
    %v3294 = vpop.f32.mrb[0].mxu0
    %3295 = vdwg.mxu0
    %v3297 = vsel %vm121, %v3217, 0
    %3299 = vmatprep.subr.mxu0 0.0
    %3300 = vmatpush1.msra.mxu0 %v3218
    %3301 = vmatprep.subr.mxu0 0.0
    %3302 = vmatpush1.msra.mxu0 %v3219
    %3303 = vmatprep.subr.mxu0 0.0
    %3304 = vmatpush1.msra.mxu0 %v3220
    %3305 = vmatprep.subr.mxu0 0.0
    %3306 = vmatpush1.msra.mxu0 %v3221
    %3307 = vmatprep.subr.mxu0 0.0
    %3308 = vmatpush1.msra.mxu0 0.0
    %3309 = vmatprep.subr.mxu0 0.0
    %3310 = vmatpush1.msra.mxu0 0.0
    %3311 = vmatprep.subr.mxu0 0.0
    %3312 = vmatpush1.msra.mxu0 0.0
    %3313 = vmatprep.subr.mxu0 0.0
    %3314 = vmatpush1.msra.mxu0 0.0
    %3315 = vmatprep.subr.mxu0 0.0
    %3316 = vmatpush1.msra.mxu0 0.0
    %3317 = vmatprep.subr.mxu0 0.0
    %3318 = vmatpush1.msra.mxu0 0.0
    %3319 = vmatprep.subr.mxu0 0.0
    %3320 = vmatpush1.msra.mxu0 0.0
    %3321 = vmatprep.subr.mxu0 0.0
    %3322 = vmatpush1.msra.mxu0 0.0
    %3323 = vmatprep.subr.mxu0 0.0
    %3324 = vmatpush1.msra.mxu0 0.0
    %3325 = vmatprep.subr.mxu0 0.0
    %3326 = vmatpush1.msra.mxu0 0.0
    %3327 = vmatprep.subr.mxu0 0.0
    %3328 = vmatpush1.msra.mxu0 0.0
    %3329 = vmatprep.subr.mxu0 0.0
    %3330 = vmatpush1.msra.mxu0 0.0
    %3331 = vmatprep.subr.mxu0 0.0
    %3332 = vmatpush1.msra.mxu0 0.0
    %3333 = vmatprep.subr.mxu0 0.0
    %3334 = vmatpush1.msra.mxu0 0.0
    %3335 = vmatprep.subr.mxu0 0.0
    %3336 = vmatpush1.msra.mxu0 0.0
    %3337 = vmatprep.subr.mxu0 0.0
    %3338 = vmatpush1.msra.mxu0 0.0
    %3339 = vmatprep.subr.mxu0 0.0
    %3340 = vmatpush1.msra.mxu0 0.0
    %3341 = vmatprep.subr.mxu0 0.0
    %3342 = vmatpush1.msra.mxu0 0.0
    %3343 = vmatprep.subr.mxu0 0.0
    %3344 = vmatpush1.msra.mxu0 0.0
    %3345 = vmatprep.subr.mxu0 0.0
    %3346 = vmatpush1.msra.mxu0 0.0
    %3347 = vmatprep.subr.mxu0 0.0
    %3348 = vmatpush1.msra.mxu0 0.0
    %3349 = vmatprep.subr.mxu0 0.0
    %3350 = vmatpush1.msra.mxu0 0.0
    %3351 = vmatprep.subr.mxu0 0.0
    %3352 = vmatpush1.msra.mxu0 0.0
    %3353 = vmatprep.subr.mxu0 0.0
    %3354 = vmatpush1.msra.mxu0 0.0
    %3355 = vmatprep.subr.mxu0 0.0
    %3356 = vmatpush1.msra.mxu0 0.0
    %3357 = vmatprep.subr.mxu0 0.0
    %3358 = vmatpush1.msra.mxu0 0.0
    %3359 = vmatprep.subr.mxu0 0.0
    %3360 = vmatpush1.msra.mxu0 0.0
    %3361 = vmatprep.subr.mxu0 0.0
    %3362 = vmatpush1.msra.mxu0 0.0
    %3363 = vmatprep.mubr.f32.mxu0 0.0
    %3364 = vmatmul.mubr.f32.gmra.mrb[0].mxu0 %v3297
    %v3365 = vpop.f32.mrb[0].mxu0
    %v3366 = vadd.f32 %v3293, %v3365
    %v3367 = vpop.f32.mrb[0].mxu0
    %3368 = vdwg.mxu0
    %v3369 = vadd.f32 %v3366, %v47
    %v3370 = vxor.u32 %v3369, 2147483648
    %v3371 = vmul.f32 %v3370, 1.442695
    %v3372 = vpow.pop %v3371
    %v3373 = vadd.f32 %v3372, 1.0
    %v3374 = vrcp.pop %v3373
    %v3375 = vmul.f32 1.0, %v3374
    %3377 = vrot.lane.b32.xlu0 %v3369, 32
    %v3378 = vpop.permute.xlu0 %3377
    %v3380 = vmul.f32 %v3375, %v3378
    %3382 = vrot.lane.b32.xlu0 %v3380, 64
    %v3383 = vpop.permute.xlu0 %3382
    %v3385 = vadd.f32 %v3369, %v3383
    %v3386 = vtanh.pop %v3385
    %v3387 = vsub.f32 1.0, %v3375
    %3389 = vrot.lane.b32.xlu0 %v3386, 96
    %v3390 = vpop.permute.xlu0 %3389
    %v3392 = vmul.f32 %v3387, %v3390
    %v3393 = vmul.f32 %v3375, %v2635
    %v3394 = vadd.f32 %v3392, %v3393
    %3396 = vrot.lane.b32.xlu0 %v3394, 96
    %v3397 = vpop.permute.xlu0 %3396
    %3399 = vst.msk [vmem:[#allocation5 + $0x3] sm:$0x1] %vm53, %v3397
    %s3400 = scalar_lea.vmem [#allocation3], 4
    %v3401 = vld [vmem:[%s3400] ss:$8 sm:$0xf]
    %v3402 = vld [vmem:[%s5] sm:$0xff]
    %v3403 = vld [vmem:[%s5 + $0x8] sm:$0xff]
    %v3404 = vld [vmem:[%s5 + $0x10] sm:$0xff]
    %v3405 = vld [vmem:[%s5 + $0x18] sm:$0xff]
    %v3406 = vld [vmem:[%s5 + $0x20] sm:$0xff]
    %v3407 = vld [vmem:[%s5 + $0x28] sm:$0xff]
    %v3408 = vld [vmem:[%s5 + $0x30] sm:$0xff]
    %v3409 = vld [vmem:[%s5 + $0x38] sm:$0xff]
    %v3410 = vld [vmem:[%s5 + $0x40] sm:$0xff]
    %v3411 = vld [vmem:[%s5 + $0x48] sm:$0xff]
    %v3412 = vld [vmem:[%s5 + $0x50] sm:$0xff]
    %v3413 = vld [vmem:[%s5 + $0x58] sm:$0xff]
    %v3414 = vld [vmem:[%s5 + $0x60] sm:$0xff]
    %v3415 = vld [vmem:[%s5 + $0x68] sm:$0xff]
    %v3416 = vld [vmem:[%s5 + $0x70] sm:$0xff]
    %v3417 = vld [vmem:[%s5 + $0x78] sm:$0xff]
    %v3418 = vsel %vm121, %v3397, 0
    %3420 = vmatprep.subr.mxu0 %v3403
    %3421 = vmatpush1.msra.mxu0 %v3402
    %3422 = vmatprep.subr.mxu0 %v3407
    %3423 = vmatpush1.msra.mxu0 %v3406
    %3424 = vmatprep.subr.mxu0 %v3411
    %3425 = vmatpush1.msra.mxu0 %v3410
    %3426 = vmatprep.subr.mxu0 %v3415
    %3427 = vmatpush1.msra.mxu0 %v3414
    %3428 = vmatprep.subr.mxu0 0.0
    %3429 = vmatpush1.msra.mxu0 0.0
    %3430 = vmatprep.subr.mxu0 0.0
    %3431 = vmatpush1.msra.mxu0 0.0
    %3432 = vmatprep.subr.mxu0 0.0
    %3433 = vmatpush1.msra.mxu0 0.0
    %3434 = vmatprep.subr.mxu0 0.0
    %3435 = vmatpush1.msra.mxu0 0.0
    %3436 = vmatprep.subr.mxu0 0.0
    %3437 = vmatpush1.msra.mxu0 0.0
    %3438 = vmatprep.subr.mxu0 0.0
    %3439 = vmatpush1.msra.mxu0 0.0
    %3440 = vmatprep.subr.mxu0 0.0
    %3441 = vmatpush1.msra.mxu0 0.0
    %3442 = vmatprep.subr.mxu0 0.0
    %3443 = vmatpush1.msra.mxu0 0.0
    %3444 = vmatprep.subr.mxu0 0.0
    %3445 = vmatpush1.msra.mxu0 0.0
    %3446 = vmatprep.subr.mxu0 0.0
    %3447 = vmatpush1.msra.mxu0 0.0
    %3448 = vmatprep.subr.mxu0 0.0
    %3449 = vmatpush1.msra.mxu0 0.0
    %3450 = vmatprep.subr.mxu0 0.0
    %3451 = vmatpush1.msra.mxu0 0.0
    %3452 = vmatprep.subr.mxu0 0.0
    %3453 = vmatpush1.msra.mxu0 0.0
    %3454 = vmatprep.subr.mxu0 0.0
    %3455 = vmatpush1.msra.mxu0 0.0
    %3456 = vmatprep.subr.mxu0 0.0
    %3457 = vmatpush1.msra.mxu0 0.0
    %3458 = vmatprep.subr.mxu0 0.0
    %3459 = vmatpush1.msra.mxu0 0.0
    %3460 = vmatprep.subr.mxu0 0.0
    %3461 = vmatpush1.msra.mxu0 0.0
    %3462 = vmatprep.subr.mxu0 0.0
    %3463 = vmatpush1.msra.mxu0 0.0
    %3464 = vmatprep.subr.mxu0 0.0
    %3465 = vmatpush1.msra.mxu0 0.0
    %3466 = vmatprep.subr.mxu0 0.0
    %3467 = vmatpush1.msra.mxu0 0.0
    %3468 = vmatprep.subr.mxu0 0.0
    %3469 = vmatpush1.msra.mxu0 0.0
    %3470 = vmatprep.subr.mxu0 0.0
    %3471 = vmatpush1.msra.mxu0 0.0
    %3472 = vmatprep.subr.mxu0 0.0
    %3473 = vmatpush1.msra.mxu0 0.0
    %3474 = vmatprep.subr.mxu0 0.0
    %3475 = vmatpush1.msra.mxu0 0.0
    %3476 = vmatprep.subr.mxu0 0.0
    %3477 = vmatpush1.msra.mxu0 0.0
    %3478 = vmatprep.subr.mxu0 0.0
    %3479 = vmatpush1.msra.mxu0 0.0
    %3480 = vmatprep.subr.mxu0 0.0
    %3481 = vmatpush1.msra.mxu0 0.0
    %3482 = vmatprep.subr.mxu0 0.0
    %3483 = vmatpush1.msra.mxu0 0.0
    %3484 = vmatprep.mubr.f32.mxu0 0.0
    %3485 = vmatmul.mubr.f32.gmra.mrb[0].mxu0 %v3418
    %v3486 = vpop.f32.mrb[0].mxu0
    %v3487 = vadd.f32 0.0, %v3486
    %v3488 = vpop.f32.mrb[0].mxu0
    %v3489 = vadd.f32 0.0, %v3488
    %3490 = vdwg.mxu0
    %3491 = vmatprep.subr.mxu0 %v3405
    %3492 = vmatpush1.msra.mxu0 %v3404
    %3493 = vmatprep.subr.mxu0 %v3409
    %3494 = vmatpush1.msra.mxu0 %v3408
    %3495 = vmatprep.subr.mxu0 %v3413
    %3496 = vmatpush1.msra.mxu0 %v3412
    %3497 = vmatprep.subr.mxu0 %v3417
    %3498 = vmatpush1.msra.mxu0 %v3416
    %3499 = vmatprep.subr.mxu0 0.0
    %3500 = vmatpush1.msra.mxu0 0.0
    %3501 = vmatprep.subr.mxu0 0.0
    %3502 = vmatpush1.msra.mxu0 0.0
    %3503 = vmatprep.subr.mxu0 0.0
    %3504 = vmatpush1.msra.mxu0 0.0
    %3505 = vmatprep.subr.mxu0 0.0
    %3506 = vmatpush1.msra.mxu0 0.0
    %3507 = vmatprep.subr.mxu0 0.0
    %3508 = vmatpush1.msra.mxu0 0.0
    %3509 = vmatprep.subr.mxu0 0.0
    %3510 = vmatpush1.msra.mxu0 0.0
    %3511 = vmatprep.subr.mxu0 0.0
    %3512 = vmatpush1.msra.mxu0 0.0
    %3513 = vmatprep.subr.mxu0 0.0
    %3514 = vmatpush1.msra.mxu0 0.0
    %3515 = vmatprep.subr.mxu0 0.0
    %3516 = vmatpush1.msra.mxu0 0.0
    %3517 = vmatprep.subr.mxu0 0.0
    %3518 = vmatpush1.msra.mxu0 0.0
    %3519 = vmatprep.subr.mxu0 0.0
    %3520 = vmatpush1.msra.mxu0 0.0
    %3521 = vmatprep.subr.mxu0 0.0
    %3522 = vmatpush1.msra.mxu0 0.0
    %3523 = vmatprep.subr.mxu0 0.0
    %3524 = vmatpush1.msra.mxu0 0.0
    %3525 = vmatprep.subr.mxu0 0.0
    %3526 = vmatpush1.msra.mxu0 0.0
    %3527 = vmatprep.subr.mxu0 0.0
    %3528 = vmatpush1.msra.mxu0 0.0
    %3529 = vmatprep.subr.mxu0 0.0
    %3530 = vmatpush1.msra.mxu0 0.0
    %3531 = vmatprep.subr.mxu0 0.0
    %3532 = vmatpush1.msra.mxu0 0.0
    %3533 = vmatprep.subr.mxu0 0.0
    %3534 = vmatpush1.msra.mxu0 0.0
    %3535 = vmatprep.subr.mxu0 0.0
    %3536 = vmatpush1.msra.mxu0 0.0
    %3537 = vmatprep.subr.mxu0 0.0
    %3538 = vmatpush1.msra.mxu0 0.0
    %3539 = vmatprep.subr.mxu0 0.0
    %3540 = vmatpush1.msra.mxu0 0.0
    %3541 = vmatprep.subr.mxu0 0.0
    %3542 = vmatpush1.msra.mxu0 0.0
    %3543 = vmatprep.subr.mxu0 0.0
    %3544 = vmatpush1.msra.mxu0 0.0
    %3545 = vmatprep.subr.mxu0 0.0
    %3546 = vmatpush1.msra.mxu0 0.0
    %3547 = vmatprep.subr.mxu0 0.0
    %3548 = vmatpush1.msra.mxu0 0.0
    %3549 = vmatprep.subr.mxu0 0.0
    %3550 = vmatpush1.msra.mxu0 0.0
    %3551 = vmatprep.subr.mxu0 0.0
    %3552 = vmatpush1.msra.mxu0 0.0
    %3553 = vmatprep.subr.mxu0 0.0
    %3554 = vmatpush1.msra.mxu0 0.0
    %3555 = vmatprep.mubr.f32.mxu0 0.0
    %3556 = vmatmul.mubr.f32.gmra.mrb[0].mxu0 %v3418
    %v3557 = vpop.f32.mrb[0].mxu0
    %v3558 = vadd.f32 0.0, %v3557
    %v3559 = vpop.f32.mrb[0].mxu0
    %v3560 = vadd.f32 0.0, %v3559
    %3561 = vdwg.mxu0
    %v3566 = vcombine.low %v3487, %v3489
    %v3567 = vcombine.low %v3558, %v3560
    %v3569 = vunpack.c.l.s4 1966171168
    %v3570 = vunpack.c.0.s8 %v3569
    %v3571 = vlaneseq
    %v3572 = vshrl.u32 %v3571, 7
    %v3573 = vsub.s32 %v3570, %v3572
    %v3574 = vrot.slane %v3566, %v3573
    %v3576 = vunpack.c.l.s4 1966171168
    %v3577 = vunpack.c.0.s8 %v3576
    %v3578 = vlaneseq
    %v3579 = vshrl.u32 %v3578, 7
    %v3580 = vsub.s32 %v3577, %v3579
    %v3581 = vrot.slane %v3567, %v3580
    %v3582 = vcombine.low %v3574, %v3581
    %v3584 = vunpack.c.l.s4 1966171168
    %v3585 = vunpack.c.0.s8 %v3584
    %v3586 = vlaneseq
    %v3587 = vshrl.u32 %v3586, 7
    %v3588 = vsub.s32 %v3585, %v3587
    %v3589 = vrot.slane %v3582, %v3588
    %v3591 = vadd.f32 %v3401, %v3589
    %v3593 = vlaneseq
    %v3594 = vshrl.u32 %v3593, 7
    %v3595 = vsub.s32 0, %v3594
    %v3596 = vrot.slane %v3591, %v3595
    %v3597 = vlaneseq
    %v3598 = vshrl.u32 %v3597, 7
    %v3599 = vsub.s32 1, %v3598
    %v3600 = vrot.slane %v3591, %v3599
    %v3601 = vlaneseq
    %v3602 = vshrl.u32 %v3601, 7
    %v3603 = vsub.s32 2, %v3602
    %v3604 = vrot.slane %v3591, %v3603
    %v3605 = vlaneseq
    %v3606 = vshrl.u32 %v3605, 7
    %v3607 = vsub.s32 3, %v3606
    %v3608 = vrot.slane %v3591, %v3607
    %v3613 = vsel %vm566, %v3596, -inf
    %v3614 = vsel %vm566, %v3600, -inf
    %v3615 = vsel %vm566, %v3604, -inf
    %v3616 = vsel %vm566, %v3608, -inf
    %v3617 = vmax.f32 %v3613, %v3614
    %v3618 = vmax.f32 %v3615, %v3616
    %v3619 = vmax.f32 %v3617, %v3618
    %3620 = vmax.xlane.f32.xlu0 %v3619
    %v3621 = vpop.xlane.xlu0 %3620
    %v3623 = vlaneseq
    %v3624 = vshrl.u32 %v3623, 7
    %v3625 = vsub.s32 0, %v3624
    %v3626 = vrot.slane %v3621, %v3625
    %v3628 = vsub.f32 %v3591, %v3626
    %v3629 = vmul.f32 %v3628, 1.442695
    %v3630 = vpow.pop %v3629
    %v3632 = vlaneseq
    %v3633 = vshrl.u32 %v3632, 7
    %v3634 = vsub.s32 0, %v3633
    %v3635 = vrot.slane %v3630, %v3634
    %v3636 = vlaneseq
    %v3637 = vshrl.u32 %v3636, 7
    %v3638 = vsub.s32 1, %v3637
    %v3639 = vrot.slane %v3630, %v3638
    %v3640 = vlaneseq
    %v3641 = vshrl.u32 %v3640, 7
    %v3642 = vsub.s32 2, %v3641
    %v3643 = vrot.slane %v3630, %v3642
    %v3644 = vlaneseq
    %v3645 = vshrl.u32 %v3644, 7
    %v3646 = vsub.s32 3, %v3645
    %v3647 = vrot.slane %v3630, %v3646
    %v3652 = vsel %vm566, %v3635, 0.0
    %v3653 = vsel %vm566, %v3639, 0.0
    %v3654 = vadd.f32 %v3652, %v3653
    %v3655 = vsel %vm566, %v3643, 0.0
    %v3656 = vadd.f32 %v3654, %v3655
    %v3657 = vsel %vm566, %v3647, 0.0
    %v3658 = vadd.f32 %v3656, %v3657
    %3659 = vadd.xlane.f32.xlu0 %v3658
    %v3660 = vpop.xlane.xlu0 %3659
    %v3662 = vlaneseq
    %v3663 = vshrl.u32 %v3662, 7
    %v3664 = vsub.s32 0, %v3663
    %v3665 = vrot.slane %v3660, %v3664
    %v3667 = vrcp.pop %v3665
    %v3668 = vmul.f32 %v3630, %v3667
    %s3669 = scalar_lea.vmem [#allocation8], 4
    %3670 = vst.msk [vmem:[%s3669] ss:$8 sm:$0xf] %vm626, %v3668
    %3671 = vst.msk [vmem:[%s3669] ss:$8 sm:$0x0] %vm626, %v3668
    %v3672 = vld [vmem:[%s3] sm:$0xff]
    %v3673 = vld [vmem:[%s3 + $0x8] sm:$0xff]
    %v3674 = vld [vmem:[%s3 + $0x10] sm:$0xff]
    %v3675 = vld [vmem:[%s3 + $0x18] sm:$0xff]
    %v3676 = vld [vmem:[%s3 + $0x20] sm:$0xff]
    %v3677 = vld [vmem:[%s3 + $0x28] sm:$0xff]
    %v3678 = vld [vmem:[%s3 + $0x30] sm:$0xff]
    %v3679 = vld [vmem:[%s3 + $0x38] sm:$0xff]
    %v3680 = vld [vmem:[%s3 + $0x40] sm:$0xff]
    %v3681 = vld [vmem:[%s3 + $0x48] sm:$0xff]
    %v3682 = vld [vmem:[%s3 + $0x50] sm:$0xff]
    %v3683 = vld [vmem:[%s3 + $0x58] sm:$0xff]
    %v3684 = vld [vmem:[%s3 + $0x60] sm:$0xff]
    %v3685 = vld [vmem:[%s3 + $0x68] sm:$0xff]
    %v3686 = vld [vmem:[%s3 + $0x70] sm:$0xff]
    %v3687 = vld [vmem:[%s3 + $0x78] sm:$0xff]
    %v3688 = vld [vmem:[%s3 + $0x80] sm:$0xff]
    %v3689 = vld [vmem:[%s3 + $0x88] sm:$0xff]
    %v3690 = vld [vmem:[%s3 + $0x90] sm:$0xff]
    %v3691 = vld [vmem:[%s3 + $0x98] sm:$0xff]
    %v3692 = vld [vmem:[%s3 + $0xa0] sm:$0xff]
    %v3693 = vld [vmem:[%s3 + $0xa8] sm:$0xff]
    %v3694 = vld [vmem:[%s3 + $0xb0] sm:$0xff]
    %v3695 = vld [vmem:[%s3 + $0xb8] sm:$0xff]
    %v3696 = vld [vmem:[%s3 + $0xc0] sm:$0xff]
    %v3697 = vld [vmem:[%s3 + $0xc8] sm:$0xff]
    %v3698 = vld [vmem:[%s3 + $0xd0] sm:$0xff]
    %v3699 = vld [vmem:[%s3 + $0xd8] sm:$0xff]
    %v3700 = vld [vmem:[%s3 + $0xe0] sm:$0xff]
    %v3701 = vld [vmem:[%s3 + $0xe8] sm:$0xff]
    %v3702 = vld [vmem:[%s3 + $0xf0] sm:$0xff]
    %v3703 = vld [vmem:[%s3 + $0xf8] sm:$0xff]
    %v3704 = vld [vmem:[%s3 + $0x100] sm:$0xff]
    %v3705 = vld [vmem:[%s3 + $0x108] sm:$0xff]
    %v3706 = vld [vmem:[%s3 + $0x110] sm:$0xff]
    %v3707 = vld [vmem:[%s3 + $0x118] sm:$0xff]
    %v3708 = vld [vmem:[%s3 + $0x120] sm:$0xff]
    %v3709 = vld [vmem:[%s3 + $0x128] sm:$0xff]
    %v3710 = vld [vmem:[%s3 + $0x130] sm:$0xff]
    %v3711 = vld [vmem:[%s3 + $0x138] sm:$0xff]
    %v3712 = vld [vmem:[%s3 + $0x140] sm:$0xff]
    %v3713 = vld [vmem:[%s3 + $0x148] sm:$0xff]
    %v3714 = vld [vmem:[%s3 + $0x150] sm:$0xff]
    %v3715 = vld [vmem:[%s3 + $0x158] sm:$0xff]
    %v3716 = vld [vmem:[%s3 + $0x160] sm:$0xff]
    %v3717 = vld [vmem:[%s3 + $0x168] sm:$0xff]
    %v3718 = vld [vmem:[%s3 + $0x170] sm:$0xff]
    %v3719 = vld [vmem:[%s3 + $0x178] sm:$0xff]
    %v3720 = vld [vmem:[%s3 + $0x180] sm:$0xff]
    %v3721 = vld [vmem:[%s3 + $0x188] sm:$0xff]
    %v3722 = vld [vmem:[%s3 + $0x190] sm:$0xff]
    %v3723 = vld [vmem:[%s3 + $0x198] sm:$0xff]
    %v3724 = vld [vmem:[%s3 + $0x1a0] sm:$0xff]
    %v3725 = vld [vmem:[%s3 + $0x1a8] sm:$0xff]
    %v3726 = vld [vmem:[%s3 + $0x1b0] sm:$0xff]
    %v3727 = vld [vmem:[%s3 + $0x1b8] sm:$0xff]
    %v3728 = vld [vmem:[%s3 + $0x1c0] sm:$0xff]
    %v3729 = vld [vmem:[%s3 + $0x1c8] sm:$0xff]
    %v3730 = vld [vmem:[%s3 + $0x1d0] sm:$0xff]
    %v3731 = vld [vmem:[%s3 + $0x1d8] sm:$0xff]
    %v3732 = vld [vmem:[%s3 + $0x1e0] sm:$0xff]
    %v3733 = vld [vmem:[%s3 + $0x1e8] sm:$0xff]
    %v3734 = vld [vmem:[%s3 + $0x1f0] sm:$0xff]
    %v3735 = vld [vmem:[%s3 + $0x1f8] sm:$0xff]
    %v3737 = vlaneseq
    %v3738 = vshrl.u32 %v3737, 7
    %v3739 = vsub.s32 0, %v3738
    %v3740 = vrot.slane %v3668, %v3739
    %v3741 = vlaneseq
    %v3742 = vshrl.u32 %v3741, 7
    %v3743 = vsub.s32 1, %v3742
    %v3744 = vrot.slane %v3668, %v3743
    %v3745 = vlaneseq
    %v3746 = vshrl.u32 %v3745, 7
    %v3747 = vsub.s32 2, %v3746
    %v3748 = vrot.slane %v3668, %v3747
    %v3749 = vlaneseq
    %v3750 = vshrl.u32 %v3749, 7
    %v3751 = vsub.s32 3, %v3750
    %v3752 = vrot.slane %v3668, %v3751
    %3757 = vmatprep.subr.mxu0 0.0
    %3758 = vmatpush1.msra.mxu0 %v3672
    %3759 = vmatprep.subr.mxu0 0.0
    %3760 = vmatpush1.msra.mxu0 %v3673
    %3761 = vmatprep.subr.mxu0 0.0
    %3762 = vmatpush1.msra.mxu0 %v3674
    %3763 = vmatprep.subr.mxu0 0.0
    %3764 = vmatpush1.msra.mxu0 %v3675
    %3765 = vmatprep.subr.mxu0 0.0
    %3766 = vmatpush1.msra.mxu0 %v3676
    %3767 = vmatprep.subr.mxu0 0.0
    %3768 = vmatpush1.msra.mxu0 %v3677
    %3769 = vmatprep.subr.mxu0 0.0
    %3770 = vmatpush1.msra.mxu0 %v3678
    %3771 = vmatprep.subr.mxu0 0.0
    %3772 = vmatpush1.msra.mxu0 %v3679
    %3773 = vmatprep.subr.mxu0 0.0
    %3774 = vmatpush1.msra.mxu0 %v3680
    %3775 = vmatprep.subr.mxu0 0.0
    %3776 = vmatpush1.msra.mxu0 %v3681
    %3777 = vmatprep.subr.mxu0 0.0
    %3778 = vmatpush1.msra.mxu0 %v3682
    %3779 = vmatprep.subr.mxu0 0.0
    %3780 = vmatpush1.msra.mxu0 %v3683
    %3781 = vmatprep.subr.mxu0 0.0
    %3782 = vmatpush1.msra.mxu0 %v3684
    %3783 = vmatprep.subr.mxu0 0.0
    %3784 = vmatpush1.msra.mxu0 %v3685
    %3785 = vmatprep.subr.mxu0 0.0
    %3786 = vmatpush1.msra.mxu0 %v3686
    %3787 = vmatprep.subr.mxu0 0.0
    %3788 = vmatpush1.msra.mxu0 %v3687
    %3789 = vmatprep.subr.mxu0 0.0
    %3790 = vmatpush1.msra.mxu0 %v3688
    %3791 = vmatprep.subr.mxu0 0.0
    %3792 = vmatpush1.msra.mxu0 %v3689
    %3793 = vmatprep.subr.mxu0 0.0
    %3794 = vmatpush1.msra.mxu0 %v3690
    %3795 = vmatprep.subr.mxu0 0.0
    %3796 = vmatpush1.msra.mxu0 %v3691
    %3797 = vmatprep.subr.mxu0 0.0
    %3798 = vmatpush1.msra.mxu0 %v3692
    %3799 = vmatprep.subr.mxu0 0.0
    %3800 = vmatpush1.msra.mxu0 %v3693
    %3801 = vmatprep.subr.mxu0 0.0
    %3802 = vmatpush1.msra.mxu0 %v3694
    %3803 = vmatprep.subr.mxu0 0.0
    %3804 = vmatpush1.msra.mxu0 %v3695
    %3805 = vmatprep.subr.mxu0 0.0
    %3806 = vmatpush1.msra.mxu0 %v3696
    %3807 = vmatprep.subr.mxu0 0.0
    %3808 = vmatpush1.msra.mxu0 %v3697
    %3809 = vmatprep.subr.mxu0 0.0
    %3810 = vmatpush1.msra.mxu0 %v3698
    %3811 = vmatprep.subr.mxu0 0.0
    %3812 = vmatpush1.msra.mxu0 %v3699
    %3813 = vmatprep.subr.mxu0 0.0
    %3814 = vmatpush1.msra.mxu0 %v3700
    %3815 = vmatprep.subr.mxu0 0.0
    %3816 = vmatpush1.msra.mxu0 %v3701
    %3817 = vmatprep.subr.mxu0 0.0
    %3818 = vmatpush1.msra.mxu0 %v3702
    %3819 = vmatprep.subr.mxu0 0.0
    %3820 = vmatpush1.msra.mxu0 %v3703
    %3821 = vmatprep.mubr.f32.mxu0 %v3744
    %3822 = vmatmul.mubr.f32.gmra.mrb[0].mxu0 %v3740
    %v3823 = vpop.f32.mrb[0].mxu0
    %v3824 = vadd.f32 0.0, %v3823
    %v3825 = vpop.f32.mrb[0].mxu0
    %3826 = vdwg.mxu0
    %3827 = vmatprep.subr.mxu0 0.0
    %3828 = vmatpush1.msra.mxu0 %v3704
    %3829 = vmatprep.subr.mxu0 0.0
    %3830 = vmatpush1.msra.mxu0 %v3705
    %3831 = vmatprep.subr.mxu0 0.0
    %3832 = vmatpush1.msra.mxu0 %v3706
    %3833 = vmatprep.subr.mxu0 0.0
    %3834 = vmatpush1.msra.mxu0 %v3707
    %3835 = vmatprep.subr.mxu0 0.0
    %3836 = vmatpush1.msra.mxu0 %v3708
    %3837 = vmatprep.subr.mxu0 0.0
    %3838 = vmatpush1.msra.mxu0 %v3709
    %3839 = vmatprep.subr.mxu0 0.0
    %3840 = vmatpush1.msra.mxu0 %v3710
    %3841 = vmatprep.subr.mxu0 0.0
    %3842 = vmatpush1.msra.mxu0 %v3711
    %3843 = vmatprep.subr.mxu0 0.0
    %3844 = vmatpush1.msra.mxu0 %v3712
    %3845 = vmatprep.subr.mxu0 0.0
    %3846 = vmatpush1.msra.mxu0 %v3713
    %3847 = vmatprep.subr.mxu0 0.0
    %3848 = vmatpush1.msra.mxu0 %v3714
    %3849 = vmatprep.subr.mxu0 0.0
    %3850 = vmatpush1.msra.mxu0 %v3715
    %3851 = vmatprep.subr.mxu0 0.0
    %3852 = vmatpush1.msra.mxu0 %v3716
    %3853 = vmatprep.subr.mxu0 0.0
    %3854 = vmatpush1.msra.mxu0 %v3717
    %3855 = vmatprep.subr.mxu0 0.0
    %3856 = vmatpush1.msra.mxu0 %v3718
    %3857 = vmatprep.subr.mxu0 0.0
    %3858 = vmatpush1.msra.mxu0 %v3719
    %3859 = vmatprep.subr.mxu0 0.0
    %3860 = vmatpush1.msra.mxu0 %v3720
    %3861 = vmatprep.subr.mxu0 0.0
    %3862 = vmatpush1.msra.mxu0 %v3721
    %3863 = vmatprep.subr.mxu0 0.0
    %3864 = vmatpush1.msra.mxu0 %v3722
    %3865 = vmatprep.subr.mxu0 0.0
    %3866 = vmatpush1.msra.mxu0 %v3723
    %3867 = vmatprep.subr.mxu0 0.0
    %3868 = vmatpush1.msra.mxu0 %v3724
    %3869 = vmatprep.subr.mxu0 0.0
    %3870 = vmatpush1.msra.mxu0 %v3725
    %3871 = vmatprep.subr.mxu0 0.0
    %3872 = vmatpush1.msra.mxu0 %v3726
    %3873 = vmatprep.subr.mxu0 0.0
    %3874 = vmatpush1.msra.mxu0 %v3727
    %3875 = vmatprep.subr.mxu0 0.0
    %3876 = vmatpush1.msra.mxu0 %v3728
    %3877 = vmatprep.subr.mxu0 0.0
    %3878 = vmatpush1.msra.mxu0 %v3729
    %3879 = vmatprep.subr.mxu0 0.0
    %3880 = vmatpush1.msra.mxu0 %v3730
    %3881 = vmatprep.subr.mxu0 0.0
    %3882 = vmatpush1.msra.mxu0 %v3731
    %3883 = vmatprep.subr.mxu0 0.0
    %3884 = vmatpush1.msra.mxu0 %v3732
    %3885 = vmatprep.subr.mxu0 0.0
    %3886 = vmatpush1.msra.mxu0 %v3733
    %3887 = vmatprep.subr.mxu0 0.0
    %3888 = vmatpush1.msra.mxu0 %v3734
    %3889 = vmatprep.subr.mxu0 0.0
    %3890 = vmatpush1.msra.mxu0 %v3735
    %3891 = vmatprep.mubr.f32.mxu0 %v3752
    %3892 = vmatmul.mubr.f32.gmra.mrb[0].mxu0 %v3748
    %v3893 = vpop.f32.mrb[0].mxu0
    %v3894 = vadd.f32 %v3824, %v3893
    %v3895 = vpop.f32.mrb[0].mxu0
    %3896 = vdwg.mxu0
    %v3897 = vld [vmem:[#allocation4 + $0x4] sm:$0x1]
    %v3898 = vld [vmem:[%s7] sm:$0xff]
    %v3899 = vld [vmem:[%s7 + $0x8] sm:$0xff]
    %v3900 = vld [vmem:[%s7 + $0x10] sm:$0xff]
    %v3901 = vld [vmem:[%s7 + $0x18] sm:$0xff]
    %v3903 = vsel %vm121, %v3894, 0
    %3905 = vmatprep.subr.mxu0 0.0
    %3906 = vmatpush1.msra.mxu0 %v3898
    %3907 = vmatprep.subr.mxu0 0.0
    %3908 = vmatpush1.msra.mxu0 %v3899
    %3909 = vmatprep.subr.mxu0 0.0
    %3910 = vmatpush1.msra.mxu0 %v3900
    %3911 = vmatprep.subr.mxu0 0.0
    %3912 = vmatpush1.msra.mxu0 %v3901
    %3913 = vmatprep.subr.mxu0 0.0
    %3914 = vmatpush1.msra.mxu0 0.0
    %3915 = vmatprep.subr.mxu0 0.0
    %3916 = vmatpush1.msra.mxu0 0.0
    %3917 = vmatprep.subr.mxu0 0.0
    %3918 = vmatpush1.msra.mxu0 0.0
    %3919 = vmatprep.subr.mxu0 0.0
    %3920 = vmatpush1.msra.mxu0 0.0
    %3921 = vmatprep.subr.mxu0 0.0
    %3922 = vmatpush1.msra.mxu0 0.0
    %3923 = vmatprep.subr.mxu0 0.0
    %3924 = vmatpush1.msra.mxu0 0.0
    %3925 = vmatprep.subr.mxu0 0.0
    %3926 = vmatpush1.msra.mxu0 0.0
    %3927 = vmatprep.subr.mxu0 0.0
    %3928 = vmatpush1.msra.mxu0 0.0
    %3929 = vmatprep.subr.mxu0 0.0
    %3930 = vmatpush1.msra.mxu0 0.0
    %3931 = vmatprep.subr.mxu0 0.0
    %3932 = vmatpush1.msra.mxu0 0.0
    %3933 = vmatprep.subr.mxu0 0.0
    %3934 = vmatpush1.msra.mxu0 0.0
    %3935 = vmatprep.subr.mxu0 0.0
    %3936 = vmatpush1.msra.mxu0 0.0
    %3937 = vmatprep.subr.mxu0 0.0
    %3938 = vmatpush1.msra.mxu0 0.0
    %3939 = vmatprep.subr.mxu0 0.0
    %3940 = vmatpush1.msra.mxu0 0.0
    %3941 = vmatprep.subr.mxu0 0.0
    %3942 = vmatpush1.msra.mxu0 0.0
    %3943 = vmatprep.subr.mxu0 0.0
    %3944 = vmatpush1.msra.mxu0 0.0
    %3945 = vmatprep.subr.mxu0 0.0
    %3946 = vmatpush1.msra.mxu0 0.0
    %3947 = vmatprep.subr.mxu0 0.0
    %3948 = vmatpush1.msra.mxu0 0.0
    %3949 = vmatprep.subr.mxu0 0.0
    %3950 = vmatpush1.msra.mxu0 0.0
    %3951 = vmatprep.subr.mxu0 0.0
    %3952 = vmatpush1.msra.mxu0 0.0
    %3953 = vmatprep.subr.mxu0 0.0
    %3954 = vmatpush1.msra.mxu0 0.0
    %3955 = vmatprep.subr.mxu0 0.0
    %3956 = vmatpush1.msra.mxu0 0.0
    %3957 = vmatprep.subr.mxu0 0.0
    %3958 = vmatpush1.msra.mxu0 0.0
    %3959 = vmatprep.subr.mxu0 0.0
    %3960 = vmatpush1.msra.mxu0 0.0
    %3961 = vmatprep.subr.mxu0 0.0
    %3962 = vmatpush1.msra.mxu0 0.0
    %3963 = vmatprep.subr.mxu0 0.0
    %3964 = vmatpush1.msra.mxu0 0.0
    %3965 = vmatprep.subr.mxu0 0.0
    %3966 = vmatpush1.msra.mxu0 0.0
    %3967 = vmatprep.subr.mxu0 0.0
    %3968 = vmatpush1.msra.mxu0 0.0
    %3969 = vmatprep.mubr.f32.mxu0 0.0
    %3970 = vmatmul.mubr.f32.gmra.mrb[0].mxu0 %v3903
    %v3971 = vpop.f32.mrb[0].mxu0
    %v3972 = vadd.f32 0.0, %v3971
    %v3973 = vpop.f32.mrb[0].mxu0
    %3974 = vdwg.mxu0
    %v3975 = vadd.f32 %v3897, %v3972
    %v3976 = vmax.f32 %v3975, 0.0
    %v3977 = vld [vmem:[%s8] sm:$0xff]
    %v3978 = vld [vmem:[%s8 + $0x8] sm:$0xff]
    %v3979 = vld [vmem:[%s8 + $0x10] sm:$0xff]
    %v3980 = vld [vmem:[%s8 + $0x18] sm:$0xff]
    %v3981 = vld [vmem:[%s9] sm:$0xff]
    %v3982 = vld [vmem:[%s9 + $0x8] sm:$0xff]
    %v3983 = vld [vmem:[%s9 + $0x10] sm:$0xff]
    %v3984 = vld [vmem:[%s9 + $0x18] sm:$0xff]
    %3985 = vmatprep.subr.mxu0 0.0
    %3986 = vmatpush1.msra.mxu0 %v3981
    %3987 = vmatprep.subr.mxu0 0.0
    %3988 = vmatpush1.msra.mxu0 %v3982
    %3989 = vmatprep.subr.mxu0 0.0
    %3990 = vmatpush1.msra.mxu0 %v3983
    %3991 = vmatprep.subr.mxu0 0.0
    %3992 = vmatpush1.msra.mxu0 %v3984
    %3993 = vmatprep.subr.mxu0 0.0
    %3994 = vmatpush1.msra.mxu0 0.0
    %3995 = vmatprep.subr.mxu0 0.0
    %3996 = vmatpush1.msra.mxu0 0.0
    %3997 = vmatprep.subr.mxu0 0.0
    %3998 = vmatpush1.msra.mxu0 0.0
    %3999 = vmatprep.subr.mxu0 0.0
    %4000 = vmatpush1.msra.mxu0 0.0
    %4001 = vmatprep.subr.mxu0 0.0
    %4002 = vmatpush1.msra.mxu0 0.0
    %4003 = vmatprep.subr.mxu0 0.0
    %4004 = vmatpush1.msra.mxu0 0.0
    %4005 = vmatprep.subr.mxu0 0.0
    %4006 = vmatpush1.msra.mxu0 0.0
    %4007 = vmatprep.subr.mxu0 0.0
    %4008 = vmatpush1.msra.mxu0 0.0
    %4009 = vmatprep.subr.mxu0 0.0
    %4010 = vmatpush1.msra.mxu0 0.0
    %4011 = vmatprep.subr.mxu0 0.0
    %4012 = vmatpush1.msra.mxu0 0.0
    %4013 = vmatprep.subr.mxu0 0.0
    %4014 = vmatpush1.msra.mxu0 0.0
    %4015 = vmatprep.subr.mxu0 0.0
    %4016 = vmatpush1.msra.mxu0 0.0
    %4017 = vmatprep.subr.mxu0 0.0
    %4018 = vmatpush1.msra.mxu0 0.0
    %4019 = vmatprep.subr.mxu0 0.0
    %4020 = vmatpush1.msra.mxu0 0.0
    %4021 = vmatprep.subr.mxu0 0.0
    %4022 = vmatpush1.msra.mxu0 0.0
    %4023 = vmatprep.subr.mxu0 0.0
    %4024 = vmatpush1.msra.mxu0 0.0
    %4025 = vmatprep.subr.mxu0 0.0
    %4026 = vmatpush1.msra.mxu0 0.0
    %4027 = vmatprep.subr.mxu0 0.0
    %4028 = vmatpush1.msra.mxu0 0.0
    %4029 = vmatprep.subr.mxu0 0.0
    %4030 = vmatpush1.msra.mxu0 0.0
    %4031 = vmatprep.subr.mxu0 0.0
    %4032 = vmatpush1.msra.mxu0 0.0
    %4033 = vmatprep.subr.mxu0 0.0
    %4034 = vmatpush1.msra.mxu0 0.0
    %4035 = vmatprep.subr.mxu0 0.0
    %4036 = vmatpush1.msra.mxu0 0.0
    %4037 = vmatprep.subr.mxu0 0.0
    %4038 = vmatpush1.msra.mxu0 0.0
    %4039 = vmatprep.subr.mxu0 0.0
    %4040 = vmatpush1.msra.mxu0 0.0
    %4041 = vmatprep.subr.mxu0 0.0
    %4042 = vmatpush1.msra.mxu0 0.0
    %4043 = vmatprep.subr.mxu0 0.0
    %4044 = vmatpush1.msra.mxu0 0.0
    %4045 = vmatprep.subr.mxu0 0.0
    %4046 = vmatpush1.msra.mxu0 0.0
    %4047 = vmatprep.subr.mxu0 0.0
    %4048 = vmatpush1.msra.mxu0 0.0
    %4049 = vmatprep.mubr.f32.mxu0 0.0
    %4050 = vmatmul.mubr.f32.gmra.mrb[0].mxu0 %v3418
    %v4051 = vpop.f32.mrb[0].mxu0
    %v4052 = vadd.f32 0.0, %v4051
    %v4053 = vpop.f32.mrb[0].mxu0
    %4054 = vdwg.mxu0
    %v4056 = vsel %vm121, %v3976, 0
    %4058 = vmatprep.subr.mxu0 0.0
    %4059 = vmatpush1.msra.mxu0 %v3977
    %4060 = vmatprep.subr.mxu0 0.0
    %4061 = vmatpush1.msra.mxu0 %v3978
    %4062 = vmatprep.subr.mxu0 0.0
    %4063 = vmatpush1.msra.mxu0 %v3979
    %4064 = vmatprep.subr.mxu0 0.0
    %4065 = vmatpush1.msra.mxu0 %v3980
    %4066 = vmatprep.subr.mxu0 0.0
    %4067 = vmatpush1.msra.mxu0 0.0
    %4068 = vmatprep.subr.mxu0 0.0
    %4069 = vmatpush1.msra.mxu0 0.0
    %4070 = vmatprep.subr.mxu0 0.0
    %4071 = vmatpush1.msra.mxu0 0.0
    %4072 = vmatprep.subr.mxu0 0.0
    %4073 = vmatpush1.msra.mxu0 0.0
    %4074 = vmatprep.subr.mxu0 0.0
    %4075 = vmatpush1.msra.mxu0 0.0
    %4076 = vmatprep.subr.mxu0 0.0
    %4077 = vmatpush1.msra.mxu0 0.0
    %4078 = vmatprep.subr.mxu0 0.0
    %4079 = vmatpush1.msra.mxu0 0.0
    %4080 = vmatprep.subr.mxu0 0.0
    %4081 = vmatpush1.msra.mxu0 0.0
    %4082 = vmatprep.subr.mxu0 0.0
    %4083 = vmatpush1.msra.mxu0 0.0
    %4084 = vmatprep.subr.mxu0 0.0
    %4085 = vmatpush1.msra.mxu0 0.0
    %4086 = vmatprep.subr.mxu0 0.0
    %4087 = vmatpush1.msra.mxu0 0.0
    %4088 = vmatprep.subr.mxu0 0.0
    %4089 = vmatpush1.msra.mxu0 0.0
    %4090 = vmatprep.subr.mxu0 0.0
    %4091 = vmatpush1.msra.mxu0 0.0
    %4092 = vmatprep.subr.mxu0 0.0
    %4093 = vmatpush1.msra.mxu0 0.0
    %4094 = vmatprep.subr.mxu0 0.0
    %4095 = vmatpush1.msra.mxu0 0.0
    %4096 = vmatprep.subr.mxu0 0.0
    %4097 = vmatpush1.msra.mxu0 0.0
    %4098 = vmatprep.subr.mxu0 0.0
    %4099 = vmatpush1.msra.mxu0 0.0
    %4100 = vmatprep.subr.mxu0 0.0
    %4101 = vmatpush1.msra.mxu0 0.0
    %4102 = vmatprep.subr.mxu0 0.0
    %4103 = vmatpush1.msra.mxu0 0.0
    %4104 = vmatprep.subr.mxu0 0.0
    %4105 = vmatpush1.msra.mxu0 0.0
    %4106 = vmatprep.subr.mxu0 0.0
    %4107 = vmatpush1.msra.mxu0 0.0
    %4108 = vmatprep.subr.mxu0 0.0
    %4109 = vmatpush1.msra.mxu0 0.0
    %4110 = vmatprep.subr.mxu0 0.0
    %4111 = vmatpush1.msra.mxu0 0.0
    %4112 = vmatprep.subr.mxu0 0.0
    %4113 = vmatpush1.msra.mxu0 0.0
    %4114 = vmatprep.subr.mxu0 0.0
    %4115 = vmatpush1.msra.mxu0 0.0
    %4116 = vmatprep.subr.mxu0 0.0
    %4117 = vmatpush1.msra.mxu0 0.0
    %4118 = vmatprep.subr.mxu0 0.0
    %4119 = vmatpush1.msra.mxu0 0.0
    %4120 = vmatprep.subr.mxu0 0.0
    %4121 = vmatpush1.msra.mxu0 0.0
    %4122 = vmatprep.mubr.f32.mxu0 0.0
    %4123 = vmatmul.mubr.f32.gmra.mrb[0].mxu0 %v4056
    %v4124 = vpop.f32.mrb[0].mxu0
    %v4125 = vadd.f32 %v4052, %v4124
    %v4126 = vpop.f32.mrb[0].mxu0
    %4127 = vdwg.mxu0
    %v4128 = vadd.f32 %v4125, %v47
    %v4129 = vxor.u32 %v4128, 2147483648
    %v4130 = vmul.f32 %v4129, 1.442695
    %v4131 = vpow.pop %v4130
    %v4132 = vadd.f32 %v4131, 1.0
    %v4133 = vrcp.pop %v4132
    %v4134 = vmul.f32 1.0, %v4133
    %4136 = vrot.lane.b32.xlu0 %v4128, 32
    %v4137 = vpop.permute.xlu0 %4136
    %v4139 = vmul.f32 %v4134, %v4137
    %4141 = vrot.lane.b32.xlu0 %v4139, 64
    %v4142 = vpop.permute.xlu0 %4141
    %v4144 = vadd.f32 %v4128, %v4142
    %v4145 = vtanh.pop %v4144
    %v4146 = vsub.f32 1.0, %v4134
    %4148 = vrot.lane.b32.xlu0 %v4145, 96
    %v4149 = vpop.permute.xlu0 %4148
    %v4151 = vmul.f32 %v4146, %v4149
    %v4152 = vmul.f32 %v4134, %v3394
    %v4153 = vadd.f32 %v4151, %v4152
    %4155 = vrot.lane.b32.xlu0 %v4153, 96
    %v4156 = vpop.permute.xlu0 %4155
    %4158 = vst.msk [vmem:[#allocation5 + $0x4] sm:$0x1] %vm53, %v4156
    %s4159 = scalar_lea.vmem [#allocation3], 5
    %v4160 = vld [vmem:[%s4159] ss:$8 sm:$0xf]
    %v4161 = vld [vmem:[%s5] sm:$0xff]
    %v4162 = vld [vmem:[%s5 + $0x8] sm:$0xff]
    %v4163 = vld [vmem:[%s5 + $0x10] sm:$0xff]
    %v4164 = vld [vmem:[%s5 + $0x18] sm:$0xff]
    %v4165 = vld [vmem:[%s5 + $0x20] sm:$0xff]
    %v4166 = vld [vmem:[%s5 + $0x28] sm:$0xff]
    %v4167 = vld [vmem:[%s5 + $0x30] sm:$0xff]
    %v4168 = vld [vmem:[%s5 + $0x38] sm:$0xff]
    %v4169 = vld [vmem:[%s5 + $0x40] sm:$0xff]
    %v4170 = vld [vmem:[%s5 + $0x48] sm:$0xff]
    %v4171 = vld [vmem:[%s5 + $0x50] sm:$0xff]
    %v4172 = vld [vmem:[%s5 + $0x58] sm:$0xff]
    %v4173 = vld [vmem:[%s5 + $0x60] sm:$0xff]
    %v4174 = vld [vmem:[%s5 + $0x68] sm:$0xff]
    %v4175 = vld [vmem:[%s5 + $0x70] sm:$0xff]
    %v4176 = vld [vmem:[%s5 + $0x78] sm:$0xff]
    %v4177 = vsel %vm121, %v4156, 0
    %4179 = vmatprep.subr.mxu0 %v4162
    %4180 = vmatpush1.msra.mxu0 %v4161
    %4181 = vmatprep.subr.mxu0 %v4166
    %4182 = vmatpush1.msra.mxu0 %v4165
    %4183 = vmatprep.subr.mxu0 %v4170
    %4184 = vmatpush1.msra.mxu0 %v4169
    %4185 = vmatprep.subr.mxu0 %v4174
    %4186 = vmatpush1.msra.mxu0 %v4173
    %4187 = vmatprep.subr.mxu0 0.0
    %4188 = vmatpush1.msra.mxu0 0.0
    %4189 = vmatprep.subr.mxu0 0.0
    %4190 = vmatpush1.msra.mxu0 0.0
    %4191 = vmatprep.subr.mxu0 0.0
    %4192 = vmatpush1.msra.mxu0 0.0
    %4193 = vmatprep.subr.mxu0 0.0
    %4194 = vmatpush1.msra.mxu0 0.0
    %4195 = vmatprep.subr.mxu0 0.0
    %4196 = vmatpush1.msra.mxu0 0.0
    %4197 = vmatprep.subr.mxu0 0.0
    %4198 = vmatpush1.msra.mxu0 0.0
    %4199 = vmatprep.subr.mxu0 0.0
    %4200 = vmatpush1.msra.mxu0 0.0
    %4201 = vmatprep.subr.mxu0 0.0
    %4202 = vmatpush1.msra.mxu0 0.0
    %4203 = vmatprep.subr.mxu0 0.0
    %4204 = vmatpush1.msra.mxu0 0.0
    %4205 = vmatprep.subr.mxu0 0.0
    %4206 = vmatpush1.msra.mxu0 0.0
    %4207 = vmatprep.subr.mxu0 0.0
    %4208 = vmatpush1.msra.mxu0 0.0
    %4209 = vmatprep.subr.mxu0 0.0
    %4210 = vmatpush1.msra.mxu0 0.0
    %4211 = vmatprep.subr.mxu0 0.0
    %4212 = vmatpush1.msra.mxu0 0.0
    %4213 = vmatprep.subr.mxu0 0.0
    %4214 = vmatpush1.msra.mxu0 0.0
    %4215 = vmatprep.subr.mxu0 0.0
    %4216 = vmatpush1.msra.mxu0 0.0
    %4217 = vmatprep.subr.mxu0 0.0
    %4218 = vmatpush1.msra.mxu0 0.0
    %4219 = vmatprep.subr.mxu0 0.0
    %4220 = vmatpush1.msra.mxu0 0.0
    %4221 = vmatprep.subr.mxu0 0.0
    %4222 = vmatpush1.msra.mxu0 0.0
    %4223 = vmatprep.subr.mxu0 0.0
    %4224 = vmatpush1.msra.mxu0 0.0
    %4225 = vmatprep.subr.mxu0 0.0
    %4226 = vmatpush1.msra.mxu0 0.0
    %4227 = vmatprep.subr.mxu0 0.0
    %4228 = vmatpush1.msra.mxu0 0.0
    %4229 = vmatprep.subr.mxu0 0.0
    %4230 = vmatpush1.msra.mxu0 0.0
    %4231 = vmatprep.subr.mxu0 0.0
    %4232 = vmatpush1.msra.mxu0 0.0
    %4233 = vmatprep.subr.mxu0 0.0
    %4234 = vmatpush1.msra.mxu0 0.0
    %4235 = vmatprep.subr.mxu0 0.0
    %4236 = vmatpush1.msra.mxu0 0.0
    %4237 = vmatprep.subr.mxu0 0.0
    %4238 = vmatpush1.msra.mxu0 0.0
    %4239 = vmatprep.subr.mxu0 0.0
    %4240 = vmatpush1.msra.mxu0 0.0
    %4241 = vmatprep.subr.mxu0 0.0
    %4242 = vmatpush1.msra.mxu0 0.0
    %4243 = vmatprep.mubr.f32.mxu0 0.0
    %4244 = vmatmul.mubr.f32.gmra.mrb[0].mxu0 %v4177
    %v4245 = vpop.f32.mrb[0].mxu0
    %v4246 = vadd.f32 0.0, %v4245
    %v4247 = vpop.f32.mrb[0].mxu0
    %v4248 = vadd.f32 0.0, %v4247
    %4249 = vdwg.mxu0
    %4250 = vmatprep.subr.mxu0 %v4164
    %4251 = vmatpush1.msra.mxu0 %v4163
    %4252 = vmatprep.subr.mxu0 %v4168
    %4253 = vmatpush1.msra.mxu0 %v4167
    %4254 = vmatprep.subr.mxu0 %v4172
    %4255 = vmatpush1.msra.mxu0 %v4171
    %4256 = vmatprep.subr.mxu0 %v4176
    %4257 = vmatpush1.msra.mxu0 %v4175
    %4258 = vmatprep.subr.mxu0 0.0
    %4259 = vmatpush1.msra.mxu0 0.0
    %4260 = vmatprep.subr.mxu0 0.0
    %4261 = vmatpush1.msra.mxu0 0.0
    %4262 = vmatprep.subr.mxu0 0.0
    %4263 = vmatpush1.msra.mxu0 0.0
    %4264 = vmatprep.subr.mxu0 0.0
    %4265 = vmatpush1.msra.mxu0 0.0
    %4266 = vmatprep.subr.mxu0 0.0
    %4267 = vmatpush1.msra.mxu0 0.0
    %4268 = vmatprep.subr.mxu0 0.0
    %4269 = vmatpush1.msra.mxu0 0.0
    %4270 = vmatprep.subr.mxu0 0.0
    %4271 = vmatpush1.msra.mxu0 0.0
    %4272 = vmatprep.subr.mxu0 0.0
    %4273 = vmatpush1.msra.mxu0 0.0
    %4274 = vmatprep.subr.mxu0 0.0
    %4275 = vmatpush1.msra.mxu0 0.0
    %4276 = vmatprep.subr.mxu0 0.0
    %4277 = vmatpush1.msra.mxu0 0.0
    %4278 = vmatprep.subr.mxu0 0.0
    %4279 = vmatpush1.msra.mxu0 0.0
    %4280 = vmatprep.subr.mxu0 0.0
    %4281 = vmatpush1.msra.mxu0 0.0
    %4282 = vmatprep.subr.mxu0 0.0
    %4283 = vmatpush1.msra.mxu0 0.0
    %4284 = vmatprep.subr.mxu0 0.0
    %4285 = vmatpush1.msra.mxu0 0.0
    %4286 = vmatprep.subr.mxu0 0.0
    %4287 = vmatpush1.msra.mxu0 0.0
    %4288 = vmatprep.subr.mxu0 0.0
    %4289 = vmatpush1.msra.mxu0 0.0
    %4290 = vmatprep.subr.mxu0 0.0
    %4291 = vmatpush1.msra.mxu0 0.0
    %4292 = vmatprep.subr.mxu0 0.0
    %4293 = vmatpush1.msra.mxu0 0.0
    %4294 = vmatprep.subr.mxu0 0.0
    %4295 = vmatpush1.msra.mxu0 0.0
    %4296 = vmatprep.subr.mxu0 0.0
    %4297 = vmatpush1.msra.mxu0 0.0
    %4298 = vmatprep.subr.mxu0 0.0
    %4299 = vmatpush1.msra.mxu0 0.0
    %4300 = vmatprep.subr.mxu0 0.0
    %4301 = vmatpush1.msra.mxu0 0.0
    %4302 = vmatprep.subr.mxu0 0.0
    %4303 = vmatpush1.msra.mxu0 0.0
    %4304 = vmatprep.subr.mxu0 0.0
    %4305 = vmatpush1.msra.mxu0 0.0
    %4306 = vmatprep.subr.mxu0 0.0
    %4307 = vmatpush1.msra.mxu0 0.0
    %4308 = vmatprep.subr.mxu0 0.0
    %4309 = vmatpush1.msra.mxu0 0.0
    %4310 = vmatprep.subr.mxu0 0.0
    %4311 = vmatpush1.msra.mxu0 0.0
    %4312 = vmatprep.subr.mxu0 0.0
    %4313 = vmatpush1.msra.mxu0 0.0
    %4314 = vmatprep.mubr.f32.mxu0 0.0
    %4315 = vmatmul.mubr.f32.gmra.mrb[0].mxu0 %v4177
    %v4316 = vpop.f32.mrb[0].mxu0
    %v4317 = vadd.f32 0.0, %v4316
    %v4318 = vpop.f32.mrb[0].mxu0
    %v4319 = vadd.f32 0.0, %v4318
    %4320 = vdwg.mxu0
    %v4325 = vcombine.low %v4246, %v4248
    %v4326 = vcombine.low %v4317, %v4319
    %v4328 = vunpack.c.l.s4 1966171168
    %v4329 = vunpack.c.0.s8 %v4328
    %v4330 = vlaneseq
    %v4331 = vshrl.u32 %v4330, 7
    %v4332 = vsub.s32 %v4329, %v4331
    %v4333 = vrot.slane %v4325, %v4332
    %v4335 = vunpack.c.l.s4 1966171168
    %v4336 = vunpack.c.0.s8 %v4335
    %v4337 = vlaneseq
    %v4338 = vshrl.u32 %v4337, 7
    %v4339 = vsub.s32 %v4336, %v4338
    %v4340 = vrot.slane %v4326, %v4339
    %v4341 = vcombine.low %v4333, %v4340
    %v4343 = vunpack.c.l.s4 1966171168
    %v4344 = vunpack.c.0.s8 %v4343
    %v4345 = vlaneseq
    %v4346 = vshrl.u32 %v4345, 7
    %v4347 = vsub.s32 %v4344, %v4346
    %v4348 = vrot.slane %v4341, %v4347
    %v4350 = vadd.f32 %v4160, %v4348
    %v4352 = vlaneseq
    %v4353 = vshrl.u32 %v4352, 7
    %v4354 = vsub.s32 0, %v4353
    %v4355 = vrot.slane %v4350, %v4354
    %v4356 = vlaneseq
    %v4357 = vshrl.u32 %v4356, 7
    %v4358 = vsub.s32 1, %v4357
    %v4359 = vrot.slane %v4350, %v4358
    %v4360 = vlaneseq
    %v4361 = vshrl.u32 %v4360, 7
    %v4362 = vsub.s32 2, %v4361
    %v4363 = vrot.slane %v4350, %v4362
    %v4364 = vlaneseq
    %v4365 = vshrl.u32 %v4364, 7
    %v4366 = vsub.s32 3, %v4365
    %v4367 = vrot.slane %v4350, %v4366
    %v4372 = vsel %vm566, %v4355, -inf
    %v4373 = vsel %vm566, %v4359, -inf
    %v4374 = vsel %vm566, %v4363, -inf
    %v4375 = vsel %vm566, %v4367, -inf
    %v4376 = vmax.f32 %v4372, %v4373
    %v4377 = vmax.f32 %v4374, %v4375
    %v4378 = vmax.f32 %v4376, %v4377
    %4379 = vmax.xlane.f32.xlu0 %v4378
    %v4380 = vpop.xlane.xlu0 %4379
    %v4382 = vlaneseq
    %v4383 = vshrl.u32 %v4382, 7
    %v4384 = vsub.s32 0, %v4383
    %v4385 = vrot.slane %v4380, %v4384
    %v4387 = vsub.f32 %v4350, %v4385
    %v4388 = vmul.f32 %v4387, 1.442695
    %v4389 = vpow.pop %v4388
    %v4391 = vlaneseq
    %v4392 = vshrl.u32 %v4391, 7
    %v4393 = vsub.s32 0, %v4392
    %v4394 = vrot.slane %v4389, %v4393
    %v4395 = vlaneseq
    %v4396 = vshrl.u32 %v4395, 7
    %v4397 = vsub.s32 1, %v4396
    %v4398 = vrot.slane %v4389, %v4397
    %v4399 = vlaneseq
    %v4400 = vshrl.u32 %v4399, 7
    %v4401 = vsub.s32 2, %v4400
    %v4402 = vrot.slane %v4389, %v4401
    %v4403 = vlaneseq
    %v4404 = vshrl.u32 %v4403, 7
    %v4405 = vsub.s32 3, %v4404
    %v4406 = vrot.slane %v4389, %v4405
    %v4411 = vsel %vm566, %v4394, 0.0
    %v4412 = vsel %vm566, %v4398, 0.0
    %v4413 = vadd.f32 %v4411, %v4412
    %v4414 = vsel %vm566, %v4402, 0.0
    %v4415 = vadd.f32 %v4413, %v4414
    %v4416 = vsel %vm566, %v4406, 0.0
    %v4417 = vadd.f32 %v4415, %v4416
    %4418 = vadd.xlane.f32.xlu0 %v4417
    %v4419 = vpop.xlane.xlu0 %4418
    %v4421 = vlaneseq
    %v4422 = vshrl.u32 %v4421, 7
    %v4423 = vsub.s32 0, %v4422
    %v4424 = vrot.slane %v4419, %v4423
    %v4426 = vrcp.pop %v4424
    %v4427 = vmul.f32 %v4389, %v4426
    %s4428 = scalar_lea.vmem [#allocation8], 5
    %4429 = vst.msk [vmem:[%s4428] ss:$8 sm:$0xf] %vm626, %v4427
    %4430 = vst.msk [vmem:[%s4428] ss:$8 sm:$0x0] %vm626, %v4427
    %v4431 = vld [vmem:[%s3] sm:$0xff]
    %v4432 = vld [vmem:[%s3 + $0x8] sm:$0xff]
    %v4433 = vld [vmem:[%s3 + $0x10] sm:$0xff]
    %v4434 = vld [vmem:[%s3 + $0x18] sm:$0xff]
    %v4435 = vld [vmem:[%s3 + $0x20] sm:$0xff]
    %v4436 = vld [vmem:[%s3 + $0x28] sm:$0xff]
    %v4437 = vld [vmem:[%s3 + $0x30] sm:$0xff]
    %v4438 = vld [vmem:[%s3 + $0x38] sm:$0xff]
    %v4439 = vld [vmem:[%s3 + $0x40] sm:$0xff]
    %v4440 = vld [vmem:[%s3 + $0x48] sm:$0xff]
    %v4441 = vld [vmem:[%s3 + $0x50] sm:$0xff]
    %v4442 = vld [vmem:[%s3 + $0x58] sm:$0xff]
    %v4443 = vld [vmem:[%s3 + $0x60] sm:$0xff]
    %v4444 = vld [vmem:[%s3 + $0x68] sm:$0xff]
    %v4445 = vld [vmem:[%s3 + $0x70] sm:$0xff]
    %v4446 = vld [vmem:[%s3 + $0x78] sm:$0xff]
    %v4447 = vld [vmem:[%s3 + $0x80] sm:$0xff]
    %v4448 = vld [vmem:[%s3 + $0x88] sm:$0xff]
    %v4449 = vld [vmem:[%s3 + $0x90] sm:$0xff]
    %v4450 = vld [vmem:[%s3 + $0x98] sm:$0xff]
    %v4451 = vld [vmem:[%s3 + $0xa0] sm:$0xff]
    %v4452 = vld [vmem:[%s3 + $0xa8] sm:$0xff]
    %v4453 = vld [vmem:[%s3 + $0xb0] sm:$0xff]
    %v4454 = vld [vmem:[%s3 + $0xb8] sm:$0xff]
    %v4455 = vld [vmem:[%s3 + $0xc0] sm:$0xff]
    %v4456 = vld [vmem:[%s3 + $0xc8] sm:$0xff]
    %v4457 = vld [vmem:[%s3 + $0xd0] sm:$0xff]
    %v4458 = vld [vmem:[%s3 + $0xd8] sm:$0xff]
    %v4459 = vld [vmem:[%s3 + $0xe0] sm:$0xff]
    %v4460 = vld [vmem:[%s3 + $0xe8] sm:$0xff]
    %v4461 = vld [vmem:[%s3 + $0xf0] sm:$0xff]
    %v4462 = vld [vmem:[%s3 + $0xf8] sm:$0xff]
    %v4463 = vld [vmem:[%s3 + $0x100] sm:$0xff]
    %v4464 = vld [vmem:[%s3 + $0x108] sm:$0xff]
    %v4465 = vld [vmem:[%s3 + $0x110] sm:$0xff]
    %v4466 = vld [vmem:[%s3 + $0x118] sm:$0xff]
    %v4467 = vld [vmem:[%s3 + $0x120] sm:$0xff]
    %v4468 = vld [vmem:[%s3 + $0x128] sm:$0xff]
    %v4469 = vld [vmem:[%s3 + $0x130] sm:$0xff]
    %v4470 = vld [vmem:[%s3 + $0x138] sm:$0xff]
    %v4471 = vld [vmem:[%s3 + $0x140] sm:$0xff]
    %v4472 = vld [vmem:[%s3 + $0x148] sm:$0xff]
    %v4473 = vld [vmem:[%s3 + $0x150] sm:$0xff]
    %v4474 = vld [vmem:[%s3 + $0x158] sm:$0xff]
    %v4475 = vld [vmem:[%s3 + $0x160] sm:$0xff]
    %v4476 = vld [vmem:[%s3 + $0x168] sm:$0xff]
    %v4477 = vld [vmem:[%s3 + $0x170] sm:$0xff]
    %v4478 = vld [vmem:[%s3 + $0x178] sm:$0xff]
    %v4479 = vld [vmem:[%s3 + $0x180] sm:$0xff]
    %v4480 = vld [vmem:[%s3 + $0x188] sm:$0xff]
    %v4481 = vld [vmem:[%s3 + $0x190] sm:$0xff]
    %v4482 = vld [vmem:[%s3 + $0x198] sm:$0xff]
    %v4483 = vld [vmem:[%s3 + $0x1a0] sm:$0xff]
    %v4484 = vld [vmem:[%s3 + $0x1a8] sm:$0xff]
    %v4485 = vld [vmem:[%s3 + $0x1b0] sm:$0xff]
    %v4486 = vld [vmem:[%s3 + $0x1b8] sm:$0xff]
    %v4487 = vld [vmem:[%s3 + $0x1c0] sm:$0xff]
    %v4488 = vld [vmem:[%s3 + $0x1c8] sm:$0xff]
    %v4489 = vld [vmem:[%s3 + $0x1d0] sm:$0xff]
    %v4490 = vld [vmem:[%s3 + $0x1d8] sm:$0xff]
    %v4491 = vld [vmem:[%s3 + $0x1e0] sm:$0xff]
    %v4492 = vld [vmem:[%s3 + $0x1e8] sm:$0xff]
    %v4493 = vld [vmem:[%s3 + $0x1f0] sm:$0xff]
    %v4494 = vld [vmem:[%s3 + $0x1f8] sm:$0xff]
    %v4496 = vlaneseq
    %v4497 = vshrl.u32 %v4496, 7
    %v4498 = vsub.s32 0, %v4497
    %v4499 = vrot.slane %v4427, %v4498
    %v4500 = vlaneseq
    %v4501 = vshrl.u32 %v4500, 7
    %v4502 = vsub.s32 1, %v4501
    %v4503 = vrot.slane %v4427, %v4502
    %v4504 = vlaneseq
    %v4505 = vshrl.u32 %v4504, 7
    %v4506 = vsub.s32 2, %v4505
    %v4507 = vrot.slane %v4427, %v4506
    %v4508 = vlaneseq
    %v4509 = vshrl.u32 %v4508, 7
    %v4510 = vsub.s32 3, %v4509
    %v4511 = vrot.slane %v4427, %v4510
    %4516 = vmatprep.subr.mxu0 0.0
    %4517 = vmatpush1.msra.mxu0 %v4431
    %4518 = vmatprep.subr.mxu0 0.0
    %4519 = vmatpush1.msra.mxu0 %v4432
    %4520 = vmatprep.subr.mxu0 0.0
    %4521 = vmatpush1.msra.mxu0 %v4433
    %4522 = vmatprep.subr.mxu0 0.0
    %4523 = vmatpush1.msra.mxu0 %v4434
    %4524 = vmatprep.subr.mxu0 0.0
    %4525 = vmatpush1.msra.mxu0 %v4435
    %4526 = vmatprep.subr.mxu0 0.0
    %4527 = vmatpush1.msra.mxu0 %v4436
    %4528 = vmatprep.subr.mxu0 0.0
    %4529 = vmatpush1.msra.mxu0 %v4437
    %4530 = vmatprep.subr.mxu0 0.0
    %4531 = vmatpush1.msra.mxu0 %v4438
    %4532 = vmatprep.subr.mxu0 0.0
    %4533 = vmatpush1.msra.mxu0 %v4439
    %4534 = vmatprep.subr.mxu0 0.0
    %4535 = vmatpush1.msra.mxu0 %v4440
    %4536 = vmatprep.subr.mxu0 0.0
    %4537 = vmatpush1.msra.mxu0 %v4441
    %4538 = vmatprep.subr.mxu0 0.0
    %4539 = vmatpush1.msra.mxu0 %v4442
    %4540 = vmatprep.subr.mxu0 0.0
    %4541 = vmatpush1.msra.mxu0 %v4443
    %4542 = vmatprep.subr.mxu0 0.0
    %4543 = vmatpush1.msra.mxu0 %v4444
    %4544 = vmatprep.subr.mxu0 0.0
    %4545 = vmatpush1.msra.mxu0 %v4445
    %4546 = vmatprep.subr.mxu0 0.0
    %4547 = vmatpush1.msra.mxu0 %v4446
    %4548 = vmatprep.subr.mxu0 0.0
    %4549 = vmatpush1.msra.mxu0 %v4447
    %4550 = vmatprep.subr.mxu0 0.0
    %4551 = vmatpush1.msra.mxu0 %v4448
    %4552 = vmatprep.subr.mxu0 0.0
    %4553 = vmatpush1.msra.mxu0 %v4449
    %4554 = vmatprep.subr.mxu0 0.0
    %4555 = vmatpush1.msra.mxu0 %v4450
    %4556 = vmatprep.subr.mxu0 0.0
    %4557 = vmatpush1.msra.mxu0 %v4451
    %4558 = vmatprep.subr.mxu0 0.0
    %4559 = vmatpush1.msra.mxu0 %v4452
    %4560 = vmatprep.subr.mxu0 0.0
    %4561 = vmatpush1.msra.mxu0 %v4453
    %4562 = vmatprep.subr.mxu0 0.0
    %4563 = vmatpush1.msra.mxu0 %v4454
    %4564 = vmatprep.subr.mxu0 0.0
    %4565 = vmatpush1.msra.mxu0 %v4455
    %4566 = vmatprep.subr.mxu0 0.0
    %4567 = vmatpush1.msra.mxu0 %v4456
    %4568 = vmatprep.subr.mxu0 0.0
    %4569 = vmatpush1.msra.mxu0 %v4457
    %4570 = vmatprep.subr.mxu0 0.0
    %4571 = vmatpush1.msra.mxu0 %v4458
    %4572 = vmatprep.subr.mxu0 0.0
    %4573 = vmatpush1.msra.mxu0 %v4459
    %4574 = vmatprep.subr.mxu0 0.0
    %4575 = vmatpush1.msra.mxu0 %v4460
    %4576 = vmatprep.subr.mxu0 0.0
    %4577 = vmatpush1.msra.mxu0 %v4461
    %4578 = vmatprep.subr.mxu0 0.0
    %4579 = vmatpush1.msra.mxu0 %v4462
    %4580 = vmatprep.mubr.f32.mxu0 %v4503
    %4581 = vmatmul.mubr.f32.gmra.mrb[0].mxu0 %v4499
    %v4582 = vpop.f32.mrb[0].mxu0
    %v4583 = vadd.f32 0.0, %v4582
    %v4584 = vpop.f32.mrb[0].mxu0
    %4585 = vdwg.mxu0
    %4586 = vmatprep.subr.mxu0 0.0
    %4587 = vmatpush1.msra.mxu0 %v4463
    %4588 = vmatprep.subr.mxu0 0.0
    %4589 = vmatpush1.msra.mxu0 %v4464
    %4590 = vmatprep.subr.mxu0 0.0
    %4591 = vmatpush1.msra.mxu0 %v4465
    %4592 = vmatprep.subr.mxu0 0.0
    %4593 = vmatpush1.msra.mxu0 %v4466
    %4594 = vmatprep.subr.mxu0 0.0
    %4595 = vmatpush1.msra.mxu0 %v4467
    %4596 = vmatprep.subr.mxu0 0.0
    %4597 = vmatpush1.msra.mxu0 %v4468
    %4598 = vmatprep.subr.mxu0 0.0
    %4599 = vmatpush1.msra.mxu0 %v4469
    %4600 = vmatprep.subr.mxu0 0.0
    %4601 = vmatpush1.msra.mxu0 %v4470
    %4602 = vmatprep.subr.mxu0 0.0
    %4603 = vmatpush1.msra.mxu0 %v4471
    %4604 = vmatprep.subr.mxu0 0.0
    %4605 = vmatpush1.msra.mxu0 %v4472
    %4606 = vmatprep.subr.mxu0 0.0
    %4607 = vmatpush1.msra.mxu0 %v4473
    %4608 = vmatprep.subr.mxu0 0.0
    %4609 = vmatpush1.msra.mxu0 %v4474
    %4610 = vmatprep.subr.mxu0 0.0
    %4611 = vmatpush1.msra.mxu0 %v4475
    %4612 = vmatprep.subr.mxu0 0.0
    %4613 = vmatpush1.msra.mxu0 %v4476
    %4614 = vmatprep.subr.mxu0 0.0
    %4615 = vmatpush1.msra.mxu0 %v4477
    %4616 = vmatprep.subr.mxu0 0.0
    %4617 = vmatpush1.msra.mxu0 %v4478
    %4618 = vmatprep.subr.mxu0 0.0
    %4619 = vmatpush1.msra.mxu0 %v4479
    %4620 = vmatprep.subr.mxu0 0.0
    %4621 = vmatpush1.msra.mxu0 %v4480
    %4622 = vmatprep.subr.mxu0 0.0
    %4623 = vmatpush1.msra.mxu0 %v4481
    %4624 = vmatprep.subr.mxu0 0.0
    %4625 = vmatpush1.msra.mxu0 %v4482
    %4626 = vmatprep.subr.mxu0 0.0
    %4627 = vmatpush1.msra.mxu0 %v4483
    %4628 = vmatprep.subr.mxu0 0.0
    %4629 = vmatpush1.msra.mxu0 %v4484
    %4630 = vmatprep.subr.mxu0 0.0
    %4631 = vmatpush1.msra.mxu0 %v4485
    %4632 = vmatprep.subr.mxu0 0.0
    %4633 = vmatpush1.msra.mxu0 %v4486
    %4634 = vmatprep.subr.mxu0 0.0
    %4635 = vmatpush1.msra.mxu0 %v4487
    %4636 = vmatprep.subr.mxu0 0.0
    %4637 = vmatpush1.msra.mxu0 %v4488
    %4638 = vmatprep.subr.mxu0 0.0
    %4639 = vmatpush1.msra.mxu0 %v4489
    %4640 = vmatprep.subr.mxu0 0.0
    %4641 = vmatpush1.msra.mxu0 %v4490
    %4642 = vmatprep.subr.mxu0 0.0
    %4643 = vmatpush1.msra.mxu0 %v4491
    %4644 = vmatprep.subr.mxu0 0.0
    %4645 = vmatpush1.msra.mxu0 %v4492
    %4646 = vmatprep.subr.mxu0 0.0
    %4647 = vmatpush1.msra.mxu0 %v4493
    %4648 = vmatprep.subr.mxu0 0.0
    %4649 = vmatpush1.msra.mxu0 %v4494
    %4650 = vmatprep.mubr.f32.mxu0 %v4511
    %4651 = vmatmul.mubr.f32.gmra.mrb[0].mxu0 %v4507
    %v4652 = vpop.f32.mrb[0].mxu0
    %v4653 = vadd.f32 %v4583, %v4652
    %v4654 = vpop.f32.mrb[0].mxu0
    %4655 = vdwg.mxu0
    %v4656 = vld [vmem:[#allocation4 + $0x5] sm:$0x1]
    %v4657 = vld [vmem:[%s7] sm:$0xff]
    %v4658 = vld [vmem:[%s7 + $0x8] sm:$0xff]
    %v4659 = vld [vmem:[%s7 + $0x10] sm:$0xff]
    %v4660 = vld [vmem:[%s7 + $0x18] sm:$0xff]
    %v4662 = vsel %vm121, %v4653, 0
    %4664 = vmatprep.subr.mxu0 0.0
    %4665 = vmatpush1.msra.mxu0 %v4657
    %4666 = vmatprep.subr.mxu0 0.0
    %4667 = vmatpush1.msra.mxu0 %v4658
    %4668 = vmatprep.subr.mxu0 0.0
    %4669 = vmatpush1.msra.mxu0 %v4659
    %4670 = vmatprep.subr.mxu0 0.0
    %4671 = vmatpush1.msra.mxu0 %v4660
    %4672 = vmatprep.subr.mxu0 0.0
    %4673 = vmatpush1.msra.mxu0 0.0
    %4674 = vmatprep.subr.mxu0 0.0
    %4675 = vmatpush1.msra.mxu0 0.0
    %4676 = vmatprep.subr.mxu0 0.0
    %4677 = vmatpush1.msra.mxu0 0.0
    %4678 = vmatprep.subr.mxu0 0.0
    %4679 = vmatpush1.msra.mxu0 0.0
    %4680 = vmatprep.subr.mxu0 0.0
    %4681 = vmatpush1.msra.mxu0 0.0
    %4682 = vmatprep.subr.mxu0 0.0
    %4683 = vmatpush1.msra.mxu0 0.0
    %4684 = vmatprep.subr.mxu0 0.0
    %4685 = vmatpush1.msra.mxu0 0.0
    %4686 = vmatprep.subr.mxu0 0.0
    %4687 = vmatpush1.msra.mxu0 0.0
    %4688 = vmatprep.subr.mxu0 0.0
    %4689 = vmatpush1.msra.mxu0 0.0
    %4690 = vmatprep.subr.mxu0 0.0
    %4691 = vmatpush1.msra.mxu0 0.0
    %4692 = vmatprep.subr.mxu0 0.0
    %4693 = vmatpush1.msra.mxu0 0.0
    %4694 = vmatprep.subr.mxu0 0.0
    %4695 = vmatpush1.msra.mxu0 0.0
    %4696 = vmatprep.subr.mxu0 0.0
    %4697 = vmatpush1.msra.mxu0 0.0
    %4698 = vmatprep.subr.mxu0 0.0
    %4699 = vmatpush1.msra.mxu0 0.0
    %4700 = vmatprep.subr.mxu0 0.0
    %4701 = vmatpush1.msra.mxu0 0.0
    %4702 = vmatprep.subr.mxu0 0.0
    %4703 = vmatpush1.msra.mxu0 0.0
    %4704 = vmatprep.subr.mxu0 0.0
    %4705 = vmatpush1.msra.mxu0 0.0
    %4706 = vmatprep.subr.mxu0 0.0
    %4707 = vmatpush1.msra.mxu0 0.0
    %4708 = vmatprep.subr.mxu0 0.0
    %4709 = vmatpush1.msra.mxu0 0.0
    %4710 = vmatprep.subr.mxu0 0.0
    %4711 = vmatpush1.msra.mxu0 0.0
    %4712 = vmatprep.subr.mxu0 0.0
    %4713 = vmatpush1.msra.mxu0 0.0
    %4714 = vmatprep.subr.mxu0 0.0
    %4715 = vmatpush1.msra.mxu0 0.0
    %4716 = vmatprep.subr.mxu0 0.0
    %4717 = vmatpush1.msra.mxu0 0.0
    %4718 = vmatprep.subr.mxu0 0.0
    %4719 = vmatpush1.msra.mxu0 0.0
    %4720 = vmatprep.subr.mxu0 0.0
    %4721 = vmatpush1.msra.mxu0 0.0
    %4722 = vmatprep.subr.mxu0 0.0
    %4723 = vmatpush1.msra.mxu0 0.0
    %4724 = vmatprep.subr.mxu0 0.0
    %4725 = vmatpush1.msra.mxu0 0.0
    %4726 = vmatprep.subr.mxu0 0.0
    %4727 = vmatpush1.msra.mxu0 0.0
    %4728 = vmatprep.mubr.f32.mxu0 0.0
    %4729 = vmatmul.mubr.f32.gmra.mrb[0].mxu0 %v4662
    %v4730 = vpop.f32.mrb[0].mxu0
    %v4731 = vadd.f32 0.0, %v4730
    %v4732 = vpop.f32.mrb[0].mxu0
    %4733 = vdwg.mxu0
    %v4734 = vadd.f32 %v4656, %v4731
    %v4735 = vmax.f32 %v4734, 0.0
    %v4736 = vld [vmem:[%s8] sm:$0xff]
    %v4737 = vld [vmem:[%s8 + $0x8] sm:$0xff]
    %v4738 = vld [vmem:[%s8 + $0x10] sm:$0xff]
    %v4739 = vld [vmem:[%s8 + $0x18] sm:$0xff]
    %v4740 = vld [vmem:[%s9] sm:$0xff]
    %v4741 = vld [vmem:[%s9 + $0x8] sm:$0xff]
    %v4742 = vld [vmem:[%s9 + $0x10] sm:$0xff]
    %v4743 = vld [vmem:[%s9 + $0x18] sm:$0xff]
    %4744 = vmatprep.subr.mxu0 0.0
    %4745 = vmatpush1.msra.mxu0 %v4740
    %4746 = vmatprep.subr.mxu0 0.0
    %4747 = vmatpush1.msra.mxu0 %v4741
    %4748 = vmatprep.subr.mxu0 0.0
    %4749 = vmatpush1.msra.mxu0 %v4742
    %4750 = vmatprep.subr.mxu0 0.0
    %4751 = vmatpush1.msra.mxu0 %v4743
    %4752 = vmatprep.subr.mxu0 0.0
    %4753 = vmatpush1.msra.mxu0 0.0
    %4754 = vmatprep.subr.mxu0 0.0
    %4755 = vmatpush1.msra.mxu0 0.0
    %4756 = vmatprep.subr.mxu0 0.0
    %4757 = vmatpush1.msra.mxu0 0.0
    %4758 = vmatprep.subr.mxu0 0.0
    %4759 = vmatpush1.msra.mxu0 0.0
    %4760 = vmatprep.subr.mxu0 0.0
    %4761 = vmatpush1.msra.mxu0 0.0
    %4762 = vmatprep.subr.mxu0 0.0
    %4763 = vmatpush1.msra.mxu0 0.0
    %4764 = vmatprep.subr.mxu0 0.0
    %4765 = vmatpush1.msra.mxu0 0.0
    %4766 = vmatprep.subr.mxu0 0.0
    %4767 = vmatpush1.msra.mxu0 0.0
    %4768 = vmatprep.subr.mxu0 0.0
    %4769 = vmatpush1.msra.mxu0 0.0
    %4770 = vmatprep.subr.mxu0 0.0
    %4771 = vmatpush1.msra.mxu0 0.0
    %4772 = vmatprep.subr.mxu0 0.0
    %4773 = vmatpush1.msra.mxu0 0.0
    %4774 = vmatprep.subr.mxu0 0.0
    %4775 = vmatpush1.msra.mxu0 0.0
    %4776 = vmatprep.subr.mxu0 0.0
    %4777 = vmatpush1.msra.mxu0 0.0
    %4778 = vmatprep.subr.mxu0 0.0
    %4779 = vmatpush1.msra.mxu0 0.0
    %4780 = vmatprep.subr.mxu0 0.0
    %4781 = vmatpush1.msra.mxu0 0.0
    %4782 = vmatprep.subr.mxu0 0.0
    %4783 = vmatpush1.msra.mxu0 0.0
    %4784 = vmatprep.subr.mxu0 0.0
    %4785 = vmatpush1.msra.mxu0 0.0
    %4786 = vmatprep.subr.mxu0 0.0
    %4787 = vmatpush1.msra.mxu0 0.0
    %4788 = vmatprep.subr.mxu0 0.0
    %4789 = vmatpush1.msra.mxu0 0.0
    %4790 = vmatprep.subr.mxu0 0.0
    %4791 = vmatpush1.msra.mxu0 0.0
    %4792 = vmatprep.subr.mxu0 0.0
    %4793 = vmatpush1.msra.mxu0 0.0
    %4794 = vmatprep.subr.mxu0 0.0
    %4795 = vmatpush1.msra.mxu0 0.0
    %4796 = vmatprep.subr.mxu0 0.0
    %4797 = vmatpush1.msra.mxu0 0.0
    %4798 = vmatprep.subr.mxu0 0.0
    %4799 = vmatpush1.msra.mxu0 0.0
    %4800 = vmatprep.subr.mxu0 0.0
    %4801 = vmatpush1.msra.mxu0 0.0
    %4802 = vmatprep.subr.mxu0 0.0
    %4803 = vmatpush1.msra.mxu0 0.0
    %4804 = vmatprep.subr.mxu0 0.0
    %4805 = vmatpush1.msra.mxu0 0.0
    %4806 = vmatprep.subr.mxu0 0.0
    %4807 = vmatpush1.msra.mxu0 0.0
    %4808 = vmatprep.mubr.f32.mxu0 0.0
    %4809 = vmatmul.mubr.f32.gmra.mrb[0].mxu0 %v4177
    %v4810 = vpop.f32.mrb[0].mxu0
    %v4811 = vadd.f32 0.0, %v4810
    %v4812 = vpop.f32.mrb[0].mxu0
    %4813 = vdwg.mxu0
    %v4815 = vsel %vm121, %v4735, 0
    %4817 = vmatprep.subr.mxu0 0.0
    %4818 = vmatpush1.msra.mxu0 %v4736
    %4819 = vmatprep.subr.mxu0 0.0
    %4820 = vmatpush1.msra.mxu0 %v4737
    %4821 = vmatprep.subr.mxu0 0.0
    %4822 = vmatpush1.msra.mxu0 %v4738
    %4823 = vmatprep.subr.mxu0 0.0
    %4824 = vmatpush1.msra.mxu0 %v4739
    %4825 = vmatprep.subr.mxu0 0.0
    %4826 = vmatpush1.msra.mxu0 0.0
    %4827 = vmatprep.subr.mxu0 0.0
    %4828 = vmatpush1.msra.mxu0 0.0
    %4829 = vmatprep.subr.mxu0 0.0
    %4830 = vmatpush1.msra.mxu0 0.0
    %4831 = vmatprep.subr.mxu0 0.0
    %4832 = vmatpush1.msra.mxu0 0.0
    %4833 = vmatprep.subr.mxu0 0.0
    %4834 = vmatpush1.msra.mxu0 0.0
    %4835 = vmatprep.subr.mxu0 0.0
    %4836 = vmatpush1.msra.mxu0 0.0
    %4837 = vmatprep.subr.mxu0 0.0
    %4838 = vmatpush1.msra.mxu0 0.0
    %4839 = vmatprep.subr.mxu0 0.0
    %4840 = vmatpush1.msra.mxu0 0.0
    %4841 = vmatprep.subr.mxu0 0.0
    %4842 = vmatpush1.msra.mxu0 0.0
    %4843 = vmatprep.subr.mxu0 0.0
    %4844 = vmatpush1.msra.mxu0 0.0
    %4845 = vmatprep.subr.mxu0 0.0
    %4846 = vmatpush1.msra.mxu0 0.0
    %4847 = vmatprep.subr.mxu0 0.0
    %4848 = vmatpush1.msra.mxu0 0.0
    %4849 = vmatprep.subr.mxu0 0.0
    %4850 = vmatpush1.msra.mxu0 0.0
    %4851 = vmatprep.subr.mxu0 0.0
    %4852 = vmatpush1.msra.mxu0 0.0
    %4853 = vmatprep.subr.mxu0 0.0
    %4854 = vmatpush1.msra.mxu0 0.0
    %4855 = vmatprep.subr.mxu0 0.0
    %4856 = vmatpush1.msra.mxu0 0.0
    %4857 = vmatprep.subr.mxu0 0.0
    %4858 = vmatpush1.msra.mxu0 0.0
    %4859 = vmatprep.subr.mxu0 0.0
    %4860 = vmatpush1.msra.mxu0 0.0
    %4861 = vmatprep.subr.mxu0 0.0
    %4862 = vmatpush1.msra.mxu0 0.0
    %4863 = vmatprep.subr.mxu0 0.0
    %4864 = vmatpush1.msra.mxu0 0.0
    %4865 = vmatprep.subr.mxu0 0.0
    %4866 = vmatpush1.msra.mxu0 0.0
    %4867 = vmatprep.subr.mxu0 0.0
    %4868 = vmatpush1.msra.mxu0 0.0
    %4869 = vmatprep.subr.mxu0 0.0
    %4870 = vmatpush1.msra.mxu0 0.0
    %4871 = vmatprep.subr.mxu0 0.0
    %4872 = vmatpush1.msra.mxu0 0.0
    %4873 = vmatprep.subr.mxu0 0.0
    %4874 = vmatpush1.msra.mxu0 0.0
    %4875 = vmatprep.subr.mxu0 0.0
    %4876 = vmatpush1.msra.mxu0 0.0
    %4877 = vmatprep.subr.mxu0 0.0
    %4878 = vmatpush1.msra.mxu0 0.0
    %4879 = vmatprep.subr.mxu0 0.0
    %4880 = vmatpush1.msra.mxu0 0.0
    %4881 = vmatprep.mubr.f32.mxu0 0.0
    %4882 = vmatmul.mubr.f32.gmra.mrb[0].mxu0 %v4815
    %v4883 = vpop.f32.mrb[0].mxu0
    %v4884 = vadd.f32 %v4811, %v4883
    %v4885 = vpop.f32.mrb[0].mxu0
    %4886 = vdwg.mxu0
    %v4887 = vadd.f32 %v4884, %v47
    %v4888 = vxor.u32 %v4887, 2147483648
    %v4889 = vmul.f32 %v4888, 1.442695
    %v4890 = vpow.pop %v4889
    %v4891 = vadd.f32 %v4890, 1.0
    %v4892 = vrcp.pop %v4891
    %v4893 = vmul.f32 1.0, %v4892
    %4895 = vrot.lane.b32.xlu0 %v4887, 32
    %v4896 = vpop.permute.xlu0 %4895
    %v4898 = vmul.f32 %v4893, %v4896
    %4900 = vrot.lane.b32.xlu0 %v4898, 64
    %v4901 = vpop.permute.xlu0 %4900
    %v4903 = vadd.f32 %v4887, %v4901
    %v4904 = vtanh.pop %v4903
    %v4905 = vsub.f32 1.0, %v4893
    %4907 = vrot.lane.b32.xlu0 %v4904, 96
    %v4908 = vpop.permute.xlu0 %4907
    %v4910 = vmul.f32 %v4905, %v4908
    %v4911 = vmul.f32 %v4893, %v4153
    %v4912 = vadd.f32 %v4910, %v4911
    %4914 = vrot.lane.b32.xlu0 %v4912, 96
    %v4915 = vpop.permute.xlu0 %4914
    %4917 = vst.msk [vmem:[#allocation5 + $0x5] sm:$0x1] %vm53, %v4915
    %s4918 = scalar_lea.vmem [#allocation3], 6
    %v4919 = vld [vmem:[%s4918] ss:$8 sm:$0xf]
    %v4920 = vld [vmem:[%s5] sm:$0xff]
    %v4921 = vld [vmem:[%s5 + $0x8] sm:$0xff]
    %v4922 = vld [vmem:[%s5 + $0x10] sm:$0xff]
    %v4923 = vld [vmem:[%s5 + $0x18] sm:$0xff]
    %v4924 = vld [vmem:[%s5 + $0x20] sm:$0xff]
    %v4925 = vld [vmem:[%s5 + $0x28] sm:$0xff]
    %v4926 = vld [vmem:[%s5 + $0x30] sm:$0xff]
    %v4927 = vld [vmem:[%s5 + $0x38] sm:$0xff]
    %v4928 = vld [vmem:[%s5 + $0x40] sm:$0xff]
    %v4929 = vld [vmem:[%s5 + $0x48] sm:$0xff]
    %v4930 = vld [vmem:[%s5 + $0x50] sm:$0xff]
    %v4931 = vld [vmem:[%s5 + $0x58] sm:$0xff]
    %v4932 = vld [vmem:[%s5 + $0x60] sm:$0xff]
    %v4933 = vld [vmem:[%s5 + $0x68] sm:$0xff]
    %v4934 = vld [vmem:[%s5 + $0x70] sm:$0xff]
    %v4935 = vld [vmem:[%s5 + $0x78] sm:$0xff]
    %v4936 = vsel %vm121, %v4915, 0
    %4938 = vmatprep.subr.mxu0 %v4921
    %4939 = vmatpush1.msra.mxu0 %v4920
    %4940 = vmatprep.subr.mxu0 %v4925
    %4941 = vmatpush1.msra.mxu0 %v4924
    %4942 = vmatprep.subr.mxu0 %v4929
    %4943 = vmatpush1.msra.mxu0 %v4928
    %4944 = vmatprep.subr.mxu0 %v4933
    %4945 = vmatpush1.msra.mxu0 %v4932
    %4946 = vmatprep.subr.mxu0 0.0
    %4947 = vmatpush1.msra.mxu0 0.0
    %4948 = vmatprep.subr.mxu0 0.0
    %4949 = vmatpush1.msra.mxu0 0.0
    %4950 = vmatprep.subr.mxu0 0.0
    %4951 = vmatpush1.msra.mxu0 0.0
    %4952 = vmatprep.subr.mxu0 0.0
    %4953 = vmatpush1.msra.mxu0 0.0
    %4954 = vmatprep.subr.mxu0 0.0
    %4955 = vmatpush1.msra.mxu0 0.0
    %4956 = vmatprep.subr.mxu0 0.0
    %4957 = vmatpush1.msra.mxu0 0.0
    %4958 = vmatprep.subr.mxu0 0.0
    %4959 = vmatpush1.msra.mxu0 0.0
    %4960 = vmatprep.subr.mxu0 0.0
    %4961 = vmatpush1.msra.mxu0 0.0
    %4962 = vmatprep.subr.mxu0 0.0
    %4963 = vmatpush1.msra.mxu0 0.0
    %4964 = vmatprep.subr.mxu0 0.0
    %4965 = vmatpush1.msra.mxu0 0.0
    %4966 = vmatprep.subr.mxu0 0.0
    %4967 = vmatpush1.msra.mxu0 0.0
    %4968 = vmatprep.subr.mxu0 0.0
    %4969 = vmatpush1.msra.mxu0 0.0
    %4970 = vmatprep.subr.mxu0 0.0
    %4971 = vmatpush1.msra.mxu0 0.0
    %4972 = vmatprep.subr.mxu0 0.0
    %4973 = vmatpush1.msra.mxu0 0.0
    %4974 = vmatprep.subr.mxu0 0.0
    %4975 = vmatpush1.msra.mxu0 0.0
    %4976 = vmatprep.subr.mxu0 0.0
    %4977 = vmatpush1.msra.mxu0 0.0
    %4978 = vmatprep.subr.mxu0 0.0
    %4979 = vmatpush1.msra.mxu0 0.0
    %4980 = vmatprep.subr.mxu0 0.0
    %4981 = vmatpush1.msra.mxu0 0.0
    %4982 = vmatprep.subr.mxu0 0.0
    %4983 = vmatpush1.msra.mxu0 0.0
    %4984 = vmatprep.subr.mxu0 0.0
    %4985 = vmatpush1.msra.mxu0 0.0
    %4986 = vmatprep.subr.mxu0 0.0
    %4987 = vmatpush1.msra.mxu0 0.0
    %4988 = vmatprep.subr.mxu0 0.0
    %4989 = vmatpush1.msra.mxu0 0.0
    %4990 = vmatprep.subr.mxu0 0.0
    %4991 = vmatpush1.msra.mxu0 0.0
    %4992 = vmatprep.subr.mxu0 0.0
    %4993 = vmatpush1.msra.mxu0 0.0
    %4994 = vmatprep.subr.mxu0 0.0
    %4995 = vmatpush1.msra.mxu0 0.0
    %4996 = vmatprep.subr.mxu0 0.0
    %4997 = vmatpush1.msra.mxu0 0.0
    %4998 = vmatprep.subr.mxu0 0.0
    %4999 = vmatpush1.msra.mxu0 0.0
    %5000 = vmatprep.subr.mxu0 0.0
    %5001 = vmatpush1.msra.mxu0 0.0
    %5002 = vmatprep.mubr.f32.mxu0 0.0
    %5003 = vmatmul.mubr.f32.gmra.mrb[0].mxu0 %v4936
    %v5004 = vpop.f32.mrb[0].mxu0
    %v5005 = vadd.f32 0.0, %v5004
    %v5006 = vpop.f32.mrb[0].mxu0
    %v5007 = vadd.f32 0.0, %v5006
    %5008 = vdwg.mxu0
    %5009 = vmatprep.subr.mxu0 %v4923
    %5010 = vmatpush1.msra.mxu0 %v4922
    %5011 = vmatprep.subr.mxu0 %v4927
    %5012 = vmatpush1.msra.mxu0 %v4926
    %5013 = vmatprep.subr.mxu0 %v4931
    %5014 = vmatpush1.msra.mxu0 %v4930
    %5015 = vmatprep.subr.mxu0 %v4935
    %5016 = vmatpush1.msra.mxu0 %v4934
    %5017 = vmatprep.subr.mxu0 0.0
    %5018 = vmatpush1.msra.mxu0 0.0
    %5019 = vmatprep.subr.mxu0 0.0
    %5020 = vmatpush1.msra.mxu0 0.0
    %5021 = vmatprep.subr.mxu0 0.0
    %5022 = vmatpush1.msra.mxu0 0.0
    %5023 = vmatprep.subr.mxu0 0.0
    %5024 = vmatpush1.msra.mxu0 0.0
    %5025 = vmatprep.subr.mxu0 0.0
    %5026 = vmatpush1.msra.mxu0 0.0
    %5027 = vmatprep.subr.mxu0 0.0
    %5028 = vmatpush1.msra.mxu0 0.0
    %5029 = vmatprep.subr.mxu0 0.0
    %5030 = vmatpush1.msra.mxu0 0.0
    %5031 = vmatprep.subr.mxu0 0.0
    %5032 = vmatpush1.msra.mxu0 0.0
    %5033 = vmatprep.subr.mxu0 0.0
    %5034 = vmatpush1.msra.mxu0 0.0
    %5035 = vmatprep.subr.mxu0 0.0
    %5036 = vmatpush1.msra.mxu0 0.0
    %5037 = vmatprep.subr.mxu0 0.0
    %5038 = vmatpush1.msra.mxu0 0.0
    %5039 = vmatprep.subr.mxu0 0.0
    %5040 = vmatpush1.msra.mxu0 0.0
    %5041 = vmatprep.subr.mxu0 0.0
    %5042 = vmatpush1.msra.mxu0 0.0
    %5043 = vmatprep.subr.mxu0 0.0
    %5044 = vmatpush1.msra.mxu0 0.0
    %5045 = vmatprep.subr.mxu0 0.0
    %5046 = vmatpush1.msra.mxu0 0.0
    %5047 = vmatprep.subr.mxu0 0.0
    %5048 = vmatpush1.msra.mxu0 0.0
    %5049 = vmatprep.subr.mxu0 0.0
    %5050 = vmatpush1.msra.mxu0 0.0
    %5051 = vmatprep.subr.mxu0 0.0
    %5052 = vmatpush1.msra.mxu0 0.0
    %5053 = vmatprep.subr.mxu0 0.0
    %5054 = vmatpush1.msra.mxu0 0.0
    %5055 = vmatprep.subr.mxu0 0.0
    %5056 = vmatpush1.msra.mxu0 0.0
    %5057 = vmatprep.subr.mxu0 0.0
    %5058 = vmatpush1.msra.mxu0 0.0
    %5059 = vmatprep.subr.mxu0 0.0
    %5060 = vmatpush1.msra.mxu0 0.0
    %5061 = vmatprep.subr.mxu0 0.0
    %5062 = vmatpush1.msra.mxu0 0.0
    %5063 = vmatprep.subr.mxu0 0.0
    %5064 = vmatpush1.msra.mxu0 0.0
    %5065 = vmatprep.subr.mxu0 0.0
    %5066 = vmatpush1.msra.mxu0 0.0
    %5067 = vmatprep.subr.mxu0 0.0
    %5068 = vmatpush1.msra.mxu0 0.0
    %5069 = vmatprep.subr.mxu0 0.0
    %5070 = vmatpush1.msra.mxu0 0.0
    %5071 = vmatprep.subr.mxu0 0.0
    %5072 = vmatpush1.msra.mxu0 0.0
    %5073 = vmatprep.mubr.f32.mxu0 0.0
    %5074 = vmatmul.mubr.f32.gmra.mrb[0].mxu0 %v4936
    %v5075 = vpop.f32.mrb[0].mxu0
    %v5076 = vadd.f32 0.0, %v5075
    %v5077 = vpop.f32.mrb[0].mxu0
    %v5078 = vadd.f32 0.0, %v5077
    %5079 = vdwg.mxu0
    %v5084 = vcombine.low %v5005, %v5007
    %v5085 = vcombine.low %v5076, %v5078
    %v5087 = vunpack.c.l.s4 1966171168
    %v5088 = vunpack.c.0.s8 %v5087
    %v5089 = vlaneseq
    %v5090 = vshrl.u32 %v5089, 7
    %v5091 = vsub.s32 %v5088, %v5090
    %v5092 = vrot.slane %v5084, %v5091
    %v5094 = vunpack.c.l.s4 1966171168
    %v5095 = vunpack.c.0.s8 %v5094
    %v5096 = vlaneseq
    %v5097 = vshrl.u32 %v5096, 7
    %v5098 = vsub.s32 %v5095, %v5097
    %v5099 = vrot.slane %v5085, %v5098
    %v5100 = vcombine.low %v5092, %v5099
    %v5102 = vunpack.c.l.s4 1966171168
    %v5103 = vunpack.c.0.s8 %v5102
    %v5104 = vlaneseq
    %v5105 = vshrl.u32 %v5104, 7
    %v5106 = vsub.s32 %v5103, %v5105
    %v5107 = vrot.slane %v5100, %v5106
    %v5109 = vadd.f32 %v4919, %v5107
    %v5111 = vlaneseq
    %v5112 = vshrl.u32 %v5111, 7
    %v5113 = vsub.s32 0, %v5112
    %v5114 = vrot.slane %v5109, %v5113
    %v5115 = vlaneseq
    %v5116 = vshrl.u32 %v5115, 7
    %v5117 = vsub.s32 1, %v5116
    %v5118 = vrot.slane %v5109, %v5117
    %v5119 = vlaneseq
    %v5120 = vshrl.u32 %v5119, 7
    %v5121 = vsub.s32 2, %v5120
    %v5122 = vrot.slane %v5109, %v5121
    %v5123 = vlaneseq
    %v5124 = vshrl.u32 %v5123, 7
    %v5125 = vsub.s32 3, %v5124
    %v5126 = vrot.slane %v5109, %v5125
    %v5131 = vsel %vm566, %v5114, -inf
    %v5132 = vsel %vm566, %v5118, -inf
    %v5133 = vsel %vm566, %v5122, -inf
    %v5134 = vsel %vm566, %v5126, -inf
    %v5135 = vmax.f32 %v5131, %v5132
    %v5136 = vmax.f32 %v5133, %v5134
    %v5137 = vmax.f32 %v5135, %v5136
    %5138 = vmax.xlane.f32.xlu0 %v5137
    %v5139 = vpop.xlane.xlu0 %5138
    %v5141 = vlaneseq
    %v5142 = vshrl.u32 %v5141, 7
    %v5143 = vsub.s32 0, %v5142
    %v5144 = vrot.slane %v5139, %v5143
    %v5146 = vsub.f32 %v5109, %v5144
    %v5147 = vmul.f32 %v5146, 1.442695
    %v5148 = vpow.pop %v5147
    %v5150 = vlaneseq
    %v5151 = vshrl.u32 %v5150, 7
    %v5152 = vsub.s32 0, %v5151
    %v5153 = vrot.slane %v5148, %v5152
    %v5154 = vlaneseq
    %v5155 = vshrl.u32 %v5154, 7
    %v5156 = vsub.s32 1, %v5155
    %v5157 = vrot.slane %v5148, %v5156
    %v5158 = vlaneseq
    %v5159 = vshrl.u32 %v5158, 7
    %v5160 = vsub.s32 2, %v5159
    %v5161 = vrot.slane %v5148, %v5160
    %v5162 = vlaneseq
    %v5163 = vshrl.u32 %v5162, 7
    %v5164 = vsub.s32 3, %v5163
    %v5165 = vrot.slane %v5148, %v5164
    %v5170 = vsel %vm566, %v5153, 0.0
    %v5171 = vsel %vm566, %v5157, 0.0
    %v5172 = vadd.f32 %v5170, %v5171
    %v5173 = vsel %vm566, %v5161, 0.0
    %v5174 = vadd.f32 %v5172, %v5173
    %v5175 = vsel %vm566, %v5165, 0.0
    %v5176 = vadd.f32 %v5174, %v5175
    %5177 = vadd.xlane.f32.xlu0 %v5176
    %v5178 = vpop.xlane.xlu0 %5177
    %v5180 = vlaneseq
    %v5181 = vshrl.u32 %v5180, 7
    %v5182 = vsub.s32 0, %v5181
    %v5183 = vrot.slane %v5178, %v5182
    %v5185 = vrcp.pop %v5183
    %v5186 = vmul.f32 %v5148, %v5185
    %s5187 = scalar_lea.vmem [#allocation8], 6
    %5188 = vst.msk [vmem:[%s5187] ss:$8 sm:$0xf] %vm626, %v5186
    %5189 = vst.msk [vmem:[%s5187] ss:$8 sm:$0x0] %vm626, %v5186
    %v5190 = vld [vmem:[%s3] sm:$0xff]
    %v5191 = vld [vmem:[%s3 + $0x8] sm:$0xff]
    %v5192 = vld [vmem:[%s3 + $0x10] sm:$0xff]
    %v5193 = vld [vmem:[%s3 + $0x18] sm:$0xff]
    %v5194 = vld [vmem:[%s3 + $0x20] sm:$0xff]
    %v5195 = vld [vmem:[%s3 + $0x28] sm:$0xff]
    %v5196 = vld [vmem:[%s3 + $0x30] sm:$0xff]
    %v5197 = vld [vmem:[%s3 + $0x38] sm:$0xff]
    %v5198 = vld [vmem:[%s3 + $0x40] sm:$0xff]
    %v5199 = vld [vmem:[%s3 + $0x48] sm:$0xff]
    %v5200 = vld [vmem:[%s3 + $0x50] sm:$0xff]
    %v5201 = vld [vmem:[%s3 + $0x58] sm:$0xff]
    %v5202 = vld [vmem:[%s3 + $0x60] sm:$0xff]
    %v5203 = vld [vmem:[%s3 + $0x68] sm:$0xff]
    %v5204 = vld [vmem:[%s3 + $0x70] sm:$0xff]
    %v5205 = vld [vmem:[%s3 + $0x78] sm:$0xff]
    %v5206 = vld [vmem:[%s3 + $0x80] sm:$0xff]
    %v5207 = vld [vmem:[%s3 + $0x88] sm:$0xff]
    %v5208 = vld [vmem:[%s3 + $0x90] sm:$0xff]
    %v5209 = vld [vmem:[%s3 + $0x98] sm:$0xff]
    %v5210 = vld [vmem:[%s3 + $0xa0] sm:$0xff]
    %v5211 = vld [vmem:[%s3 + $0xa8] sm:$0xff]
    %v5212 = vld [vmem:[%s3 + $0xb0] sm:$0xff]
    %v5213 = vld [vmem:[%s3 + $0xb8] sm:$0xff]
    %v5214 = vld [vmem:[%s3 + $0xc0] sm:$0xff]
    %v5215 = vld [vmem:[%s3 + $0xc8] sm:$0xff]
    %v5216 = vld [vmem:[%s3 + $0xd0] sm:$0xff]
    %v5217 = vld [vmem:[%s3 + $0xd8] sm:$0xff]
    %v5218 = vld [vmem:[%s3 + $0xe0] sm:$0xff]
    %v5219 = vld [vmem:[%s3 + $0xe8] sm:$0xff]
    %v5220 = vld [vmem:[%s3 + $0xf0] sm:$0xff]
    %v5221 = vld [vmem:[%s3 + $0xf8] sm:$0xff]
    %v5222 = vld [vmem:[%s3 + $0x100] sm:$0xff]
    %v5223 = vld [vmem:[%s3 + $0x108] sm:$0xff]
    %v5224 = vld [vmem:[%s3 + $0x110] sm:$0xff]
    %v5225 = vld [vmem:[%s3 + $0x118] sm:$0xff]
    %v5226 = vld [vmem:[%s3 + $0x120] sm:$0xff]
    %v5227 = vld [vmem:[%s3 + $0x128] sm:$0xff]
    %v5228 = vld [vmem:[%s3 + $0x130] sm:$0xff]
    %v5229 = vld [vmem:[%s3 + $0x138] sm:$0xff]
    %v5230 = vld [vmem:[%s3 + $0x140] sm:$0xff]
    %v5231 = vld [vmem:[%s3 + $0x148] sm:$0xff]
    %v5232 = vld [vmem:[%s3 + $0x150] sm:$0xff]
    %v5233 = vld [vmem:[%s3 + $0x158] sm:$0xff]
    %v5234 = vld [vmem:[%s3 + $0x160] sm:$0xff]
    %v5235 = vld [vmem:[%s3 + $0x168] sm:$0xff]
    %v5236 = vld [vmem:[%s3 + $0x170] sm:$0xff]
    %v5237 = vld [vmem:[%s3 + $0x178] sm:$0xff]
    %v5238 = vld [vmem:[%s3 + $0x180] sm:$0xff]
    %v5239 = vld [vmem:[%s3 + $0x188] sm:$0xff]
    %v5240 = vld [vmem:[%s3 + $0x190] sm:$0xff]
    %v5241 = vld [vmem:[%s3 + $0x198] sm:$0xff]
    %v5242 = vld [vmem:[%s3 + $0x1a0] sm:$0xff]
    %v5243 = vld [vmem:[%s3 + $0x1a8] sm:$0xff]
    %v5244 = vld [vmem:[%s3 + $0x1b0] sm:$0xff]
    %v5245 = vld [vmem:[%s3 + $0x1b8] sm:$0xff]
    %v5246 = vld [vmem:[%s3 + $0x1c0] sm:$0xff]
    %v5247 = vld [vmem:[%s3 + $0x1c8] sm:$0xff]
    %v5248 = vld [vmem:[%s3 + $0x1d0] sm:$0xff]
    %v5249 = vld [vmem:[%s3 + $0x1d8] sm:$0xff]
    %v5250 = vld [vmem:[%s3 + $0x1e0] sm:$0xff]
    %v5251 = vld [vmem:[%s3 + $0x1e8] sm:$0xff]
    %v5252 = vld [vmem:[%s3 + $0x1f0] sm:$0xff]
    %v5253 = vld [vmem:[%s3 + $0x1f8] sm:$0xff]
    %v5255 = vlaneseq
    %v5256 = vshrl.u32 %v5255, 7
    %v5257 = vsub.s32 0, %v5256
    %v5258 = vrot.slane %v5186, %v5257
    %v5259 = vlaneseq
    %v5260 = vshrl.u32 %v5259, 7
    %v5261 = vsub.s32 1, %v5260
    %v5262 = vrot.slane %v5186, %v5261
    %v5263 = vlaneseq
    %v5264 = vshrl.u32 %v5263, 7
    %v5265 = vsub.s32 2, %v5264
    %v5266 = vrot.slane %v5186, %v5265
    %v5267 = vlaneseq
    %v5268 = vshrl.u32 %v5267, 7
    %v5269 = vsub.s32 3, %v5268
    %v5270 = vrot.slane %v5186, %v5269
    %5275 = vmatprep.subr.mxu0 0.0
    %5276 = vmatpush1.msra.mxu0 %v5190
    %5277 = vmatprep.subr.mxu0 0.0
    %5278 = vmatpush1.msra.mxu0 %v5191
    %5279 = vmatprep.subr.mxu0 0.0
    %5280 = vmatpush1.msra.mxu0 %v5192
    %5281 = vmatprep.subr.mxu0 0.0
    %5282 = vmatpush1.msra.mxu0 %v5193
    %5283 = vmatprep.subr.mxu0 0.0
    %5284 = vmatpush1.msra.mxu0 %v5194
    %5285 = vmatprep.subr.mxu0 0.0
    %5286 = vmatpush1.msra.mxu0 %v5195
    %5287 = vmatprep.subr.mxu0 0.0
    %5288 = vmatpush1.msra.mxu0 %v5196
    %5289 = vmatprep.subr.mxu0 0.0
    %5290 = vmatpush1.msra.mxu0 %v5197
    %5291 = vmatprep.subr.mxu0 0.0
    %5292 = vmatpush1.msra.mxu0 %v5198
    %5293 = vmatprep.subr.mxu0 0.0
    %5294 = vmatpush1.msra.mxu0 %v5199
    %5295 = vmatprep.subr.mxu0 0.0
    %5296 = vmatpush1.msra.mxu0 %v5200
    %5297 = vmatprep.subr.mxu0 0.0
    %5298 = vmatpush1.msra.mxu0 %v5201
    %5299 = vmatprep.subr.mxu0 0.0
    %5300 = vmatpush1.msra.mxu0 %v5202
    %5301 = vmatprep.subr.mxu0 0.0
    %5302 = vmatpush1.msra.mxu0 %v5203
    %5303 = vmatprep.subr.mxu0 0.0
    %5304 = vmatpush1.msra.mxu0 %v5204
    %5305 = vmatprep.subr.mxu0 0.0
    %5306 = vmatpush1.msra.mxu0 %v5205
    %5307 = vmatprep.subr.mxu0 0.0
    %5308 = vmatpush1.msra.mxu0 %v5206
    %5309 = vmatprep.subr.mxu0 0.0
    %5310 = vmatpush1.msra.mxu0 %v5207
    %5311 = vmatprep.subr.mxu0 0.0
    %5312 = vmatpush1.msra.mxu0 %v5208
    %5313 = vmatprep.subr.mxu0 0.0
    %5314 = vmatpush1.msra.mxu0 %v5209
    %5315 = vmatprep.subr.mxu0 0.0
    %5316 = vmatpush1.msra.mxu0 %v5210
    %5317 = vmatprep.subr.mxu0 0.0
    %5318 = vmatpush1.msra.mxu0 %v5211
    %5319 = vmatprep.subr.mxu0 0.0
    %5320 = vmatpush1.msra.mxu0 %v5212
    %5321 = vmatprep.subr.mxu0 0.0
    %5322 = vmatpush1.msra.mxu0 %v5213
    %5323 = vmatprep.subr.mxu0 0.0
    %5324 = vmatpush1.msra.mxu0 %v5214
    %5325 = vmatprep.subr.mxu0 0.0
    %5326 = vmatpush1.msra.mxu0 %v5215
    %5327 = vmatprep.subr.mxu0 0.0
    %5328 = vmatpush1.msra.mxu0 %v5216
    %5329 = vmatprep.subr.mxu0 0.0
    %5330 = vmatpush1.msra.mxu0 %v5217
    %5331 = vmatprep.subr.mxu0 0.0
    %5332 = vmatpush1.msra.mxu0 %v5218
    %5333 = vmatprep.subr.mxu0 0.0
    %5334 = vmatpush1.msra.mxu0 %v5219
    %5335 = vmatprep.subr.mxu0 0.0
    %5336 = vmatpush1.msra.mxu0 %v5220
    %5337 = vmatprep.subr.mxu0 0.0
    %5338 = vmatpush1.msra.mxu0 %v5221
    %5339 = vmatprep.mubr.f32.mxu0 %v5262
    %5340 = vmatmul.mubr.f32.gmra.mrb[0].mxu0 %v5258
    %v5341 = vpop.f32.mrb[0].mxu0
    %v5342 = vadd.f32 0.0, %v5341
    %v5343 = vpop.f32.mrb[0].mxu0
    %5344 = vdwg.mxu0
    %5345 = vmatprep.subr.mxu0 0.0
    %5346 = vmatpush1.msra.mxu0 %v5222
    %5347 = vmatprep.subr.mxu0 0.0
    %5348 = vmatpush1.msra.mxu0 %v5223
    %5349 = vmatprep.subr.mxu0 0.0
    %5350 = vmatpush1.msra.mxu0 %v5224
    %5351 = vmatprep.subr.mxu0 0.0
    %5352 = vmatpush1.msra.mxu0 %v5225
    %5353 = vmatprep.subr.mxu0 0.0
    %5354 = vmatpush1.msra.mxu0 %v5226
    %5355 = vmatprep.subr.mxu0 0.0
    %5356 = vmatpush1.msra.mxu0 %v5227
    %5357 = vmatprep.subr.mxu0 0.0
    %5358 = vmatpush1.msra.mxu0 %v5228
    %5359 = vmatprep.subr.mxu0 0.0
    %5360 = vmatpush1.msra.mxu0 %v5229
    %5361 = vmatprep.subr.mxu0 0.0
    %5362 = vmatpush1.msra.mxu0 %v5230
    %5363 = vmatprep.subr.mxu0 0.0
    %5364 = vmatpush1.msra.mxu0 %v5231
    %5365 = vmatprep.subr.mxu0 0.0
    %5366 = vmatpush1.msra.mxu0 %v5232
    %5367 = vmatprep.subr.mxu0 0.0
    %5368 = vmatpush1.msra.mxu0 %v5233
    %5369 = vmatprep.subr.mxu0 0.0
    %5370 = vmatpush1.msra.mxu0 %v5234
    %5371 = vmatprep.subr.mxu0 0.0
    %5372 = vmatpush1.msra.mxu0 %v5235
    %5373 = vmatprep.subr.mxu0 0.0
    %5374 = vmatpush1.msra.mxu0 %v5236
    %5375 = vmatprep.subr.mxu0 0.0
    %5376 = vmatpush1.msra.mxu0 %v5237
    %5377 = vmatprep.subr.mxu0 0.0
    %5378 = vmatpush1.msra.mxu0 %v5238
    %5379 = vmatprep.subr.mxu0 0.0
    %5380 = vmatpush1.msra.mxu0 %v5239
    %5381 = vmatprep.subr.mxu0 0.0
    %5382 = vmatpush1.msra.mxu0 %v5240
    %5383 = vmatprep.subr.mxu0 0.0
    %5384 = vmatpush1.msra.mxu0 %v5241
    %5385 = vmatprep.subr.mxu0 0.0
    %5386 = vmatpush1.msra.mxu0 %v5242
    %5387 = vmatprep.subr.mxu0 0.0
    %5388 = vmatpush1.msra.mxu0 %v5243
    %5389 = vmatprep.subr.mxu0 0.0
    %5390 = vmatpush1.msra.mxu0 %v5244
    %5391 = vmatprep.subr.mxu0 0.0
    %5392 = vmatpush1.msra.mxu0 %v5245
    %5393 = vmatprep.subr.mxu0 0.0
    %5394 = vmatpush1.msra.mxu0 %v5246
    %5395 = vmatprep.subr.mxu0 0.0
    %5396 = vmatpush1.msra.mxu0 %v5247
    %5397 = vmatprep.subr.mxu0 0.0
    %5398 = vmatpush1.msra.mxu0 %v5248
    %5399 = vmatprep.subr.mxu0 0.0
    %5400 = vmatpush1.msra.mxu0 %v5249
    %5401 = vmatprep.subr.mxu0 0.0
    %5402 = vmatpush1.msra.mxu0 %v5250
    %5403 = vmatprep.subr.mxu0 0.0
    %5404 = vmatpush1.msra.mxu0 %v5251
    %5405 = vmatprep.subr.mxu0 0.0
    %5406 = vmatpush1.msra.mxu0 %v5252
    %5407 = vmatprep.subr.mxu0 0.0
    %5408 = vmatpush1.msra.mxu0 %v5253
    %5409 = vmatprep.mubr.f32.mxu0 %v5270
    %5410 = vmatmul.mubr.f32.gmra.mrb[0].mxu0 %v5266
    %v5411 = vpop.f32.mrb[0].mxu0
    %v5412 = vadd.f32 %v5342, %v5411
    %v5413 = vpop.f32.mrb[0].mxu0
    %5414 = vdwg.mxu0
    %v5415 = vld [vmem:[#allocation4 + $0x6] sm:$0x1]
    %v5416 = vld [vmem:[%s7] sm:$0xff]
    %v5417 = vld [vmem:[%s7 + $0x8] sm:$0xff]
    %v5418 = vld [vmem:[%s7 + $0x10] sm:$0xff]
    %v5419 = vld [vmem:[%s7 + $0x18] sm:$0xff]
    %v5421 = vsel %vm121, %v5412, 0
    %5423 = vmatprep.subr.mxu0 0.0
    %5424 = vmatpush1.msra.mxu0 %v5416
    %5425 = vmatprep.subr.mxu0 0.0
    %5426 = vmatpush1.msra.mxu0 %v5417
    %5427 = vmatprep.subr.mxu0 0.0
    %5428 = vmatpush1.msra.mxu0 %v5418
    %5429 = vmatprep.subr.mxu0 0.0
    %5430 = vmatpush1.msra.mxu0 %v5419
    %5431 = vmatprep.subr.mxu0 0.0
    %5432 = vmatpush1.msra.mxu0 0.0
    %5433 = vmatprep.subr.mxu0 0.0
    %5434 = vmatpush1.msra.mxu0 0.0
    %5435 = vmatprep.subr.mxu0 0.0
    %5436 = vmatpush1.msra.mxu0 0.0
    %5437 = vmatprep.subr.mxu0 0.0
    %5438 = vmatpush1.msra.mxu0 0.0
    %5439 = vmatprep.subr.mxu0 0.0
    %5440 = vmatpush1.msra.mxu0 0.0
    %5441 = vmatprep.subr.mxu0 0.0
    %5442 = vmatpush1.msra.mxu0 0.0
    %5443 = vmatprep.subr.mxu0 0.0
    %5444 = vmatpush1.msra.mxu0 0.0
    %5445 = vmatprep.subr.mxu0 0.0
    %5446 = vmatpush1.msra.mxu0 0.0
    %5447 = vmatprep.subr.mxu0 0.0
    %5448 = vmatpush1.msra.mxu0 0.0
    %5449 = vmatprep.subr.mxu0 0.0
    %5450 = vmatpush1.msra.mxu0 0.0
    %5451 = vmatprep.subr.mxu0 0.0
    %5452 = vmatpush1.msra.mxu0 0.0
    %5453 = vmatprep.subr.mxu0 0.0
    %5454 = vmatpush1.msra.mxu0 0.0
    %5455 = vmatprep.subr.mxu0 0.0
    %5456 = vmatpush1.msra.mxu0 0.0
    %5457 = vmatprep.subr.mxu0 0.0
    %5458 = vmatpush1.msra.mxu0 0.0
    %5459 = vmatprep.subr.mxu0 0.0
    %5460 = vmatpush1.msra.mxu0 0.0
    %5461 = vmatprep.subr.mxu0 0.0
    %5462 = vmatpush1.msra.mxu0 0.0
    %5463 = vmatprep.subr.mxu0 0.0
    %5464 = vmatpush1.msra.mxu0 0.0
    %5465 = vmatprep.subr.mxu0 0.0
    %5466 = vmatpush1.msra.mxu0 0.0
    %5467 = vmatprep.subr.mxu0 0.0
    %5468 = vmatpush1.msra.mxu0 0.0
    %5469 = vmatprep.subr.mxu0 0.0
    %5470 = vmatpush1.msra.mxu0 0.0
    %5471 = vmatprep.subr.mxu0 0.0
    %5472 = vmatpush1.msra.mxu0 0.0
    %5473 = vmatprep.subr.mxu0 0.0
    %5474 = vmatpush1.msra.mxu0 0.0
    %5475 = vmatprep.subr.mxu0 0.0
    %5476 = vmatpush1.msra.mxu0 0.0
    %5477 = vmatprep.subr.mxu0 0.0
    %5478 = vmatpush1.msra.mxu0 0.0
    %5479 = vmatprep.subr.mxu0 0.0
    %5480 = vmatpush1.msra.mxu0 0.0
    %5481 = vmatprep.subr.mxu0 0.0
    %5482 = vmatpush1.msra.mxu0 0.0
    %5483 = vmatprep.subr.mxu0 0.0
    %5484 = vmatpush1.msra.mxu0 0.0
    %5485 = vmatprep.subr.mxu0 0.0
    %5486 = vmatpush1.msra.mxu0 0.0
    %5487 = vmatprep.mubr.f32.mxu0 0.0
    %5488 = vmatmul.mubr.f32.gmra.mrb[0].mxu0 %v5421
    %v5489 = vpop.f32.mrb[0].mxu0
    %v5490 = vadd.f32 0.0, %v5489
    %v5491 = vpop.f32.mrb[0].mxu0
    %5492 = vdwg.mxu0
    %v5493 = vadd.f32 %v5415, %v5490
    %v5494 = vmax.f32 %v5493, 0.0
    %v5495 = vld [vmem:[%s8] sm:$0xff]
    %v5496 = vld [vmem:[%s8 + $0x8] sm:$0xff]
    %v5497 = vld [vmem:[%s8 + $0x10] sm:$0xff]
    %v5498 = vld [vmem:[%s8 + $0x18] sm:$0xff]
    %v5499 = vld [vmem:[%s9] sm:$0xff]
    %v5500 = vld [vmem:[%s9 + $0x8] sm:$0xff]
    %v5501 = vld [vmem:[%s9 + $0x10] sm:$0xff]
    %v5502 = vld [vmem:[%s9 + $0x18] sm:$0xff]
    %5503 = vmatprep.subr.mxu0 0.0
    %5504 = vmatpush1.msra.mxu0 %v5499
    %5505 = vmatprep.subr.mxu0 0.0
    %5506 = vmatpush1.msra.mxu0 %v5500
    %5507 = vmatprep.subr.mxu0 0.0
    %5508 = vmatpush1.msra.mxu0 %v5501
    %5509 = vmatprep.subr.mxu0 0.0
    %5510 = vmatpush1.msra.mxu0 %v5502
    %5511 = vmatprep.subr.mxu0 0.0
    %5512 = vmatpush1.msra.mxu0 0.0
    %5513 = vmatprep.subr.mxu0 0.0
    %5514 = vmatpush1.msra.mxu0 0.0
    %5515 = vmatprep.subr.mxu0 0.0
    %5516 = vmatpush1.msra.mxu0 0.0
    %5517 = vmatprep.subr.mxu0 0.0
    %5518 = vmatpush1.msra.mxu0 0.0
    %5519 = vmatprep.subr.mxu0 0.0
    %5520 = vmatpush1.msra.mxu0 0.0
    %5521 = vmatprep.subr.mxu0 0.0
    %5522 = vmatpush1.msra.mxu0 0.0
    %5523 = vmatprep.subr.mxu0 0.0
    %5524 = vmatpush1.msra.mxu0 0.0
    %5525 = vmatprep.subr.mxu0 0.0
    %5526 = vmatpush1.msra.mxu0 0.0
    %5527 = vmatprep.subr.mxu0 0.0
    %5528 = vmatpush1.msra.mxu0 0.0
    %5529 = vmatprep.subr.mxu0 0.0
    %5530 = vmatpush1.msra.mxu0 0.0
    %5531 = vmatprep.subr.mxu0 0.0
    %5532 = vmatpush1.msra.mxu0 0.0
    %5533 = vmatprep.subr.mxu0 0.0
    %5534 = vmatpush1.msra.mxu0 0.0
    %5535 = vmatprep.subr.mxu0 0.0
    %5536 = vmatpush1.msra.mxu0 0.0
    %5537 = vmatprep.subr.mxu0 0.0
    %5538 = vmatpush1.msra.mxu0 0.0
    %5539 = vmatprep.subr.mxu0 0.0
    %5540 = vmatpush1.msra.mxu0 0.0
    %5541 = vmatprep.subr.mxu0 0.0
    %5542 = vmatpush1.msra.mxu0 0.0
    %5543 = vmatprep.subr.mxu0 0.0
    %5544 = vmatpush1.msra.mxu0 0.0
    %5545 = vmatprep.subr.mxu0 0.0
    %5546 = vmatpush1.msra.mxu0 0.0
    %5547 = vmatprep.subr.mxu0 0.0
    %5548 = vmatpush1.msra.mxu0 0.0
    %5549 = vmatprep.subr.mxu0 0.0
    %5550 = vmatpush1.msra.mxu0 0.0
    %5551 = vmatprep.subr.mxu0 0.0
    %5552 = vmatpush1.msra.mxu0 0.0
    %5553 = vmatprep.subr.mxu0 0.0
    %5554 = vmatpush1.msra.mxu0 0.0
    %5555 = vmatprep.subr.mxu0 0.0
    %5556 = vmatpush1.msra.mxu0 0.0
    %5557 = vmatprep.subr.mxu0 0.0
    %5558 = vmatpush1.msra.mxu0 0.0
    %5559 = vmatprep.subr.mxu0 0.0
    %5560 = vmatpush1.msra.mxu0 0.0
    %5561 = vmatprep.subr.mxu0 0.0
    %5562 = vmatpush1.msra.mxu0 0.0
    %5563 = vmatprep.subr.mxu0 0.0
    %5564 = vmatpush1.msra.mxu0 0.0
    %5565 = vmatprep.subr.mxu0 0.0
    %5566 = vmatpush1.msra.mxu0 0.0
    %5567 = vmatprep.mubr.f32.mxu0 0.0
    %5568 = vmatmul.mubr.f32.gmra.mrb[0].mxu0 %v4936
    %v5569 = vpop.f32.mrb[0].mxu0
    %v5570 = vadd.f32 0.0, %v5569
    %v5571 = vpop.f32.mrb[0].mxu0
    %5572 = vdwg.mxu0
    %v5574 = vsel %vm121, %v5494, 0
    %5576 = vmatprep.subr.mxu0 0.0
    %5577 = vmatpush1.msra.mxu0 %v5495
    %5578 = vmatprep.subr.mxu0 0.0
    %5579 = vmatpush1.msra.mxu0 %v5496
    %5580 = vmatprep.subr.mxu0 0.0
    %5581 = vmatpush1.msra.mxu0 %v5497
    %5582 = vmatprep.subr.mxu0 0.0
    %5583 = vmatpush1.msra.mxu0 %v5498
    %5584 = vmatprep.subr.mxu0 0.0
    %5585 = vmatpush1.msra.mxu0 0.0
    %5586 = vmatprep.subr.mxu0 0.0
    %5587 = vmatpush1.msra.mxu0 0.0
    %5588 = vmatprep.subr.mxu0 0.0
    %5589 = vmatpush1.msra.mxu0 0.0
    %5590 = vmatprep.subr.mxu0 0.0
    %5591 = vmatpush1.msra.mxu0 0.0
    %5592 = vmatprep.subr.mxu0 0.0
    %5593 = vmatpush1.msra.mxu0 0.0
    %5594 = vmatprep.subr.mxu0 0.0
    %5595 = vmatpush1.msra.mxu0 0.0
    %5596 = vmatprep.subr.mxu0 0.0
    %5597 = vmatpush1.msra.mxu0 0.0
    %5598 = vmatprep.subr.mxu0 0.0
    %5599 = vmatpush1.msra.mxu0 0.0
    %5600 = vmatprep.subr.mxu0 0.0
    %5601 = vmatpush1.msra.mxu0 0.0
    %5602 = vmatprep.subr.mxu0 0.0
    %5603 = vmatpush1.msra.mxu0 0.0
    %5604 = vmatprep.subr.mxu0 0.0
    %5605 = vmatpush1.msra.mxu0 0.0
    %5606 = vmatprep.subr.mxu0 0.0
    %5607 = vmatpush1.msra.mxu0 0.0
    %5608 = vmatprep.subr.mxu0 0.0
    %5609 = vmatpush1.msra.mxu0 0.0
    %5610 = vmatprep.subr.mxu0 0.0
    %5611 = vmatpush1.msra.mxu0 0.0
    %5612 = vmatprep.subr.mxu0 0.0
    %5613 = vmatpush1.msra.mxu0 0.0
    %5614 = vmatprep.subr.mxu0 0.0
    %5615 = vmatpush1.msra.mxu0 0.0
    %5616 = vmatprep.subr.mxu0 0.0
    %5617 = vmatpush1.msra.mxu0 0.0
    %5618 = vmatprep.subr.mxu0 0.0
    %5619 = vmatpush1.msra.mxu0 0.0
    %5620 = vmatprep.subr.mxu0 0.0
    %5621 = vmatpush1.msra.mxu0 0.0
    %5622 = vmatprep.subr.mxu0 0.0
    %5623 = vmatpush1.msra.mxu0 0.0
    %5624 = vmatprep.subr.mxu0 0.0
    %5625 = vmatpush1.msra.mxu0 0.0
    %5626 = vmatprep.subr.mxu0 0.0
    %5627 = vmatpush1.msra.mxu0 0.0
    %5628 = vmatprep.subr.mxu0 0.0
    %5629 = vmatpush1.msra.mxu0 0.0
    %5630 = vmatprep.subr.mxu0 0.0
    %5631 = vmatpush1.msra.mxu0 0.0
    %5632 = vmatprep.subr.mxu0 0.0
    %5633 = vmatpush1.msra.mxu0 0.0
    %5634 = vmatprep.subr.mxu0 0.0
    %5635 = vmatpush1.msra.mxu0 0.0
    %5636 = vmatprep.subr.mxu0 0.0
    %5637 = vmatpush1.msra.mxu0 0.0
    %5638 = vmatprep.subr.mxu0 0.0
    %5639 = vmatpush1.msra.mxu0 0.0
    %5640 = vmatprep.mubr.f32.mxu0 0.0
    %5641 = vmatmul.mubr.f32.gmra.mrb[0].mxu0 %v5574
    %v5642 = vpop.f32.mrb[0].mxu0
    %v5643 = vadd.f32 %v5570, %v5642
    %v5644 = vpop.f32.mrb[0].mxu0
    %5645 = vdwg.mxu0
    %v5646 = vadd.f32 %v5643, %v47
    %v5647 = vxor.u32 %v5646, 2147483648
    %v5648 = vmul.f32 %v5647, 1.442695
    %v5649 = vpow.pop %v5648
    %v5650 = vadd.f32 %v5649, 1.0
    %v5651 = vrcp.pop %v5650
    %v5652 = vmul.f32 1.0, %v5651
    %5654 = vrot.lane.b32.xlu0 %v5646, 32
    %v5655 = vpop.permute.xlu0 %5654
    %v5657 = vmul.f32 %v5652, %v5655
    %5659 = vrot.lane.b32.xlu0 %v5657, 64
    %v5660 = vpop.permute.xlu0 %5659
    %v5662 = vadd.f32 %v5646, %v5660
    %v5663 = vtanh.pop %v5662
    %v5664 = vsub.f32 1.0, %v5652
    %5666 = vrot.lane.b32.xlu0 %v5663, 96
    %v5667 = vpop.permute.xlu0 %5666
    %v5669 = vmul.f32 %v5664, %v5667
    %v5670 = vmul.f32 %v5652, %v4912
    %v5671 = vadd.f32 %v5669, %v5670
    %5673 = vrot.lane.b32.xlu0 %v5671, 96
    %v5674 = vpop.permute.xlu0 %5673
    %5676 = vst.msk [vmem:[#allocation5 + $0x6] sm:$0x1] %vm53, %v5674
    %s5677 = scalar_lea.vmem [#allocation3], 7
    %v5678 = vld [vmem:[%s5677] ss:$8 sm:$0xf]
    %v5679 = vld [vmem:[%s5] sm:$0xff]
    %v5680 = vld [vmem:[%s5 + $0x8] sm:$0xff]
    %v5681 = vld [vmem:[%s5 + $0x10] sm:$0xff]
    %v5682 = vld [vmem:[%s5 + $0x18] sm:$0xff]
    %v5683 = vld [vmem:[%s5 + $0x20] sm:$0xff]
    %v5684 = vld [vmem:[%s5 + $0x28] sm:$0xff]
    %v5685 = vld [vmem:[%s5 + $0x30] sm:$0xff]
    %v5686 = vld [vmem:[%s5 + $0x38] sm:$0xff]
    %v5687 = vld [vmem:[%s5 + $0x40] sm:$0xff]
    %v5688 = vld [vmem:[%s5 + $0x48] sm:$0xff]
    %v5689 = vld [vmem:[%s5 + $0x50] sm:$0xff]
    %v5690 = vld [vmem:[%s5 + $0x58] sm:$0xff]
    %v5691 = vld [vmem:[%s5 + $0x60] sm:$0xff]
    %v5692 = vld [vmem:[%s5 + $0x68] sm:$0xff]
    %v5693 = vld [vmem:[%s5 + $0x70] sm:$0xff]
    %v5694 = vld [vmem:[%s5 + $0x78] sm:$0xff]
    %v5695 = vsel %vm121, %v5674, 0
    %5697 = vmatprep.subr.mxu0 %v5680
    %5698 = vmatpush1.msra.mxu0 %v5679
    %5699 = vmatprep.subr.mxu0 %v5684
    %5700 = vmatpush1.msra.mxu0 %v5683
    %5701 = vmatprep.subr.mxu0 %v5688
    %5702 = vmatpush1.msra.mxu0 %v5687
    %5703 = vmatprep.subr.mxu0 %v5692
    %5704 = vmatpush1.msra.mxu0 %v5691
    %5705 = vmatprep.subr.mxu0 0.0
    %5706 = vmatpush1.msra.mxu0 0.0
    %5707 = vmatprep.subr.mxu0 0.0
    %5708 = vmatpush1.msra.mxu0 0.0
    %5709 = vmatprep.subr.mxu0 0.0
    %5710 = vmatpush1.msra.mxu0 0.0
    %5711 = vmatprep.subr.mxu0 0.0
    %5712 = vmatpush1.msra.mxu0 0.0
    %5713 = vmatprep.subr.mxu0 0.0
    %5714 = vmatpush1.msra.mxu0 0.0
    %5715 = vmatprep.subr.mxu0 0.0
    %5716 = vmatpush1.msra.mxu0 0.0
    %5717 = vmatprep.subr.mxu0 0.0
    %5718 = vmatpush1.msra.mxu0 0.0
    %5719 = vmatprep.subr.mxu0 0.0
    %5720 = vmatpush1.msra.mxu0 0.0
    %5721 = vmatprep.subr.mxu0 0.0
    %5722 = vmatpush1.msra.mxu0 0.0
    %5723 = vmatprep.subr.mxu0 0.0
    %5724 = vmatpush1.msra.mxu0 0.0
    %5725 = vmatprep.subr.mxu0 0.0
    %5726 = vmatpush1.msra.mxu0 0.0
    %5727 = vmatprep.subr.mxu0 0.0
    %5728 = vmatpush1.msra.mxu0 0.0
    %5729 = vmatprep.subr.mxu0 0.0
    %5730 = vmatpush1.msra.mxu0 0.0
    %5731 = vmatprep.subr.mxu0 0.0
    %5732 = vmatpush1.msra.mxu0 0.0
    %5733 = vmatprep.subr.mxu0 0.0
    %5734 = vmatpush1.msra.mxu0 0.0
    %5735 = vmatprep.subr.mxu0 0.0
    %5736 = vmatpush1.msra.mxu0 0.0
    %5737 = vmatprep.subr.mxu0 0.0
    %5738 = vmatpush1.msra.mxu0 0.0
    %5739 = vmatprep.subr.mxu0 0.0
    %5740 = vmatpush1.msra.mxu0 0.0
    %5741 = vmatprep.subr.mxu0 0.0
    %5742 = vmatpush1.msra.mxu0 0.0
    %5743 = vmatprep.subr.mxu0 0.0
    %5744 = vmatpush1.msra.mxu0 0.0
    %5745 = vmatprep.subr.mxu0 0.0
    %5746 = vmatpush1.msra.mxu0 0.0
    %5747 = vmatprep.subr.mxu0 0.0
    %5748 = vmatpush1.msra.mxu0 0.0
    %5749 = vmatprep.subr.mxu0 0.0
    %5750 = vmatpush1.msra.mxu0 0.0
    %5751 = vmatprep.subr.mxu0 0.0
    %5752 = vmatpush1.msra.mxu0 0.0
    %5753 = vmatprep.subr.mxu0 0.0
    %5754 = vmatpush1.msra.mxu0 0.0
    %5755 = vmatprep.subr.mxu0 0.0
    %5756 = vmatpush1.msra.mxu0 0.0
    %5757 = vmatprep.subr.mxu0 0.0
    %5758 = vmatpush1.msra.mxu0 0.0
    %5759 = vmatprep.subr.mxu0 0.0
    %5760 = vmatpush1.msra.mxu0 0.0
    %5761 = vmatprep.mubr.f32.mxu0 0.0
    %5762 = vmatmul.mubr.f32.gmra.mrb[0].mxu0 %v5695
    %v5763 = vpop.f32.mrb[0].mxu0
    %v5764 = vadd.f32 0.0, %v5763
    %v5765 = vpop.f32.mrb[0].mxu0
    %v5766 = vadd.f32 0.0, %v5765
    %5767 = vdwg.mxu0
    %5768 = vmatprep.subr.mxu0 %v5682
    %5769 = vmatpush1.msra.mxu0 %v5681
    %5770 = vmatprep.subr.mxu0 %v5686
    %5771 = vmatpush1.msra.mxu0 %v5685
    %5772 = vmatprep.subr.mxu0 %v5690
    %5773 = vmatpush1.msra.mxu0 %v5689
    %5774 = vmatprep.subr.mxu0 %v5694
    %5775 = vmatpush1.msra.mxu0 %v5693
    %5776 = vmatprep.subr.mxu0 0.0
    %5777 = vmatpush1.msra.mxu0 0.0
    %5778 = vmatprep.subr.mxu0 0.0
    %5779 = vmatpush1.msra.mxu0 0.0
    %5780 = vmatprep.subr.mxu0 0.0
    %5781 = vmatpush1.msra.mxu0 0.0
    %5782 = vmatprep.subr.mxu0 0.0
    %5783 = vmatpush1.msra.mxu0 0.0
    %5784 = vmatprep.subr.mxu0 0.0
    %5785 = vmatpush1.msra.mxu0 0.0
    %5786 = vmatprep.subr.mxu0 0.0
    %5787 = vmatpush1.msra.mxu0 0.0
    %5788 = vmatprep.subr.mxu0 0.0
    %5789 = vmatpush1.msra.mxu0 0.0
    %5790 = vmatprep.subr.mxu0 0.0
    %5791 = vmatpush1.msra.mxu0 0.0
    %5792 = vmatprep.subr.mxu0 0.0
    %5793 = vmatpush1.msra.mxu0 0.0
    %5794 = vmatprep.subr.mxu0 0.0
    %5795 = vmatpush1.msra.mxu0 0.0
    %5796 = vmatprep.subr.mxu0 0.0
    %5797 = vmatpush1.msra.mxu0 0.0
    %5798 = vmatprep.subr.mxu0 0.0
    %5799 = vmatpush1.msra.mxu0 0.0
    %5800 = vmatprep.subr.mxu0 0.0
    %5801 = vmatpush1.msra.mxu0 0.0
    %5802 = vmatprep.subr.mxu0 0.0
    %5803 = vmatpush1.msra.mxu0 0.0
    %5804 = vmatprep.subr.mxu0 0.0
    %5805 = vmatpush1.msra.mxu0 0.0
    %5806 = vmatprep.subr.mxu0 0.0
    %5807 = vmatpush1.msra.mxu0 0.0
    %5808 = vmatprep.subr.mxu0 0.0
    %5809 = vmatpush1.msra.mxu0 0.0
    %5810 = vmatprep.subr.mxu0 0.0
    %5811 = vmatpush1.msra.mxu0 0.0
    %5812 = vmatprep.subr.mxu0 0.0
    %5813 = vmatpush1.msra.mxu0 0.0
    %5814 = vmatprep.subr.mxu0 0.0
    %5815 = vmatpush1.msra.mxu0 0.0
    %5816 = vmatprep.subr.mxu0 0.0
    %5817 = vmatpush1.msra.mxu0 0.0
    %5818 = vmatprep.subr.mxu0 0.0
    %5819 = vmatpush1.msra.mxu0 0.0
    %5820 = vmatprep.subr.mxu0 0.0
    %5821 = vmatpush1.msra.mxu0 0.0
    %5822 = vmatprep.subr.mxu0 0.0
    %5823 = vmatpush1.msra.mxu0 0.0
    %5824 = vmatprep.subr.mxu0 0.0
    %5825 = vmatpush1.msra.mxu0 0.0
    %5826 = vmatprep.subr.mxu0 0.0
    %5827 = vmatpush1.msra.mxu0 0.0
    %5828 = vmatprep.subr.mxu0 0.0
    %5829 = vmatpush1.msra.mxu0 0.0
    %5830 = vmatprep.subr.mxu0 0.0
    %5831 = vmatpush1.msra.mxu0 0.0
    %5832 = vmatprep.mubr.f32.mxu0 0.0
    %5833 = vmatmul.mubr.f32.gmra.mrb[0].mxu0 %v5695
    %v5834 = vpop.f32.mrb[0].mxu0
    %v5835 = vadd.f32 0.0, %v5834
    %v5836 = vpop.f32.mrb[0].mxu0
    %v5837 = vadd.f32 0.0, %v5836
    %5838 = vdwg.mxu0
    %v5843 = vcombine.low %v5764, %v5766
    %v5844 = vcombine.low %v5835, %v5837
    %v5846 = vunpack.c.l.s4 1966171168
    %v5847 = vunpack.c.0.s8 %v5846
    %v5848 = vlaneseq
    %v5849 = vshrl.u32 %v5848, 7
    %v5850 = vsub.s32 %v5847, %v5849
    %v5851 = vrot.slane %v5843, %v5850
    %v5853 = vunpack.c.l.s4 1966171168
    %v5854 = vunpack.c.0.s8 %v5853
    %v5855 = vlaneseq
    %v5856 = vshrl.u32 %v5855, 7
    %v5857 = vsub.s32 %v5854, %v5856
    %v5858 = vrot.slane %v5844, %v5857
    %v5859 = vcombine.low %v5851, %v5858
    %v5861 = vunpack.c.l.s4 1966171168
    %v5862 = vunpack.c.0.s8 %v5861
    %v5863 = vlaneseq
    %v5864 = vshrl.u32 %v5863, 7
    %v5865 = vsub.s32 %v5862, %v5864
    %v5866 = vrot.slane %v5859, %v5865
    %v5868 = vadd.f32 %v5678, %v5866
    %v5870 = vlaneseq
    %v5871 = vshrl.u32 %v5870, 7
    %v5872 = vsub.s32 0, %v5871
    %v5873 = vrot.slane %v5868, %v5872
    %v5874 = vlaneseq
    %v5875 = vshrl.u32 %v5874, 7
    %v5876 = vsub.s32 1, %v5875
    %v5877 = vrot.slane %v5868, %v5876
    %v5878 = vlaneseq
    %v5879 = vshrl.u32 %v5878, 7
    %v5880 = vsub.s32 2, %v5879
    %v5881 = vrot.slane %v5868, %v5880
    %v5882 = vlaneseq
    %v5883 = vshrl.u32 %v5882, 7
    %v5884 = vsub.s32 3, %v5883
    %v5885 = vrot.slane %v5868, %v5884
    %v5890 = vsel %vm566, %v5873, -inf
    %v5891 = vsel %vm566, %v5877, -inf
    %v5892 = vsel %vm566, %v5881, -inf
    %v5893 = vsel %vm566, %v5885, -inf
    %v5894 = vmax.f32 %v5890, %v5891
    %v5895 = vmax.f32 %v5892, %v5893
    %v5896 = vmax.f32 %v5894, %v5895
    %5897 = vmax.xlane.f32.xlu0 %v5896
    %v5898 = vpop.xlane.xlu0 %5897
    %v5900 = vlaneseq
    %v5901 = vshrl.u32 %v5900, 7
    %v5902 = vsub.s32 0, %v5901
    %v5903 = vrot.slane %v5898, %v5902
    %v5905 = vsub.f32 %v5868, %v5903
    %v5906 = vmul.f32 %v5905, 1.442695
    %v5907 = vpow.pop %v5906
    %v5909 = vlaneseq
    %v5910 = vshrl.u32 %v5909, 7
    %v5911 = vsub.s32 0, %v5910
    %v5912 = vrot.slane %v5907, %v5911
    %v5913 = vlaneseq
    %v5914 = vshrl.u32 %v5913, 7
    %v5915 = vsub.s32 1, %v5914
    %v5916 = vrot.slane %v5907, %v5915
    %v5917 = vlaneseq
    %v5918 = vshrl.u32 %v5917, 7
    %v5919 = vsub.s32 2, %v5918
    %v5920 = vrot.slane %v5907, %v5919
    %v5921 = vlaneseq
    %v5922 = vshrl.u32 %v5921, 7
    %v5923 = vsub.s32 3, %v5922
    %v5924 = vrot.slane %v5907, %v5923
    %v5929 = vsel %vm566, %v5912, 0.0
    %v5930 = vsel %vm566, %v5916, 0.0
    %v5931 = vadd.f32 %v5929, %v5930
    %v5932 = vsel %vm566, %v5920, 0.0
    %v5933 = vadd.f32 %v5931, %v5932
    %v5934 = vsel %vm566, %v5924, 0.0
    %v5935 = vadd.f32 %v5933, %v5934
    %5936 = vadd.xlane.f32.xlu0 %v5935
    %v5937 = vpop.xlane.xlu0 %5936
    %v5939 = vlaneseq
    %v5940 = vshrl.u32 %v5939, 7
    %v5941 = vsub.s32 0, %v5940
    %v5942 = vrot.slane %v5937, %v5941
    %v5944 = vrcp.pop %v5942
    %v5945 = vmul.f32 %v5907, %v5944
    %s5946 = scalar_lea.vmem [#allocation8], 7
    %5947 = vst.msk [vmem:[%s5946] ss:$8 sm:$0xf] %vm626, %v5945
    %5948 = vst.msk [vmem:[%s5946] ss:$8 sm:$0x0] %vm626, %v5945
    %v5949 = vld [vmem:[%s3] sm:$0xff]
    %v5950 = vld [vmem:[%s3 + $0x8] sm:$0xff]
    %v5951 = vld [vmem:[%s3 + $0x10] sm:$0xff]
    %v5952 = vld [vmem:[%s3 + $0x18] sm:$0xff]
    %v5953 = vld [vmem:[%s3 + $0x20] sm:$0xff]
    %v5954 = vld [vmem:[%s3 + $0x28] sm:$0xff]
    %v5955 = vld [vmem:[%s3 + $0x30] sm:$0xff]
    %v5956 = vld [vmem:[%s3 + $0x38] sm:$0xff]
    %v5957 = vld [vmem:[%s3 + $0x40] sm:$0xff]
    %v5958 = vld [vmem:[%s3 + $0x48] sm:$0xff]
    %v5959 = vld [vmem:[%s3 + $0x50] sm:$0xff]
    %v5960 = vld [vmem:[%s3 + $0x58] sm:$0xff]
    %v5961 = vld [vmem:[%s3 + $0x60] sm:$0xff]
    %v5962 = vld [vmem:[%s3 + $0x68] sm:$0xff]
    %v5963 = vld [vmem:[%s3 + $0x70] sm:$0xff]
    %v5964 = vld [vmem:[%s3 + $0x78] sm:$0xff]
    %v5965 = vld [vmem:[%s3 + $0x80] sm:$0xff]
    %v5966 = vld [vmem:[%s3 + $0x88] sm:$0xff]
    %v5967 = vld [vmem:[%s3 + $0x90] sm:$0xff]
    %v5968 = vld [vmem:[%s3 + $0x98] sm:$0xff]
    %v5969 = vld [vmem:[%s3 + $0xa0] sm:$0xff]
    %v5970 = vld [vmem:[%s3 + $0xa8] sm:$0xff]
    %v5971 = vld [vmem:[%s3 + $0xb0] sm:$0xff]
    %v5972 = vld [vmem:[%s3 + $0xb8] sm:$0xff]
    %v5973 = vld [vmem:[%s3 + $0xc0] sm:$0xff]
    %v5974 = vld [vmem:[%s3 + $0xc8] sm:$0xff]
    %v5975 = vld [vmem:[%s3 + $0xd0] sm:$0xff]
    %v5976 = vld [vmem:[%s3 + $0xd8] sm:$0xff]
    %v5977 = vld [vmem:[%s3 + $0xe0] sm:$0xff]
    %v5978 = vld [vmem:[%s3 + $0xe8] sm:$0xff]
    %v5979 = vld [vmem:[%s3 + $0xf0] sm:$0xff]
    %v5980 = vld [vmem:[%s3 + $0xf8] sm:$0xff]
    %v5981 = vld [vmem:[%s3 + $0x100] sm:$0xff]
    %v5982 = vld [vmem:[%s3 + $0x108] sm:$0xff]
    %v5983 = vld [vmem:[%s3 + $0x110] sm:$0xff]
    %v5984 = vld [vmem:[%s3 + $0x118] sm:$0xff]
    %v5985 = vld [vmem:[%s3 + $0x120] sm:$0xff]
    %v5986 = vld [vmem:[%s3 + $0x128] sm:$0xff]
    %v5987 = vld [vmem:[%s3 + $0x130] sm:$0xff]
    %v5988 = vld [vmem:[%s3 + $0x138] sm:$0xff]
    %v5989 = vld [vmem:[%s3 + $0x140] sm:$0xff]
    %v5990 = vld [vmem:[%s3 + $0x148] sm:$0xff]
    %v5991 = vld [vmem:[%s3 + $0x150] sm:$0xff]
    %v5992 = vld [vmem:[%s3 + $0x158] sm:$0xff]
    %v5993 = vld [vmem:[%s3 + $0x160] sm:$0xff]
    %v5994 = vld [vmem:[%s3 + $0x168] sm:$0xff]
    %v5995 = vld [vmem:[%s3 + $0x170] sm:$0xff]
    %v5996 = vld [vmem:[%s3 + $0x178] sm:$0xff]
    %v5997 = vld [vmem:[%s3 + $0x180] sm:$0xff]
    %v5998 = vld [vmem:[%s3 + $0x188] sm:$0xff]
    %v5999 = vld [vmem:[%s3 + $0x190] sm:$0xff]
    %v6000 = vld [vmem:[%s3 + $0x198] sm:$0xff]
    %v6001 = vld [vmem:[%s3 + $0x1a0] sm:$0xff]
    %v6002 = vld [vmem:[%s3 + $0x1a8] sm:$0xff]
    %v6003 = vld [vmem:[%s3 + $0x1b0] sm:$0xff]
    %v6004 = vld [vmem:[%s3 + $0x1b8] sm:$0xff]
    %v6005 = vld [vmem:[%s3 + $0x1c0] sm:$0xff]
    %v6006 = vld [vmem:[%s3 + $0x1c8] sm:$0xff]
    %v6007 = vld [vmem:[%s3 + $0x1d0] sm:$0xff]
    %v6008 = vld [vmem:[%s3 + $0x1d8] sm:$0xff]
    %v6009 = vld [vmem:[%s3 + $0x1e0] sm:$0xff]
    %v6010 = vld [vmem:[%s3 + $0x1e8] sm:$0xff]
    %v6011 = vld [vmem:[%s3 + $0x1f0] sm:$0xff]
    %v6012 = vld [vmem:[%s3 + $0x1f8] sm:$0xff]
    %v6014 = vlaneseq
    %v6015 = vshrl.u32 %v6014, 7
    %v6016 = vsub.s32 0, %v6015
    %v6017 = vrot.slane %v5945, %v6016
    %v6018 = vlaneseq
    %v6019 = vshrl.u32 %v6018, 7
    %v6020 = vsub.s32 1, %v6019
    %v6021 = vrot.slane %v5945, %v6020
    %v6022 = vlaneseq
    %v6023 = vshrl.u32 %v6022, 7
    %v6024 = vsub.s32 2, %v6023
    %v6025 = vrot.slane %v5945, %v6024
    %v6026 = vlaneseq
    %v6027 = vshrl.u32 %v6026, 7
    %v6028 = vsub.s32 3, %v6027
    %v6029 = vrot.slane %v5945, %v6028
    %6034 = vmatprep.subr.mxu0 0.0
    %6035 = vmatpush1.msra.mxu0 %v5949
    %6036 = vmatprep.subr.mxu0 0.0
    %6037 = vmatpush1.msra.mxu0 %v5950
    %6038 = vmatprep.subr.mxu0 0.0
    %6039 = vmatpush1.msra.mxu0 %v5951
    %6040 = vmatprep.subr.mxu0 0.0
    %6041 = vmatpush1.msra.mxu0 %v5952
    %6042 = vmatprep.subr.mxu0 0.0
    %6043 = vmatpush1.msra.mxu0 %v5953
    %6044 = vmatprep.subr.mxu0 0.0
    %6045 = vmatpush1.msra.mxu0 %v5954
    %6046 = vmatprep.subr.mxu0 0.0
    %6047 = vmatpush1.msra.mxu0 %v5955
    %6048 = vmatprep.subr.mxu0 0.0
    %6049 = vmatpush1.msra.mxu0 %v5956
    %6050 = vmatprep.subr.mxu0 0.0
    %6051 = vmatpush1.msra.mxu0 %v5957
    %6052 = vmatprep.subr.mxu0 0.0
    %6053 = vmatpush1.msra.mxu0 %v5958
    %6054 = vmatprep.subr.mxu0 0.0
    %6055 = vmatpush1.msra.mxu0 %v5959
    %6056 = vmatprep.subr.mxu0 0.0
    %6057 = vmatpush1.msra.mxu0 %v5960
    %6058 = vmatprep.subr.mxu0 0.0
    %6059 = vmatpush1.msra.mxu0 %v5961
    %6060 = vmatprep.subr.mxu0 0.0
    %6061 = vmatpush1.msra.mxu0 %v5962
    %6062 = vmatprep.subr.mxu0 0.0
    %6063 = vmatpush1.msra.mxu0 %v5963
    %6064 = vmatprep.subr.mxu0 0.0
    %6065 = vmatpush1.msra.mxu0 %v5964
    %6066 = vmatprep.subr.mxu0 0.0
    %6067 = vmatpush1.msra.mxu0 %v5965
    %6068 = vmatprep.subr.mxu0 0.0
    %6069 = vmatpush1.msra.mxu0 %v5966
    %6070 = vmatprep.subr.mxu0 0.0
    %6071 = vmatpush1.msra.mxu0 %v5967
    %6072 = vmatprep.subr.mxu0 0.0
    %6073 = vmatpush1.msra.mxu0 %v5968
    %6074 = vmatprep.subr.mxu0 0.0
    %6075 = vmatpush1.msra.mxu0 %v5969
    %6076 = vmatprep.subr.mxu0 0.0
    %6077 = vmatpush1.msra.mxu0 %v5970
    %6078 = vmatprep.subr.mxu0 0.0
    %6079 = vmatpush1.msra.mxu0 %v5971
    %6080 = vmatprep.subr.mxu0 0.0
    %6081 = vmatpush1.msra.mxu0 %v5972
    %6082 = vmatprep.subr.mxu0 0.0
    %6083 = vmatpush1.msra.mxu0 %v5973
    %6084 = vmatprep.subr.mxu0 0.0
    %6085 = vmatpush1.msra.mxu0 %v5974
    %6086 = vmatprep.subr.mxu0 0.0
    %6087 = vmatpush1.msra.mxu0 %v5975
    %6088 = vmatprep.subr.mxu0 0.0
    %6089 = vmatpush1.msra.mxu0 %v5976
    %6090 = vmatprep.subr.mxu0 0.0
    %6091 = vmatpush1.msra.mxu0 %v5977
    %6092 = vmatprep.subr.mxu0 0.0
    %6093 = vmatpush1.msra.mxu0 %v5978
    %6094 = vmatprep.subr.mxu0 0.0
    %6095 = vmatpush1.msra.mxu0 %v5979
    %6096 = vmatprep.subr.mxu0 0.0
    %6097 = vmatpush1.msra.mxu0 %v5980
    %6098 = vmatprep.mubr.f32.mxu0 %v6021
    %6099 = vmatmul.mubr.f32.gmra.mrb[0].mxu0 %v6017
    %v6100 = vpop.f32.mrb[0].mxu0
    %v6101 = vadd.f32 0.0, %v6100
    %v6102 = vpop.f32.mrb[0].mxu0
    %6103 = vdwg.mxu0
    %6104 = vmatprep.subr.mxu0 0.0
    %6105 = vmatpush1.msra.mxu0 %v5981
    %6106 = vmatprep.subr.mxu0 0.0
    %6107 = vmatpush1.msra.mxu0 %v5982
    %6108 = vmatprep.subr.mxu0 0.0
    %6109 = vmatpush1.msra.mxu0 %v5983
    %6110 = vmatprep.subr.mxu0 0.0
    %6111 = vmatpush1.msra.mxu0 %v5984
    %6112 = vmatprep.subr.mxu0 0.0
    %6113 = vmatpush1.msra.mxu0 %v5985
    %6114 = vmatprep.subr.mxu0 0.0
    %6115 = vmatpush1.msra.mxu0 %v5986
    %6116 = vmatprep.subr.mxu0 0.0
    %6117 = vmatpush1.msra.mxu0 %v5987
    %6118 = vmatprep.subr.mxu0 0.0
    %6119 = vmatpush1.msra.mxu0 %v5988
    %6120 = vmatprep.subr.mxu0 0.0
    %6121 = vmatpush1.msra.mxu0 %v5989
    %6122 = vmatprep.subr.mxu0 0.0
    %6123 = vmatpush1.msra.mxu0 %v5990
    %6124 = vmatprep.subr.mxu0 0.0
    %6125 = vmatpush1.msra.mxu0 %v5991
    %6126 = vmatprep.subr.mxu0 0.0
    %6127 = vmatpush1.msra.mxu0 %v5992
    %6128 = vmatprep.subr.mxu0 0.0
    %6129 = vmatpush1.msra.mxu0 %v5993
    %6130 = vmatprep.subr.mxu0 0.0
    %6131 = vmatpush1.msra.mxu0 %v5994
    %6132 = vmatprep.subr.mxu0 0.0
    %6133 = vmatpush1.msra.mxu0 %v5995
    %6134 = vmatprep.subr.mxu0 0.0
    %6135 = vmatpush1.msra.mxu0 %v5996
    %6136 = vmatprep.subr.mxu0 0.0
    %6137 = vmatpush1.msra.mxu0 %v5997
    %6138 = vmatprep.subr.mxu0 0.0
    %6139 = vmatpush1.msra.mxu0 %v5998
    %6140 = vmatprep.subr.mxu0 0.0
    %6141 = vmatpush1.msra.mxu0 %v5999
    %6142 = vmatprep.subr.mxu0 0.0
    %6143 = vmatpush1.msra.mxu0 %v6000
    %6144 = vmatprep.subr.mxu0 0.0
    %6145 = vmatpush1.msra.mxu0 %v6001
    %6146 = vmatprep.subr.mxu0 0.0
    %6147 = vmatpush1.msra.mxu0 %v6002
    %6148 = vmatprep.subr.mxu0 0.0
    %6149 = vmatpush1.msra.mxu0 %v6003
    %6150 = vmatprep.subr.mxu0 0.0
    %6151 = vmatpush1.msra.mxu0 %v6004
    %6152 = vmatprep.subr.mxu0 0.0
    %6153 = vmatpush1.msra.mxu0 %v6005
    %6154 = vmatprep.subr.mxu0 0.0
    %6155 = vmatpush1.msra.mxu0 %v6006
    %6156 = vmatprep.subr.mxu0 0.0
    %6157 = vmatpush1.msra.mxu0 %v6007
    %6158 = vmatprep.subr.mxu0 0.0
    %6159 = vmatpush1.msra.mxu0 %v6008
    %6160 = vmatprep.subr.mxu0 0.0
    %6161 = vmatpush1.msra.mxu0 %v6009
    %6162 = vmatprep.subr.mxu0 0.0
    %6163 = vmatpush1.msra.mxu0 %v6010
    %6164 = vmatprep.subr.mxu0 0.0
    %6165 = vmatpush1.msra.mxu0 %v6011
    %6166 = vmatprep.subr.mxu0 0.0
    %6167 = vmatpush1.msra.mxu0 %v6012
    %6168 = vmatprep.mubr.f32.mxu0 %v6029
    %6169 = vmatmul.mubr.f32.gmra.mrb[0].mxu0 %v6025
    %v6170 = vpop.f32.mrb[0].mxu0
    %v6171 = vadd.f32 %v6101, %v6170
    %v6172 = vpop.f32.mrb[0].mxu0
    %6173 = vdwg.mxu0
    %v6174 = vld [vmem:[#allocation4 + $0x7] sm:$0x1]
    %v6175 = vld [vmem:[%s7] sm:$0xff]
    %v6176 = vld [vmem:[%s7 + $0x8] sm:$0xff]
    %v6177 = vld [vmem:[%s7 + $0x10] sm:$0xff]
    %v6178 = vld [vmem:[%s7 + $0x18] sm:$0xff]
    %v6180 = vsel %vm121, %v6171, 0
    %6182 = vmatprep.subr.mxu0 0.0
    %6183 = vmatpush1.msra.mxu0 %v6175
    %6184 = vmatprep.subr.mxu0 0.0
    %6185 = vmatpush1.msra.mxu0 %v6176
    %6186 = vmatprep.subr.mxu0 0.0
    %6187 = vmatpush1.msra.mxu0 %v6177
    %6188 = vmatprep.subr.mxu0 0.0
    %6189 = vmatpush1.msra.mxu0 %v6178
    %6190 = vmatprep.subr.mxu0 0.0
    %6191 = vmatpush1.msra.mxu0 0.0
    %6192 = vmatprep.subr.mxu0 0.0
    %6193 = vmatpush1.msra.mxu0 0.0
    %6194 = vmatprep.subr.mxu0 0.0
    %6195 = vmatpush1.msra.mxu0 0.0
    %6196 = vmatprep.subr.mxu0 0.0
    %6197 = vmatpush1.msra.mxu0 0.0
    %6198 = vmatprep.subr.mxu0 0.0
    %6199 = vmatpush1.msra.mxu0 0.0
    %6200 = vmatprep.subr.mxu0 0.0
    %6201 = vmatpush1.msra.mxu0 0.0
    %6202 = vmatprep.subr.mxu0 0.0
    %6203 = vmatpush1.msra.mxu0 0.0
    %6204 = vmatprep.subr.mxu0 0.0
    %6205 = vmatpush1.msra.mxu0 0.0
    %6206 = vmatprep.subr.mxu0 0.0
    %6207 = vmatpush1.msra.mxu0 0.0
    %6208 = vmatprep.subr.mxu0 0.0
    %6209 = vmatpush1.msra.mxu0 0.0
    %6210 = vmatprep.subr.mxu0 0.0
    %6211 = vmatpush1.msra.mxu0 0.0
    %6212 = vmatprep.subr.mxu0 0.0
    %6213 = vmatpush1.msra.mxu0 0.0
    %6214 = vmatprep.subr.mxu0 0.0
    %6215 = vmatpush1.msra.mxu0 0.0
    %6216 = vmatprep.subr.mxu0 0.0
    %6217 = vmatpush1.msra.mxu0 0.0
    %6218 = vmatprep.subr.mxu0 0.0
    %6219 = vmatpush1.msra.mxu0 0.0
    %6220 = vmatprep.subr.mxu0 0.0
    %6221 = vmatpush1.msra.mxu0 0.0
    %6222 = vmatprep.subr.mxu0 0.0
    %6223 = vmatpush1.msra.mxu0 0.0
    %6224 = vmatprep.subr.mxu0 0.0
    %6225 = vmatpush1.msra.mxu0 0.0
    %6226 = vmatprep.subr.mxu0 0.0
    %6227 = vmatpush1.msra.mxu0 0.0
    %6228 = vmatprep.subr.mxu0 0.0
    %6229 = vmatpush1.msra.mxu0 0.0
    %6230 = vmatprep.subr.mxu0 0.0
    %6231 = vmatpush1.msra.mxu0 0.0
    %6232 = vmatprep.subr.mxu0 0.0
    %6233 = vmatpush1.msra.mxu0 0.0
    %6234 = vmatprep.subr.mxu0 0.0
    %6235 = vmatpush1.msra.mxu0 0.0
    %6236 = vmatprep.subr.mxu0 0.0
    %6237 = vmatpush1.msra.mxu0 0.0
    %6238 = vmatprep.subr.mxu0 0.0
    %6239 = vmatpush1.msra.mxu0 0.0
    %6240 = vmatprep.subr.mxu0 0.0
    %6241 = vmatpush1.msra.mxu0 0.0
    %6242 = vmatprep.subr.mxu0 0.0
    %6243 = vmatpush1.msra.mxu0 0.0
    %6244 = vmatprep.subr.mxu0 0.0
    %6245 = vmatpush1.msra.mxu0 0.0
    %6246 = vmatprep.mubr.f32.mxu0 0.0
    %6247 = vmatmul.mubr.f32.gmra.mrb[0].mxu0 %v6180
    %v6248 = vpop.f32.mrb[0].mxu0
    %v6249 = vadd.f32 0.0, %v6248
    %v6250 = vpop.f32.mrb[0].mxu0
    %6251 = vdwg.mxu0
    %v6252 = vadd.f32 %v6174, %v6249
    %v6253 = vmax.f32 %v6252, 0.0
    %v6254 = vld [vmem:[%s8] sm:$0xff]
    %v6255 = vld [vmem:[%s8 + $0x8] sm:$0xff]
    %v6256 = vld [vmem:[%s8 + $0x10] sm:$0xff]
    %v6257 = vld [vmem:[%s8 + $0x18] sm:$0xff]
    %v6258 = vld [vmem:[%s9] sm:$0xff]
    %v6259 = vld [vmem:[%s9 + $0x8] sm:$0xff]
    %v6260 = vld [vmem:[%s9 + $0x10] sm:$0xff]
    %v6261 = vld [vmem:[%s9 + $0x18] sm:$0xff]
    %6262 = vmatprep.subr.mxu0 0.0
    %6263 = vmatpush1.msra.mxu0 %v6258
    %6264 = vmatprep.subr.mxu0 0.0
    %6265 = vmatpush1.msra.mxu0 %v6259
    %6266 = vmatprep.subr.mxu0 0.0
    %6267 = vmatpush1.msra.mxu0 %v6260
    %6268 = vmatprep.subr.mxu0 0.0
    %6269 = vmatpush1.msra.mxu0 %v6261
    %6270 = vmatprep.subr.mxu0 0.0
    %6271 = vmatpush1.msra.mxu0 0.0
    %6272 = vmatprep.subr.mxu0 0.0
    %6273 = vmatpush1.msra.mxu0 0.0
    %6274 = vmatprep.subr.mxu0 0.0
    %6275 = vmatpush1.msra.mxu0 0.0
    %6276 = vmatprep.subr.mxu0 0.0
    %6277 = vmatpush1.msra.mxu0 0.0
    %6278 = vmatprep.subr.mxu0 0.0
    %6279 = vmatpush1.msra.mxu0 0.0
    %6280 = vmatprep.subr.mxu0 0.0
    %6281 = vmatpush1.msra.mxu0 0.0
    %6282 = vmatprep.subr.mxu0 0.0
    %6283 = vmatpush1.msra.mxu0 0.0
    %6284 = vmatprep.subr.mxu0 0.0
    %6285 = vmatpush1.msra.mxu0 0.0
    %6286 = vmatprep.subr.mxu0 0.0
    %6287 = vmatpush1.msra.mxu0 0.0
    %6288 = vmatprep.subr.mxu0 0.0
    %6289 = vmatpush1.msra.mxu0 0.0
    %6290 = vmatprep.subr.mxu0 0.0
    %6291 = vmatpush1.msra.mxu0 0.0
    %6292 = vmatprep.subr.mxu0 0.0
    %6293 = vmatpush1.msra.mxu0 0.0
    %6294 = vmatprep.subr.mxu0 0.0
    %6295 = vmatpush1.msra.mxu0 0.0
    %6296 = vmatprep.subr.mxu0 0.0
    %6297 = vmatpush1.msra.mxu0 0.0
    %6298 = vmatprep.subr.mxu0 0.0
    %6299 = vmatpush1.msra.mxu0 0.0
    %6300 = vmatprep.subr.mxu0 0.0
    %6301 = vmatpush1.msra.mxu0 0.0
    %6302 = vmatprep.subr.mxu0 0.0
    %6303 = vmatpush1.msra.mxu0 0.0
    %6304 = vmatprep.subr.mxu0 0.0
    %6305 = vmatpush1.msra.mxu0 0.0
    %6306 = vmatprep.subr.mxu0 0.0
    %6307 = vmatpush1.msra.mxu0 0.0
    %6308 = vmatprep.subr.mxu0 0.0
    %6309 = vmatpush1.msra.mxu0 0.0
    %6310 = vmatprep.subr.mxu0 0.0
    %6311 = vmatpush1.msra.mxu0 0.0
    %6312 = vmatprep.subr.mxu0 0.0
    %6313 = vmatpush1.msra.mxu0 0.0
    %6314 = vmatprep.subr.mxu0 0.0
    %6315 = vmatpush1.msra.mxu0 0.0
    %6316 = vmatprep.subr.mxu0 0.0
    %6317 = vmatpush1.msra.mxu0 0.0
    %6318 = vmatprep.subr.mxu0 0.0
    %6319 = vmatpush1.msra.mxu0 0.0
    %6320 = vmatprep.subr.mxu0 0.0
    %6321 = vmatpush1.msra.mxu0 0.0
    %6322 = vmatprep.subr.mxu0 0.0
    %6323 = vmatpush1.msra.mxu0 0.0
    %6324 = vmatprep.subr.mxu0 0.0
    %6325 = vmatpush1.msra.mxu0 0.0
    %6326 = vmatprep.mubr.f32.mxu0 0.0
    %6327 = vmatmul.mubr.f32.gmra.mrb[0].mxu0 %v5695
    %v6328 = vpop.f32.mrb[0].mxu0
    %v6329 = vadd.f32 0.0, %v6328
    %v6330 = vpop.f32.mrb[0].mxu0
    %6331 = vdwg.mxu0
    %v6333 = vsel %vm121, %v6253, 0
    %6335 = vmatprep.subr.mxu0 0.0
    %6336 = vmatpush1.msra.mxu0 %v6254
    %6337 = vmatprep.subr.mxu0 0.0
    %6338 = vmatpush1.msra.mxu0 %v6255
    %6339 = vmatprep.subr.mxu0 0.0
    %6340 = vmatpush1.msra.mxu0 %v6256
    %6341 = vmatprep.subr.mxu0 0.0
    %6342 = vmatpush1.msra.mxu0 %v6257
    %6343 = vmatprep.subr.mxu0 0.0
    %6344 = vmatpush1.msra.mxu0 0.0
    %6345 = vmatprep.subr.mxu0 0.0
    %6346 = vmatpush1.msra.mxu0 0.0
    %6347 = vmatprep.subr.mxu0 0.0
    %6348 = vmatpush1.msra.mxu0 0.0
    %6349 = vmatprep.subr.mxu0 0.0
    %6350 = vmatpush1.msra.mxu0 0.0
    %6351 = vmatprep.subr.mxu0 0.0
    %6352 = vmatpush1.msra.mxu0 0.0
    %6353 = vmatprep.subr.mxu0 0.0
    %6354 = vmatpush1.msra.mxu0 0.0
    %6355 = vmatprep.subr.mxu0 0.0
    %6356 = vmatpush1.msra.mxu0 0.0
    %6357 = vmatprep.subr.mxu0 0.0
    %6358 = vmatpush1.msra.mxu0 0.0
    %6359 = vmatprep.subr.mxu0 0.0
    %6360 = vmatpush1.msra.mxu0 0.0
    %6361 = vmatprep.subr.mxu0 0.0
    %6362 = vmatpush1.msra.mxu0 0.0
    %6363 = vmatprep.subr.mxu0 0.0
    %6364 = vmatpush1.msra.mxu0 0.0
    %6365 = vmatprep.subr.mxu0 0.0
    %6366 = vmatpush1.msra.mxu0 0.0
    %6367 = vmatprep.subr.mxu0 0.0
    %6368 = vmatpush1.msra.mxu0 0.0
    %6369 = vmatprep.subr.mxu0 0.0
    %6370 = vmatpush1.msra.mxu0 0.0
    %6371 = vmatprep.subr.mxu0 0.0
    %6372 = vmatpush1.msra.mxu0 0.0
    %6373 = vmatprep.subr.mxu0 0.0
    %6374 = vmatpush1.msra.mxu0 0.0
    %6375 = vmatprep.subr.mxu0 0.0
    %6376 = vmatpush1.msra.mxu0 0.0
    %6377 = vmatprep.subr.mxu0 0.0
    %6378 = vmatpush1.msra.mxu0 0.0
    %6379 = vmatprep.subr.mxu0 0.0
    %6380 = vmatpush1.msra.mxu0 0.0
    %6381 = vmatprep.subr.mxu0 0.0
    %6382 = vmatpush1.msra.mxu0 0.0
    %6383 = vmatprep.subr.mxu0 0.0
    %6384 = vmatpush1.msra.mxu0 0.0
    %6385 = vmatprep.subr.mxu0 0.0
    %6386 = vmatpush1.msra.mxu0 0.0
    %6387 = vmatprep.subr.mxu0 0.0
    %6388 = vmatpush1.msra.mxu0 0.0
    %6389 = vmatprep.subr.mxu0 0.0
    %6390 = vmatpush1.msra.mxu0 0.0
    %6391 = vmatprep.subr.mxu0 0.0
    %6392 = vmatpush1.msra.mxu0 0.0
    %6393 = vmatprep.subr.mxu0 0.0
    %6394 = vmatpush1.msra.mxu0 0.0
    %6395 = vmatprep.subr.mxu0 0.0
    %6396 = vmatpush1.msra.mxu0 0.0
    %6397 = vmatprep.subr.mxu0 0.0
    %6398 = vmatpush1.msra.mxu0 0.0
    %6399 = vmatprep.mubr.f32.mxu0 0.0
    %6400 = vmatmul.mubr.f32.gmra.mrb[0].mxu0 %v6333
    %v6401 = vpop.f32.mrb[0].mxu0
    %v6402 = vadd.f32 %v6329, %v6401
    %v6403 = vpop.f32.mrb[0].mxu0
    %6404 = vdwg.mxu0
    %v6405 = vadd.f32 %v6402, %v47
    %v6406 = vxor.u32 %v6405, 2147483648
    %v6407 = vmul.f32 %v6406, 1.442695
    %v6408 = vpow.pop %v6407
    %v6409 = vadd.f32 %v6408, 1.0
    %v6410 = vrcp.pop %v6409
    %v6411 = vmul.f32 1.0, %v6410
    %6413 = vrot.lane.b32.xlu0 %v6405, 32
    %v6414 = vpop.permute.xlu0 %6413
    %v6416 = vmul.f32 %v6411, %v6414
    %6418 = vrot.lane.b32.xlu0 %v6416, 64
    %v6419 = vpop.permute.xlu0 %6418
    %v6421 = vadd.f32 %v6405, %v6419
    %v6422 = vtanh.pop %v6421
    %v6423 = vsub.f32 1.0, %v6411
    %6425 = vrot.lane.b32.xlu0 %v6422, 96
    %v6426 = vpop.permute.xlu0 %6425
    %v6428 = vmul.f32 %v6423, %v6426
    %v6429 = vmul.f32 %v6411, %v5671
    %v6430 = vadd.f32 %v6428, %v6429
    %6432 = vrot.lane.b32.xlu0 %v6430, 96
    %v6433 = vpop.permute.xlu0 %6432
    %6435 = vst.msk [vmem:[#allocation5 + $0x7] sm:$0x1] %vm53, %v6433
    %v6436 = vld [vmem:[#allocation5] sm:$0xff]
    %v6437 = vld [vmem:[%s10] sm:$0xff]
    %v6438 = vld [vmem:[%s10 + $0x8] sm:$0xff]
    %v6439 = vld [vmem:[%s10 + $0x10] sm:$0xff]
    %v6440 = vld [vmem:[%s10 + $0x18] sm:$0xff]
    %v6442 = vlaneseq
    %v6443 = vshrl.u32 %v6442, 7
    %v6444 = vsub.s32 0, %v6443
    %v6445 = vrot.slane %v48, %v6444
    %v6448 = vsel %vm121, %v6436, 0
    %6450 = vmatprep.subr.mxu0 0.0
    %6451 = vmatpush1.msra.mxu0 %v6437
    %6452 = vmatprep.subr.mxu0 0.0
    %6453 = vmatpush1.msra.mxu0 %v6438
    %6454 = vmatprep.subr.mxu0 0.0
    %6455 = vmatpush1.msra.mxu0 %v6439
    %6456 = vmatprep.subr.mxu0 0.0
    %6457 = vmatpush1.msra.mxu0 %v6440
    %6458 = vmatprep.subr.mxu0 0.0
    %6459 = vmatpush1.msra.mxu0 0.0
    %6460 = vmatprep.subr.mxu0 0.0
    %6461 = vmatpush1.msra.mxu0 0.0
    %6462 = vmatprep.subr.mxu0 0.0
    %6463 = vmatpush1.msra.mxu0 0.0
    %6464 = vmatprep.subr.mxu0 0.0
    %6465 = vmatpush1.msra.mxu0 0.0
    %6466 = vmatprep.subr.mxu0 0.0
    %6467 = vmatpush1.msra.mxu0 0.0
    %6468 = vmatprep.subr.mxu0 0.0
    %6469 = vmatpush1.msra.mxu0 0.0
    %6470 = vmatprep.subr.mxu0 0.0
    %6471 = vmatpush1.msra.mxu0 0.0
    %6472 = vmatprep.subr.mxu0 0.0
    %6473 = vmatpush1.msra.mxu0 0.0
    %6474 = vmatprep.subr.mxu0 0.0
    %6475 = vmatpush1.msra.mxu0 0.0
    %6476 = vmatprep.subr.mxu0 0.0
    %6477 = vmatpush1.msra.mxu0 0.0
    %6478 = vmatprep.subr.mxu0 0.0
    %6479 = vmatpush1.msra.mxu0 0.0
    %6480 = vmatprep.subr.mxu0 0.0
    %6481 = vmatpush1.msra.mxu0 0.0
    %6482 = vmatprep.subr.mxu0 0.0
    %6483 = vmatpush1.msra.mxu0 0.0
    %6484 = vmatprep.subr.mxu0 0.0
    %6485 = vmatpush1.msra.mxu0 0.0
    %6486 = vmatprep.subr.mxu0 0.0
    %6487 = vmatpush1.msra.mxu0 0.0
    %6488 = vmatprep.subr.mxu0 0.0
    %6489 = vmatpush1.msra.mxu0 0.0
    %6490 = vmatprep.subr.mxu0 0.0
    %6491 = vmatpush1.msra.mxu0 0.0
    %6492 = vmatprep.subr.mxu0 0.0
    %6493 = vmatpush1.msra.mxu0 0.0
    %6494 = vmatprep.subr.mxu0 0.0
    %6495 = vmatpush1.msra.mxu0 0.0
    %6496 = vmatprep.subr.mxu0 0.0
    %6497 = vmatpush1.msra.mxu0 0.0
    %6498 = vmatprep.subr.mxu0 0.0
    %6499 = vmatpush1.msra.mxu0 0.0
    %6500 = vmatprep.subr.mxu0 0.0
    %6501 = vmatpush1.msra.mxu0 0.0
    %6502 = vmatprep.subr.mxu0 0.0
    %6503 = vmatpush1.msra.mxu0 0.0
    %6504 = vmatprep.subr.mxu0 0.0
    %6505 = vmatpush1.msra.mxu0 0.0
    %6506 = vmatprep.subr.mxu0 0.0
    %6507 = vmatpush1.msra.mxu0 0.0
    %6508 = vmatprep.subr.mxu0 0.0
    %6509 = vmatpush1.msra.mxu0 0.0
    %6510 = vmatprep.subr.mxu0 0.0
    %6511 = vmatpush1.msra.mxu0 0.0
    %6512 = vmatprep.subr.mxu0 0.0
    %6513 = vmatpush1.msra.mxu0 0.0
    %6514 = vmatprep.mubr.f32.mxu0 0.0
    %6515 = vmatmul.mubr.f32.gmra.mrb[0].mxu0 %v6448
    %v6516 = vpop.f32.mrb[0].mxu0
    %v6517 = vadd.f32 %v6445, %v6516
    %v6518 = vpop.f32.mrb[0].mxu0
    %6519 = vdwg.mxu0
    %vm6520 = vcmask 523264
    %v6521 = vsel %vm6520, %v6517, -inf
    %6522 = vmax.xlane.f32.xlu0 %v6521
    %v6523 = vpop.xlane.xlu0 %6522
    %v6524 = vsub.f32 %v6517, %v6523
    %v6525 = vmul.f32 %v6524, 1.442695
    %v6526 = vpow.pop %v6525
    %v6527 = vsel %vm6520, %v6526, 0.0
    %6528 = vadd.xlane.f32.xlu0 %v6527
    %v6529 = vpop.xlane.xlu0 %6528
    %v6530 = vlog2.pop %v6529
    %v6531 = vmul.f32 %v6530, 0.6931472
    %v6532 = vadd.f32 %v6523, %v6531
    %v6533 = vsub.f32 %v6517, %v6532
    %6534 = vrot.lane.b32.xlu0 %v6436, 64
    %v6535 = vpop.permute.xlu0 %6534
    %v6537 = vsel %vm6520, %v6533, %v6535
    %vm6538 = vcmask 785408
    %v6539 = vsel %vm6538, %v6537, 0.0
    %6540 = vst [vmem:[#allocation8 + $0x20] sm:$0xff] %v6539
    // Predicated region
    $region46: #{tpu_custom_call.1} parent=1 // pred_check
      _
    $region47: #{tpu_custom_call.1} parent=1 // pred_check_branch
      %6542 = sbr.rel (0) target = $region49
    $region48: #{tpu_custom_call.1} parent=1 // pred_region
      %s6544 = ssub.s32 640, 640
      %6545 = vsyncadd [#allocation9], %s6544
      %s6547 = sshll.u32 [#allocation8], 4
      %s6548 = int_to_ptr.vmem [resolvable:$true] %s6547
      %6550 = dma.vmem_to_hbm [thread:$0]  %s6548, 640, %s12, [#allocation9]
    $region49: #{tpu_custom_call.1} parent=1 // pred_fallthru
      _
    // Predicated region
    $region50: #{tpu_custom_call.1} parent=1 // pred_check
      _
    $region51: #{tpu_custom_call.1} parent=1 // pred_check_branch
      %6552 = sbr.rel (0) target = $region53
    $region52: #{tpu_custom_call.1} parent=1 // pred_region
      %6553 = dma.done [#allocation9], 640
    $region53: #{tpu_custom_call.1} parent=1 // pred_fallthru
      _
    %6554 = vsyncpa [#allocation9], 1

</llo_original>
